<compile_context>
chip_gen: v5e
topology: v5e:2x2
jax: 0.10.0
libtpu: 0.0.40
codegen_flags: <defaults>
</compile_context>

<pallas_src>
import functools
import math

import jax
import jax.numpy as jnp
from jax.experimental import pallas as pl
from jax.experimental.pallas import tpu as pltpu

LANE = 128


def _round_up(x, m):
    return ((x + m - 1) // m) * m


def _pad_to(x, rows, cols):
    return jnp.pad(x, ((0, rows - x.shape[0]), (0, cols - x.shape[1])))


def _largest_divisor_tile(np_, target):
    """Largest multiple of LANE that divides np_ and is <= max(target, LANE)."""
    target = max(LANE, min(int(target), np_))
    t = (target // LANE) * LANE
    while np_ % t:
        t -= LANE
    return t


def _choose_tiles(n, tm, tk):
    """Padded node count Np (multiple of LANE) and tile sizes dividing it."""
    np_ = _round_up(max(n, LANE), LANE)
    tk = _largest_divisor_tile(np_, tk)
    tm = _largest_divisor_tile(np_, tm)
    # Megacore (v7x): keep >= 2 row tiles so the "parallel" row axis can split
    # across both TensorCores instead of idling one of them.
    if np_ // tm < 2 and np_ >= 2 * LANE:
        tm = _largest_divisor_tile(np_, np_ // 2)
    return np_, tm, tk


def _vmem_cap_bytes():
    """Generation-aware VMEM ceiling (v5e/v6e: 128 MiB, v7x: 64 MiB per TC)."""
    try:
        phys = pltpu.get_tpu_info().vmem_capacity_bytes
        return int(min(phys * 3 // 4, 96 << 20))
    except Exception:
        return 48 << 20   # safe on every generation (v7x has 64 MiB physical)


def _sage_kernel_resident(a_ref, h_ref, ws_ref, wn_ref, b_ref, o_ref, acc_ref,
                          *, apply_relu, tm, tk):
    """One (row-tile i, contraction-tile k) step; H fully resident in VMEM.

    a_ref  : (TM, TK) bf16  A[i-tile, k-tile] (row-normalized adjacency)
    h_ref  : (Np, Dp) bf16  all node features, resident in VMEM
    ws_ref : (Dp, Dq) bf16  W_self
    wn_ref : (Dp, Dq) bf16  W_neigh
    b_ref  : (1,  Dq) f32   bias
    o_ref  : (TM, Dq) f32/bf16 output rows for tile i
    acc_ref: (TM, Dp) f32   neighbor-aggregation accumulator (VMEM scratch)
    """
    i = pl.program_id(0)
    k = pl.program_id(1)

    @pl.when(k == 0)
    def _init():
        acc_ref[...] = jnp.zeros_like(acc_ref)

    # Mean aggregation: acc += A[i, k] @ H[k]  (bf16 x bf16 -> f32 on the MXU).
    k_off = pl.multiple_of(k * tk, tk)
    acc_ref[...] += jnp.dot(a_ref[...], h_ref[pl.ds(k_off, tk), :],
                            preferred_element_type=jnp.float32)

    # Epilogue (projections + bias + relu + store) once per row tile, so the
    # inner k loop is pure MXU + A-tile DMA.
    @pl.when(k == pl.num_programs(1) - 1)
    def _finalize():
        i_off = pl.multiple_of(i * tm, tm)
        hi = h_ref[pl.ds(i_off, tm), :]
        out = (
            jnp.dot(hi, ws_ref[...], preferred_element_type=jnp.float32)
            + jnp.dot(acc_ref[...].astype(jnp.bfloat16), wn_ref[...],
                      preferred_element_type=jnp.float32)
            + b_ref[...]
        )
        if apply_relu:
            out = jnp.maximum(out, 0.0)
        o_ref[...] = out.astype(o_ref.dtype)


def _sage_kernel_streamed(a_ref, hk_ref, hi_ref, ws_ref, wn_ref, b_ref, o_ref,
                          acc_ref, *, apply_relu):
    """Fallback for graphs whose H does not fit VMEM: H[k]/H[i] are streamed."""
    k = pl.program_id(1)

    @pl.when(k == 0)
    def _init():
        acc_ref[...] = jnp.zeros_like(acc_ref)

    acc_ref[...] += jnp.dot(a_ref[...], hk_ref[...],
                            preferred_element_type=jnp.float32)

    @pl.when(k == pl.num_programs(1) - 1)
    def _finalize():
        out = (
            jnp.dot(hi_ref[...], ws_ref[...], preferred_element_type=jnp.float32)
            + jnp.dot(acc_ref[...].astype(jnp.bfloat16), wn_ref[...],
                      preferred_element_type=jnp.float32)
            + b_ref[...]
        )
        if apply_relu:
            out = jnp.maximum(out, 0.0)
        o_ref[...] = out.astype(o_ref.dtype)


def sage_conv_layer(A, H, W_self, W_neigh, bias, *, apply_relu, out_dtype,
                    tm, tk, resident_h=None):
    """One SAGEConv('mean') layer as a fused, tiled Pallas kernel.

    A:       (Np, Np) bf16  row-normalized adjacency (zero-padded)
    H:       (Np, Dp) bf16  node features (lane-padded)
    W_self:  (Dp, Dq) bf16
    W_neigh: (Dp, Dq) bf16
    bias:    (1,  Dq) f32
    Np divisible by tm and tk; Dp, Dq multiples of 128.
    """
    np_, dp = H.shape
    dq = W_self.shape[1]
    assert np_ % tm == 0 and np_ % tk == 0, (np_, tm, tk)

    if resident_h is None:
        # Count a possible double-buffer on the (constant-index) H block.
        resident_h = 2 * np_ * dp * H.dtype.itemsize <= (16 << 20)

    grid = (np_ // tm, np_ // tk)

    a_spec = pl.BlockSpec((tm, tk), lambda i, k: (i, k))        # A tile
    w_spec = pl.BlockSpec((dp, dq), lambda i, k: (0, 0))        # weights
    b_spec = pl.BlockSpec((1, dq), lambda i, k: (0, 0))         # bias
    out_spec = pl.BlockSpec((tm, dq), lambda i, k: (i, 0))      # output rows

    if resident_h:
        kernel = functools.partial(_sage_kernel_resident,
                                   apply_relu=apply_relu, tm=tm, tk=tk)
        in_specs = [
            a_spec,
            pl.BlockSpec((np_, dp), lambda i, k: (0, 0)),       # H resident
            w_spec, w_spec, b_spec,
        ]
        inputs = (A, H, W_self, W_neigh, bias)
        h_vmem = 2 * np_ * dp * H.dtype.itemsize
    else:
        kernel = functools.partial(_sage_kernel_streamed, apply_relu=apply_relu)
        in_specs = [
            a_spec,
            pl.BlockSpec((tk, dp), lambda i, k: (k, 0)),        # H[k] neighbors
            pl.BlockSpec((tm, dp), lambda i, k: (i, 0)),        # H[i] self
            w_spec, w_spec, b_spec,
        ]
        inputs = (A, H, H, W_self, W_neigh, bias)               # H passed twice
        h_vmem = 2 * (tk + tm) * dp * H.dtype.itemsize

    # Working set (double-buffered inputs/outputs + scratch), then clamp by a
    # generation-aware cap so we never exceed v7x's 64 MiB/TC physical VMEM.
    need = (2 * tm * tk * A.dtype.itemsize
            + h_vmem
            + 2 * 2 * dp * dq * 2 + 2 * dq * 4
            + 2 * tm * dq * jnp.dtype(out_dtype).itemsize
            + tm * dp * 4)
    vmem_limit = int(min(max(need * 3 // 2 + (4 << 20), 32 << 20),
                         _vmem_cap_bytes()))

    return pl.pallas_call(
        kernel,
        out_shape=jax.ShapeDtypeStruct((np_, dq), out_dtype),
        grid_spec=pltpu.PrefetchScalarGridSpec(
            num_scalar_prefetch=0,
            grid=grid,
            in_specs=in_specs,
            out_specs=out_spec,
            scratch_shapes=[pltpu.VMEM((tm, dp), jnp.float32)],
        ),
        compiler_params=pltpu.CompilerParams(
            dimension_semantics=("parallel", "arbitrary"),
            vmem_limit_bytes=vmem_limit,
        ),
    )(*inputs)


def init_sageprop_params(key, input_dim, hidden, classes, num_layer):
    """Deterministic parameter init matching the SAGEConv layer shapes."""
    params = []
    for i in range(num_layer):
        in_feat = input_dim if i == 0 else hidden
        out_feat = hidden if i < num_layer - 1 else classes
        key, k1, k2 = jax.random.split(key, 3)
        scale = 1.0 / math.sqrt(in_feat)
        w_self = jax.random.uniform(k1, (in_feat, out_feat), jnp.float32,
                                    -scale, scale)
        w_neigh = jax.random.uniform(k2, (in_feat, out_feat), jnp.float32,
                                     -scale, scale)
        b = jnp.zeros((1, out_feat), jnp.float32)
        params.append((w_self, w_neigh, b))
    return params


def sageprop_forward(A, feats, params, *, activation=True, tm=512, tk=2048,
                     resident_h=None):
    """SAGEprop.forward in eval mode (dropout = identity)."""
    n, in_dim = feats.shape
    np_, tm, tk = _choose_tiles(n, tm, tk)

    # Wrapper-side layout plumbing: zero-pad A to (Np, Np), features to 128
    # lanes, cast the streaming operands to bf16 (fp32 accumulation in-kernel).
    # Padded rows/cols are zero, so results are unchanged.
    a_bf = _pad_to(A.astype(jnp.bfloat16), np_, np_)
    h = _pad_to(feats, np_, _round_up(in_dim, LANE)).astype(jnp.bfloat16)

    num_layer = len(params)
    for j, (w_self, w_neigh, b) in enumerate(params):
        din, dout = w_self.shape
        dp, dq = _round_up(din, LANE), _round_up(dout, LANE)
        ws = _pad_to(w_self, dp, dq).astype(jnp.bfloat16)
        wn = _pad_to(w_neigh, dp, dq).astype(jnp.bfloat16)
        bp = _pad_to(b, 1, dq)
        last = j == num_layer - 1
        h = sage_conv_layer(
            a_bf, h, ws, wn, bp,
            apply_relu=activation and not last,
            out_dtype=jnp.float32 if last else jnp.bfloat16,  # bf16 from kernel
            tm=tm, tk=tk, resident_h=resident_h)

    out_feat = params[-1][0].shape[1]
    return h[:n, :out_feat]


def _reference_forward(A, feats, params, *, activation=True):
    """Pure-JAX fp32 reference (full-precision matmuls) for correctness."""
    hp = jax.lax.Precision.HIGHEST
    h = feats
    num_layer = len(params)
    for j, (w_self, w_neigh, b) in enumerate(params):
        neigh = jnp.dot(A, h, precision=hp)
        h = (jnp.dot(h, w_self, precision=hp)
             + jnp.dot(neigh, w_neigh, precision=hp) + b)
        if activation and j < num_layer - 1:
            h = jnp.maximum(h, 0.0)
    return h


if __name__ == "__main__":
    # Small, module-consistent shapes.
    N = 1024
    input_dim = 32
    hidden = 32
    classes = 8
    num_layer = 3

    key = jax.random.PRNGKey(0)
    k_feat, k_adj, k_param = jax.random.split(key, 3)

    feats = jax.random.normal(k_feat, (N, input_dim), jnp.float32)

    # Deterministic random graph -> dense mean-normalized adjacency.
    adj = (jax.random.uniform(k_adj, (N, N)) < 0.05).astype(jnp.float32)
    adj = adj * (1.0 - jnp.eye(N, dtype=jnp.float32))  # no self loops
    in_deg = jnp.maximum(adj.sum(axis=1, keepdims=True), 1.0)
    A = adj / in_deg

    params = init_sageprop_params(k_param, input_dim, hidden, classes, num_layer)

    ref = jax.block_until_ready(
        _reference_forward(A, feats, params, activation=True))

    # 1) Default path: resident H in VMEM, large tiles (grid = (2, 1) here).
    fwd = jax.jit(functools.partial(sageprop_forward, activation=True))
    out = jax.block_until_ready(fwd(A, feats, params))
    assert out.shape == (N, classes), out.shape
    max_err = float(jnp.max(jnp.abs(out - ref)))
    assert jnp.allclose(out, ref, atol=5e-2, rtol=5e-2), (
        f"resident-H path mismatch vs reference (max abs err {max_err})")

    # 2) Streamed-H fallback with a multi-step contraction (grid = (4, 4)),
    #    exercising the k-accumulator path and the H-passed-twice spec fix.
    fwd2 = jax.jit(functools.partial(sageprop_forward, activation=True,
                                     tm=256, tk=256, resident_h=False))
    out2 = jax.block_until_ready(fwd2(A, feats, params))
    max_err2 = float(jnp.max(jnp.abs(out2 - ref)))
    assert jnp.allclose(out2, ref, atol=5e-2, rtol=5e-2), (
        f"streamed-H path mismatch vs reference (max abs err {max_err2})")

    print("KERNEL_OK")
</pallas_src>

<mosaic_0001>
module attributes {stable_mosaic.version = 11 : i64} {
  func.func @_sage_kernel_resident(%arg0: i32, %arg1: i32, %arg2: memref<512x1024xbf16, #tpu.memory_space<vmem>>, %arg3: memref<1024x128xbf16, #tpu.memory_space<vmem>>, %arg4: memref<128x128xbf16, #tpu.memory_space<vmem>>, %arg5: memref<128x128xbf16, #tpu.memory_space<vmem>>, %arg6: memref<1x128xf32, #tpu.memory_space<vmem>>, %arg7: memref<512x128xbf16, #tpu.memory_space<vmem>>, %arg8: memref<512x128xf32, #tpu.memory_space<vmem>>) attributes {dimension_semantics = [#tpu.dimension_semantics<parallel>, #tpu.dimension_semantics<arbitrary>], iteration_bounds = array<i64: 2, 1>, scalar_prefetch = 0 : i64, scratch_operands = 1 : i64, tpu.core_type = #tpu.core_type<tc>, window_params = [{transform_indices = @transform_0, window_bounds = array<i64: 512, 1024>}, {pipeline_mode = #tpu.pipeline_mode<synchronous>, transform_indices = @transform_1, window_bounds = array<i64: 1024, 128>}, {pipeline_mode = #tpu.pipeline_mode<synchronous>, transform_indices = @transform_2, window_bounds = array<i64: 128, 128>}, {pipeline_mode = #tpu.pipeline_mode<synchronous>, transform_indices = @transform_3, window_bounds = array<i64: 128, 128>}, {pipeline_mode = #tpu.pipeline_mode<synchronous>, transform_indices = @transform_4, window_bounds = array<i64: 1, 128>}, {transform_indices = @transform_5, window_bounds = array<i64: 512, 128>}]} {
    %c0_i32 = arith.constant 0 : i32
    %0 = arith.cmpi eq, %arg1, %c0_i32 : i32
    %1 = arith.extui %0 : i1 to i32
    %c0_i32_0 = arith.constant 0 : i32
    %2 = arith.cmpi ne, %1, %c0_i32_0 : i32
    scf.if %2 {
      %cst_9 = arith.constant 0.000000e+00 : f32
      %15 = vector.broadcast %cst_9 : f32 to vector<512x128xf32>
      %c0_10 = arith.constant 0 : index
      %c0_11 = arith.constant 0 : index
      %16 = vector.load %arg8[%c0_10, %c0_11] : memref<512x128xf32, #tpu.memory_space<vmem>>, vector<512x128xf32>
      tpu.vector_store %arg8[%c0_10, %c0_11], %15 {strides = array<i32>} : memref<512x128xf32, #tpu.memory_space<vmem>>, vector<512x128xf32>,
    } else {
    }
    %c1024_i32 = arith.constant 1024 : i32
    %3 = arith.muli %arg1, %c1024_i32 : i32
    %4 = tpu.assume_multiple %3, 1024 : i32
    %c0 = arith.constant 0 : index
    %c0_1 = arith.constant 0 : index
    %5 = vector.load %arg8[%c0, %c0_1] : memref<512x128xf32, #tpu.memory_space<vmem>>, vector<512x128xf32>
    %c0_2 = arith.constant 0 : index
    %c0_3 = arith.constant 0 : index
    %6 = vector.load %arg2[%c0_2, %c0_3] : memref<512x1024xbf16, #tpu.memory_space<vmem>>, vector<512x1024xbf16>
    %7 = arith.index_cast %4 : i32 to index
    %c0_4 = arith.constant 0 : index
    %8 = vector.load %arg3[%7, %c0_4] : memref<1024x128xbf16, #tpu.memory_space<vmem>>, vector<1024x128xbf16>
    %cst = arith.constant dense<0.000000e+00> : vector<512x128xf32>
    %9 = tpu.matmul %6, %8, %cst {dimension_numbers = #tpu.dot_dimension_numbers<[1], [0], [0], [1], [0, 0, 1, 1], [], []>} : vector<512x1024xbf16>, vector<1024x128xbf16>, vector<512x128xf32> -> vector<512x128xf32>
    %10 = arith.addf %5, %9 : vector<512x128xf32>
    %c0_5 = arith.constant 0 : index
    %c0_6 = arith.constant 0 : index
    %11 = vector.load %arg8[%c0_5, %c0_6] : memref<512x128xf32, #tpu.memory_space<vmem>>, vector<512x128xf32>
    tpu.vector_store %arg8[%c0_5, %c0_6], %10 {strides = array<i32>} : memref<512x128xf32, #tpu.memory_space<vmem>>, vector<512x128xf32>,
    %c0_i32_7 = arith.constant 0 : i32
    %12 = arith.cmpi eq, %arg1, %c0_i32_7 : i32
    %13 = arith.extui %12 : i1 to i32
    %c0_i32_8 = arith.constant 0 : i32
    %14 = arith.cmpi ne, %13, %c0_i32_8 : i32
    scf.if %14 {
      %c512_i32 = arith.constant 512 : i32
      %15 = arith.muli %arg0, %c512_i32 : i32
      %16 = tpu.assume_multiple %15, 512 : i32
      %17 = arith.index_cast %16 : i32 to index
      %c0_9 = arith.constant 0 : index
      %18 = vector.load %arg3[%17, %c0_9] : memref<1024x128xbf16, #tpu.memory_space<vmem>>, vector<512x128xbf16>
      %c0_10 = arith.constant 0 : index
      %c0_11 = arith.constant 0 : index
      %19 = vector.load %arg4[%c0_10, %c0_11] : memref<128x128xbf16, #tpu.memory_space<vmem>>, vector<128x128xbf16>
      %cst_12 = arith.constant dense<0.000000e+00> : vector<512x128xf32>
      %20 = tpu.matmul %18, %19, %cst_12 {dimension_numbers = #tpu.dot_dimension_numbers<[1], [0], [0], [1], [0, 0, 1, 1], [], []>} : vector<512x128xbf16>, vector<128x128xbf16>, vector<512x128xf32> -> vector<512x128xf32>
      %c0_13 = arith.constant 0 : index
      %c0_14 = arith.constant 0 : index
      %21 = vector.load %arg8[%c0_13, %c0_14] : memref<512x128xf32, #tpu.memory_space<vmem>>, vector<512x128xf32>
      %22 = arith.truncf %21 : vector<512x128xf32> to vector<512x128xbf16>
      %c0_15 = arith.constant 0 : index
      %c0_16 = arith.constant 0 : index
      %23 = vector.load %arg5[%c0_15, %c0_16] : memref<128x128xbf16, #tpu.memory_space<vmem>>, vector<128x128xbf16>
      %cst_17 = arith.constant dense<0.000000e+00> : vector<512x128xf32>
      %24 = tpu.matmul %22, %23, %cst_17 {dimension_numbers = #tpu.dot_dimension_numbers<[1], [0], [0], [1], [0, 0, 1, 1], [], []>} : vector<512x128xbf16>, vector<128x128xbf16>, vector<512x128xf32> -> vector<512x128xf32>
      %25 = arith.addf %20, %24 : vector<512x128xf32>
      %c0_18 = arith.constant 0 : index
      %c0_19 = arith.constant 0 : index
      %26 = vector.load %arg6[%c0_18, %c0_19] : memref<1x128xf32, #tpu.memory_space<vmem>>, vector<1x128xf32>
      %27 = vector.broadcast %26 : vector<1x128xf32> to vector<512x128xf32>
      %28 = arith.addf %25, %27 : vector<512x128xf32>
      %cst_20 = arith.constant 0.000000e+00 : f32
      %29 = vector.broadcast %cst_20 : f32 to vector<512x128xf32>
      %30 = arith.maximumf %28, %29 : vector<512x128xf32>
      %31 = arith.truncf %30 : vector<512x128xf32> to vector<512x128xbf16>
      %c0_21 = arith.constant 0 : index
      %c0_22 = arith.constant 0 : index
      %32 = vector.load %arg7[%c0_21, %c0_22] : memref<512x128xbf16, #tpu.memory_space<vmem>>, vector<512x128xbf16>
      tpu.vector_store %arg7[%c0_21, %c0_22], %31 {strides = array<i32>} : memref<512x128xbf16, #tpu.memory_space<vmem>>, vector<512x128xbf16>,
    } else {
    }
    return
  }
  func.func @transform_0(%arg0: i32, %arg1: i32) -> (i32, i32) {
    %c0_i32 = arith.constant 0 : i32
    return %arg0, %arg1 : i32, i32
  }
  func.func @transform_1(%arg0: i32, %arg1: i32) -> (i32, i32) {
    %c0_i32 = arith.constant 0 : i32
    %c0_i32_0 = arith.constant 0 : i32
    %c0_i32_1 = arith.constant 0 : i32
    return %c0_i32, %c0_i32_0 : i32, i32
  }
  func.func @transform_2(%arg0: i32, %arg1: i32) -> (i32, i32) {
    %c0_i32 = arith.constant 0 : i32
    %c0_i32_0 = arith.constant 0 : i32
    %c0_i32_1 = arith.constant 0 : i32
    return %c0_i32, %c0_i32_0 : i32, i32
  }
  func.func @transform_3(%arg0: i32, %arg1: i32) -> (i32, i32) {
    %c0_i32 = arith.constant 0 : i32
    %c0_i32_0 = arith.constant 0 : i32
    %c0_i32_1 = arith.constant 0 : i32
    return %c0_i32, %c0_i32_0 : i32, i32
  }
  func.func @transform_4(%arg0: i32, %arg1: i32) -> (i32, i32) {
    %c0_i32 = arith.constant 0 : i32
    %c0_i32_0 = arith.constant 0 : i32
    %c0_i32_1 = arith.constant 0 : i32
    return %c0_i32, %c0_i32_0 : i32, i32
  }
  func.func @transform_5(%arg0: i32, %arg1: i32) -> (i32, i32) {
    %c0_i32 = arith.constant 0 : i32
    %c0_i32_0 = arith.constant 0 : i32
    return %arg0, %c0_i32 : i32, i32
  }
}

module attributes {stable_mosaic.version = 11 : i64} {
  func.func @_sage_kernel_resident(%arg0: i32, %arg1: i32, %arg2: memref<512x1024xbf16, #tpu.memory_space<vmem>>, %arg3: memref<1024x128xbf16, #tpu.memory_space<vmem>>, %arg4: memref<128x128xbf16, #tpu.memory_space<vmem>>, %arg5: memref<128x128xbf16, #tpu.memory_space<vmem>>, %arg6: memref<1x128xf32, #tpu.memory_space<vmem>>, %arg7: memref<512x128xf32, #tpu.memory_space<vmem>>, %arg8: memref<512x128xf32, #tpu.memory_space<vmem>>) attributes {dimension_semantics = [#tpu.dimension_semantics<parallel>, #tpu.dimension_semantics<arbitrary>], iteration_bounds = array<i64: 2, 1>, scalar_prefetch = 0 : i64, scratch_operands = 1 : i64, tpu.core_type = #tpu.core_type<tc>, window_params = [{transform_indices = @transform_0, window_bounds = array<i64: 512, 1024>}, {pipeline_mode = #tpu.pipeline_mode<synchronous>, transform_indices = @transform_1, window_bounds = array<i64: 1024, 128>}, {pipeline_mode = #tpu.pipeline_mode<synchronous>, transform_indices = @transform_2, window_bounds = array<i64: 128, 128>}, {pipeline_mode = #tpu.pipeline_mode<synchronous>, transform_indices = @transform_3, window_bounds = array<i64: 128, 128>}, {pipeline_mode = #tpu.pipeline_mode<synchronous>, transform_indices = @transform_4, window_bounds = array<i64: 1, 128>}, {transform_indices = @transform_5, window_bounds = array<i64: 512, 128>}]} {
    %c0_i32 = arith.constant 0 : i32
    %0 = arith.cmpi eq, %arg1, %c0_i32 : i32
    %1 = arith.extui %0 : i1 to i32
    %c0_i32_0 = arith.constant 0 : i32
    %2 = arith.cmpi ne, %1, %c0_i32_0 : i32
    scf.if %2 {
      %cst_9 = arith.constant 0.000000e+00 : f32
      %15 = vector.broadcast %cst_9 : f32 to vector<512x128xf32>
      %c0_10 = arith.constant 0 : index
      %c0_11 = arith.constant 0 : index
      %16 = vector.load %arg8[%c0_10, %c0_11] : memref<512x128xf32, #tpu.memory_space<vmem>>, vector<512x128xf32>
      tpu.vector_store %arg8[%c0_10, %c0_11], %15 {strides = array<i32>} : memref<512x128xf32, #tpu.memory_space<vmem>>, vector<512x128xf32>,
    } else {
    }
    %c1024_i32 = arith.constant 1024 : i32
    %3 = arith.muli %arg1, %c1024_i32 : i32
    %4 = tpu.assume_multiple %3, 1024 : i32
    %c0 = arith.constant 0 : index
    %c0_1 = arith.constant 0 : index
    %5 = vector.load %arg8[%c0, %c0_1] : memref<512x128xf32, #tpu.memory_space<vmem>>, vector<512x128xf32>
    %c0_2 = arith.constant 0 : index
    %c0_3 = arith.constant 0 : index
    %6 = vector.load %arg2[%c0_2, %c0_3] : memref<512x1024xbf16, #tpu.memory_space<vmem>>, vector<512x1024xbf16>
    %7 = arith.index_cast %4 : i32 to index
    %c0_4 = arith.constant 0 : index
    %8 = vector.load %arg3[%7, %c0_4] : memref<1024x128xbf16, #tpu.memory_space<vmem>>, vector<1024x128xbf16>
    %cst = arith.constant dense<0.000000e+00> : vector<512x128xf32>
    %9 = tpu.matmul %6, %8, %cst {dimension_numbers = #tpu.dot_dimension_numbers<[1], [0], [0], [1], [0, 0, 1, 1], [], []>} : vector<512x1024xbf16>, vector<1024x128xbf16>, vector<512x128xf32> -> vector<512x128xf32>
    %10 = arith.addf %5, %9 : vector<512x128xf32>
    %c0_5 = arith.constant 0 : index
    %c0_6 = arith.constant 0 : index
    %11 = vector.load %arg8[%c0_5, %c0_6] : memref<512x128xf32, #tpu.memory_space<vmem>>, vector<512x128xf32>
    tpu.vector_store %arg8[%c0_5, %c0_6], %10 {strides = array<i32>} : memref<512x128xf32, #tpu.memory_space<vmem>>, vector<512x128xf32>,
    %c0_i32_7 = arith.constant 0 : i32
    %12 = arith.cmpi eq, %arg1, %c0_i32_7 : i32
    %13 = arith.extui %12 : i1 to i32
    %c0_i32_8 = arith.constant 0 : i32
    %14 = arith.cmpi ne, %13, %c0_i32_8 : i32
    scf.if %14 {
      %c512_i32 = arith.constant 512 : i32
      %15 = arith.muli %arg0, %c512_i32 : i32
      %16 = tpu.assume_multiple %15, 512 : i32
      %17 = arith.index_cast %16 : i32 to index
      %c0_9 = arith.constant 0 : index
      %18 = vector.load %arg3[%17, %c0_9] : memref<1024x128xbf16, #tpu.memory_space<vmem>>, vector<512x128xbf16>
      %c0_10 = arith.constant 0 : index
      %c0_11 = arith.constant 0 : index
      %19 = vector.load %arg4[%c0_10, %c0_11] : memref<128x128xbf16, #tpu.memory_space<vmem>>, vector<128x128xbf16>
      %cst_12 = arith.constant dense<0.000000e+00> : vector<512x128xf32>
      %20 = tpu.matmul %18, %19, %cst_12 {dimension_numbers = #tpu.dot_dimension_numbers<[1], [0], [0], [1], [0, 0, 1, 1], [], []>} : vector<512x128xbf16>, vector<128x128xbf16>, vector<512x128xf32> -> vector<512x128xf32>
      %c0_13 = arith.constant 0 : index
      %c0_14 = arith.constant 0 : index
      %21 = vector.load %arg8[%c0_13, %c0_14] : memref<512x128xf32, #tpu.memory_space<vmem>>, vector<512x128xf32>
      %22 = arith.truncf %21 : vector<512x128xf32> to vector<512x128xbf16>
      %c0_15 = arith.constant 0 : index
      %c0_16 = arith.constant 0 : index
      %23 = vector.load %arg5[%c0_15, %c0_16] : memref<128x128xbf16, #tpu.memory_space<vmem>>, vector<128x128xbf16>
      %cst_17 = arith.constant dense<0.000000e+00> : vector<512x128xf32>
      %24 = tpu.matmul %22, %23, %cst_17 {dimension_numbers = #tpu.dot_dimension_numbers<[1], [0], [0], [1], [0, 0, 1, 1], [], []>} : vector<512x128xbf16>, vector<128x128xbf16>, vector<512x128xf32> -> vector<512x128xf32>
      %25 = arith.addf %20, %24 : vector<512x128xf32>
      %c0_18 = arith.constant 0 : index
      %c0_19 = arith.constant 0 : index
      %26 = vector.load %arg6[%c0_18, %c0_19] : memref<1x128xf32, #tpu.memory_space<vmem>>, vector<1x128xf32>
      %27 = vector.broadcast %26 : vector<1x128xf32> to vector<512x128xf32>
      %28 = arith.addf %25, %27 : vector<512x128xf32>
      %c0_20 = arith.constant 0 : index
      %c0_21 = arith.constant 0 : index
      %29 = vector.load %arg7[%c0_20, %c0_21] : memref<512x128xf32, #tpu.memory_space<vmem>>, vector<512x128xf32>
      tpu.vector_store %arg7[%c0_20, %c0_21], %28 {strides = array<i32>} : memref<512x128xf32, #tpu.memory_space<vmem>>, vector<512x128xf32>,
    } else {
    }
    return
  }
  func.func @transform_0(%arg0: i32, %arg1: i32) -> (i32, i32) {
    %c0_i32 = arith.constant 0 : i32
    return %arg0, %arg1 : i32, i32
  }
  func.func @transform_1(%arg0: i32, %arg1: i32) -> (i32, i32) {
    %c0_i32 = arith.constant 0 : i32
    %c0_i32_0 = arith.constant 0 : i32
    %c0_i32_1 = arith.constant 0 : i32
    return %c0_i32, %c0_i32_0 : i32, i32
  }
  func.func @transform_2(%arg0: i32, %arg1: i32) -> (i32, i32) {
    %c0_i32 = arith.constant 0 : i32
    %c0_i32_0 = arith.constant 0 : i32
    %c0_i32_1 = arith.constant 0 : i32
    return %c0_i32, %c0_i32_0 : i32, i32
  }
  func.func @transform_3(%arg0: i32, %arg1: i32) -> (i32, i32) {
    %c0_i32 = arith.constant 0 : i32
    %c0_i32_0 = arith.constant 0 : i32
    %c0_i32_1 = arith.constant 0 : i32
    return %c0_i32, %c0_i32_0 : i32, i32
  }
  func.func @transform_4(%arg0: i32, %arg1: i32) -> (i32, i32) {
    %c0_i32 = arith.constant 0 : i32
    %c0_i32_0 = arith.constant 0 : i32
    %c0_i32_1 = arith.constant 0 : i32
    return %c0_i32, %c0_i32_0 : i32, i32
  }
  func.func @transform_5(%arg0: i32, %arg1: i32) -> (i32, i32) {
    %c0_i32 = arith.constant 0 : i32
    %c0_i32_0 = arith.constant 0 : i32
    return %arg0, %c0_i32 : i32, i32
  }
}

</mosaic_0001>

<llo_original>
// kernel: sageprop_forward.5
$region0: #{sageprop_forward.5}
  #allocation0 [shape = 'u32[]', space=smem, size = 0x4, offset = 0x4, fixed_abs, tag = 'smem constant byte address 0x4 - core index']
  #allocation1 [shape = 'u32[72,128]{1,0:T(1,128)}', space=vmem, size = 0x9000, scoped, tag = 'internal scratch']
  #allocation2 [shape = 'f32[512,128]{1,0:T(8,128)}', space=vmem, size = 0x40000, scoped, tag = 'scratch operand']
  %s0 = inlined_call_operand.vmem [shape: bf16[1024,1024], index: 0, kind: input, shape index: {}]
  %s1 = inlined_call_operand.vmem [shape: bf16[1024,128], index: 1, kind: input, shape index: {}]
  %s2 = inlined_call_operand.vmem [shape: bf16[128,128], index: 2, kind: input, shape index: {}]
  %s3 = inlined_call_operand.vmem [shape: bf16[128,128], index: 3, kind: input, shape index: {}]
  %s4 = inlined_call_operand.vmem [shape: f32[1,128], index: 4, kind: input, shape index: {}]
  %s5 = inlined_call_operand.vmem [shape: f32[1024,128], index: 5, kind: output, shape index: {}]
  %s6 = sld [smem:[#allocation0]]
  $region61: #{sageprop_forward.5} parent=0
    _
  %s8 = ssub.s32 1, %s6
  %s9 = scalar_select 0, %s8, %s6
  loop: start=0, step=1, limit=4
  $region2: #{sageprop_forward.5} parent=0 // loop_pre_header
    _
  $region3: #{sageprop_forward.5} parent=0 // loop_header
    %s11 = sphi 0, %s15
    %p12 = scmp.ge.s32.totalorder %s11, 4
    %s18 = sphi 0, %s30
    %s19 = sphi 0, %s26
    %s20 = sphi 0, %s18
    %s21 = sphi 0, %s19
    %s22 = sphi 0, %s20
    %s23 = sphi 0, %s21
    %s35 = sphi 0, %s37
    %s38 = sphi 0, %s35
    %s39 = sphi 0, %s38
    %s55 = sphi 0, %s39
    %s59 = sphi 0, %s59
    %s61 = sphi 0, %s59
    %s62 = sphi 0, %s61
    %s76 = sphi 0, %s62
    %s80 = sphi 0, %s80
    %s82 = sphi 0, %s80
    %s83 = sphi 0, %s82
    %s97 = sphi 0, %s83
    %s101 = sphi 0, %s101
    %s103 = sphi 0, %s101
    %s104 = sphi 0, %s103
    %s118 = sphi 0, %s104
    %s122 = sphi 0, %s122
    %s124 = sphi 0, %s122
    %s125 = sphi 0, %s124
    %s139 = sphi 0, %s125
    %s145 = sphi 0, %s147
    %s148 = sphi 0, %s145
    %s149 = sphi 0, %s148
    %s165 = sphi 0, %s149
  $region4: #{sageprop_forward.5} parent=0 // loop_header_branch
    %14 = sbr.rel (%p12) target = $region8
  $region5: #{sageprop_forward.5} parent=0 // loop_body
    %s16 = ssub.s32 %s11, 1
    %s17 = ssub.s32 %s11, 2
    %s24 = sadd.s32 1, %s19
    %p25 = scmp.ge.s32.totalorder %s24, 1
    %s26 = scalar_select %p25, 0, %s24
    %s27 = sadd.s32 1, %s18
    %s28 = scalar_select %p25, %s27, %s18
    %p29 = scmp.ge.s32.totalorder %s28, 2
    %s30 = scalar_select %p29, 0, %s28
    %s31 = ssub.s32 %s18, %s30
    %s32 = ssub.s32 %s19, %s26
    %s33 = sor.u32 %s31, %s32
    %p34 = scmp.eq.s32.totalorder %s33, 0
    %s36 = sadd.s32 %s35, 1
    %s37 = scalar_select %p34, %s35, %s36
    %p40 = pneg %p34
    %p41 = scmp.eq.s32.totalorder %s11, 1
    %p42 = por %p40, %p41
    %p43 = scmp.ne.s32.totalorder %s35, %s38
    %p44 = scmp.eq.s32.totalorder %s11, 0
    %p45 = por %p43, %p44
    %p46 = scmp.ne.s32.totalorder %s35, %s38
    %p47 = scmp.eq.s32.totalorder %s16, 1
    %p48 = por %p46, %p47
    %p49 = scmp.ne.s32.totalorder %s38, %s39
    %p50 = scmp.eq.s32.totalorder %s16, 0
    %p51 = por %p49, %p50
    %p52 = scmp.ne.s32.totalorder %s38, %s39
    %p53 = scmp.eq.s32.totalorder %s17, 1
    %p54 = por %p52, %p53
    %p56 = scmp.ne.s32.totalorder %s39, %s55
    %p57 = scmp.eq.s32.totalorder %s17, 0
    %p58 = por %p56, %p57
    %s60 = sadd.s32 %s59, 1
    %p63 = scmp.eq.s32.totalorder %s11, 1
    %p64 = scmp.ne.s32.totalorder %s59, %s61
    %p65 = scmp.eq.s32.totalorder %s11, 0
    %p66 = por %p64, %p65
    %p67 = scmp.ne.s32.totalorder %s59, %s61
    %p68 = scmp.eq.s32.totalorder %s16, 1
    %p69 = por %p67, %p68
    %p70 = scmp.ne.s32.totalorder %s61, %s62
    %p71 = scmp.eq.s32.totalorder %s16, 0
    %p72 = por %p70, %p71
    %p73 = scmp.ne.s32.totalorder %s61, %s62
    %p74 = scmp.eq.s32.totalorder %s17, 1
    %p75 = por %p73, %p74
    %p77 = scmp.ne.s32.totalorder %s62, %s76
    %p78 = scmp.eq.s32.totalorder %s17, 0
    %p79 = por %p77, %p78
    %s81 = sadd.s32 %s80, 1
    %p84 = scmp.eq.s32.totalorder %s11, 1
    %p85 = scmp.ne.s32.totalorder %s80, %s82
    %p86 = scmp.eq.s32.totalorder %s11, 0
    %p87 = por %p85, %p86
    %p88 = scmp.ne.s32.totalorder %s80, %s82
    %p89 = scmp.eq.s32.totalorder %s16, 1
    %p90 = por %p88, %p89
    %p91 = scmp.ne.s32.totalorder %s82, %s83
    %p92 = scmp.eq.s32.totalorder %s16, 0
    %p93 = por %p91, %p92
    %p94 = scmp.ne.s32.totalorder %s82, %s83
    %p95 = scmp.eq.s32.totalorder %s17, 1
    %p96 = por %p94, %p95
    %p98 = scmp.ne.s32.totalorder %s83, %s97
    %p99 = scmp.eq.s32.totalorder %s17, 0
    %p100 = por %p98, %p99
    %s102 = sadd.s32 %s101, 1
    %p105 = scmp.eq.s32.totalorder %s11, 1
    %p106 = scmp.ne.s32.totalorder %s101, %s103
    %p107 = scmp.eq.s32.totalorder %s11, 0
    %p108 = por %p106, %p107
    %p109 = scmp.ne.s32.totalorder %s101, %s103
    %p110 = scmp.eq.s32.totalorder %s16, 1
    %p111 = por %p109, %p110
    %p112 = scmp.ne.s32.totalorder %s103, %s104
    %p113 = scmp.eq.s32.totalorder %s16, 0
    %p114 = por %p112, %p113
    %p115 = scmp.ne.s32.totalorder %s103, %s104
    %p116 = scmp.eq.s32.totalorder %s17, 1
    %p117 = por %p115, %p116
    %p119 = scmp.ne.s32.totalorder %s104, %s118
    %p120 = scmp.eq.s32.totalorder %s17, 0
    %p121 = por %p119, %p120
    %s123 = sadd.s32 %s122, 1
    %p126 = scmp.eq.s32.totalorder %s11, 1
    %p127 = scmp.ne.s32.totalorder %s122, %s124
    %p128 = scmp.eq.s32.totalorder %s11, 0
    %p129 = por %p127, %p128
    %p130 = scmp.ne.s32.totalorder %s122, %s124
    %p131 = scmp.eq.s32.totalorder %s16, 1
    %p132 = por %p130, %p131
    %p133 = scmp.ne.s32.totalorder %s124, %s125
    %p134 = scmp.eq.s32.totalorder %s16, 0
    %p135 = por %p133, %p134
    %p136 = scmp.ne.s32.totalorder %s124, %s125
    %p137 = scmp.eq.s32.totalorder %s17, 1
    %p138 = por %p136, %p137
    %p140 = scmp.ne.s32.totalorder %s125, %s139
    %p141 = scmp.eq.s32.totalorder %s17, 0
    %p142 = por %p140, %p141
    %s143 = ssub.s32 %s18, %s30
    %p144 = scmp.eq.s32.totalorder %s143, 0
    %s146 = sadd.s32 %s145, 1
    %s147 = scalar_select %p144, %s145, %s146
    %p150 = pneg %p144
    %p151 = scmp.eq.s32.totalorder %s11, 1
    %p152 = por %p150, %p151
    %p153 = scmp.ne.s32.totalorder %s145, %s148
    %p154 = scmp.eq.s32.totalorder %s11, 0
    %p155 = por %p153, %p154
    %p156 = scmp.ne.s32.totalorder %s145, %s148
    %p157 = scmp.eq.s32.totalorder %s16, 1
    %p158 = por %p156, %p157
    %p159 = scmp.ne.s32.totalorder %s148, %s149
    %p160 = scmp.eq.s32.totalorder %s16, 0
    %p161 = por %p159, %p160
    %p162 = scmp.ne.s32.totalorder %s148, %s149
    %p163 = scmp.eq.s32.totalorder %s17, 1
    %p164 = por %p162, %p163
    %p166 = scmp.ne.s32.totalorder %s149, %s165
    %p167 = scmp.eq.s32.totalorder %s17, 0
    %p168 = por %p166, %p167
    %p169 = scmp.le.s32.totalorder 1, %s11
    %p170 = scmp.lt.s32.totalorder %s11, 3
    %p171 = pnand %p169, %p170
    %p172 = pneg %p171
    // Predicated region
    $region9: #{sageprop_forward.5} parent=5 // pred_check
      _
    $region10: #{sageprop_forward.5} parent=5 // pred_check_branch
      %174 = sbr.rel (%p171) target = $region12
    $region11: #{sageprop_forward.5} parent=5 // pred_region
      %s175 = ssub.s32 %s11, 1
      // Predicated region
      $region13: #{sageprop_forward.5} parent=11 // pred_check
        %p176 = pneg %p72
      $region14: #{sageprop_forward.5} parent=11 // pred_check_branch
        %178 = sbr.rel (%p176) target = $region16
      $region15: #{sageprop_forward.5} parent=11 // pred_region
        _
      $region16: #{sageprop_forward.5} parent=11 // pred_fallthru
        _
      // Predicated region
      $region17: #{sageprop_forward.5} parent=11 // pred_check
        %p179 = pneg %p93
      $region18: #{sageprop_forward.5} parent=11 // pred_check_branch
        %181 = sbr.rel (%p179) target = $region20
      $region19: #{sageprop_forward.5} parent=11 // pred_region
        _
      $region20: #{sageprop_forward.5} parent=11 // pred_fallthru
        _
      // Predicated region
      $region21: #{sageprop_forward.5} parent=11 // pred_check
        %p182 = pneg %p114
      $region22: #{sageprop_forward.5} parent=11 // pred_check_branch
        %184 = sbr.rel (%p182) target = $region24
      $region23: #{sageprop_forward.5} parent=11 // pred_region
        _
      $region24: #{sageprop_forward.5} parent=11 // pred_fallthru
        _
      // Predicated region
      $region25: #{sageprop_forward.5} parent=11 // pred_check
        %p185 = pneg %p135
      $region26: #{sageprop_forward.5} parent=11 // pred_check_branch
        %187 = sbr.rel (%p185) target = $region28
      $region27: #{sageprop_forward.5} parent=11 // pred_region
        _
      $region28: #{sageprop_forward.5} parent=11 // pred_fallthru
        _
    $region12: #{sageprop_forward.5} parent=5 // pred_fallthru
      _
    %p188 = scmp.lt.s32.totalorder %s11, 2
    // Predicated region
    $region29: #{sageprop_forward.5} parent=5 // pred_check
      %p189 = pneg %p188
    $region30: #{sageprop_forward.5} parent=5 // pred_check_branch
      %191 = sbr.rel (%p189) target = $region32
    $region31: #{sageprop_forward.5} parent=5 // pred_region
      // Predicated region
      $region33: #{sageprop_forward.5} parent=31 // pred_check
        %p192 = pneg %p45
      $region34: #{sageprop_forward.5} parent=31 // pred_check_branch
        %194 = sbr.rel (%p192) target = $region36
      $region35: #{sageprop_forward.5} parent=31 // pred_region
        %s195 = smul.u32 64, %s18
        %s196 = smul.u32 8, %s19
        %p197 = scmp.lt.s32.totalorder %s195, 127
        %s198 = scalar_select %p197, %s195, 127
        %p199 = scmp.lt.s32.totalorder %s196, 7
        %s200 = scalar_select %p199, %s196, 7
        %s201 = smul.addr %s198, 8
        %s202 = sadd.s32 %s200, %s201
        %s203 = smul.addr %s202, 4
        %s204 = scalar_lea.vmem %s0, %s203
        %s205 = smul.u32 64, %s18
        %s206 = smul.u32 8, %s19
      $region36: #{sageprop_forward.5} parent=31 // pred_fallthru
        _
    $region32: #{sageprop_forward.5} parent=5 // pred_fallthru
      _
    %p207 = scmp.le.s32.totalorder 1, %s11
    %p208 = scmp.lt.s32.totalorder %s11, 3
    %p209 = pnand %p207, %p208
    %p210 = pneg %p209
    // Predicated region
    $region37: #{sageprop_forward.5} parent=5 // pred_check
      _
    $region38: #{sageprop_forward.5} parent=5 // pred_check_branch
      %212 = sbr.rel (%p209) target = $region40
    $region39: #{sageprop_forward.5} parent=5 // pred_region
      %s213 = ssub.s32 %s11, 1
      %s214 = smul.u32 64, %s20
      %s215 = smul.u32 8, %s21
      %p216 = scmp.lt.s32.totalorder %s214, 127
      %s217 = scalar_select %p216, %s214, 127
      %p218 = scmp.lt.s32.totalorder %s215, 7
      %s219 = scalar_select %p218, %s215, 7
      %s220 = smul.addr %s217, 8
      %s221 = sadd.s32 %s219, %s220
      %s222 = smul.addr %s221, 4
      %s223 = scalar_lea.vmem %s0, %s222
      %p224 = pneg %p51
      %p225 = pneg %p48
      %p226 = pneg %p72
      %p227 = pneg %p69
      %p228 = pneg %p93
      %p229 = pneg %p90
      %p230 = pneg %p114
      %p231 = pneg %p111
      %p232 = pneg %p135
      %p233 = pneg %p132
      %p234 = pneg %p161
      %p235 = pneg %p158
      %s236 = smul.u32 64, %s20
      %p237 = scmp.lt.s32.totalorder %s236, 127
      %s238 = scalar_select %p237, %s236, 127
      %s239 = smul.addr %s238, 8
      %s240 = scalar_lea.vmem %s5, %s239
      %s241 = smul.u32 64, %s20
      %s242 = smul.u32 8, %s21
      %p243 = scmp.lt.s32.totalorder %s241, 127
      %s244 = scalar_select %p243, %s241, 127
      %p245 = scmp.lt.s32.totalorder %s242, 7
      %s246 = scalar_select %p245, %s242, 7
      %s247 = smul.addr %s244, 8
      %s248 = sadd.s32 %s246, %s247
      %s249 = smul.addr %s248, 4
      %s250 = scalar_lea.vmem %s0, %s249
      %s251 = smul.u32 64, %s20
      %s252 = smul.u32 8, %s21
      %s253 = smul.u32 64, %s20
      %p254 = scmp.lt.s32.totalorder %s253, 127
      %s255 = scalar_select %p254, %s253, 127
      %s256 = smul.addr %s255, 8
      %s257 = scalar_lea.vmem %s5, %s256
      %s258 = smul.u32 64, %s20
      %p259 = scmp.eq.s32.totalorder %s21, 0
      // Predicated region
      $region41: #{sageprop_forward.5} parent=39 // pred_check
        %p260 = pneg %p259
      $region42: #{sageprop_forward.5} parent=39 // pred_check_branch
        %262 = sbr.rel (%p260) target = $region44
      $region43: #{sageprop_forward.5} parent=39 // pred_region
        %263 = vst [vmem:[#allocation2] sm:$0xff] 0.0
        %264 = vst [vmem:[#allocation2 + $0x8] sm:$0xff] 0.0
        %265 = vst [vmem:[#allocation2 + $0x10] sm:$0xff] 0.0
        %266 = vst [vmem:[#allocation2 + $0x18] sm:$0xff] 0.0
        %267 = vst [vmem:[#allocation2 + $0x20] sm:$0xff] 0.0
        %268 = vst [vmem:[#allocation2 + $0x28] sm:$0xff] 0.0
        %269 = vst [vmem:[#allocation2 + $0x30] sm:$0xff] 0.0
        %270 = vst [vmem:[#allocation2 + $0x38] sm:$0xff] 0.0
        %271 = vst [vmem:[#allocation2 + $0x40] sm:$0xff] 0.0
        %272 = vst [vmem:[#allocation2 + $0x48] sm:$0xff] 0.0
        %273 = vst [vmem:[#allocation2 + $0x50] sm:$0xff] 0.0
        %274 = vst [vmem:[#allocation2 + $0x58] sm:$0xff] 0.0
        %275 = vst [vmem:[#allocation2 + $0x60] sm:$0xff] 0.0
        %276 = vst [vmem:[#allocation2 + $0x68] sm:$0xff] 0.0
        %277 = vst [vmem:[#allocation2 + $0x70] sm:$0xff] 0.0
        %278 = vst [vmem:[#allocation2 + $0x78] sm:$0xff] 0.0
        %279 = vst [vmem:[#allocation2 + $0x80] sm:$0xff] 0.0
        %280 = vst [vmem:[#allocation2 + $0x88] sm:$0xff] 0.0
        %281 = vst [vmem:[#allocation2 + $0x90] sm:$0xff] 0.0
        %282 = vst [vmem:[#allocation2 + $0x98] sm:$0xff] 0.0
        %283 = vst [vmem:[#allocation2 + $0xa0] sm:$0xff] 0.0
        %284 = vst [vmem:[#allocation2 + $0xa8] sm:$0xff] 0.0
        %285 = vst [vmem:[#allocation2 + $0xb0] sm:$0xff] 0.0
        %286 = vst [vmem:[#allocation2 + $0xb8] sm:$0xff] 0.0
        %287 = vst [vmem:[#allocation2 + $0xc0] sm:$0xff] 0.0
        %288 = vst [vmem:[#allocation2 + $0xc8] sm:$0xff] 0.0
        %289 = vst [vmem:[#allocation2 + $0xd0] sm:$0xff] 0.0
        %290 = vst [vmem:[#allocation2 + $0xd8] sm:$0xff] 0.0
        %291 = vst [vmem:[#allocation2 + $0xe0] sm:$0xff] 0.0
        %292 = vst [vmem:[#allocation2 + $0xe8] sm:$0xff] 0.0
        %293 = vst [vmem:[#allocation2 + $0xf0] sm:$0xff] 0.0
        %294 = vst [vmem:[#allocation2 + $0xf8] sm:$0xff] 0.0
        %295 = vst [vmem:[#allocation2 + $0x100] sm:$0xff] 0.0
        %296 = vst [vmem:[#allocation2 + $0x108] sm:$0xff] 0.0
        %297 = vst [vmem:[#allocation2 + $0x110] sm:$0xff] 0.0
        %298 = vst [vmem:[#allocation2 + $0x118] sm:$0xff] 0.0
        %299 = vst [vmem:[#allocation2 + $0x120] sm:$0xff] 0.0
        %300 = vst [vmem:[#allocation2 + $0x128] sm:$0xff] 0.0
        %301 = vst [vmem:[#allocation2 + $0x130] sm:$0xff] 0.0
        %302 = vst [vmem:[#allocation2 + $0x138] sm:$0xff] 0.0
        %303 = vst [vmem:[#allocation2 + $0x140] sm:$0xff] 0.0
        %304 = vst [vmem:[#allocation2 + $0x148] sm:$0xff] 0.0
        %305 = vst [vmem:[#allocation2 + $0x150] sm:$0xff] 0.0
        %306 = vst [vmem:[#allocation2 + $0x158] sm:$0xff] 0.0
        %307 = vst [vmem:[#allocation2 + $0x160] sm:$0xff] 0.0
        %308 = vst [vmem:[#allocation2 + $0x168] sm:$0xff] 0.0
        %309 = vst [vmem:[#allocation2 + $0x170] sm:$0xff] 0.0
        %310 = vst [vmem:[#allocation2 + $0x178] sm:$0xff] 0.0
        %311 = vst [vmem:[#allocation2 + $0x180] sm:$0xff] 0.0
        %312 = vst [vmem:[#allocation2 + $0x188] sm:$0xff] 0.0
        %313 = vst [vmem:[#allocation2 + $0x190] sm:$0xff] 0.0
        %314 = vst [vmem:[#allocation2 + $0x198] sm:$0xff] 0.0
        %315 = vst [vmem:[#allocation2 + $0x1a0] sm:$0xff] 0.0
        %316 = vst [vmem:[#allocation2 + $0x1a8] sm:$0xff] 0.0
        %317 = vst [vmem:[#allocation2 + $0x1b0] sm:$0xff] 0.0
        %318 = vst [vmem:[#allocation2 + $0x1b8] sm:$0xff] 0.0
        %319 = vst [vmem:[#allocation2 + $0x1c0] sm:$0xff] 0.0
        %320 = vst [vmem:[#allocation2 + $0x1c8] sm:$0xff] 0.0
        %321 = vst [vmem:[#allocation2 + $0x1d0] sm:$0xff] 0.0
        %322 = vst [vmem:[#allocation2 + $0x1d8] sm:$0xff] 0.0
        %323 = vst [vmem:[#allocation2 + $0x1e0] sm:$0xff] 0.0
        %324 = vst [vmem:[#allocation2 + $0x1e8] sm:$0xff] 0.0
        %325 = vst [vmem:[#allocation2 + $0x1f0] sm:$0xff] 0.0
        %326 = vst [vmem:[#allocation2 + $0x1f8] sm:$0xff] 0.0
      $region44: #{sageprop_forward.5} parent=39 // pred_fallthru
        _
      %s327 = smul.u32 %s21, 1024
      %v328 = vld [vmem:[#allocation2] sm:$0xff]
      %v329 = vld [vmem:[#allocation2 + $0x8] sm:$0xff]
      %v330 = vld [vmem:[#allocation2 + $0x10] sm:$0xff]
      %v331 = vld [vmem:[#allocation2 + $0x18] sm:$0xff]
      %v332 = vld [vmem:[#allocation2 + $0x20] sm:$0xff]
      %v333 = vld [vmem:[#allocation2 + $0x28] sm:$0xff]
      %v334 = vld [vmem:[#allocation2 + $0x30] sm:$0xff]
      %v335 = vld [vmem:[#allocation2 + $0x38] sm:$0xff]
      %v336 = vld [vmem:[#allocation2 + $0x40] sm:$0xff]
      %v337 = vld [vmem:[#allocation2 + $0x48] sm:$0xff]
      %v338 = vld [vmem:[#allocation2 + $0x50] sm:$0xff]
      %v339 = vld [vmem:[#allocation2 + $0x58] sm:$0xff]
      %v340 = vld [vmem:[#allocation2 + $0x60] sm:$0xff]
      %v341 = vld [vmem:[#allocation2 + $0x68] sm:$0xff]
      %v342 = vld [vmem:[#allocation2 + $0x70] sm:$0xff]
      %v343 = vld [vmem:[#allocation2 + $0x78] sm:$0xff]
      %v344 = vld [vmem:[#allocation2 + $0x80] sm:$0xff]
      %v345 = vld [vmem:[#allocation2 + $0x88] sm:$0xff]
      %v346 = vld [vmem:[#allocation2 + $0x90] sm:$0xff]
      %v347 = vld [vmem:[#allocation2 + $0x98] sm:$0xff]
      %v348 = vld [vmem:[#allocation2 + $0xa0] sm:$0xff]
      %v349 = vld [vmem:[#allocation2 + $0xa8] sm:$0xff]
      %v350 = vld [vmem:[#allocation2 + $0xb0] sm:$0xff]
      %v351 = vld [vmem:[#allocation2 + $0xb8] sm:$0xff]
      %v352 = vld [vmem:[#allocation2 + $0xc0] sm:$0xff]
      %v353 = vld [vmem:[#allocation2 + $0xc8] sm:$0xff]
      %v354 = vld [vmem:[#allocation2 + $0xd0] sm:$0xff]
      %v355 = vld [vmem:[#allocation2 + $0xd8] sm:$0xff]
      %v356 = vld [vmem:[#allocation2 + $0xe0] sm:$0xff]
      %v357 = vld [vmem:[#allocation2 + $0xe8] sm:$0xff]
      %v358 = vld [vmem:[#allocation2 + $0xf0] sm:$0xff]
      %v359 = vld [vmem:[#allocation2 + $0xf8] sm:$0xff]
      %v360 = vld [vmem:[#allocation2 + $0x100] sm:$0xff]
      %v361 = vld [vmem:[#allocation2 + $0x108] sm:$0xff]
      %v362 = vld [vmem:[#allocation2 + $0x110] sm:$0xff]
      %v363 = vld [vmem:[#allocation2 + $0x118] sm:$0xff]
      %v364 = vld [vmem:[#allocation2 + $0x120] sm:$0xff]
      %v365 = vld [vmem:[#allocation2 + $0x128] sm:$0xff]
      %v366 = vld [vmem:[#allocation2 + $0x130] sm:$0xff]
      %v367 = vld [vmem:[#allocation2 + $0x138] sm:$0xff]
      %v368 = vld [vmem:[#allocation2 + $0x140] sm:$0xff]
      %v369 = vld [vmem:[#allocation2 + $0x148] sm:$0xff]
      %v370 = vld [vmem:[#allocation2 + $0x150] sm:$0xff]
      %v371 = vld [vmem:[#allocation2 + $0x158] sm:$0xff]
      %v372 = vld [vmem:[#allocation2 + $0x160] sm:$0xff]
      %v373 = vld [vmem:[#allocation2 + $0x168] sm:$0xff]
      %v374 = vld [vmem:[#allocation2 + $0x170] sm:$0xff]
      %v375 = vld [vmem:[#allocation2 + $0x178] sm:$0xff]
      %v376 = vld [vmem:[#allocation2 + $0x180] sm:$0xff]
      %v377 = vld [vmem:[#allocation2 + $0x188] sm:$0xff]
      %v378 = vld [vmem:[#allocation2 + $0x190] sm:$0xff]
      %v379 = vld [vmem:[#allocation2 + $0x198] sm:$0xff]
      %v380 = vld [vmem:[#allocation2 + $0x1a0] sm:$0xff]
      %v381 = vld [vmem:[#allocation2 + $0x1a8] sm:$0xff]
      %v382 = vld [vmem:[#allocation2 + $0x1b0] sm:$0xff]
      %v383 = vld [vmem:[#allocation2 + $0x1b8] sm:$0xff]
      %v384 = vld [vmem:[#allocation2 + $0x1c0] sm:$0xff]
      %v385 = vld [vmem:[#allocation2 + $0x1c8] sm:$0xff]
      %v386 = vld [vmem:[#allocation2 + $0x1d0] sm:$0xff]
      %v387 = vld [vmem:[#allocation2 + $0x1d8] sm:$0xff]
      %v388 = vld [vmem:[#allocation2 + $0x1e0] sm:$0xff]
      %v389 = vld [vmem:[#allocation2 + $0x1e8] sm:$0xff]
      %v390 = vld [vmem:[#allocation2 + $0x1f0] sm:$0xff]
      %v391 = vld [vmem:[#allocation2 + $0x1f8] sm:$0xff]
      %v392 = vld [vmem:[%s250] sm:$0xff]
      %v393 = vld [vmem:[%s250 + $0x8] sm:$0xff]
      %v394 = vld [vmem:[%s250 + $0x10] sm:$0xff]
      %v395 = vld [vmem:[%s250 + $0x18] sm:$0xff]
      %v396 = vld [vmem:[%s250 + $0x20] sm:$0xff]
      %v397 = vld [vmem:[%s250 + $0x28] sm:$0xff]
      %v398 = vld [vmem:[%s250 + $0x30] sm:$0xff]
      %v399 = vld [vmem:[%s250 + $0x38] sm:$0xff]
      %v400 = vld [vmem:[%s250 + $0x40] sm:$0xff]
      %v401 = vld [vmem:[%s250 + $0x48] sm:$0xff]
      %v402 = vld [vmem:[%s250 + $0x50] sm:$0xff]
      %v403 = vld [vmem:[%s250 + $0x58] sm:$0xff]
      %v404 = vld [vmem:[%s250 + $0x60] sm:$0xff]
      %v405 = vld [vmem:[%s250 + $0x68] sm:$0xff]
      %v406 = vld [vmem:[%s250 + $0x70] sm:$0xff]
      %v407 = vld [vmem:[%s250 + $0x78] sm:$0xff]
      %v408 = vld [vmem:[%s250 + $0x80] sm:$0xff]
      %v409 = vld [vmem:[%s250 + $0x88] sm:$0xff]
      %v410 = vld [vmem:[%s250 + $0x90] sm:$0xff]
      %v411 = vld [vmem:[%s250 + $0x98] sm:$0xff]
      %v412 = vld [vmem:[%s250 + $0xa0] sm:$0xff]
      %v413 = vld [vmem:[%s250 + $0xa8] sm:$0xff]
      %v414 = vld [vmem:[%s250 + $0xb0] sm:$0xff]
      %v415 = vld [vmem:[%s250 + $0xb8] sm:$0xff]
      %v416 = vld [vmem:[%s250 + $0xc0] sm:$0xff]
      %v417 = vld [vmem:[%s250 + $0xc8] sm:$0xff]
      %v418 = vld [vmem:[%s250 + $0xd0] sm:$0xff]
      %v419 = vld [vmem:[%s250 + $0xd8] sm:$0xff]
      %v420 = vld [vmem:[%s250 + $0xe0] sm:$0xff]
      %v421 = vld [vmem:[%s250 + $0xe8] sm:$0xff]
      %v422 = vld [vmem:[%s250 + $0xf0] sm:$0xff]
      %v423 = vld [vmem:[%s250 + $0xf8] sm:$0xff]
      %v424 = vld [vmem:[%s250 + $0x100] sm:$0xff]
      %v425 = vld [vmem:[%s250 + $0x108] sm:$0xff]
      %v426 = vld [vmem:[%s250 + $0x110] sm:$0xff]
      %v427 = vld [vmem:[%s250 + $0x118] sm:$0xff]
      %v428 = vld [vmem:[%s250 + $0x120] sm:$0xff]
      %v429 = vld [vmem:[%s250 + $0x128] sm:$0xff]
      %v430 = vld [vmem:[%s250 + $0x130] sm:$0xff]
      %v431 = vld [vmem:[%s250 + $0x138] sm:$0xff]
      %v432 = vld [vmem:[%s250 + $0x140] sm:$0xff]
      %v433 = vld [vmem:[%s250 + $0x148] sm:$0xff]
      %v434 = vld [vmem:[%s250 + $0x150] sm:$0xff]
      %v435 = vld [vmem:[%s250 + $0x158] sm:$0xff]
      %v436 = vld [vmem:[%s250 + $0x160] sm:$0xff]
      %v437 = vld [vmem:[%s250 + $0x168] sm:$0xff]
      %v438 = vld [vmem:[%s250 + $0x170] sm:$0xff]
      %v439 = vld [vmem:[%s250 + $0x178] sm:$0xff]
      %v440 = vld [vmem:[%s250 + $0x180] sm:$0xff]
      %v441 = vld [vmem:[%s250 + $0x188] sm:$0xff]
      %v442 = vld [vmem:[%s250 + $0x190] sm:$0xff]
      %v443 = vld [vmem:[%s250 + $0x198] sm:$0xff]
      %v444 = vld [vmem:[%s250 + $0x1a0] sm:$0xff]
      %v445 = vld [vmem:[%s250 + $0x1a8] sm:$0xff]
      %v446 = vld [vmem:[%s250 + $0x1b0] sm:$0xff]
      %v447 = vld [vmem:[%s250 + $0x1b8] sm:$0xff]
      %v448 = vld [vmem:[%s250 + $0x1c0] sm:$0xff]
      %v449 = vld [vmem:[%s250 + $0x1c8] sm:$0xff]
      %v450 = vld [vmem:[%s250 + $0x1d0] sm:$0xff]
      %v451 = vld [vmem:[%s250 + $0x1d8] sm:$0xff]
      %v452 = vld [vmem:[%s250 + $0x1e0] sm:$0xff]
      %v453 = vld [vmem:[%s250 + $0x1e8] sm:$0xff]
      %v454 = vld [vmem:[%s250 + $0x1f0] sm:$0xff]
      %v455 = vld [vmem:[%s250 + $0x1f8] sm:$0xff]
      %v456 = vld [vmem:[%s250 + $0x200] sm:$0xff]
      %v457 = vld [vmem:[%s250 + $0x208] sm:$0xff]
      %v458 = vld [vmem:[%s250 + $0x210] sm:$0xff]
      %v459 = vld [vmem:[%s250 + $0x218] sm:$0xff]
      %v460 = vld [vmem:[%s250 + $0x220] sm:$0xff]
      %v461 = vld [vmem:[%s250 + $0x228] sm:$0xff]
      %v462 = vld [vmem:[%s250 + $0x230] sm:$0xff]
      %v463 = vld [vmem:[%s250 + $0x238] sm:$0xff]
      %v464 = vld [vmem:[%s250 + $0x240] sm:$0xff]
      %v465 = vld [vmem:[%s250 + $0x248] sm:$0xff]
      %v466 = vld [vmem:[%s250 + $0x250] sm:$0xff]
      %v467 = vld [vmem:[%s250 + $0x258] sm:$0xff]
      %v468 = vld [vmem:[%s250 + $0x260] sm:$0xff]
      %v469 = vld [vmem:[%s250 + $0x268] sm:$0xff]
      %v470 = vld [vmem:[%s250 + $0x270] sm:$0xff]
      %v471 = vld [vmem:[%s250 + $0x278] sm:$0xff]
      %v472 = vld [vmem:[%s250 + $0x280] sm:$0xff]
      %v473 = vld [vmem:[%s250 + $0x288] sm:$0xff]
      %v474 = vld [vmem:[%s250 + $0x290] sm:$0xff]
      %v475 = vld [vmem:[%s250 + $0x298] sm:$0xff]
      %v476 = vld [vmem:[%s250 + $0x2a0] sm:$0xff]
      %v477 = vld [vmem:[%s250 + $0x2a8] sm:$0xff]
      %v478 = vld [vmem:[%s250 + $0x2b0] sm:$0xff]
      %v479 = vld [vmem:[%s250 + $0x2b8] sm:$0xff]
      %v480 = vld [vmem:[%s250 + $0x2c0] sm:$0xff]
      %v481 = vld [vmem:[%s250 + $0x2c8] sm:$0xff]
      %v482 = vld [vmem:[%s250 + $0x2d0] sm:$0xff]
      %v483 = vld [vmem:[%s250 + $0x2d8] sm:$0xff]
      %v484 = vld [vmem:[%s250 + $0x2e0] sm:$0xff]
      %v485 = vld [vmem:[%s250 + $0x2e8] sm:$0xff]
      %v486 = vld [vmem:[%s250 + $0x2f0] sm:$0xff]
      %v487 = vld [vmem:[%s250 + $0x2f8] sm:$0xff]
      %v488 = vld [vmem:[%s250 + $0x300] sm:$0xff]
      %v489 = vld [vmem:[%s250 + $0x308] sm:$0xff]
      %v490 = vld [vmem:[%s250 + $0x310] sm:$0xff]
      %v491 = vld [vmem:[%s250 + $0x318] sm:$0xff]
      %v492 = vld [vmem:[%s250 + $0x320] sm:$0xff]
      %v493 = vld [vmem:[%s250 + $0x328] sm:$0xff]
      %v494 = vld [vmem:[%s250 + $0x330] sm:$0xff]
      %v495 = vld [vmem:[%s250 + $0x338] sm:$0xff]
      %v496 = vld [vmem:[%s250 + $0x340] sm:$0xff]
      %v497 = vld [vmem:[%s250 + $0x348] sm:$0xff]
      %v498 = vld [vmem:[%s250 + $0x350] sm:$0xff]
      %v499 = vld [vmem:[%s250 + $0x358] sm:$0xff]
      %v500 = vld [vmem:[%s250 + $0x360] sm:$0xff]
      %v501 = vld [vmem:[%s250 + $0x368] sm:$0xff]
      %v502 = vld [vmem:[%s250 + $0x370] sm:$0xff]
      %v503 = vld [vmem:[%s250 + $0x378] sm:$0xff]
      %v504 = vld [vmem:[%s250 + $0x380] sm:$0xff]
      %v505 = vld [vmem:[%s250 + $0x388] sm:$0xff]
      %v506 = vld [vmem:[%s250 + $0x390] sm:$0xff]
      %v507 = vld [vmem:[%s250 + $0x398] sm:$0xff]
      %v508 = vld [vmem:[%s250 + $0x3a0] sm:$0xff]
      %v509 = vld [vmem:[%s250 + $0x3a8] sm:$0xff]
      %v510 = vld [vmem:[%s250 + $0x3b0] sm:$0xff]
      %v511 = vld [vmem:[%s250 + $0x3b8] sm:$0xff]
      %v512 = vld [vmem:[%s250 + $0x3c0] sm:$0xff]
      %v513 = vld [vmem:[%s250 + $0x3c8] sm:$0xff]
      %v514 = vld [vmem:[%s250 + $0x3d0] sm:$0xff]
      %v515 = vld [vmem:[%s250 + $0x3d8] sm:$0xff]
      %v516 = vld [vmem:[%s250 + $0x3e0] sm:$0xff]
      %v517 = vld [vmem:[%s250 + $0x3e8] sm:$0xff]
      %v518 = vld [vmem:[%s250 + $0x3f0] sm:$0xff]
      %v519 = vld [vmem:[%s250 + $0x3f8] sm:$0xff]
      %v520 = vld [vmem:[%s250 + $0x400] sm:$0xff]
      %v521 = vld [vmem:[%s250 + $0x408] sm:$0xff]
      %v522 = vld [vmem:[%s250 + $0x410] sm:$0xff]
      %v523 = vld [vmem:[%s250 + $0x418] sm:$0xff]
      %v524 = vld [vmem:[%s250 + $0x420] sm:$0xff]
      %v525 = vld [vmem:[%s250 + $0x428] sm:$0xff]
      %v526 = vld [vmem:[%s250 + $0x430] sm:$0xff]
      %v527 = vld [vmem:[%s250 + $0x438] sm:$0xff]
      %v528 = vld [vmem:[%s250 + $0x440] sm:$0xff]
      %v529 = vld [vmem:[%s250 + $0x448] sm:$0xff]
      %v530 = vld [vmem:[%s250 + $0x450] sm:$0xff]
      %v531 = vld [vmem:[%s250 + $0x458] sm:$0xff]
      %v532 = vld [vmem:[%s250 + $0x460] sm:$0xff]
      %v533 = vld [vmem:[%s250 + $0x468] sm:$0xff]
      %v534 = vld [vmem:[%s250 + $0x470] sm:$0xff]
      %v535 = vld [vmem:[%s250 + $0x478] sm:$0xff]
      %v536 = vld [vmem:[%s250 + $0x480] sm:$0xff]
      %v537 = vld [vmem:[%s250 + $0x488] sm:$0xff]
      %v538 = vld [vmem:[%s250 + $0x490] sm:$0xff]
      %v539 = vld [vmem:[%s250 + $0x498] sm:$0xff]
      %v540 = vld [vmem:[%s250 + $0x4a0] sm:$0xff]
      %v541 = vld [vmem:[%s250 + $0x4a8] sm:$0xff]
      %v542 = vld [vmem:[%s250 + $0x4b0] sm:$0xff]
      %v543 = vld [vmem:[%s250 + $0x4b8] sm:$0xff]
      %v544 = vld [vmem:[%s250 + $0x4c0] sm:$0xff]
      %v545 = vld [vmem:[%s250 + $0x4c8] sm:$0xff]
      %v546 = vld [vmem:[%s250 + $0x4d0] sm:$0xff]
      %v547 = vld [vmem:[%s250 + $0x4d8] sm:$0xff]
      %v548 = vld [vmem:[%s250 + $0x4e0] sm:$0xff]
      %v549 = vld [vmem:[%s250 + $0x4e8] sm:$0xff]
      %v550 = vld [vmem:[%s250 + $0x4f0] sm:$0xff]
      %v551 = vld [vmem:[%s250 + $0x4f8] sm:$0xff]
      %v552 = vld [vmem:[%s250 + $0x500] sm:$0xff]
      %v553 = vld [vmem:[%s250 + $0x508] sm:$0xff]
      %v554 = vld [vmem:[%s250 + $0x510] sm:$0xff]
      %v555 = vld [vmem:[%s250 + $0x518] sm:$0xff]
      %v556 = vld [vmem:[%s250 + $0x520] sm:$0xff]
      %v557 = vld [vmem:[%s250 + $0x528] sm:$0xff]
      %v558 = vld [vmem:[%s250 + $0x530] sm:$0xff]
      %v559 = vld [vmem:[%s250 + $0x538] sm:$0xff]
      %v560 = vld [vmem:[%s250 + $0x540] sm:$0xff]
      %v561 = vld [vmem:[%s250 + $0x548] sm:$0xff]
      %v562 = vld [vmem:[%s250 + $0x550] sm:$0xff]
      %v563 = vld [vmem:[%s250 + $0x558] sm:$0xff]
      %v564 = vld [vmem:[%s250 + $0x560] sm:$0xff]
      %v565 = vld [vmem:[%s250 + $0x568] sm:$0xff]
      %v566 = vld [vmem:[%s250 + $0x570] sm:$0xff]
      %v567 = vld [vmem:[%s250 + $0x578] sm:$0xff]
      %v568 = vld [vmem:[%s250 + $0x580] sm:$0xff]
      %v569 = vld [vmem:[%s250 + $0x588] sm:$0xff]
      %v570 = vld [vmem:[%s250 + $0x590] sm:$0xff]
      %v571 = vld [vmem:[%s250 + $0x598] sm:$0xff]
      %v572 = vld [vmem:[%s250 + $0x5a0] sm:$0xff]
      %v573 = vld [vmem:[%s250 + $0x5a8] sm:$0xff]
      %v574 = vld [vmem:[%s250 + $0x5b0] sm:$0xff]
      %v575 = vld [vmem:[%s250 + $0x5b8] sm:$0xff]
      %v576 = vld [vmem:[%s250 + $0x5c0] sm:$0xff]
      %v577 = vld [vmem:[%s250 + $0x5c8] sm:$0xff]
      %v578 = vld [vmem:[%s250 + $0x5d0] sm:$0xff]
      %v579 = vld [vmem:[%s250 + $0x5d8] sm:$0xff]
      %v580 = vld [vmem:[%s250 + $0x5e0] sm:$0xff]
      %v581 = vld [vmem:[%s250 + $0x5e8] sm:$0xff]
      %v582 = vld [vmem:[%s250 + $0x5f0] sm:$0xff]
      %v583 = vld [vmem:[%s250 + $0x5f8] sm:$0xff]
      %v584 = vld [vmem:[%s250 + $0x600] sm:$0xff]
      %v585 = vld [vmem:[%s250 + $0x608] sm:$0xff]
      %v586 = vld [vmem:[%s250 + $0x610] sm:$0xff]
      %v587 = vld [vmem:[%s250 + $0x618] sm:$0xff]
      %v588 = vld [vmem:[%s250 + $0x620] sm:$0xff]
      %v589 = vld [vmem:[%s250 + $0x628] sm:$0xff]
      %v590 = vld [vmem:[%s250 + $0x630] sm:$0xff]
      %v591 = vld [vmem:[%s250 + $0x638] sm:$0xff]
      %v592 = vld [vmem:[%s250 + $0x640] sm:$0xff]
      %v593 = vld [vmem:[%s250 + $0x648] sm:$0xff]
      %v594 = vld [vmem:[%s250 + $0x650] sm:$0xff]
      %v595 = vld [vmem:[%s250 + $0x658] sm:$0xff]
      %v596 = vld [vmem:[%s250 + $0x660] sm:$0xff]
      %v597 = vld [vmem:[%s250 + $0x668] sm:$0xff]
      %v598 = vld [vmem:[%s250 + $0x670] sm:$0xff]
      %v599 = vld [vmem:[%s250 + $0x678] sm:$0xff]
      %v600 = vld [vmem:[%s250 + $0x680] sm:$0xff]
      %v601 = vld [vmem:[%s250 + $0x688] sm:$0xff]
      %v602 = vld [vmem:[%s250 + $0x690] sm:$0xff]
      %v603 = vld [vmem:[%s250 + $0x698] sm:$0xff]
      %v604 = vld [vmem:[%s250 + $0x6a0] sm:$0xff]
      %v605 = vld [vmem:[%s250 + $0x6a8] sm:$0xff]
      %v606 = vld [vmem:[%s250 + $0x6b0] sm:$0xff]
      %v607 = vld [vmem:[%s250 + $0x6b8] sm:$0xff]
      %v608 = vld [vmem:[%s250 + $0x6c0] sm:$0xff]
      %v609 = vld [vmem:[%s250 + $0x6c8] sm:$0xff]
      %v610 = vld [vmem:[%s250 + $0x6d0] sm:$0xff]
      %v611 = vld [vmem:[%s250 + $0x6d8] sm:$0xff]
      %v612 = vld [vmem:[%s250 + $0x6e0] sm:$0xff]
      %v613 = vld [vmem:[%s250 + $0x6e8] sm:$0xff]
      %v614 = vld [vmem:[%s250 + $0x6f0] sm:$0xff]
      %v615 = vld [vmem:[%s250 + $0x6f8] sm:$0xff]
      %v616 = vld [vmem:[%s250 + $0x700] sm:$0xff]
      %v617 = vld [vmem:[%s250 + $0x708] sm:$0xff]
      %v618 = vld [vmem:[%s250 + $0x710] sm:$0xff]
      %v619 = vld [vmem:[%s250 + $0x718] sm:$0xff]
      %v620 = vld [vmem:[%s250 + $0x720] sm:$0xff]
      %v621 = vld [vmem:[%s250 + $0x728] sm:$0xff]
      %v622 = vld [vmem:[%s250 + $0x730] sm:$0xff]
      %v623 = vld [vmem:[%s250 + $0x738] sm:$0xff]
      %v624 = vld [vmem:[%s250 + $0x740] sm:$0xff]
      %v625 = vld [vmem:[%s250 + $0x748] sm:$0xff]
      %v626 = vld [vmem:[%s250 + $0x750] sm:$0xff]
      %v627 = vld [vmem:[%s250 + $0x758] sm:$0xff]
      %v628 = vld [vmem:[%s250 + $0x760] sm:$0xff]
      %v629 = vld [vmem:[%s250 + $0x768] sm:$0xff]
      %v630 = vld [vmem:[%s250 + $0x770] sm:$0xff]
      %v631 = vld [vmem:[%s250 + $0x778] sm:$0xff]
      %v632 = vld [vmem:[%s250 + $0x780] sm:$0xff]
      %v633 = vld [vmem:[%s250 + $0x788] sm:$0xff]
      %v634 = vld [vmem:[%s250 + $0x790] sm:$0xff]
      %v635 = vld [vmem:[%s250 + $0x798] sm:$0xff]
      %v636 = vld [vmem:[%s250 + $0x7a0] sm:$0xff]
      %v637 = vld [vmem:[%s250 + $0x7a8] sm:$0xff]
      %v638 = vld [vmem:[%s250 + $0x7b0] sm:$0xff]
      %v639 = vld [vmem:[%s250 + $0x7b8] sm:$0xff]
      %v640 = vld [vmem:[%s250 + $0x7c0] sm:$0xff]
      %v641 = vld [vmem:[%s250 + $0x7c8] sm:$0xff]
      %v642 = vld [vmem:[%s250 + $0x7d0] sm:$0xff]
      %v643 = vld [vmem:[%s250 + $0x7d8] sm:$0xff]
      %v644 = vld [vmem:[%s250 + $0x7e0] sm:$0xff]
      %v645 = vld [vmem:[%s250 + $0x7e8] sm:$0xff]
      %v646 = vld [vmem:[%s250 + $0x7f0] sm:$0xff]
      %v647 = vld [vmem:[%s250 + $0x7f8] sm:$0xff]
      %s648 = sshra.s32 %s327, 3
      %s649 = sand.u32 %s327, 7
      %s650 = smul.addr %s648, 4
      %s651 = scalar_lea.vmem %s1, %s650
      %v652 = vld [vmem:[%s651] sm:$0xf]
      %v653 = vld [vmem:[%s651 + $0x4] sm:$0xf]
      %v654 = vld [vmem:[%s651 + $0x8] sm:$0xf]
      %v655 = vld [vmem:[%s651 + $0xc] sm:$0xf]
      %v656 = vld [vmem:[%s651 + $0x10] sm:$0xf]
      %v657 = vld [vmem:[%s651 + $0x14] sm:$0xf]
      %v658 = vld [vmem:[%s651 + $0x18] sm:$0xf]
      %v659 = vld [vmem:[%s651 + $0x1c] sm:$0xf]
      %v660 = vld [vmem:[%s651 + $0x20] sm:$0xf]
      %v661 = vld [vmem:[%s651 + $0x24] sm:$0xf]
      %v662 = vld [vmem:[%s651 + $0x28] sm:$0xf]
      %v663 = vld [vmem:[%s651 + $0x2c] sm:$0xf]
      %v664 = vld [vmem:[%s651 + $0x30] sm:$0xf]
      %v665 = vld [vmem:[%s651 + $0x34] sm:$0xf]
      %v666 = vld [vmem:[%s651 + $0x38] sm:$0xf]
      %v667 = vld [vmem:[%s651 + $0x3c] sm:$0xf]
      %v668 = vld [vmem:[%s651 + $0x40] sm:$0xf]
      %v669 = vld [vmem:[%s651 + $0x44] sm:$0xf]
      %v670 = vld [vmem:[%s651 + $0x48] sm:$0xf]
      %v671 = vld [vmem:[%s651 + $0x4c] sm:$0xf]
      %v672 = vld [vmem:[%s651 + $0x50] sm:$0xf]
      %v673 = vld [vmem:[%s651 + $0x54] sm:$0xf]
      %v674 = vld [vmem:[%s651 + $0x58] sm:$0xf]
      %v675 = vld [vmem:[%s651 + $0x5c] sm:$0xf]
      %v676 = vld [vmem:[%s651 + $0x60] sm:$0xf]
      %v677 = vld [vmem:[%s651 + $0x64] sm:$0xf]
      %v678 = vld [vmem:[%s651 + $0x68] sm:$0xf]
      %v679 = vld [vmem:[%s651 + $0x6c] sm:$0xf]
      %v680 = vld [vmem:[%s651 + $0x70] sm:$0xf]
      %v681 = vld [vmem:[%s651 + $0x74] sm:$0xf]
      %v682 = vld [vmem:[%s651 + $0x78] sm:$0xf]
      %v683 = vld [vmem:[%s651 + $0x7c] sm:$0xf]
      %v684 = vld [vmem:[%s651 + $0x80] sm:$0xf]
      %v685 = vld [vmem:[%s651 + $0x84] sm:$0xf]
      %v686 = vld [vmem:[%s651 + $0x88] sm:$0xf]
      %v687 = vld [vmem:[%s651 + $0x8c] sm:$0xf]
      %v688 = vld [vmem:[%s651 + $0x90] sm:$0xf]
      %v689 = vld [vmem:[%s651 + $0x94] sm:$0xf]
      %v690 = vld [vmem:[%s651 + $0x98] sm:$0xf]
      %v691 = vld [vmem:[%s651 + $0x9c] sm:$0xf]
      %v692 = vld [vmem:[%s651 + $0xa0] sm:$0xf]
      %v693 = vld [vmem:[%s651 + $0xa4] sm:$0xf]
      %v694 = vld [vmem:[%s651 + $0xa8] sm:$0xf]
      %v695 = vld [vmem:[%s651 + $0xac] sm:$0xf]
      %v696 = vld [vmem:[%s651 + $0xb0] sm:$0xf]
      %v697 = vld [vmem:[%s651 + $0xb4] sm:$0xf]
      %v698 = vld [vmem:[%s651 + $0xb8] sm:$0xf]
      %v699 = vld [vmem:[%s651 + $0xbc] sm:$0xf]
      %v700 = vld [vmem:[%s651 + $0xc0] sm:$0xf]
      %v701 = vld [vmem:[%s651 + $0xc4] sm:$0xf]
      %v702 = vld [vmem:[%s651 + $0xc8] sm:$0xf]
      %v703 = vld [vmem:[%s651 + $0xcc] sm:$0xf]
      %v704 = vld [vmem:[%s651 + $0xd0] sm:$0xf]
      %v705 = vld [vmem:[%s651 + $0xd4] sm:$0xf]
      %v706 = vld [vmem:[%s651 + $0xd8] sm:$0xf]
      %v707 = vld [vmem:[%s651 + $0xdc] sm:$0xf]
      %v708 = vld [vmem:[%s651 + $0xe0] sm:$0xf]
      %v709 = vld [vmem:[%s651 + $0xe4] sm:$0xf]
      %v710 = vld [vmem:[%s651 + $0xe8] sm:$0xf]
      %v711 = vld [vmem:[%s651 + $0xec] sm:$0xf]
      %v712 = vld [vmem:[%s651 + $0xf0] sm:$0xf]
      %v713 = vld [vmem:[%s651 + $0xf4] sm:$0xf]
      %v714 = vld [vmem:[%s651 + $0xf8] sm:$0xf]
      %v715 = vld [vmem:[%s651 + $0xfc] sm:$0xf]
      %v716 = vld [vmem:[%s651 + $0x100] sm:$0xf]
      %v717 = vld [vmem:[%s651 + $0x104] sm:$0xf]
      %v718 = vld [vmem:[%s651 + $0x108] sm:$0xf]
      %v719 = vld [vmem:[%s651 + $0x10c] sm:$0xf]
      %v720 = vld [vmem:[%s651 + $0x110] sm:$0xf]
      %v721 = vld [vmem:[%s651 + $0x114] sm:$0xf]
      %v722 = vld [vmem:[%s651 + $0x118] sm:$0xf]
      %v723 = vld [vmem:[%s651 + $0x11c] sm:$0xf]
      %v724 = vld [vmem:[%s651 + $0x120] sm:$0xf]
      %v725 = vld [vmem:[%s651 + $0x124] sm:$0xf]
      %v726 = vld [vmem:[%s651 + $0x128] sm:$0xf]
      %v727 = vld [vmem:[%s651 + $0x12c] sm:$0xf]
      %v728 = vld [vmem:[%s651 + $0x130] sm:$0xf]
      %v729 = vld [vmem:[%s651 + $0x134] sm:$0xf]
      %v730 = vld [vmem:[%s651 + $0x138] sm:$0xf]
      %v731 = vld [vmem:[%s651 + $0x13c] sm:$0xf]
      %v732 = vld [vmem:[%s651 + $0x140] sm:$0xf]
      %v733 = vld [vmem:[%s651 + $0x144] sm:$0xf]
      %v734 = vld [vmem:[%s651 + $0x148] sm:$0xf]
      %v735 = vld [vmem:[%s651 + $0x14c] sm:$0xf]
      %v736 = vld [vmem:[%s651 + $0x150] sm:$0xf]
      %v737 = vld [vmem:[%s651 + $0x154] sm:$0xf]
      %v738 = vld [vmem:[%s651 + $0x158] sm:$0xf]
      %v739 = vld [vmem:[%s651 + $0x15c] sm:$0xf]
      %v740 = vld [vmem:[%s651 + $0x160] sm:$0xf]
      %v741 = vld [vmem:[%s651 + $0x164] sm:$0xf]
      %v742 = vld [vmem:[%s651 + $0x168] sm:$0xf]
      %v743 = vld [vmem:[%s651 + $0x16c] sm:$0xf]
      %v744 = vld [vmem:[%s651 + $0x170] sm:$0xf]
      %v745 = vld [vmem:[%s651 + $0x174] sm:$0xf]
      %v746 = vld [vmem:[%s651 + $0x178] sm:$0xf]
      %v747 = vld [vmem:[%s651 + $0x17c] sm:$0xf]
      %v748 = vld [vmem:[%s651 + $0x180] sm:$0xf]
      %v749 = vld [vmem:[%s651 + $0x184] sm:$0xf]
      %v750 = vld [vmem:[%s651 + $0x188] sm:$0xf]
      %v751 = vld [vmem:[%s651 + $0x18c] sm:$0xf]
      %v752 = vld [vmem:[%s651 + $0x190] sm:$0xf]
      %v753 = vld [vmem:[%s651 + $0x194] sm:$0xf]
      %v754 = vld [vmem:[%s651 + $0x198] sm:$0xf]
      %v755 = vld [vmem:[%s651 + $0x19c] sm:$0xf]
      %v756 = vld [vmem:[%s651 + $0x1a0] sm:$0xf]
      %v757 = vld [vmem:[%s651 + $0x1a4] sm:$0xf]
      %v758 = vld [vmem:[%s651 + $0x1a8] sm:$0xf]
      %v759 = vld [vmem:[%s651 + $0x1ac] sm:$0xf]
      %v760 = vld [vmem:[%s651 + $0x1b0] sm:$0xf]
      %v761 = vld [vmem:[%s651 + $0x1b4] sm:$0xf]
      %v762 = vld [vmem:[%s651 + $0x1b8] sm:$0xf]
      %v763 = vld [vmem:[%s651 + $0x1bc] sm:$0xf]
      %v764 = vld [vmem:[%s651 + $0x1c0] sm:$0xf]
      %v765 = vld [vmem:[%s651 + $0x1c4] sm:$0xf]
      %v766 = vld [vmem:[%s651 + $0x1c8] sm:$0xf]
      %v767 = vld [vmem:[%s651 + $0x1cc] sm:$0xf]
      %v768 = vld [vmem:[%s651 + $0x1d0] sm:$0xf]
      %v769 = vld [vmem:[%s651 + $0x1d4] sm:$0xf]
      %v770 = vld [vmem:[%s651 + $0x1d8] sm:$0xf]
      %v771 = vld [vmem:[%s651 + $0x1dc] sm:$0xf]
      %v772 = vld [vmem:[%s651 + $0x1e0] sm:$0xf]
      %v773 = vld [vmem:[%s651 + $0x1e4] sm:$0xf]
      %v774 = vld [vmem:[%s651 + $0x1e8] sm:$0xf]
      %v775 = vld [vmem:[%s651 + $0x1ec] sm:$0xf]
      %v776 = vld [vmem:[%s651 + $0x1f0] sm:$0xf]
      %v777 = vld [vmem:[%s651 + $0x1f4] sm:$0xf]
      %v778 = vld [vmem:[%s651 + $0x1f8] sm:$0xf]
      %v779 = vld [vmem:[%s651 + $0x1fc] sm:$0xf]
      %v1036 = vunpack.c.l.b16 %v392
      %v1037 = vunpack.c.h.b16 %v392
      %v1038 = vunpack.c.l.b16 %v393
      %v1039 = vunpack.c.h.b16 %v393
      %v1040 = vunpack.c.l.b16 %v394
      %v1041 = vunpack.c.h.b16 %v394
      %v1042 = vunpack.c.l.b16 %v395
      %v1043 = vunpack.c.h.b16 %v395
      %v1044 = vunpack.c.l.b16 %v396
      %v1045 = vunpack.c.h.b16 %v396
      %v1046 = vunpack.c.l.b16 %v397
      %v1047 = vunpack.c.h.b16 %v397
      %v1048 = vunpack.c.l.b16 %v398
      %v1049 = vunpack.c.h.b16 %v398
      %v1050 = vunpack.c.l.b16 %v399
      %v1051 = vunpack.c.h.b16 %v399
      %v1052 = vunpack.c.l.b16 %v400
      %v1053 = vunpack.c.h.b16 %v400
      %v1054 = vunpack.c.l.b16 %v401
      %v1055 = vunpack.c.h.b16 %v401
      %v1056 = vunpack.c.l.b16 %v402
      %v1057 = vunpack.c.h.b16 %v402
      %v1058 = vunpack.c.l.b16 %v403
      %v1059 = vunpack.c.h.b16 %v403
      %v1060 = vunpack.c.l.b16 %v404
      %v1061 = vunpack.c.h.b16 %v404
      %v1062 = vunpack.c.l.b16 %v405
      %v1063 = vunpack.c.h.b16 %v405
      %v1064 = vunpack.c.l.b16 %v406
      %v1065 = vunpack.c.h.b16 %v406
      %v1066 = vunpack.c.l.b16 %v407
      %v1067 = vunpack.c.h.b16 %v407
      %v1068 = vunpack.c.l.b16 %v408
      %v1069 = vunpack.c.h.b16 %v408
      %v1070 = vunpack.c.l.b16 %v409
      %v1071 = vunpack.c.h.b16 %v409
      %v1072 = vunpack.c.l.b16 %v410
      %v1073 = vunpack.c.h.b16 %v410
      %v1074 = vunpack.c.l.b16 %v411
      %v1075 = vunpack.c.h.b16 %v411
      %v1076 = vunpack.c.l.b16 %v412
      %v1077 = vunpack.c.h.b16 %v412
      %v1078 = vunpack.c.l.b16 %v413
      %v1079 = vunpack.c.h.b16 %v413
      %v1080 = vunpack.c.l.b16 %v414
      %v1081 = vunpack.c.h.b16 %v414
      %v1082 = vunpack.c.l.b16 %v415
      %v1083 = vunpack.c.h.b16 %v415
      %v1084 = vunpack.c.l.b16 %v416
      %v1085 = vunpack.c.h.b16 %v416
      %v1086 = vunpack.c.l.b16 %v417
      %v1087 = vunpack.c.h.b16 %v417
      %v1088 = vunpack.c.l.b16 %v418
      %v1089 = vunpack.c.h.b16 %v418
      %v1090 = vunpack.c.l.b16 %v419
      %v1091 = vunpack.c.h.b16 %v419
      %v1092 = vunpack.c.l.b16 %v420
      %v1093 = vunpack.c.h.b16 %v420
      %v1094 = vunpack.c.l.b16 %v421
      %v1095 = vunpack.c.h.b16 %v421
      %v1096 = vunpack.c.l.b16 %v422
      %v1097 = vunpack.c.h.b16 %v422
      %v1098 = vunpack.c.l.b16 %v423
      %v1099 = vunpack.c.h.b16 %v423
      %v1100 = vunpack.c.l.b16 %v424
      %v1101 = vunpack.c.h.b16 %v424
      %v1102 = vunpack.c.l.b16 %v425
      %v1103 = vunpack.c.h.b16 %v425
      %v1104 = vunpack.c.l.b16 %v426
      %v1105 = vunpack.c.h.b16 %v426
      %v1106 = vunpack.c.l.b16 %v427
      %v1107 = vunpack.c.h.b16 %v427
      %v1108 = vunpack.c.l.b16 %v428
      %v1109 = vunpack.c.h.b16 %v428
      %v1110 = vunpack.c.l.b16 %v429
      %v1111 = vunpack.c.h.b16 %v429
      %v1112 = vunpack.c.l.b16 %v430
      %v1113 = vunpack.c.h.b16 %v430
      %v1114 = vunpack.c.l.b16 %v431
      %v1115 = vunpack.c.h.b16 %v431
      %v1116 = vunpack.c.l.b16 %v432
      %v1117 = vunpack.c.h.b16 %v432
      %v1118 = vunpack.c.l.b16 %v433
      %v1119 = vunpack.c.h.b16 %v433
      %v1120 = vunpack.c.l.b16 %v434
      %v1121 = vunpack.c.h.b16 %v434
      %v1122 = vunpack.c.l.b16 %v435
      %v1123 = vunpack.c.h.b16 %v435
      %v1124 = vunpack.c.l.b16 %v436
      %v1125 = vunpack.c.h.b16 %v436
      %v1126 = vunpack.c.l.b16 %v437
      %v1127 = vunpack.c.h.b16 %v437
      %v1128 = vunpack.c.l.b16 %v438
      %v1129 = vunpack.c.h.b16 %v438
      %v1130 = vunpack.c.l.b16 %v439
      %v1131 = vunpack.c.h.b16 %v439
      %v1132 = vunpack.c.l.b16 %v440
      %v1133 = vunpack.c.h.b16 %v440
      %v1134 = vunpack.c.l.b16 %v441
      %v1135 = vunpack.c.h.b16 %v441
      %v1136 = vunpack.c.l.b16 %v442
      %v1137 = vunpack.c.h.b16 %v442
      %v1138 = vunpack.c.l.b16 %v443
      %v1139 = vunpack.c.h.b16 %v443
      %v1140 = vunpack.c.l.b16 %v444
      %v1141 = vunpack.c.h.b16 %v444
      %v1142 = vunpack.c.l.b16 %v445
      %v1143 = vunpack.c.h.b16 %v445
      %v1144 = vunpack.c.l.b16 %v446
      %v1145 = vunpack.c.h.b16 %v446
      %v1146 = vunpack.c.l.b16 %v447
      %v1147 = vunpack.c.h.b16 %v447
      %v1148 = vunpack.c.l.b16 %v448
      %v1149 = vunpack.c.h.b16 %v448
      %v1150 = vunpack.c.l.b16 %v449
      %v1151 = vunpack.c.h.b16 %v449
      %v1152 = vunpack.c.l.b16 %v450
      %v1153 = vunpack.c.h.b16 %v450
      %v1154 = vunpack.c.l.b16 %v451
      %v1155 = vunpack.c.h.b16 %v451
      %v1156 = vunpack.c.l.b16 %v452
      %v1157 = vunpack.c.h.b16 %v452
      %v1158 = vunpack.c.l.b16 %v453
      %v1159 = vunpack.c.h.b16 %v453
      %v1160 = vunpack.c.l.b16 %v454
      %v1161 = vunpack.c.h.b16 %v454
      %v1162 = vunpack.c.l.b16 %v455
      %v1163 = vunpack.c.h.b16 %v455
      %v1164 = vunpack.c.l.b16 %v456
      %v1165 = vunpack.c.h.b16 %v456
      %v1166 = vunpack.c.l.b16 %v457
      %v1167 = vunpack.c.h.b16 %v457
      %v1168 = vunpack.c.l.b16 %v458
      %v1169 = vunpack.c.h.b16 %v458
      %v1170 = vunpack.c.l.b16 %v459
      %v1171 = vunpack.c.h.b16 %v459
      %v1172 = vunpack.c.l.b16 %v460
      %v1173 = vunpack.c.h.b16 %v460
      %v1174 = vunpack.c.l.b16 %v461
      %v1175 = vunpack.c.h.b16 %v461
      %v1176 = vunpack.c.l.b16 %v462
      %v1177 = vunpack.c.h.b16 %v462
      %v1178 = vunpack.c.l.b16 %v463
      %v1179 = vunpack.c.h.b16 %v463
      %v1180 = vunpack.c.l.b16 %v464
      %v1181 = vunpack.c.h.b16 %v464
      %v1182 = vunpack.c.l.b16 %v465
      %v1183 = vunpack.c.h.b16 %v465
      %v1184 = vunpack.c.l.b16 %v466
      %v1185 = vunpack.c.h.b16 %v466
      %v1186 = vunpack.c.l.b16 %v467
      %v1187 = vunpack.c.h.b16 %v467
      %v1188 = vunpack.c.l.b16 %v468
      %v1189 = vunpack.c.h.b16 %v468
      %v1190 = vunpack.c.l.b16 %v469
      %v1191 = vunpack.c.h.b16 %v469
      %v1192 = vunpack.c.l.b16 %v470
      %v1193 = vunpack.c.h.b16 %v470
      %v1194 = vunpack.c.l.b16 %v471
      %v1195 = vunpack.c.h.b16 %v471
      %v1196 = vunpack.c.l.b16 %v472
      %v1197 = vunpack.c.h.b16 %v472
      %v1198 = vunpack.c.l.b16 %v473
      %v1199 = vunpack.c.h.b16 %v473
      %v1200 = vunpack.c.l.b16 %v474
      %v1201 = vunpack.c.h.b16 %v474
      %v1202 = vunpack.c.l.b16 %v475
      %v1203 = vunpack.c.h.b16 %v475
      %v1204 = vunpack.c.l.b16 %v476
      %v1205 = vunpack.c.h.b16 %v476
      %v1206 = vunpack.c.l.b16 %v477
      %v1207 = vunpack.c.h.b16 %v477
      %v1208 = vunpack.c.l.b16 %v478
      %v1209 = vunpack.c.h.b16 %v478
      %v1210 = vunpack.c.l.b16 %v479
      %v1211 = vunpack.c.h.b16 %v479
      %v1212 = vunpack.c.l.b16 %v480
      %v1213 = vunpack.c.h.b16 %v480
      %v1214 = vunpack.c.l.b16 %v481
      %v1215 = vunpack.c.h.b16 %v481
      %v1216 = vunpack.c.l.b16 %v482
      %v1217 = vunpack.c.h.b16 %v482
      %v1218 = vunpack.c.l.b16 %v483
      %v1219 = vunpack.c.h.b16 %v483
      %v1220 = vunpack.c.l.b16 %v484
      %v1221 = vunpack.c.h.b16 %v484
      %v1222 = vunpack.c.l.b16 %v485
      %v1223 = vunpack.c.h.b16 %v485
      %v1224 = vunpack.c.l.b16 %v486
      %v1225 = vunpack.c.h.b16 %v486
      %v1226 = vunpack.c.l.b16 %v487
      %v1227 = vunpack.c.h.b16 %v487
      %v1228 = vunpack.c.l.b16 %v488
      %v1229 = vunpack.c.h.b16 %v488
      %v1230 = vunpack.c.l.b16 %v489
      %v1231 = vunpack.c.h.b16 %v489
      %v1232 = vunpack.c.l.b16 %v490
      %v1233 = vunpack.c.h.b16 %v490
      %v1234 = vunpack.c.l.b16 %v491
      %v1235 = vunpack.c.h.b16 %v491
      %v1236 = vunpack.c.l.b16 %v492
      %v1237 = vunpack.c.h.b16 %v492
      %v1238 = vunpack.c.l.b16 %v493
      %v1239 = vunpack.c.h.b16 %v493
      %v1240 = vunpack.c.l.b16 %v494
      %v1241 = vunpack.c.h.b16 %v494
      %v1242 = vunpack.c.l.b16 %v495
      %v1243 = vunpack.c.h.b16 %v495
      %v1244 = vunpack.c.l.b16 %v496
      %v1245 = vunpack.c.h.b16 %v496
      %v1246 = vunpack.c.l.b16 %v497
      %v1247 = vunpack.c.h.b16 %v497
      %v1248 = vunpack.c.l.b16 %v498
      %v1249 = vunpack.c.h.b16 %v498
      %v1250 = vunpack.c.l.b16 %v499
      %v1251 = vunpack.c.h.b16 %v499
      %v1252 = vunpack.c.l.b16 %v500
      %v1253 = vunpack.c.h.b16 %v500
      %v1254 = vunpack.c.l.b16 %v501
      %v1255 = vunpack.c.h.b16 %v501
      %v1256 = vunpack.c.l.b16 %v502
      %v1257 = vunpack.c.h.b16 %v502
      %v1258 = vunpack.c.l.b16 %v503
      %v1259 = vunpack.c.h.b16 %v503
      %v1260 = vunpack.c.l.b16 %v504
      %v1261 = vunpack.c.h.b16 %v504
      %v1262 = vunpack.c.l.b16 %v505
      %v1263 = vunpack.c.h.b16 %v505
      %v1264 = vunpack.c.l.b16 %v506
      %v1265 = vunpack.c.h.b16 %v506
      %v1266 = vunpack.c.l.b16 %v507
      %v1267 = vunpack.c.h.b16 %v507
      %v1268 = vunpack.c.l.b16 %v508
      %v1269 = vunpack.c.h.b16 %v508
      %v1270 = vunpack.c.l.b16 %v509
      %v1271 = vunpack.c.h.b16 %v509
      %v1272 = vunpack.c.l.b16 %v510
      %v1273 = vunpack.c.h.b16 %v510
      %v1274 = vunpack.c.l.b16 %v511
      %v1275 = vunpack.c.h.b16 %v511
      %v1276 = vunpack.c.l.b16 %v512
      %v1277 = vunpack.c.h.b16 %v512
      %v1278 = vunpack.c.l.b16 %v513
      %v1279 = vunpack.c.h.b16 %v513
      %v1280 = vunpack.c.l.b16 %v514
      %v1281 = vunpack.c.h.b16 %v514
      %v1282 = vunpack.c.l.b16 %v515
      %v1283 = vunpack.c.h.b16 %v515
      %v1284 = vunpack.c.l.b16 %v516
      %v1285 = vunpack.c.h.b16 %v516
      %v1286 = vunpack.c.l.b16 %v517
      %v1287 = vunpack.c.h.b16 %v517
      %v1288 = vunpack.c.l.b16 %v518
      %v1289 = vunpack.c.h.b16 %v518
      %v1290 = vunpack.c.l.b16 %v519
      %v1291 = vunpack.c.h.b16 %v519
      %v1292 = vunpack.c.l.b16 %v520
      %v1293 = vunpack.c.h.b16 %v520
      %v1294 = vunpack.c.l.b16 %v521
      %v1295 = vunpack.c.h.b16 %v521
      %v1296 = vunpack.c.l.b16 %v522
      %v1297 = vunpack.c.h.b16 %v522
      %v1298 = vunpack.c.l.b16 %v523
      %v1299 = vunpack.c.h.b16 %v523
      %v1300 = vunpack.c.l.b16 %v524
      %v1301 = vunpack.c.h.b16 %v524
      %v1302 = vunpack.c.l.b16 %v525
      %v1303 = vunpack.c.h.b16 %v525
      %v1304 = vunpack.c.l.b16 %v526
      %v1305 = vunpack.c.h.b16 %v526
      %v1306 = vunpack.c.l.b16 %v527
      %v1307 = vunpack.c.h.b16 %v527
      %v1308 = vunpack.c.l.b16 %v528
      %v1309 = vunpack.c.h.b16 %v528
      %v1310 = vunpack.c.l.b16 %v529
      %v1311 = vunpack.c.h.b16 %v529
      %v1312 = vunpack.c.l.b16 %v530
      %v1313 = vunpack.c.h.b16 %v530
      %v1314 = vunpack.c.l.b16 %v531
      %v1315 = vunpack.c.h.b16 %v531
      %v1316 = vunpack.c.l.b16 %v532
      %v1317 = vunpack.c.h.b16 %v532
      %v1318 = vunpack.c.l.b16 %v533
      %v1319 = vunpack.c.h.b16 %v533
      %v1320 = vunpack.c.l.b16 %v534
      %v1321 = vunpack.c.h.b16 %v534
      %v1322 = vunpack.c.l.b16 %v535
      %v1323 = vunpack.c.h.b16 %v535
      %v1324 = vunpack.c.l.b16 %v536
      %v1325 = vunpack.c.h.b16 %v536
      %v1326 = vunpack.c.l.b16 %v537
      %v1327 = vunpack.c.h.b16 %v537
      %v1328 = vunpack.c.l.b16 %v538
      %v1329 = vunpack.c.h.b16 %v538
      %v1330 = vunpack.c.l.b16 %v539
      %v1331 = vunpack.c.h.b16 %v539
      %v1332 = vunpack.c.l.b16 %v540
      %v1333 = vunpack.c.h.b16 %v540
      %v1334 = vunpack.c.l.b16 %v541
      %v1335 = vunpack.c.h.b16 %v541
      %v1336 = vunpack.c.l.b16 %v542
      %v1337 = vunpack.c.h.b16 %v542
      %v1338 = vunpack.c.l.b16 %v543
      %v1339 = vunpack.c.h.b16 %v543
      %v1340 = vunpack.c.l.b16 %v544
      %v1341 = vunpack.c.h.b16 %v544
      %v1342 = vunpack.c.l.b16 %v545
      %v1343 = vunpack.c.h.b16 %v545
      %v1344 = vunpack.c.l.b16 %v546
      %v1345 = vunpack.c.h.b16 %v546
      %v1346 = vunpack.c.l.b16 %v547
      %v1347 = vunpack.c.h.b16 %v547
      %v1348 = vunpack.c.l.b16 %v548
      %v1349 = vunpack.c.h.b16 %v548
      %v1350 = vunpack.c.l.b16 %v549
      %v1351 = vunpack.c.h.b16 %v549
      %v1352 = vunpack.c.l.b16 %v550
      %v1353 = vunpack.c.h.b16 %v550
      %v1354 = vunpack.c.l.b16 %v551
      %v1355 = vunpack.c.h.b16 %v551
      %v1356 = vunpack.c.l.b16 %v552
      %v1357 = vunpack.c.h.b16 %v552
      %v1358 = vunpack.c.l.b16 %v553
      %v1359 = vunpack.c.h.b16 %v553
      %v1360 = vunpack.c.l.b16 %v554
      %v1361 = vunpack.c.h.b16 %v554
      %v1362 = vunpack.c.l.b16 %v555
      %v1363 = vunpack.c.h.b16 %v555
      %v1364 = vunpack.c.l.b16 %v556
      %v1365 = vunpack.c.h.b16 %v556
      %v1366 = vunpack.c.l.b16 %v557
      %v1367 = vunpack.c.h.b16 %v557
      %v1368 = vunpack.c.l.b16 %v558
      %v1369 = vunpack.c.h.b16 %v558
      %v1370 = vunpack.c.l.b16 %v559
      %v1371 = vunpack.c.h.b16 %v559
      %v1372 = vunpack.c.l.b16 %v560
      %v1373 = vunpack.c.h.b16 %v560
      %v1374 = vunpack.c.l.b16 %v561
      %v1375 = vunpack.c.h.b16 %v561
      %v1376 = vunpack.c.l.b16 %v562
      %v1377 = vunpack.c.h.b16 %v562
      %v1378 = vunpack.c.l.b16 %v563
      %v1379 = vunpack.c.h.b16 %v563
      %v1380 = vunpack.c.l.b16 %v564
      %v1381 = vunpack.c.h.b16 %v564
      %v1382 = vunpack.c.l.b16 %v565
      %v1383 = vunpack.c.h.b16 %v565
      %v1384 = vunpack.c.l.b16 %v566
      %v1385 = vunpack.c.h.b16 %v566
      %v1386 = vunpack.c.l.b16 %v567
      %v1387 = vunpack.c.h.b16 %v567
      %v1388 = vunpack.c.l.b16 %v568
      %v1389 = vunpack.c.h.b16 %v568
      %v1390 = vunpack.c.l.b16 %v569
      %v1391 = vunpack.c.h.b16 %v569
      %v1392 = vunpack.c.l.b16 %v570
      %v1393 = vunpack.c.h.b16 %v570
      %v1394 = vunpack.c.l.b16 %v571
      %v1395 = vunpack.c.h.b16 %v571
      %v1396 = vunpack.c.l.b16 %v572
      %v1397 = vunpack.c.h.b16 %v572
      %v1398 = vunpack.c.l.b16 %v573
      %v1399 = vunpack.c.h.b16 %v573
      %v1400 = vunpack.c.l.b16 %v574
      %v1401 = vunpack.c.h.b16 %v574
      %v1402 = vunpack.c.l.b16 %v575
      %v1403 = vunpack.c.h.b16 %v575
      %v1404 = vunpack.c.l.b16 %v576
      %v1405 = vunpack.c.h.b16 %v576
      %v1406 = vunpack.c.l.b16 %v577
      %v1407 = vunpack.c.h.b16 %v577
      %v1408 = vunpack.c.l.b16 %v578
      %v1409 = vunpack.c.h.b16 %v578
      %v1410 = vunpack.c.l.b16 %v579
      %v1411 = vunpack.c.h.b16 %v579
      %v1412 = vunpack.c.l.b16 %v580
      %v1413 = vunpack.c.h.b16 %v580
      %v1414 = vunpack.c.l.b16 %v581
      %v1415 = vunpack.c.h.b16 %v581
      %v1416 = vunpack.c.l.b16 %v582
      %v1417 = vunpack.c.h.b16 %v582
      %v1418 = vunpack.c.l.b16 %v583
      %v1419 = vunpack.c.h.b16 %v583
      %v1420 = vunpack.c.l.b16 %v584
      %v1421 = vunpack.c.h.b16 %v584
      %v1422 = vunpack.c.l.b16 %v585
      %v1423 = vunpack.c.h.b16 %v585
      %v1424 = vunpack.c.l.b16 %v586
      %v1425 = vunpack.c.h.b16 %v586
      %v1426 = vunpack.c.l.b16 %v587
      %v1427 = vunpack.c.h.b16 %v587
      %v1428 = vunpack.c.l.b16 %v588
      %v1429 = vunpack.c.h.b16 %v588
      %v1430 = vunpack.c.l.b16 %v589
      %v1431 = vunpack.c.h.b16 %v589
      %v1432 = vunpack.c.l.b16 %v590
      %v1433 = vunpack.c.h.b16 %v590
      %v1434 = vunpack.c.l.b16 %v591
      %v1435 = vunpack.c.h.b16 %v591
      %v1436 = vunpack.c.l.b16 %v592
      %v1437 = vunpack.c.h.b16 %v592
      %v1438 = vunpack.c.l.b16 %v593
      %v1439 = vunpack.c.h.b16 %v593
      %v1440 = vunpack.c.l.b16 %v594
      %v1441 = vunpack.c.h.b16 %v594
      %v1442 = vunpack.c.l.b16 %v595
      %v1443 = vunpack.c.h.b16 %v595
      %v1444 = vunpack.c.l.b16 %v596
      %v1445 = vunpack.c.h.b16 %v596
      %v1446 = vunpack.c.l.b16 %v597
      %v1447 = vunpack.c.h.b16 %v597
      %v1448 = vunpack.c.l.b16 %v598
      %v1449 = vunpack.c.h.b16 %v598
      %v1450 = vunpack.c.l.b16 %v599
      %v1451 = vunpack.c.h.b16 %v599
      %v1452 = vunpack.c.l.b16 %v600
      %v1453 = vunpack.c.h.b16 %v600
      %v1454 = vunpack.c.l.b16 %v601
      %v1455 = vunpack.c.h.b16 %v601
      %v1456 = vunpack.c.l.b16 %v602
      %v1457 = vunpack.c.h.b16 %v602
      %v1458 = vunpack.c.l.b16 %v603
      %v1459 = vunpack.c.h.b16 %v603
      %v1460 = vunpack.c.l.b16 %v604
      %v1461 = vunpack.c.h.b16 %v604
      %v1462 = vunpack.c.l.b16 %v605
      %v1463 = vunpack.c.h.b16 %v605
      %v1464 = vunpack.c.l.b16 %v606
      %v1465 = vunpack.c.h.b16 %v606
      %v1466 = vunpack.c.l.b16 %v607
      %v1467 = vunpack.c.h.b16 %v607
      %v1468 = vunpack.c.l.b16 %v608
      %v1469 = vunpack.c.h.b16 %v608
      %v1470 = vunpack.c.l.b16 %v609
      %v1471 = vunpack.c.h.b16 %v609
      %v1472 = vunpack.c.l.b16 %v610
      %v1473 = vunpack.c.h.b16 %v610
      %v1474 = vunpack.c.l.b16 %v611
      %v1475 = vunpack.c.h.b16 %v611
      %v1476 = vunpack.c.l.b16 %v612
      %v1477 = vunpack.c.h.b16 %v612
      %v1478 = vunpack.c.l.b16 %v613
      %v1479 = vunpack.c.h.b16 %v613
      %v1480 = vunpack.c.l.b16 %v614
      %v1481 = vunpack.c.h.b16 %v614
      %v1482 = vunpack.c.l.b16 %v615
      %v1483 = vunpack.c.h.b16 %v615
      %v1484 = vunpack.c.l.b16 %v616
      %v1485 = vunpack.c.h.b16 %v616
      %v1486 = vunpack.c.l.b16 %v617
      %v1487 = vunpack.c.h.b16 %v617
      %v1488 = vunpack.c.l.b16 %v618
      %v1489 = vunpack.c.h.b16 %v618
      %v1490 = vunpack.c.l.b16 %v619
      %v1491 = vunpack.c.h.b16 %v619
      %v1492 = vunpack.c.l.b16 %v620
      %v1493 = vunpack.c.h.b16 %v620
      %v1494 = vunpack.c.l.b16 %v621
      %v1495 = vunpack.c.h.b16 %v621
      %v1496 = vunpack.c.l.b16 %v622
      %v1497 = vunpack.c.h.b16 %v622
      %v1498 = vunpack.c.l.b16 %v623
      %v1499 = vunpack.c.h.b16 %v623
      %v1500 = vunpack.c.l.b16 %v624
      %v1501 = vunpack.c.h.b16 %v624
      %v1502 = vunpack.c.l.b16 %v625
      %v1503 = vunpack.c.h.b16 %v625
      %v1504 = vunpack.c.l.b16 %v626
      %v1505 = vunpack.c.h.b16 %v626
      %v1506 = vunpack.c.l.b16 %v627
      %v1507 = vunpack.c.h.b16 %v627
      %v1508 = vunpack.c.l.b16 %v628
      %v1509 = vunpack.c.h.b16 %v628
      %v1510 = vunpack.c.l.b16 %v629
      %v1511 = vunpack.c.h.b16 %v629
      %v1512 = vunpack.c.l.b16 %v630
      %v1513 = vunpack.c.h.b16 %v630
      %v1514 = vunpack.c.l.b16 %v631
      %v1515 = vunpack.c.h.b16 %v631
      %v1516 = vunpack.c.l.b16 %v632
      %v1517 = vunpack.c.h.b16 %v632
      %v1518 = vunpack.c.l.b16 %v633
      %v1519 = vunpack.c.h.b16 %v633
      %v1520 = vunpack.c.l.b16 %v634
      %v1521 = vunpack.c.h.b16 %v634
      %v1522 = vunpack.c.l.b16 %v635
      %v1523 = vunpack.c.h.b16 %v635
      %v1524 = vunpack.c.l.b16 %v636
      %v1525 = vunpack.c.h.b16 %v636
      %v1526 = vunpack.c.l.b16 %v637
      %v1527 = vunpack.c.h.b16 %v637
      %v1528 = vunpack.c.l.b16 %v638
      %v1529 = vunpack.c.h.b16 %v638
      %v1530 = vunpack.c.l.b16 %v639
      %v1531 = vunpack.c.h.b16 %v639
      %v1532 = vunpack.c.l.b16 %v640
      %v1533 = vunpack.c.h.b16 %v640
      %v1534 = vunpack.c.l.b16 %v641
      %v1535 = vunpack.c.h.b16 %v641
      %v1536 = vunpack.c.l.b16 %v642
      %v1537 = vunpack.c.h.b16 %v642
      %v1538 = vunpack.c.l.b16 %v643
      %v1539 = vunpack.c.h.b16 %v643
      %v1540 = vunpack.c.l.b16 %v644
      %v1541 = vunpack.c.h.b16 %v644
      %v1542 = vunpack.c.l.b16 %v645
      %v1543 = vunpack.c.h.b16 %v645
      %v1544 = vunpack.c.l.b16 %v646
      %v1545 = vunpack.c.h.b16 %v646
      %v1546 = vunpack.c.l.b16 %v647
      %v1547 = vunpack.c.h.b16 %v647
      %v1548 = vpack.c.b16 %v1044, %v1036
      %v1549 = vpack.c.b16 %v1045, %v1037
      %v1550 = vpack.c.b16 %v1046, %v1038
      %v1551 = vpack.c.b16 %v1047, %v1039
      %v1552 = vpack.c.b16 %v1048, %v1040
      %v1553 = vpack.c.b16 %v1049, %v1041
      %v1554 = vpack.c.b16 %v1050, %v1042
      %v1555 = vpack.c.b16 %v1051, %v1043
      %v1556 = vpack.c.b16 %v1060, %v1052
      %v1557 = vpack.c.b16 %v1061, %v1053
      %v1558 = vpack.c.b16 %v1062, %v1054
      %v1559 = vpack.c.b16 %v1063, %v1055
      %v1560 = vpack.c.b16 %v1064, %v1056
      %v1561 = vpack.c.b16 %v1065, %v1057
      %v1562 = vpack.c.b16 %v1066, %v1058
      %v1563 = vpack.c.b16 %v1067, %v1059
      %v1564 = vpack.c.b16 %v1076, %v1068
      %v1565 = vpack.c.b16 %v1077, %v1069
      %v1566 = vpack.c.b16 %v1078, %v1070
      %v1567 = vpack.c.b16 %v1079, %v1071
      %v1568 = vpack.c.b16 %v1080, %v1072
      %v1569 = vpack.c.b16 %v1081, %v1073
      %v1570 = vpack.c.b16 %v1082, %v1074
      %v1571 = vpack.c.b16 %v1083, %v1075
      %v1572 = vpack.c.b16 %v1092, %v1084
      %v1573 = vpack.c.b16 %v1093, %v1085
      %v1574 = vpack.c.b16 %v1094, %v1086
      %v1575 = vpack.c.b16 %v1095, %v1087
      %v1576 = vpack.c.b16 %v1096, %v1088
      %v1577 = vpack.c.b16 %v1097, %v1089
      %v1578 = vpack.c.b16 %v1098, %v1090
      %v1579 = vpack.c.b16 %v1099, %v1091
      %v1580 = vpack.c.b16 %v1108, %v1100
      %v1581 = vpack.c.b16 %v1109, %v1101
      %v1582 = vpack.c.b16 %v1110, %v1102
      %v1583 = vpack.c.b16 %v1111, %v1103
      %v1584 = vpack.c.b16 %v1112, %v1104
      %v1585 = vpack.c.b16 %v1113, %v1105
      %v1586 = vpack.c.b16 %v1114, %v1106
      %v1587 = vpack.c.b16 %v1115, %v1107
      %v1588 = vpack.c.b16 %v1124, %v1116
      %v1589 = vpack.c.b16 %v1125, %v1117
      %v1590 = vpack.c.b16 %v1126, %v1118
      %v1591 = vpack.c.b16 %v1127, %v1119
      %v1592 = vpack.c.b16 %v1128, %v1120
      %v1593 = vpack.c.b16 %v1129, %v1121
      %v1594 = vpack.c.b16 %v1130, %v1122
      %v1595 = vpack.c.b16 %v1131, %v1123
      %v1596 = vpack.c.b16 %v1140, %v1132
      %v1597 = vpack.c.b16 %v1141, %v1133
      %v1598 = vpack.c.b16 %v1142, %v1134
      %v1599 = vpack.c.b16 %v1143, %v1135
      %v1600 = vpack.c.b16 %v1144, %v1136
      %v1601 = vpack.c.b16 %v1145, %v1137
      %v1602 = vpack.c.b16 %v1146, %v1138
      %v1603 = vpack.c.b16 %v1147, %v1139
      %v1604 = vpack.c.b16 %v1156, %v1148
      %v1605 = vpack.c.b16 %v1157, %v1149
      %v1606 = vpack.c.b16 %v1158, %v1150
      %v1607 = vpack.c.b16 %v1159, %v1151
      %v1608 = vpack.c.b16 %v1160, %v1152
      %v1609 = vpack.c.b16 %v1161, %v1153
      %v1610 = vpack.c.b16 %v1162, %v1154
      %v1611 = vpack.c.b16 %v1163, %v1155
      %v1612 = vpack.c.b16 %v1172, %v1164
      %v1613 = vpack.c.b16 %v1173, %v1165
      %v1614 = vpack.c.b16 %v1174, %v1166
      %v1615 = vpack.c.b16 %v1175, %v1167
      %v1616 = vpack.c.b16 %v1176, %v1168
      %v1617 = vpack.c.b16 %v1177, %v1169
      %v1618 = vpack.c.b16 %v1178, %v1170
      %v1619 = vpack.c.b16 %v1179, %v1171
      %v1620 = vpack.c.b16 %v1188, %v1180
      %v1621 = vpack.c.b16 %v1189, %v1181
      %v1622 = vpack.c.b16 %v1190, %v1182
      %v1623 = vpack.c.b16 %v1191, %v1183
      %v1624 = vpack.c.b16 %v1192, %v1184
      %v1625 = vpack.c.b16 %v1193, %v1185
      %v1626 = vpack.c.b16 %v1194, %v1186
      %v1627 = vpack.c.b16 %v1195, %v1187
      %v1628 = vpack.c.b16 %v1204, %v1196
      %v1629 = vpack.c.b16 %v1205, %v1197
      %v1630 = vpack.c.b16 %v1206, %v1198
      %v1631 = vpack.c.b16 %v1207, %v1199
      %v1632 = vpack.c.b16 %v1208, %v1200
      %v1633 = vpack.c.b16 %v1209, %v1201
      %v1634 = vpack.c.b16 %v1210, %v1202
      %v1635 = vpack.c.b16 %v1211, %v1203
      %v1636 = vpack.c.b16 %v1220, %v1212
      %v1637 = vpack.c.b16 %v1221, %v1213
      %v1638 = vpack.c.b16 %v1222, %v1214
      %v1639 = vpack.c.b16 %v1223, %v1215
      %v1640 = vpack.c.b16 %v1224, %v1216
      %v1641 = vpack.c.b16 %v1225, %v1217
      %v1642 = vpack.c.b16 %v1226, %v1218
      %v1643 = vpack.c.b16 %v1227, %v1219
      %v1644 = vpack.c.b16 %v1236, %v1228
      %v1645 = vpack.c.b16 %v1237, %v1229
      %v1646 = vpack.c.b16 %v1238, %v1230
      %v1647 = vpack.c.b16 %v1239, %v1231
      %v1648 = vpack.c.b16 %v1240, %v1232
      %v1649 = vpack.c.b16 %v1241, %v1233
      %v1650 = vpack.c.b16 %v1242, %v1234
      %v1651 = vpack.c.b16 %v1243, %v1235
      %v1652 = vpack.c.b16 %v1252, %v1244
      %v1653 = vpack.c.b16 %v1253, %v1245
      %v1654 = vpack.c.b16 %v1254, %v1246
      %v1655 = vpack.c.b16 %v1255, %v1247
      %v1656 = vpack.c.b16 %v1256, %v1248
      %v1657 = vpack.c.b16 %v1257, %v1249
      %v1658 = vpack.c.b16 %v1258, %v1250
      %v1659 = vpack.c.b16 %v1259, %v1251
      %v1660 = vpack.c.b16 %v1268, %v1260
      %v1661 = vpack.c.b16 %v1269, %v1261
      %v1662 = vpack.c.b16 %v1270, %v1262
      %v1663 = vpack.c.b16 %v1271, %v1263
      %v1664 = vpack.c.b16 %v1272, %v1264
      %v1665 = vpack.c.b16 %v1273, %v1265
      %v1666 = vpack.c.b16 %v1274, %v1266
      %v1667 = vpack.c.b16 %v1275, %v1267
      %v1668 = vpack.c.b16 %v1284, %v1276
      %v1669 = vpack.c.b16 %v1285, %v1277
      %v1670 = vpack.c.b16 %v1286, %v1278
      %v1671 = vpack.c.b16 %v1287, %v1279
      %v1672 = vpack.c.b16 %v1288, %v1280
      %v1673 = vpack.c.b16 %v1289, %v1281
      %v1674 = vpack.c.b16 %v1290, %v1282
      %v1675 = vpack.c.b16 %v1291, %v1283
      %v1676 = vpack.c.b16 %v1300, %v1292
      %v1677 = vpack.c.b16 %v1301, %v1293
      %v1678 = vpack.c.b16 %v1302, %v1294
      %v1679 = vpack.c.b16 %v1303, %v1295
      %v1680 = vpack.c.b16 %v1304, %v1296
      %v1681 = vpack.c.b16 %v1305, %v1297
      %v1682 = vpack.c.b16 %v1306, %v1298
      %v1683 = vpack.c.b16 %v1307, %v1299
      %v1684 = vpack.c.b16 %v1316, %v1308
      %v1685 = vpack.c.b16 %v1317, %v1309
      %v1686 = vpack.c.b16 %v1318, %v1310
      %v1687 = vpack.c.b16 %v1319, %v1311
      %v1688 = vpack.c.b16 %v1320, %v1312
      %v1689 = vpack.c.b16 %v1321, %v1313
      %v1690 = vpack.c.b16 %v1322, %v1314
      %v1691 = vpack.c.b16 %v1323, %v1315
      %v1692 = vpack.c.b16 %v1332, %v1324
      %v1693 = vpack.c.b16 %v1333, %v1325
      %v1694 = vpack.c.b16 %v1334, %v1326
      %v1695 = vpack.c.b16 %v1335, %v1327
      %v1696 = vpack.c.b16 %v1336, %v1328
      %v1697 = vpack.c.b16 %v1337, %v1329
      %v1698 = vpack.c.b16 %v1338, %v1330
      %v1699 = vpack.c.b16 %v1339, %v1331
      %v1700 = vpack.c.b16 %v1348, %v1340
      %v1701 = vpack.c.b16 %v1349, %v1341
      %v1702 = vpack.c.b16 %v1350, %v1342
      %v1703 = vpack.c.b16 %v1351, %v1343
      %v1704 = vpack.c.b16 %v1352, %v1344
      %v1705 = vpack.c.b16 %v1353, %v1345
      %v1706 = vpack.c.b16 %v1354, %v1346
      %v1707 = vpack.c.b16 %v1355, %v1347
      %v1708 = vpack.c.b16 %v1364, %v1356
      %v1709 = vpack.c.b16 %v1365, %v1357
      %v1710 = vpack.c.b16 %v1366, %v1358
      %v1711 = vpack.c.b16 %v1367, %v1359
      %v1712 = vpack.c.b16 %v1368, %v1360
      %v1713 = vpack.c.b16 %v1369, %v1361
      %v1714 = vpack.c.b16 %v1370, %v1362
      %v1715 = vpack.c.b16 %v1371, %v1363
      %v1716 = vpack.c.b16 %v1380, %v1372
      %v1717 = vpack.c.b16 %v1381, %v1373
      %v1718 = vpack.c.b16 %v1382, %v1374
      %v1719 = vpack.c.b16 %v1383, %v1375
      %v1720 = vpack.c.b16 %v1384, %v1376
      %v1721 = vpack.c.b16 %v1385, %v1377
      %v1722 = vpack.c.b16 %v1386, %v1378
      %v1723 = vpack.c.b16 %v1387, %v1379
      %v1724 = vpack.c.b16 %v1396, %v1388
      %v1725 = vpack.c.b16 %v1397, %v1389
      %v1726 = vpack.c.b16 %v1398, %v1390
      %v1727 = vpack.c.b16 %v1399, %v1391
      %v1728 = vpack.c.b16 %v1400, %v1392
      %v1729 = vpack.c.b16 %v1401, %v1393
      %v1730 = vpack.c.b16 %v1402, %v1394
      %v1731 = vpack.c.b16 %v1403, %v1395
      %v1732 = vpack.c.b16 %v1412, %v1404
      %v1733 = vpack.c.b16 %v1413, %v1405
      %v1734 = vpack.c.b16 %v1414, %v1406
      %v1735 = vpack.c.b16 %v1415, %v1407
      %v1736 = vpack.c.b16 %v1416, %v1408
      %v1737 = vpack.c.b16 %v1417, %v1409
      %v1738 = vpack.c.b16 %v1418, %v1410
      %v1739 = vpack.c.b16 %v1419, %v1411
      %v1740 = vpack.c.b16 %v1428, %v1420
      %v1741 = vpack.c.b16 %v1429, %v1421
      %v1742 = vpack.c.b16 %v1430, %v1422
      %v1743 = vpack.c.b16 %v1431, %v1423
      %v1744 = vpack.c.b16 %v1432, %v1424
      %v1745 = vpack.c.b16 %v1433, %v1425
      %v1746 = vpack.c.b16 %v1434, %v1426
      %v1747 = vpack.c.b16 %v1435, %v1427
      %v1748 = vpack.c.b16 %v1444, %v1436
      %v1749 = vpack.c.b16 %v1445, %v1437
      %v1750 = vpack.c.b16 %v1446, %v1438
      %v1751 = vpack.c.b16 %v1447, %v1439
      %v1752 = vpack.c.b16 %v1448, %v1440
      %v1753 = vpack.c.b16 %v1449, %v1441
      %v1754 = vpack.c.b16 %v1450, %v1442
      %v1755 = vpack.c.b16 %v1451, %v1443
      %v1756 = vpack.c.b16 %v1460, %v1452
      %v1757 = vpack.c.b16 %v1461, %v1453
      %v1758 = vpack.c.b16 %v1462, %v1454
      %v1759 = vpack.c.b16 %v1463, %v1455
      %v1760 = vpack.c.b16 %v1464, %v1456
      %v1761 = vpack.c.b16 %v1465, %v1457
      %v1762 = vpack.c.b16 %v1466, %v1458
      %v1763 = vpack.c.b16 %v1467, %v1459
      %v1764 = vpack.c.b16 %v1476, %v1468
      %v1765 = vpack.c.b16 %v1477, %v1469
      %v1766 = vpack.c.b16 %v1478, %v1470
      %v1767 = vpack.c.b16 %v1479, %v1471
      %v1768 = vpack.c.b16 %v1480, %v1472
      %v1769 = vpack.c.b16 %v1481, %v1473
      %v1770 = vpack.c.b16 %v1482, %v1474
      %v1771 = vpack.c.b16 %v1483, %v1475
      %v1772 = vpack.c.b16 %v1492, %v1484
      %v1773 = vpack.c.b16 %v1493, %v1485
      %v1774 = vpack.c.b16 %v1494, %v1486
      %v1775 = vpack.c.b16 %v1495, %v1487
      %v1776 = vpack.c.b16 %v1496, %v1488
      %v1777 = vpack.c.b16 %v1497, %v1489
      %v1778 = vpack.c.b16 %v1498, %v1490
      %v1779 = vpack.c.b16 %v1499, %v1491
      %v1780 = vpack.c.b16 %v1508, %v1500
      %v1781 = vpack.c.b16 %v1509, %v1501
      %v1782 = vpack.c.b16 %v1510, %v1502
      %v1783 = vpack.c.b16 %v1511, %v1503
      %v1784 = vpack.c.b16 %v1512, %v1504
      %v1785 = vpack.c.b16 %v1513, %v1505
      %v1786 = vpack.c.b16 %v1514, %v1506
      %v1787 = vpack.c.b16 %v1515, %v1507
      %v1788 = vpack.c.b16 %v1524, %v1516
      %v1789 = vpack.c.b16 %v1525, %v1517
      %v1790 = vpack.c.b16 %v1526, %v1518
      %v1791 = vpack.c.b16 %v1527, %v1519
      %v1792 = vpack.c.b16 %v1528, %v1520
      %v1793 = vpack.c.b16 %v1529, %v1521
      %v1794 = vpack.c.b16 %v1530, %v1522
      %v1795 = vpack.c.b16 %v1531, %v1523
      %v1796 = vpack.c.b16 %v1540, %v1532
      %v1797 = vpack.c.b16 %v1541, %v1533
      %v1798 = vpack.c.b16 %v1542, %v1534
      %v1799 = vpack.c.b16 %v1543, %v1535
      %v1800 = vpack.c.b16 %v1544, %v1536
      %v1801 = vpack.c.b16 %v1545, %v1537
      %v1802 = vpack.c.b16 %v1546, %v1538
      %v1803 = vpack.c.b16 %v1547, %v1539
      %v2188 = vunpack.c.l.b16 %v652
      %v2189 = vunpack.c.l.b16 %v653
      %v2190 = vunpack.c.l.b16 %v654
      %v2191 = vunpack.c.l.b16 %v655
      %v2192 = vunpack.c.l.b16 %v656
      %v2193 = vunpack.c.l.b16 %v657
      %v2194 = vunpack.c.l.b16 %v658
      %v2195 = vunpack.c.l.b16 %v659
      %v2196 = vunpack.c.l.b16 %v660
      %v2197 = vunpack.c.l.b16 %v661
      %v2198 = vunpack.c.l.b16 %v662
      %v2199 = vunpack.c.l.b16 %v663
      %v2200 = vunpack.c.l.b16 %v664
      %v2201 = vunpack.c.l.b16 %v665
      %v2202 = vunpack.c.l.b16 %v666
      %v2203 = vunpack.c.l.b16 %v667
      %v2204 = vunpack.c.l.b16 %v668
      %v2205 = vunpack.c.l.b16 %v669
      %v2206 = vunpack.c.l.b16 %v670
      %v2207 = vunpack.c.l.b16 %v671
      %v2208 = vunpack.c.l.b16 %v672
      %v2209 = vunpack.c.l.b16 %v673
      %v2210 = vunpack.c.l.b16 %v674
      %v2211 = vunpack.c.l.b16 %v675
      %v2212 = vunpack.c.l.b16 %v676
      %v2213 = vunpack.c.l.b16 %v677
      %v2214 = vunpack.c.l.b16 %v678
      %v2215 = vunpack.c.l.b16 %v679
      %v2216 = vunpack.c.l.b16 %v680
      %v2217 = vunpack.c.l.b16 %v681
      %v2218 = vunpack.c.l.b16 %v682
      %v2219 = vunpack.c.l.b16 %v683
      %v2220 = vunpack.c.l.b16 %v684
      %v2221 = vunpack.c.l.b16 %v685
      %v2222 = vunpack.c.l.b16 %v686
      %v2223 = vunpack.c.l.b16 %v687
      %v2224 = vunpack.c.l.b16 %v688
      %v2225 = vunpack.c.l.b16 %v689
      %v2226 = vunpack.c.l.b16 %v690
      %v2227 = vunpack.c.l.b16 %v691
      %v2228 = vunpack.c.l.b16 %v692
      %v2229 = vunpack.c.l.b16 %v693
      %v2230 = vunpack.c.l.b16 %v694
      %v2231 = vunpack.c.l.b16 %v695
      %v2232 = vunpack.c.l.b16 %v696
      %v2233 = vunpack.c.l.b16 %v697
      %v2234 = vunpack.c.l.b16 %v698
      %v2235 = vunpack.c.l.b16 %v699
      %v2236 = vunpack.c.l.b16 %v700
      %v2237 = vunpack.c.l.b16 %v701
      %v2238 = vunpack.c.l.b16 %v702
      %v2239 = vunpack.c.l.b16 %v703
      %v2240 = vunpack.c.l.b16 %v704
      %v2241 = vunpack.c.l.b16 %v705
      %v2242 = vunpack.c.l.b16 %v706
      %v2243 = vunpack.c.l.b16 %v707
      %v2244 = vunpack.c.l.b16 %v708
      %v2245 = vunpack.c.l.b16 %v709
      %v2246 = vunpack.c.l.b16 %v710
      %v2247 = vunpack.c.l.b16 %v711
      %v2248 = vunpack.c.l.b16 %v712
      %v2249 = vunpack.c.l.b16 %v713
      %v2250 = vunpack.c.l.b16 %v714
      %v2251 = vunpack.c.l.b16 %v715
      %v2252 = vunpack.c.l.b16 %v716
      %v2253 = vunpack.c.l.b16 %v717
      %v2254 = vunpack.c.l.b16 %v718
      %v2255 = vunpack.c.l.b16 %v719
      %v2256 = vunpack.c.l.b16 %v720
      %v2257 = vunpack.c.l.b16 %v721
      %v2258 = vunpack.c.l.b16 %v722
      %v2259 = vunpack.c.l.b16 %v723
      %v2260 = vunpack.c.l.b16 %v724
      %v2261 = vunpack.c.l.b16 %v725
      %v2262 = vunpack.c.l.b16 %v726
      %v2263 = vunpack.c.l.b16 %v727
      %v2264 = vunpack.c.l.b16 %v728
      %v2265 = vunpack.c.l.b16 %v729
      %v2266 = vunpack.c.l.b16 %v730
      %v2267 = vunpack.c.l.b16 %v731
      %v2268 = vunpack.c.l.b16 %v732
      %v2269 = vunpack.c.l.b16 %v733
      %v2270 = vunpack.c.l.b16 %v734
      %v2271 = vunpack.c.l.b16 %v735
      %v2272 = vunpack.c.l.b16 %v736
      %v2273 = vunpack.c.l.b16 %v737
      %v2274 = vunpack.c.l.b16 %v738
      %v2275 = vunpack.c.l.b16 %v739
      %v2276 = vunpack.c.l.b16 %v740
      %v2277 = vunpack.c.l.b16 %v741
      %v2278 = vunpack.c.l.b16 %v742
      %v2279 = vunpack.c.l.b16 %v743
      %v2280 = vunpack.c.l.b16 %v744
      %v2281 = vunpack.c.l.b16 %v745
      %v2282 = vunpack.c.l.b16 %v746
      %v2283 = vunpack.c.l.b16 %v747
      %v2284 = vunpack.c.l.b16 %v748
      %v2285 = vunpack.c.l.b16 %v749
      %v2286 = vunpack.c.l.b16 %v750
      %v2287 = vunpack.c.l.b16 %v751
      %v2288 = vunpack.c.l.b16 %v752
      %v2289 = vunpack.c.l.b16 %v753
      %v2290 = vunpack.c.l.b16 %v754
      %v2291 = vunpack.c.l.b16 %v755
      %v2292 = vunpack.c.l.b16 %v756
      %v2293 = vunpack.c.l.b16 %v757
      %v2294 = vunpack.c.l.b16 %v758
      %v2295 = vunpack.c.l.b16 %v759
      %v2296 = vunpack.c.l.b16 %v760
      %v2297 = vunpack.c.l.b16 %v761
      %v2298 = vunpack.c.l.b16 %v762
      %v2299 = vunpack.c.l.b16 %v763
      %v2300 = vunpack.c.l.b16 %v764
      %v2301 = vunpack.c.l.b16 %v765
      %v2302 = vunpack.c.l.b16 %v766
      %v2303 = vunpack.c.l.b16 %v767
      %v2304 = vunpack.c.l.b16 %v768
      %v2305 = vunpack.c.l.b16 %v769
      %v2306 = vunpack.c.l.b16 %v770
      %v2307 = vunpack.c.l.b16 %v771
      %v2308 = vunpack.c.l.b16 %v772
      %v2309 = vunpack.c.l.b16 %v773
      %v2310 = vunpack.c.l.b16 %v774
      %v2311 = vunpack.c.l.b16 %v775
      %v2312 = vunpack.c.l.b16 %v776
      %v2313 = vunpack.c.l.b16 %v777
      %v2314 = vunpack.c.l.b16 %v778
      %v2315 = vunpack.c.l.b16 %v779
      %v2316 = vpack.c.b16 %v2189, %v2188
      %v2317 = vpack.c.b16 %v2191, %v2190
      %v2318 = vpack.c.b16 %v2193, %v2192
      %v2319 = vpack.c.b16 %v2195, %v2194
      %v2320 = vpack.c.b16 %v2197, %v2196
      %v2321 = vpack.c.b16 %v2199, %v2198
      %v2322 = vpack.c.b16 %v2201, %v2200
      %v2323 = vpack.c.b16 %v2203, %v2202
      %v2324 = vpack.c.b16 %v2205, %v2204
      %v2325 = vpack.c.b16 %v2207, %v2206
      %v2326 = vpack.c.b16 %v2209, %v2208
      %v2327 = vpack.c.b16 %v2211, %v2210
      %v2328 = vpack.c.b16 %v2213, %v2212
      %v2329 = vpack.c.b16 %v2215, %v2214
      %v2330 = vpack.c.b16 %v2217, %v2216
      %v2331 = vpack.c.b16 %v2219, %v2218
      %v2332 = vpack.c.b16 %v2221, %v2220
      %v2333 = vpack.c.b16 %v2223, %v2222
      %v2334 = vpack.c.b16 %v2225, %v2224
      %v2335 = vpack.c.b16 %v2227, %v2226
      %v2336 = vpack.c.b16 %v2229, %v2228
      %v2337 = vpack.c.b16 %v2231, %v2230
      %v2338 = vpack.c.b16 %v2233, %v2232
      %v2339 = vpack.c.b16 %v2235, %v2234
      %v2340 = vpack.c.b16 %v2237, %v2236
      %v2341 = vpack.c.b16 %v2239, %v2238
      %v2342 = vpack.c.b16 %v2241, %v2240
      %v2343 = vpack.c.b16 %v2243, %v2242
      %v2344 = vpack.c.b16 %v2245, %v2244
      %v2345 = vpack.c.b16 %v2247, %v2246
      %v2346 = vpack.c.b16 %v2249, %v2248
      %v2347 = vpack.c.b16 %v2251, %v2250
      %v2348 = vpack.c.b16 %v2253, %v2252
      %v2349 = vpack.c.b16 %v2255, %v2254
      %v2350 = vpack.c.b16 %v2257, %v2256
      %v2351 = vpack.c.b16 %v2259, %v2258
      %v2352 = vpack.c.b16 %v2261, %v2260
      %v2353 = vpack.c.b16 %v2263, %v2262
      %v2354 = vpack.c.b16 %v2265, %v2264
      %v2355 = vpack.c.b16 %v2267, %v2266
      %v2356 = vpack.c.b16 %v2269, %v2268
      %v2357 = vpack.c.b16 %v2271, %v2270
      %v2358 = vpack.c.b16 %v2273, %v2272
      %v2359 = vpack.c.b16 %v2275, %v2274
      %v2360 = vpack.c.b16 %v2277, %v2276
      %v2361 = vpack.c.b16 %v2279, %v2278
      %v2362 = vpack.c.b16 %v2281, %v2280
      %v2363 = vpack.c.b16 %v2283, %v2282
      %v2364 = vpack.c.b16 %v2285, %v2284
      %v2365 = vpack.c.b16 %v2287, %v2286
      %v2366 = vpack.c.b16 %v2289, %v2288
      %v2367 = vpack.c.b16 %v2291, %v2290
      %v2368 = vpack.c.b16 %v2293, %v2292
      %v2369 = vpack.c.b16 %v2295, %v2294
      %v2370 = vpack.c.b16 %v2297, %v2296
      %v2371 = vpack.c.b16 %v2299, %v2298
      %v2372 = vpack.c.b16 %v2301, %v2300
      %v2373 = vpack.c.b16 %v2303, %v2302
      %v2374 = vpack.c.b16 %v2305, %v2304
      %v2375 = vpack.c.b16 %v2307, %v2306
      %v2376 = vpack.c.b16 %v2309, %v2308
      %v2377 = vpack.c.b16 %v2311, %v2310
      %v2378 = vpack.c.b16 %v2313, %v2312
      %v2379 = vpack.c.b16 %v2315, %v2314
      %2444 = vmatpush.bf16.msra.mxu0 %v2323
      %2445 = vmatpush.bf16.msra.mxu0 %v2322
      %2446 = vmatpush.bf16.msra.mxu0 %v2321
      %2447 = vmatpush.bf16.msra.mxu0 %v2320
      %2448 = vmatpush.bf16.msra.mxu0 %v2319
      %2449 = vmatpush.bf16.msra.mxu0 %v2318
      %2450 = vmatpush.bf16.msra.mxu0 %v2317
      %2451 = vmatpush.bf16.msra.mxu0 %v2316
      %2452 = vmatmul.bf16.gmra.mxu0 %v1548
      %v2453 = vpop.f32.mrf.mxu0
      %v2454 = vadd.f32 0.0, %v2453
      %v2455 = vpop.f32.mrf.mxu0
      %v2456 = vadd.f32 0.0, %v2455
      %2457 = vmatmul.bf16.gmra.mxu0 %v1556
      %v2458 = vpop.f32.mrf.mxu0
      %v2459 = vadd.f32 0.0, %v2458
      %v2460 = vpop.f32.mrf.mxu0
      %v2461 = vadd.f32 0.0, %v2460
      %2462 = vmatmul.bf16.gmra.mxu0 %v1564
      %v2463 = vpop.f32.mrf.mxu0
      %v2464 = vadd.f32 0.0, %v2463
      %v2465 = vpop.f32.mrf.mxu0
      %v2466 = vadd.f32 0.0, %v2465
      %2467 = vmatmul.bf16.gmra.mxu0 %v1572
      %v2468 = vpop.f32.mrf.mxu0
      %v2469 = vadd.f32 0.0, %v2468
      %v2470 = vpop.f32.mrf.mxu0
      %v2471 = vadd.f32 0.0, %v2470
      %2472 = vmatmul.bf16.gmra.mxu0 %v1580
      %v2473 = vpop.f32.mrf.mxu0
      %v2474 = vadd.f32 0.0, %v2473
      %v2475 = vpop.f32.mrf.mxu0
      %v2476 = vadd.f32 0.0, %v2475
      %2477 = vmatmul.bf16.gmra.mxu0 %v1588
      %v2478 = vpop.f32.mrf.mxu0
      %v2479 = vadd.f32 0.0, %v2478
      %v2480 = vpop.f32.mrf.mxu0
      %v2481 = vadd.f32 0.0, %v2480
      %2482 = vmatmul.bf16.gmra.mxu0 %v1596
      %v2483 = vpop.f32.mrf.mxu0
      %v2484 = vadd.f32 0.0, %v2483
      %v2485 = vpop.f32.mrf.mxu0
      %v2486 = vadd.f32 0.0, %v2485
      %2487 = vmatmul.bf16.gmra.mxu0 %v1604
      %v2488 = vpop.f32.mrf.mxu0
      %v2489 = vadd.f32 0.0, %v2488
      %v2490 = vpop.f32.mrf.mxu0
      %v2491 = vadd.f32 0.0, %v2490
      %2492 = vmatmul.bf16.gmra.mxu0 %v1612
      %v2493 = vpop.f32.mrf.mxu0
      %v2494 = vadd.f32 0.0, %v2493
      %v2495 = vpop.f32.mrf.mxu0
      %v2496 = vadd.f32 0.0, %v2495
      %2497 = vmatmul.bf16.gmra.mxu0 %v1620
      %v2498 = vpop.f32.mrf.mxu0
      %v2499 = vadd.f32 0.0, %v2498
      %v2500 = vpop.f32.mrf.mxu0
      %v2501 = vadd.f32 0.0, %v2500
      %2502 = vmatmul.bf16.gmra.mxu0 %v1628
      %v2503 = vpop.f32.mrf.mxu0
      %v2504 = vadd.f32 0.0, %v2503
      %v2505 = vpop.f32.mrf.mxu0
      %v2506 = vadd.f32 0.0, %v2505
      %2507 = vmatmul.bf16.gmra.mxu0 %v1636
      %v2508 = vpop.f32.mrf.mxu0
      %v2509 = vadd.f32 0.0, %v2508
      %v2510 = vpop.f32.mrf.mxu0
      %v2511 = vadd.f32 0.0, %v2510
      %2512 = vmatmul.bf16.gmra.mxu0 %v1644
      %v2513 = vpop.f32.mrf.mxu0
      %v2514 = vadd.f32 0.0, %v2513
      %v2515 = vpop.f32.mrf.mxu0
      %v2516 = vadd.f32 0.0, %v2515
      %2517 = vmatmul.bf16.gmra.mxu0 %v1652
      %v2518 = vpop.f32.mrf.mxu0
      %v2519 = vadd.f32 0.0, %v2518
      %v2520 = vpop.f32.mrf.mxu0
      %v2521 = vadd.f32 0.0, %v2520
      %2522 = vmatmul.bf16.gmra.mxu0 %v1660
      %v2523 = vpop.f32.mrf.mxu0
      %v2524 = vadd.f32 0.0, %v2523
      %v2525 = vpop.f32.mrf.mxu0
      %v2526 = vadd.f32 0.0, %v2525
      %2527 = vmatmul.bf16.gmra.mxu0 %v1668
      %v2528 = vpop.f32.mrf.mxu0
      %v2529 = vadd.f32 0.0, %v2528
      %v2530 = vpop.f32.mrf.mxu0
      %v2531 = vadd.f32 0.0, %v2530
      %2532 = vmatmul.bf16.gmra.mxu0 %v1676
      %v2533 = vpop.f32.mrf.mxu0
      %v2534 = vadd.f32 0.0, %v2533
      %v2535 = vpop.f32.mrf.mxu0
      %v2536 = vadd.f32 0.0, %v2535
      %2537 = vmatmul.bf16.gmra.mxu0 %v1684
      %v2538 = vpop.f32.mrf.mxu0
      %v2539 = vadd.f32 0.0, %v2538
      %v2540 = vpop.f32.mrf.mxu0
      %v2541 = vadd.f32 0.0, %v2540
      %2542 = vmatmul.bf16.gmra.mxu0 %v1692
      %v2543 = vpop.f32.mrf.mxu0
      %v2544 = vadd.f32 0.0, %v2543
      %v2545 = vpop.f32.mrf.mxu0
      %v2546 = vadd.f32 0.0, %v2545
      %2547 = vmatmul.bf16.gmra.mxu0 %v1700
      %v2548 = vpop.f32.mrf.mxu0
      %v2549 = vadd.f32 0.0, %v2548
      %v2550 = vpop.f32.mrf.mxu0
      %v2551 = vadd.f32 0.0, %v2550
      %2552 = vmatmul.bf16.gmra.mxu0 %v1708
      %v2553 = vpop.f32.mrf.mxu0
      %v2554 = vadd.f32 0.0, %v2553
      %v2555 = vpop.f32.mrf.mxu0
      %v2556 = vadd.f32 0.0, %v2555
      %2557 = vmatmul.bf16.gmra.mxu0 %v1716
      %v2558 = vpop.f32.mrf.mxu0
      %v2559 = vadd.f32 0.0, %v2558
      %v2560 = vpop.f32.mrf.mxu0
      %v2561 = vadd.f32 0.0, %v2560
      %2562 = vmatmul.bf16.gmra.mxu0 %v1724
      %v2563 = vpop.f32.mrf.mxu0
      %v2564 = vadd.f32 0.0, %v2563
      %v2565 = vpop.f32.mrf.mxu0
      %v2566 = vadd.f32 0.0, %v2565
      %2567 = vmatmul.bf16.gmra.mxu0 %v1732
      %v2568 = vpop.f32.mrf.mxu0
      %v2569 = vadd.f32 0.0, %v2568
      %v2570 = vpop.f32.mrf.mxu0
      %v2571 = vadd.f32 0.0, %v2570
      %2572 = vmatmul.bf16.gmra.mxu0 %v1740
      %v2573 = vpop.f32.mrf.mxu0
      %v2574 = vadd.f32 0.0, %v2573
      %v2575 = vpop.f32.mrf.mxu0
      %v2576 = vadd.f32 0.0, %v2575
      %2577 = vmatmul.bf16.gmra.mxu0 %v1748
      %v2578 = vpop.f32.mrf.mxu0
      %v2579 = vadd.f32 0.0, %v2578
      %v2580 = vpop.f32.mrf.mxu0
      %v2581 = vadd.f32 0.0, %v2580
      %2582 = vmatmul.bf16.gmra.mxu0 %v1756
      %v2583 = vpop.f32.mrf.mxu0
      %v2584 = vadd.f32 0.0, %v2583
      %v2585 = vpop.f32.mrf.mxu0
      %v2586 = vadd.f32 0.0, %v2585
      %2587 = vmatmul.bf16.gmra.mxu0 %v1764
      %v2588 = vpop.f32.mrf.mxu0
      %v2589 = vadd.f32 0.0, %v2588
      %v2590 = vpop.f32.mrf.mxu0
      %v2591 = vadd.f32 0.0, %v2590
      %2592 = vmatmul.bf16.gmra.mxu0 %v1772
      %v2593 = vpop.f32.mrf.mxu0
      %v2594 = vadd.f32 0.0, %v2593
      %v2595 = vpop.f32.mrf.mxu0
      %v2596 = vadd.f32 0.0, %v2595
      %2597 = vmatmul.bf16.gmra.mxu0 %v1780
      %v2598 = vpop.f32.mrf.mxu0
      %v2599 = vadd.f32 0.0, %v2598
      %v2600 = vpop.f32.mrf.mxu0
      %v2601 = vadd.f32 0.0, %v2600
      %2602 = vmatmul.bf16.gmra.mxu0 %v1788
      %v2603 = vpop.f32.mrf.mxu0
      %v2604 = vadd.f32 0.0, %v2603
      %v2605 = vpop.f32.mrf.mxu0
      %v2606 = vadd.f32 0.0, %v2605
      %2607 = vmatmul.bf16.gmra.mxu0 %v1796
      %v2608 = vpop.f32.mrf.mxu0
      %v2609 = vadd.f32 0.0, %v2608
      %v2610 = vpop.f32.mrf.mxu0
      %v2611 = vadd.f32 0.0, %v2610
      %2612 = vdwg.mxu0
      %2613 = vmatpush.bf16.msra.mxu0 %v2331
      %2614 = vmatpush.bf16.msra.mxu0 %v2330
      %2615 = vmatpush.bf16.msra.mxu0 %v2329
      %2616 = vmatpush.bf16.msra.mxu0 %v2328
      %2617 = vmatpush.bf16.msra.mxu0 %v2327
      %2618 = vmatpush.bf16.msra.mxu0 %v2326
      %2619 = vmatpush.bf16.msra.mxu0 %v2325
      %2620 = vmatpush.bf16.msra.mxu0 %v2324
      %2621 = vmatmul.bf16.gmra.mxu0 %v1549
      %v2622 = vpop.f32.mrf.mxu0
      %v2623 = vadd.f32 %v2454, %v2622
      %v2624 = vpop.f32.mrf.mxu0
      %v2625 = vadd.f32 %v2456, %v2624
      %2626 = vmatmul.bf16.gmra.mxu0 %v1557
      %v2627 = vpop.f32.mrf.mxu0
      %v2628 = vadd.f32 %v2459, %v2627
      %v2629 = vpop.f32.mrf.mxu0
      %v2630 = vadd.f32 %v2461, %v2629
      %2631 = vmatmul.bf16.gmra.mxu0 %v1565
      %v2632 = vpop.f32.mrf.mxu0
      %v2633 = vadd.f32 %v2464, %v2632
      %v2634 = vpop.f32.mrf.mxu0
      %v2635 = vadd.f32 %v2466, %v2634
      %2636 = vmatmul.bf16.gmra.mxu0 %v1573
      %v2637 = vpop.f32.mrf.mxu0
      %v2638 = vadd.f32 %v2469, %v2637
      %v2639 = vpop.f32.mrf.mxu0
      %v2640 = vadd.f32 %v2471, %v2639
      %2641 = vmatmul.bf16.gmra.mxu0 %v1581
      %v2642 = vpop.f32.mrf.mxu0
      %v2643 = vadd.f32 %v2474, %v2642
      %v2644 = vpop.f32.mrf.mxu0
      %v2645 = vadd.f32 %v2476, %v2644
      %2646 = vmatmul.bf16.gmra.mxu0 %v1589
      %v2647 = vpop.f32.mrf.mxu0
      %v2648 = vadd.f32 %v2479, %v2647
      %v2649 = vpop.f32.mrf.mxu0
      %v2650 = vadd.f32 %v2481, %v2649
      %2651 = vmatmul.bf16.gmra.mxu0 %v1597
      %v2652 = vpop.f32.mrf.mxu0
      %v2653 = vadd.f32 %v2484, %v2652
      %v2654 = vpop.f32.mrf.mxu0
      %v2655 = vadd.f32 %v2486, %v2654
      %2656 = vmatmul.bf16.gmra.mxu0 %v1605
      %v2657 = vpop.f32.mrf.mxu0
      %v2658 = vadd.f32 %v2489, %v2657
      %v2659 = vpop.f32.mrf.mxu0
      %v2660 = vadd.f32 %v2491, %v2659
      %2661 = vmatmul.bf16.gmra.mxu0 %v1613
      %v2662 = vpop.f32.mrf.mxu0
      %v2663 = vadd.f32 %v2494, %v2662
      %v2664 = vpop.f32.mrf.mxu0
      %v2665 = vadd.f32 %v2496, %v2664
      %2666 = vmatmul.bf16.gmra.mxu0 %v1621
      %v2667 = vpop.f32.mrf.mxu0
      %v2668 = vadd.f32 %v2499, %v2667
      %v2669 = vpop.f32.mrf.mxu0
      %v2670 = vadd.f32 %v2501, %v2669
      %2671 = vmatmul.bf16.gmra.mxu0 %v1629
      %v2672 = vpop.f32.mrf.mxu0
      %v2673 = vadd.f32 %v2504, %v2672
      %v2674 = vpop.f32.mrf.mxu0
      %v2675 = vadd.f32 %v2506, %v2674
      %2676 = vmatmul.bf16.gmra.mxu0 %v1637
      %v2677 = vpop.f32.mrf.mxu0
      %v2678 = vadd.f32 %v2509, %v2677
      %v2679 = vpop.f32.mrf.mxu0
      %v2680 = vadd.f32 %v2511, %v2679
      %2681 = vmatmul.bf16.gmra.mxu0 %v1645
      %v2682 = vpop.f32.mrf.mxu0
      %v2683 = vadd.f32 %v2514, %v2682
      %v2684 = vpop.f32.mrf.mxu0
      %v2685 = vadd.f32 %v2516, %v2684
      %2686 = vmatmul.bf16.gmra.mxu0 %v1653
      %v2687 = vpop.f32.mrf.mxu0
      %v2688 = vadd.f32 %v2519, %v2687
      %v2689 = vpop.f32.mrf.mxu0
      %v2690 = vadd.f32 %v2521, %v2689
      %2691 = vmatmul.bf16.gmra.mxu0 %v1661
      %v2692 = vpop.f32.mrf.mxu0
      %v2693 = vadd.f32 %v2524, %v2692
      %v2694 = vpop.f32.mrf.mxu0
      %v2695 = vadd.f32 %v2526, %v2694
      %2696 = vmatmul.bf16.gmra.mxu0 %v1669
      %v2697 = vpop.f32.mrf.mxu0
      %v2698 = vadd.f32 %v2529, %v2697
      %v2699 = vpop.f32.mrf.mxu0
      %v2700 = vadd.f32 %v2531, %v2699
      %2701 = vmatmul.bf16.gmra.mxu0 %v1677
      %v2702 = vpop.f32.mrf.mxu0
      %v2703 = vadd.f32 %v2534, %v2702
      %v2704 = vpop.f32.mrf.mxu0
      %v2705 = vadd.f32 %v2536, %v2704
      %2706 = vmatmul.bf16.gmra.mxu0 %v1685
      %v2707 = vpop.f32.mrf.mxu0
      %v2708 = vadd.f32 %v2539, %v2707
      %v2709 = vpop.f32.mrf.mxu0
      %v2710 = vadd.f32 %v2541, %v2709
      %2711 = vmatmul.bf16.gmra.mxu0 %v1693
      %v2712 = vpop.f32.mrf.mxu0
      %v2713 = vadd.f32 %v2544, %v2712
      %v2714 = vpop.f32.mrf.mxu0
      %v2715 = vadd.f32 %v2546, %v2714
      %2716 = vmatmul.bf16.gmra.mxu0 %v1701
      %v2717 = vpop.f32.mrf.mxu0
      %v2718 = vadd.f32 %v2549, %v2717
      %v2719 = vpop.f32.mrf.mxu0
      %v2720 = vadd.f32 %v2551, %v2719
      %2721 = vmatmul.bf16.gmra.mxu0 %v1709
      %v2722 = vpop.f32.mrf.mxu0
      %v2723 = vadd.f32 %v2554, %v2722
      %v2724 = vpop.f32.mrf.mxu0
      %v2725 = vadd.f32 %v2556, %v2724
      %2726 = vmatmul.bf16.gmra.mxu0 %v1717
      %v2727 = vpop.f32.mrf.mxu0
      %v2728 = vadd.f32 %v2559, %v2727
      %v2729 = vpop.f32.mrf.mxu0
      %v2730 = vadd.f32 %v2561, %v2729
      %2731 = vmatmul.bf16.gmra.mxu0 %v1725
      %v2732 = vpop.f32.mrf.mxu0
      %v2733 = vadd.f32 %v2564, %v2732
      %v2734 = vpop.f32.mrf.mxu0
      %v2735 = vadd.f32 %v2566, %v2734
      %2736 = vmatmul.bf16.gmra.mxu0 %v1733
      %v2737 = vpop.f32.mrf.mxu0
      %v2738 = vadd.f32 %v2569, %v2737
      %v2739 = vpop.f32.mrf.mxu0
      %v2740 = vadd.f32 %v2571, %v2739
      %2741 = vmatmul.bf16.gmra.mxu0 %v1741
      %v2742 = vpop.f32.mrf.mxu0
      %v2743 = vadd.f32 %v2574, %v2742
      %v2744 = vpop.f32.mrf.mxu0
      %v2745 = vadd.f32 %v2576, %v2744
      %2746 = vmatmul.bf16.gmra.mxu0 %v1749
      %v2747 = vpop.f32.mrf.mxu0
      %v2748 = vadd.f32 %v2579, %v2747
      %v2749 = vpop.f32.mrf.mxu0
      %v2750 = vadd.f32 %v2581, %v2749
      %2751 = vmatmul.bf16.gmra.mxu0 %v1757
      %v2752 = vpop.f32.mrf.mxu0
      %v2753 = vadd.f32 %v2584, %v2752
      %v2754 = vpop.f32.mrf.mxu0
      %v2755 = vadd.f32 %v2586, %v2754
      %2756 = vmatmul.bf16.gmra.mxu0 %v1765
      %v2757 = vpop.f32.mrf.mxu0
      %v2758 = vadd.f32 %v2589, %v2757
      %v2759 = vpop.f32.mrf.mxu0
      %v2760 = vadd.f32 %v2591, %v2759
      %2761 = vmatmul.bf16.gmra.mxu0 %v1773
      %v2762 = vpop.f32.mrf.mxu0
      %v2763 = vadd.f32 %v2594, %v2762
      %v2764 = vpop.f32.mrf.mxu0
      %v2765 = vadd.f32 %v2596, %v2764
      %2766 = vmatmul.bf16.gmra.mxu0 %v1781
      %v2767 = vpop.f32.mrf.mxu0
      %v2768 = vadd.f32 %v2599, %v2767
      %v2769 = vpop.f32.mrf.mxu0
      %v2770 = vadd.f32 %v2601, %v2769
      %2771 = vmatmul.bf16.gmra.mxu0 %v1789
      %v2772 = vpop.f32.mrf.mxu0
      %v2773 = vadd.f32 %v2604, %v2772
      %v2774 = vpop.f32.mrf.mxu0
      %v2775 = vadd.f32 %v2606, %v2774
      %2776 = vmatmul.bf16.gmra.mxu0 %v1797
      %v2777 = vpop.f32.mrf.mxu0
      %v2778 = vadd.f32 %v2609, %v2777
      %v2779 = vpop.f32.mrf.mxu0
      %v2780 = vadd.f32 %v2611, %v2779
      %2781 = vdwg.mxu0
      %2782 = vmatpush.bf16.msra.mxu0 %v2339
      %2783 = vmatpush.bf16.msra.mxu0 %v2338
      %2784 = vmatpush.bf16.msra.mxu0 %v2337
      %2785 = vmatpush.bf16.msra.mxu0 %v2336
      %2786 = vmatpush.bf16.msra.mxu0 %v2335
      %2787 = vmatpush.bf16.msra.mxu0 %v2334
      %2788 = vmatpush.bf16.msra.mxu0 %v2333
      %2789 = vmatpush.bf16.msra.mxu0 %v2332
      %2790 = vmatmul.bf16.gmra.mxu0 %v1550
      %v2791 = vpop.f32.mrf.mxu0
      %v2792 = vadd.f32 %v2623, %v2791
      %v2793 = vpop.f32.mrf.mxu0
      %v2794 = vadd.f32 %v2625, %v2793
      %2795 = vmatmul.bf16.gmra.mxu0 %v1558
      %v2796 = vpop.f32.mrf.mxu0
      %v2797 = vadd.f32 %v2628, %v2796
      %v2798 = vpop.f32.mrf.mxu0
      %v2799 = vadd.f32 %v2630, %v2798
      %2800 = vmatmul.bf16.gmra.mxu0 %v1566
      %v2801 = vpop.f32.mrf.mxu0
      %v2802 = vadd.f32 %v2633, %v2801
      %v2803 = vpop.f32.mrf.mxu0
      %v2804 = vadd.f32 %v2635, %v2803
      %2805 = vmatmul.bf16.gmra.mxu0 %v1574
      %v2806 = vpop.f32.mrf.mxu0
      %v2807 = vadd.f32 %v2638, %v2806
      %v2808 = vpop.f32.mrf.mxu0
      %v2809 = vadd.f32 %v2640, %v2808
      %2810 = vmatmul.bf16.gmra.mxu0 %v1582
      %v2811 = vpop.f32.mrf.mxu0
      %v2812 = vadd.f32 %v2643, %v2811
      %v2813 = vpop.f32.mrf.mxu0
      %v2814 = vadd.f32 %v2645, %v2813
      %2815 = vmatmul.bf16.gmra.mxu0 %v1590
      %v2816 = vpop.f32.mrf.mxu0
      %v2817 = vadd.f32 %v2648, %v2816
      %v2818 = vpop.f32.mrf.mxu0
      %v2819 = vadd.f32 %v2650, %v2818
      %2820 = vmatmul.bf16.gmra.mxu0 %v1598
      %v2821 = vpop.f32.mrf.mxu0
      %v2822 = vadd.f32 %v2653, %v2821
      %v2823 = vpop.f32.mrf.mxu0
      %v2824 = vadd.f32 %v2655, %v2823
      %2825 = vmatmul.bf16.gmra.mxu0 %v1606
      %v2826 = vpop.f32.mrf.mxu0
      %v2827 = vadd.f32 %v2658, %v2826
      %v2828 = vpop.f32.mrf.mxu0
      %v2829 = vadd.f32 %v2660, %v2828
      %2830 = vmatmul.bf16.gmra.mxu0 %v1614
      %v2831 = vpop.f32.mrf.mxu0
      %v2832 = vadd.f32 %v2663, %v2831
      %v2833 = vpop.f32.mrf.mxu0
      %v2834 = vadd.f32 %v2665, %v2833
      %2835 = vmatmul.bf16.gmra.mxu0 %v1622
      %v2836 = vpop.f32.mrf.mxu0
      %v2837 = vadd.f32 %v2668, %v2836
      %v2838 = vpop.f32.mrf.mxu0
      %v2839 = vadd.f32 %v2670, %v2838
      %2840 = vmatmul.bf16.gmra.mxu0 %v1630
      %v2841 = vpop.f32.mrf.mxu0
      %v2842 = vadd.f32 %v2673, %v2841
      %v2843 = vpop.f32.mrf.mxu0
      %v2844 = vadd.f32 %v2675, %v2843
      %2845 = vmatmul.bf16.gmra.mxu0 %v1638
      %v2846 = vpop.f32.mrf.mxu0
      %v2847 = vadd.f32 %v2678, %v2846
      %v2848 = vpop.f32.mrf.mxu0
      %v2849 = vadd.f32 %v2680, %v2848
      %2850 = vmatmul.bf16.gmra.mxu0 %v1646
      %v2851 = vpop.f32.mrf.mxu0
      %v2852 = vadd.f32 %v2683, %v2851
      %v2853 = vpop.f32.mrf.mxu0
      %v2854 = vadd.f32 %v2685, %v2853
      %2855 = vmatmul.bf16.gmra.mxu0 %v1654
      %v2856 = vpop.f32.mrf.mxu0
      %v2857 = vadd.f32 %v2688, %v2856
      %v2858 = vpop.f32.mrf.mxu0
      %v2859 = vadd.f32 %v2690, %v2858
      %2860 = vmatmul.bf16.gmra.mxu0 %v1662
      %v2861 = vpop.f32.mrf.mxu0
      %v2862 = vadd.f32 %v2693, %v2861
      %v2863 = vpop.f32.mrf.mxu0
      %v2864 = vadd.f32 %v2695, %v2863
      %2865 = vmatmul.bf16.gmra.mxu0 %v1670
      %v2866 = vpop.f32.mrf.mxu0
      %v2867 = vadd.f32 %v2698, %v2866
      %v2868 = vpop.f32.mrf.mxu0
      %v2869 = vadd.f32 %v2700, %v2868
      %2870 = vmatmul.bf16.gmra.mxu0 %v1678
      %v2871 = vpop.f32.mrf.mxu0
      %v2872 = vadd.f32 %v2703, %v2871
      %v2873 = vpop.f32.mrf.mxu0
      %v2874 = vadd.f32 %v2705, %v2873
      %2875 = vmatmul.bf16.gmra.mxu0 %v1686
      %v2876 = vpop.f32.mrf.mxu0
      %v2877 = vadd.f32 %v2708, %v2876
      %v2878 = vpop.f32.mrf.mxu0
      %v2879 = vadd.f32 %v2710, %v2878
      %2880 = vmatmul.bf16.gmra.mxu0 %v1694
      %v2881 = vpop.f32.mrf.mxu0
      %v2882 = vadd.f32 %v2713, %v2881
      %v2883 = vpop.f32.mrf.mxu0
      %v2884 = vadd.f32 %v2715, %v2883
      %2885 = vmatmul.bf16.gmra.mxu0 %v1702
      %v2886 = vpop.f32.mrf.mxu0
      %v2887 = vadd.f32 %v2718, %v2886
      %v2888 = vpop.f32.mrf.mxu0
      %v2889 = vadd.f32 %v2720, %v2888
      %2890 = vmatmul.bf16.gmra.mxu0 %v1710
      %v2891 = vpop.f32.mrf.mxu0
      %v2892 = vadd.f32 %v2723, %v2891
      %v2893 = vpop.f32.mrf.mxu0
      %v2894 = vadd.f32 %v2725, %v2893
      %2895 = vmatmul.bf16.gmra.mxu0 %v1718
      %v2896 = vpop.f32.mrf.mxu0
      %v2897 = vadd.f32 %v2728, %v2896
      %v2898 = vpop.f32.mrf.mxu0
      %v2899 = vadd.f32 %v2730, %v2898
      %2900 = vmatmul.bf16.gmra.mxu0 %v1726
      %v2901 = vpop.f32.mrf.mxu0
      %v2902 = vadd.f32 %v2733, %v2901
      %v2903 = vpop.f32.mrf.mxu0
      %v2904 = vadd.f32 %v2735, %v2903
      %2905 = vmatmul.bf16.gmra.mxu0 %v1734
      %v2906 = vpop.f32.mrf.mxu0
      %v2907 = vadd.f32 %v2738, %v2906
      %v2908 = vpop.f32.mrf.mxu0
      %v2909 = vadd.f32 %v2740, %v2908
      %2910 = vmatmul.bf16.gmra.mxu0 %v1742
      %v2911 = vpop.f32.mrf.mxu0
      %v2912 = vadd.f32 %v2743, %v2911
      %v2913 = vpop.f32.mrf.mxu0
      %v2914 = vadd.f32 %v2745, %v2913
      %2915 = vmatmul.bf16.gmra.mxu0 %v1750
      %v2916 = vpop.f32.mrf.mxu0
      %v2917 = vadd.f32 %v2748, %v2916
      %v2918 = vpop.f32.mrf.mxu0
      %v2919 = vadd.f32 %v2750, %v2918
      %2920 = vmatmul.bf16.gmra.mxu0 %v1758
      %v2921 = vpop.f32.mrf.mxu0
      %v2922 = vadd.f32 %v2753, %v2921
      %v2923 = vpop.f32.mrf.mxu0
      %v2924 = vadd.f32 %v2755, %v2923
      %2925 = vmatmul.bf16.gmra.mxu0 %v1766
      %v2926 = vpop.f32.mrf.mxu0
      %v2927 = vadd.f32 %v2758, %v2926
      %v2928 = vpop.f32.mrf.mxu0
      %v2929 = vadd.f32 %v2760, %v2928
      %2930 = vmatmul.bf16.gmra.mxu0 %v1774
      %v2931 = vpop.f32.mrf.mxu0
      %v2932 = vadd.f32 %v2763, %v2931
      %v2933 = vpop.f32.mrf.mxu0
      %v2934 = vadd.f32 %v2765, %v2933
      %2935 = vmatmul.bf16.gmra.mxu0 %v1782
      %v2936 = vpop.f32.mrf.mxu0
      %v2937 = vadd.f32 %v2768, %v2936
      %v2938 = vpop.f32.mrf.mxu0
      %v2939 = vadd.f32 %v2770, %v2938
      %2940 = vmatmul.bf16.gmra.mxu0 %v1790
      %v2941 = vpop.f32.mrf.mxu0
      %v2942 = vadd.f32 %v2773, %v2941
      %v2943 = vpop.f32.mrf.mxu0
      %v2944 = vadd.f32 %v2775, %v2943
      %2945 = vmatmul.bf16.gmra.mxu0 %v1798
      %v2946 = vpop.f32.mrf.mxu0
      %v2947 = vadd.f32 %v2778, %v2946
      %v2948 = vpop.f32.mrf.mxu0
      %v2949 = vadd.f32 %v2780, %v2948
      %2950 = vdwg.mxu0
      %2951 = vmatpush.bf16.msra.mxu0 %v2347
      %2952 = vmatpush.bf16.msra.mxu0 %v2346
      %2953 = vmatpush.bf16.msra.mxu0 %v2345
      %2954 = vmatpush.bf16.msra.mxu0 %v2344
      %2955 = vmatpush.bf16.msra.mxu0 %v2343
      %2956 = vmatpush.bf16.msra.mxu0 %v2342
      %2957 = vmatpush.bf16.msra.mxu0 %v2341
      %2958 = vmatpush.bf16.msra.mxu0 %v2340
      %2959 = vmatmul.bf16.gmra.mxu0 %v1551
      %v2960 = vpop.f32.mrf.mxu0
      %v2961 = vadd.f32 %v2792, %v2960
      %v2962 = vpop.f32.mrf.mxu0
      %v2963 = vadd.f32 %v2794, %v2962
      %2964 = vmatmul.bf16.gmra.mxu0 %v1559
      %v2965 = vpop.f32.mrf.mxu0
      %v2966 = vadd.f32 %v2797, %v2965
      %v2967 = vpop.f32.mrf.mxu0
      %v2968 = vadd.f32 %v2799, %v2967
      %2969 = vmatmul.bf16.gmra.mxu0 %v1567
      %v2970 = vpop.f32.mrf.mxu0
      %v2971 = vadd.f32 %v2802, %v2970
      %v2972 = vpop.f32.mrf.mxu0
      %v2973 = vadd.f32 %v2804, %v2972
      %2974 = vmatmul.bf16.gmra.mxu0 %v1575
      %v2975 = vpop.f32.mrf.mxu0
      %v2976 = vadd.f32 %v2807, %v2975
      %v2977 = vpop.f32.mrf.mxu0
      %v2978 = vadd.f32 %v2809, %v2977
      %2979 = vmatmul.bf16.gmra.mxu0 %v1583
      %v2980 = vpop.f32.mrf.mxu0
      %v2981 = vadd.f32 %v2812, %v2980
      %v2982 = vpop.f32.mrf.mxu0
      %v2983 = vadd.f32 %v2814, %v2982
      %2984 = vmatmul.bf16.gmra.mxu0 %v1591
      %v2985 = vpop.f32.mrf.mxu0
      %v2986 = vadd.f32 %v2817, %v2985
      %v2987 = vpop.f32.mrf.mxu0
      %v2988 = vadd.f32 %v2819, %v2987
      %2989 = vmatmul.bf16.gmra.mxu0 %v1599
      %v2990 = vpop.f32.mrf.mxu0
      %v2991 = vadd.f32 %v2822, %v2990
      %v2992 = vpop.f32.mrf.mxu0
      %v2993 = vadd.f32 %v2824, %v2992
      %2994 = vmatmul.bf16.gmra.mxu0 %v1607
      %v2995 = vpop.f32.mrf.mxu0
      %v2996 = vadd.f32 %v2827, %v2995
      %v2997 = vpop.f32.mrf.mxu0
      %v2998 = vadd.f32 %v2829, %v2997
      %2999 = vmatmul.bf16.gmra.mxu0 %v1615
      %v3000 = vpop.f32.mrf.mxu0
      %v3001 = vadd.f32 %v2832, %v3000
      %v3002 = vpop.f32.mrf.mxu0
      %v3003 = vadd.f32 %v2834, %v3002
      %3004 = vmatmul.bf16.gmra.mxu0 %v1623
      %v3005 = vpop.f32.mrf.mxu0
      %v3006 = vadd.f32 %v2837, %v3005
      %v3007 = vpop.f32.mrf.mxu0
      %v3008 = vadd.f32 %v2839, %v3007
      %3009 = vmatmul.bf16.gmra.mxu0 %v1631
      %v3010 = vpop.f32.mrf.mxu0
      %v3011 = vadd.f32 %v2842, %v3010
      %v3012 = vpop.f32.mrf.mxu0
      %v3013 = vadd.f32 %v2844, %v3012
      %3014 = vmatmul.bf16.gmra.mxu0 %v1639
      %v3015 = vpop.f32.mrf.mxu0
      %v3016 = vadd.f32 %v2847, %v3015
      %v3017 = vpop.f32.mrf.mxu0
      %v3018 = vadd.f32 %v2849, %v3017
      %3019 = vmatmul.bf16.gmra.mxu0 %v1647
      %v3020 = vpop.f32.mrf.mxu0
      %v3021 = vadd.f32 %v2852, %v3020
      %v3022 = vpop.f32.mrf.mxu0
      %v3023 = vadd.f32 %v2854, %v3022
      %3024 = vmatmul.bf16.gmra.mxu0 %v1655
      %v3025 = vpop.f32.mrf.mxu0
      %v3026 = vadd.f32 %v2857, %v3025
      %v3027 = vpop.f32.mrf.mxu0
      %v3028 = vadd.f32 %v2859, %v3027
      %3029 = vmatmul.bf16.gmra.mxu0 %v1663
      %v3030 = vpop.f32.mrf.mxu0
      %v3031 = vadd.f32 %v2862, %v3030
      %v3032 = vpop.f32.mrf.mxu0
      %v3033 = vadd.f32 %v2864, %v3032
      %3034 = vmatmul.bf16.gmra.mxu0 %v1671
      %v3035 = vpop.f32.mrf.mxu0
      %v3036 = vadd.f32 %v2867, %v3035
      %v3037 = vpop.f32.mrf.mxu0
      %v3038 = vadd.f32 %v2869, %v3037
      %3039 = vmatmul.bf16.gmra.mxu0 %v1679
      %v3040 = vpop.f32.mrf.mxu0
      %v3041 = vadd.f32 %v2872, %v3040
      %v3042 = vpop.f32.mrf.mxu0
      %v3043 = vadd.f32 %v2874, %v3042
      %3044 = vmatmul.bf16.gmra.mxu0 %v1687
      %v3045 = vpop.f32.mrf.mxu0
      %v3046 = vadd.f32 %v2877, %v3045
      %v3047 = vpop.f32.mrf.mxu0
      %v3048 = vadd.f32 %v2879, %v3047
      %3049 = vmatmul.bf16.gmra.mxu0 %v1695
      %v3050 = vpop.f32.mrf.mxu0
      %v3051 = vadd.f32 %v2882, %v3050
      %v3052 = vpop.f32.mrf.mxu0
      %v3053 = vadd.f32 %v2884, %v3052
      %3054 = vmatmul.bf16.gmra.mxu0 %v1703
      %v3055 = vpop.f32.mrf.mxu0
      %v3056 = vadd.f32 %v2887, %v3055
      %v3057 = vpop.f32.mrf.mxu0
      %v3058 = vadd.f32 %v2889, %v3057
      %3059 = vmatmul.bf16.gmra.mxu0 %v1711
      %v3060 = vpop.f32.mrf.mxu0
      %v3061 = vadd.f32 %v2892, %v3060
      %v3062 = vpop.f32.mrf.mxu0
      %v3063 = vadd.f32 %v2894, %v3062
      %3064 = vmatmul.bf16.gmra.mxu0 %v1719
      %v3065 = vpop.f32.mrf.mxu0
      %v3066 = vadd.f32 %v2897, %v3065
      %v3067 = vpop.f32.mrf.mxu0
      %v3068 = vadd.f32 %v2899, %v3067
      %3069 = vmatmul.bf16.gmra.mxu0 %v1727
      %v3070 = vpop.f32.mrf.mxu0
      %v3071 = vadd.f32 %v2902, %v3070
      %v3072 = vpop.f32.mrf.mxu0
      %v3073 = vadd.f32 %v2904, %v3072
      %3074 = vmatmul.bf16.gmra.mxu0 %v1735
      %v3075 = vpop.f32.mrf.mxu0
      %v3076 = vadd.f32 %v2907, %v3075
      %v3077 = vpop.f32.mrf.mxu0
      %v3078 = vadd.f32 %v2909, %v3077
      %3079 = vmatmul.bf16.gmra.mxu0 %v1743
      %v3080 = vpop.f32.mrf.mxu0
      %v3081 = vadd.f32 %v2912, %v3080
      %v3082 = vpop.f32.mrf.mxu0
      %v3083 = vadd.f32 %v2914, %v3082
      %3084 = vmatmul.bf16.gmra.mxu0 %v1751
      %v3085 = vpop.f32.mrf.mxu0
      %v3086 = vadd.f32 %v2917, %v3085
      %v3087 = vpop.f32.mrf.mxu0
      %v3088 = vadd.f32 %v2919, %v3087
      %3089 = vmatmul.bf16.gmra.mxu0 %v1759
      %v3090 = vpop.f32.mrf.mxu0
      %v3091 = vadd.f32 %v2922, %v3090
      %v3092 = vpop.f32.mrf.mxu0
      %v3093 = vadd.f32 %v2924, %v3092
      %3094 = vmatmul.bf16.gmra.mxu0 %v1767
      %v3095 = vpop.f32.mrf.mxu0
      %v3096 = vadd.f32 %v2927, %v3095
      %v3097 = vpop.f32.mrf.mxu0
      %v3098 = vadd.f32 %v2929, %v3097
      %3099 = vmatmul.bf16.gmra.mxu0 %v1775
      %v3100 = vpop.f32.mrf.mxu0
      %v3101 = vadd.f32 %v2932, %v3100
      %v3102 = vpop.f32.mrf.mxu0
      %v3103 = vadd.f32 %v2934, %v3102
      %3104 = vmatmul.bf16.gmra.mxu0 %v1783
      %v3105 = vpop.f32.mrf.mxu0
      %v3106 = vadd.f32 %v2937, %v3105
      %v3107 = vpop.f32.mrf.mxu0
      %v3108 = vadd.f32 %v2939, %v3107
      %3109 = vmatmul.bf16.gmra.mxu0 %v1791
      %v3110 = vpop.f32.mrf.mxu0
      %v3111 = vadd.f32 %v2942, %v3110
      %v3112 = vpop.f32.mrf.mxu0
      %v3113 = vadd.f32 %v2944, %v3112
      %3114 = vmatmul.bf16.gmra.mxu0 %v1799
      %v3115 = vpop.f32.mrf.mxu0
      %v3116 = vadd.f32 %v2947, %v3115
      %v3117 = vpop.f32.mrf.mxu0
      %v3118 = vadd.f32 %v2949, %v3117
      %3119 = vdwg.mxu0
      %3120 = vmatpush.bf16.msra.mxu0 %v2355
      %3121 = vmatpush.bf16.msra.mxu0 %v2354
      %3122 = vmatpush.bf16.msra.mxu0 %v2353
      %3123 = vmatpush.bf16.msra.mxu0 %v2352
      %3124 = vmatpush.bf16.msra.mxu0 %v2351
      %3125 = vmatpush.bf16.msra.mxu0 %v2350
      %3126 = vmatpush.bf16.msra.mxu0 %v2349
      %3127 = vmatpush.bf16.msra.mxu0 %v2348
      %3128 = vmatmul.bf16.gmra.mxu0 %v1552
      %v3129 = vpop.f32.mrf.mxu0
      %v3130 = vadd.f32 %v2961, %v3129
      %v3131 = vpop.f32.mrf.mxu0
      %v3132 = vadd.f32 %v2963, %v3131
      %3133 = vmatmul.bf16.gmra.mxu0 %v1560
      %v3134 = vpop.f32.mrf.mxu0
      %v3135 = vadd.f32 %v2966, %v3134
      %v3136 = vpop.f32.mrf.mxu0
      %v3137 = vadd.f32 %v2968, %v3136
      %3138 = vmatmul.bf16.gmra.mxu0 %v1568
      %v3139 = vpop.f32.mrf.mxu0
      %v3140 = vadd.f32 %v2971, %v3139
      %v3141 = vpop.f32.mrf.mxu0
      %v3142 = vadd.f32 %v2973, %v3141
      %3143 = vmatmul.bf16.gmra.mxu0 %v1576
      %v3144 = vpop.f32.mrf.mxu0
      %v3145 = vadd.f32 %v2976, %v3144
      %v3146 = vpop.f32.mrf.mxu0
      %v3147 = vadd.f32 %v2978, %v3146
      %3148 = vmatmul.bf16.gmra.mxu0 %v1584
      %v3149 = vpop.f32.mrf.mxu0
      %v3150 = vadd.f32 %v2981, %v3149
      %v3151 = vpop.f32.mrf.mxu0
      %v3152 = vadd.f32 %v2983, %v3151
      %3153 = vmatmul.bf16.gmra.mxu0 %v1592
      %v3154 = vpop.f32.mrf.mxu0
      %v3155 = vadd.f32 %v2986, %v3154
      %v3156 = vpop.f32.mrf.mxu0
      %v3157 = vadd.f32 %v2988, %v3156
      %3158 = vmatmul.bf16.gmra.mxu0 %v1600
      %v3159 = vpop.f32.mrf.mxu0
      %v3160 = vadd.f32 %v2991, %v3159
      %v3161 = vpop.f32.mrf.mxu0
      %v3162 = vadd.f32 %v2993, %v3161
      %3163 = vmatmul.bf16.gmra.mxu0 %v1608
      %v3164 = vpop.f32.mrf.mxu0
      %v3165 = vadd.f32 %v2996, %v3164
      %v3166 = vpop.f32.mrf.mxu0
      %v3167 = vadd.f32 %v2998, %v3166
      %3168 = vmatmul.bf16.gmra.mxu0 %v1616
      %v3169 = vpop.f32.mrf.mxu0
      %v3170 = vadd.f32 %v3001, %v3169
      %v3171 = vpop.f32.mrf.mxu0
      %v3172 = vadd.f32 %v3003, %v3171
      %3173 = vmatmul.bf16.gmra.mxu0 %v1624
      %v3174 = vpop.f32.mrf.mxu0
      %v3175 = vadd.f32 %v3006, %v3174
      %v3176 = vpop.f32.mrf.mxu0
      %v3177 = vadd.f32 %v3008, %v3176
      %3178 = vmatmul.bf16.gmra.mxu0 %v1632
      %v3179 = vpop.f32.mrf.mxu0
      %v3180 = vadd.f32 %v3011, %v3179
      %v3181 = vpop.f32.mrf.mxu0
      %v3182 = vadd.f32 %v3013, %v3181
      %3183 = vmatmul.bf16.gmra.mxu0 %v1640
      %v3184 = vpop.f32.mrf.mxu0
      %v3185 = vadd.f32 %v3016, %v3184
      %v3186 = vpop.f32.mrf.mxu0
      %v3187 = vadd.f32 %v3018, %v3186
      %3188 = vmatmul.bf16.gmra.mxu0 %v1648
      %v3189 = vpop.f32.mrf.mxu0
      %v3190 = vadd.f32 %v3021, %v3189
      %v3191 = vpop.f32.mrf.mxu0
      %v3192 = vadd.f32 %v3023, %v3191
      %3193 = vmatmul.bf16.gmra.mxu0 %v1656
      %v3194 = vpop.f32.mrf.mxu0
      %v3195 = vadd.f32 %v3026, %v3194
      %v3196 = vpop.f32.mrf.mxu0
      %v3197 = vadd.f32 %v3028, %v3196
      %3198 = vmatmul.bf16.gmra.mxu0 %v1664
      %v3199 = vpop.f32.mrf.mxu0
      %v3200 = vadd.f32 %v3031, %v3199
      %v3201 = vpop.f32.mrf.mxu0
      %v3202 = vadd.f32 %v3033, %v3201
      %3203 = vmatmul.bf16.gmra.mxu0 %v1672
      %v3204 = vpop.f32.mrf.mxu0
      %v3205 = vadd.f32 %v3036, %v3204
      %v3206 = vpop.f32.mrf.mxu0
      %v3207 = vadd.f32 %v3038, %v3206
      %3208 = vmatmul.bf16.gmra.mxu0 %v1680
      %v3209 = vpop.f32.mrf.mxu0
      %v3210 = vadd.f32 %v3041, %v3209
      %v3211 = vpop.f32.mrf.mxu0
      %v3212 = vadd.f32 %v3043, %v3211
      %3213 = vmatmul.bf16.gmra.mxu0 %v1688
      %v3214 = vpop.f32.mrf.mxu0
      %v3215 = vadd.f32 %v3046, %v3214
      %v3216 = vpop.f32.mrf.mxu0
      %v3217 = vadd.f32 %v3048, %v3216
      %3218 = vmatmul.bf16.gmra.mxu0 %v1696
      %v3219 = vpop.f32.mrf.mxu0
      %v3220 = vadd.f32 %v3051, %v3219
      %v3221 = vpop.f32.mrf.mxu0
      %v3222 = vadd.f32 %v3053, %v3221
      %3223 = vmatmul.bf16.gmra.mxu0 %v1704
      %v3224 = vpop.f32.mrf.mxu0
      %v3225 = vadd.f32 %v3056, %v3224
      %v3226 = vpop.f32.mrf.mxu0
      %v3227 = vadd.f32 %v3058, %v3226
      %3228 = vmatmul.bf16.gmra.mxu0 %v1712
      %v3229 = vpop.f32.mrf.mxu0
      %v3230 = vadd.f32 %v3061, %v3229
      %v3231 = vpop.f32.mrf.mxu0
      %v3232 = vadd.f32 %v3063, %v3231
      %3233 = vmatmul.bf16.gmra.mxu0 %v1720
      %v3234 = vpop.f32.mrf.mxu0
      %v3235 = vadd.f32 %v3066, %v3234
      %v3236 = vpop.f32.mrf.mxu0
      %v3237 = vadd.f32 %v3068, %v3236
      %3238 = vmatmul.bf16.gmra.mxu0 %v1728
      %v3239 = vpop.f32.mrf.mxu0
      %v3240 = vadd.f32 %v3071, %v3239
      %v3241 = vpop.f32.mrf.mxu0
      %v3242 = vadd.f32 %v3073, %v3241
      %3243 = vmatmul.bf16.gmra.mxu0 %v1736
      %v3244 = vpop.f32.mrf.mxu0
      %v3245 = vadd.f32 %v3076, %v3244
      %v3246 = vpop.f32.mrf.mxu0
      %v3247 = vadd.f32 %v3078, %v3246
      %3248 = vmatmul.bf16.gmra.mxu0 %v1744
      %v3249 = vpop.f32.mrf.mxu0
      %v3250 = vadd.f32 %v3081, %v3249
      %v3251 = vpop.f32.mrf.mxu0
      %v3252 = vadd.f32 %v3083, %v3251
      %3253 = vmatmul.bf16.gmra.mxu0 %v1752
      %v3254 = vpop.f32.mrf.mxu0
      %v3255 = vadd.f32 %v3086, %v3254
      %v3256 = vpop.f32.mrf.mxu0
      %v3257 = vadd.f32 %v3088, %v3256
      %3258 = vmatmul.bf16.gmra.mxu0 %v1760
      %v3259 = vpop.f32.mrf.mxu0
      %v3260 = vadd.f32 %v3091, %v3259
      %v3261 = vpop.f32.mrf.mxu0
      %v3262 = vadd.f32 %v3093, %v3261
      %3263 = vmatmul.bf16.gmra.mxu0 %v1768
      %v3264 = vpop.f32.mrf.mxu0
      %v3265 = vadd.f32 %v3096, %v3264
      %v3266 = vpop.f32.mrf.mxu0
      %v3267 = vadd.f32 %v3098, %v3266
      %3268 = vmatmul.bf16.gmra.mxu0 %v1776
      %v3269 = vpop.f32.mrf.mxu0
      %v3270 = vadd.f32 %v3101, %v3269
      %v3271 = vpop.f32.mrf.mxu0
      %v3272 = vadd.f32 %v3103, %v3271
      %3273 = vmatmul.bf16.gmra.mxu0 %v1784
      %v3274 = vpop.f32.mrf.mxu0
      %v3275 = vadd.f32 %v3106, %v3274
      %v3276 = vpop.f32.mrf.mxu0
      %v3277 = vadd.f32 %v3108, %v3276
      %3278 = vmatmul.bf16.gmra.mxu0 %v1792
      %v3279 = vpop.f32.mrf.mxu0
      %v3280 = vadd.f32 %v3111, %v3279
      %v3281 = vpop.f32.mrf.mxu0
      %v3282 = vadd.f32 %v3113, %v3281
      %3283 = vmatmul.bf16.gmra.mxu0 %v1800
      %v3284 = vpop.f32.mrf.mxu0
      %v3285 = vadd.f32 %v3116, %v3284
      %v3286 = vpop.f32.mrf.mxu0
      %v3287 = vadd.f32 %v3118, %v3286
      %3288 = vdwg.mxu0
      %3289 = vmatpush.bf16.msra.mxu0 %v2363
      %3290 = vmatpush.bf16.msra.mxu0 %v2362
      %3291 = vmatpush.bf16.msra.mxu0 %v2361
      %3292 = vmatpush.bf16.msra.mxu0 %v2360
      %3293 = vmatpush.bf16.msra.mxu0 %v2359
      %3294 = vmatpush.bf16.msra.mxu0 %v2358
      %3295 = vmatpush.bf16.msra.mxu0 %v2357
      %3296 = vmatpush.bf16.msra.mxu0 %v2356
      %3297 = vmatmul.bf16.gmra.mxu0 %v1553
      %v3298 = vpop.f32.mrf.mxu0
      %v3299 = vadd.f32 %v3130, %v3298
      %v3300 = vpop.f32.mrf.mxu0
      %v3301 = vadd.f32 %v3132, %v3300
      %3302 = vmatmul.bf16.gmra.mxu0 %v1561
      %v3303 = vpop.f32.mrf.mxu0
      %v3304 = vadd.f32 %v3135, %v3303
      %v3305 = vpop.f32.mrf.mxu0
      %v3306 = vadd.f32 %v3137, %v3305
      %3307 = vmatmul.bf16.gmra.mxu0 %v1569
      %v3308 = vpop.f32.mrf.mxu0
      %v3309 = vadd.f32 %v3140, %v3308
      %v3310 = vpop.f32.mrf.mxu0
      %v3311 = vadd.f32 %v3142, %v3310
      %3312 = vmatmul.bf16.gmra.mxu0 %v1577
      %v3313 = vpop.f32.mrf.mxu0
      %v3314 = vadd.f32 %v3145, %v3313
      %v3315 = vpop.f32.mrf.mxu0
      %v3316 = vadd.f32 %v3147, %v3315
      %3317 = vmatmul.bf16.gmra.mxu0 %v1585
      %v3318 = vpop.f32.mrf.mxu0
      %v3319 = vadd.f32 %v3150, %v3318
      %v3320 = vpop.f32.mrf.mxu0
      %v3321 = vadd.f32 %v3152, %v3320
      %3322 = vmatmul.bf16.gmra.mxu0 %v1593
      %v3323 = vpop.f32.mrf.mxu0
      %v3324 = vadd.f32 %v3155, %v3323
      %v3325 = vpop.f32.mrf.mxu0
      %v3326 = vadd.f32 %v3157, %v3325
      %3327 = vmatmul.bf16.gmra.mxu0 %v1601
      %v3328 = vpop.f32.mrf.mxu0
      %v3329 = vadd.f32 %v3160, %v3328
      %v3330 = vpop.f32.mrf.mxu0
      %v3331 = vadd.f32 %v3162, %v3330
      %3332 = vmatmul.bf16.gmra.mxu0 %v1609
      %v3333 = vpop.f32.mrf.mxu0
      %v3334 = vadd.f32 %v3165, %v3333
      %v3335 = vpop.f32.mrf.mxu0
      %v3336 = vadd.f32 %v3167, %v3335
      %3337 = vmatmul.bf16.gmra.mxu0 %v1617
      %v3338 = vpop.f32.mrf.mxu0
      %v3339 = vadd.f32 %v3170, %v3338
      %v3340 = vpop.f32.mrf.mxu0
      %v3341 = vadd.f32 %v3172, %v3340
      %3342 = vmatmul.bf16.gmra.mxu0 %v1625
      %v3343 = vpop.f32.mrf.mxu0
      %v3344 = vadd.f32 %v3175, %v3343
      %v3345 = vpop.f32.mrf.mxu0
      %v3346 = vadd.f32 %v3177, %v3345
      %3347 = vmatmul.bf16.gmra.mxu0 %v1633
      %v3348 = vpop.f32.mrf.mxu0
      %v3349 = vadd.f32 %v3180, %v3348
      %v3350 = vpop.f32.mrf.mxu0
      %v3351 = vadd.f32 %v3182, %v3350
      %3352 = vmatmul.bf16.gmra.mxu0 %v1641
      %v3353 = vpop.f32.mrf.mxu0
      %v3354 = vadd.f32 %v3185, %v3353
      %v3355 = vpop.f32.mrf.mxu0
      %v3356 = vadd.f32 %v3187, %v3355
      %3357 = vmatmul.bf16.gmra.mxu0 %v1649
      %v3358 = vpop.f32.mrf.mxu0
      %v3359 = vadd.f32 %v3190, %v3358
      %v3360 = vpop.f32.mrf.mxu0
      %v3361 = vadd.f32 %v3192, %v3360
      %3362 = vmatmul.bf16.gmra.mxu0 %v1657
      %v3363 = vpop.f32.mrf.mxu0
      %v3364 = vadd.f32 %v3195, %v3363
      %v3365 = vpop.f32.mrf.mxu0
      %v3366 = vadd.f32 %v3197, %v3365
      %3367 = vmatmul.bf16.gmra.mxu0 %v1665
      %v3368 = vpop.f32.mrf.mxu0
      %v3369 = vadd.f32 %v3200, %v3368
      %v3370 = vpop.f32.mrf.mxu0
      %v3371 = vadd.f32 %v3202, %v3370
      %3372 = vmatmul.bf16.gmra.mxu0 %v1673
      %v3373 = vpop.f32.mrf.mxu0
      %v3374 = vadd.f32 %v3205, %v3373
      %v3375 = vpop.f32.mrf.mxu0
      %v3376 = vadd.f32 %v3207, %v3375
      %3377 = vmatmul.bf16.gmra.mxu0 %v1681
      %v3378 = vpop.f32.mrf.mxu0
      %v3379 = vadd.f32 %v3210, %v3378
      %v3380 = vpop.f32.mrf.mxu0
      %v3381 = vadd.f32 %v3212, %v3380
      %3382 = vmatmul.bf16.gmra.mxu0 %v1689
      %v3383 = vpop.f32.mrf.mxu0
      %v3384 = vadd.f32 %v3215, %v3383
      %v3385 = vpop.f32.mrf.mxu0
      %v3386 = vadd.f32 %v3217, %v3385
      %3387 = vmatmul.bf16.gmra.mxu0 %v1697
      %v3388 = vpop.f32.mrf.mxu0
      %v3389 = vadd.f32 %v3220, %v3388
      %v3390 = vpop.f32.mrf.mxu0
      %v3391 = vadd.f32 %v3222, %v3390
      %3392 = vmatmul.bf16.gmra.mxu0 %v1705
      %v3393 = vpop.f32.mrf.mxu0
      %v3394 = vadd.f32 %v3225, %v3393
      %v3395 = vpop.f32.mrf.mxu0
      %v3396 = vadd.f32 %v3227, %v3395
      %3397 = vmatmul.bf16.gmra.mxu0 %v1713
      %v3398 = vpop.f32.mrf.mxu0
      %v3399 = vadd.f32 %v3230, %v3398
      %v3400 = vpop.f32.mrf.mxu0
      %v3401 = vadd.f32 %v3232, %v3400
      %3402 = vmatmul.bf16.gmra.mxu0 %v1721
      %v3403 = vpop.f32.mrf.mxu0
      %v3404 = vadd.f32 %v3235, %v3403
      %v3405 = vpop.f32.mrf.mxu0
      %v3406 = vadd.f32 %v3237, %v3405
      %3407 = vmatmul.bf16.gmra.mxu0 %v1729
      %v3408 = vpop.f32.mrf.mxu0
      %v3409 = vadd.f32 %v3240, %v3408
      %v3410 = vpop.f32.mrf.mxu0
      %v3411 = vadd.f32 %v3242, %v3410
      %3412 = vmatmul.bf16.gmra.mxu0 %v1737
      %v3413 = vpop.f32.mrf.mxu0
      %v3414 = vadd.f32 %v3245, %v3413
      %v3415 = vpop.f32.mrf.mxu0
      %v3416 = vadd.f32 %v3247, %v3415
      %3417 = vmatmul.bf16.gmra.mxu0 %v1745
      %v3418 = vpop.f32.mrf.mxu0
      %v3419 = vadd.f32 %v3250, %v3418
      %v3420 = vpop.f32.mrf.mxu0
      %v3421 = vadd.f32 %v3252, %v3420
      %3422 = vmatmul.bf16.gmra.mxu0 %v1753
      %v3423 = vpop.f32.mrf.mxu0
      %v3424 = vadd.f32 %v3255, %v3423
      %v3425 = vpop.f32.mrf.mxu0
      %v3426 = vadd.f32 %v3257, %v3425
      %3427 = vmatmul.bf16.gmra.mxu0 %v1761
      %v3428 = vpop.f32.mrf.mxu0
      %v3429 = vadd.f32 %v3260, %v3428
      %v3430 = vpop.f32.mrf.mxu0
      %v3431 = vadd.f32 %v3262, %v3430
      %3432 = vmatmul.bf16.gmra.mxu0 %v1769
      %v3433 = vpop.f32.mrf.mxu0
      %v3434 = vadd.f32 %v3265, %v3433
      %v3435 = vpop.f32.mrf.mxu0
      %v3436 = vadd.f32 %v3267, %v3435
      %3437 = vmatmul.bf16.gmra.mxu0 %v1777
      %v3438 = vpop.f32.mrf.mxu0
      %v3439 = vadd.f32 %v3270, %v3438
      %v3440 = vpop.f32.mrf.mxu0
      %v3441 = vadd.f32 %v3272, %v3440
      %3442 = vmatmul.bf16.gmra.mxu0 %v1785
      %v3443 = vpop.f32.mrf.mxu0
      %v3444 = vadd.f32 %v3275, %v3443
      %v3445 = vpop.f32.mrf.mxu0
      %v3446 = vadd.f32 %v3277, %v3445
      %3447 = vmatmul.bf16.gmra.mxu0 %v1793
      %v3448 = vpop.f32.mrf.mxu0
      %v3449 = vadd.f32 %v3280, %v3448
      %v3450 = vpop.f32.mrf.mxu0
      %v3451 = vadd.f32 %v3282, %v3450
      %3452 = vmatmul.bf16.gmra.mxu0 %v1801
      %v3453 = vpop.f32.mrf.mxu0
      %v3454 = vadd.f32 %v3285, %v3453
      %v3455 = vpop.f32.mrf.mxu0
      %v3456 = vadd.f32 %v3287, %v3455
      %3457 = vdwg.mxu0
      %3458 = vmatpush.bf16.msra.mxu0 %v2371
      %3459 = vmatpush.bf16.msra.mxu0 %v2370
      %3460 = vmatpush.bf16.msra.mxu0 %v2369
      %3461 = vmatpush.bf16.msra.mxu0 %v2368
      %3462 = vmatpush.bf16.msra.mxu0 %v2367
      %3463 = vmatpush.bf16.msra.mxu0 %v2366
      %3464 = vmatpush.bf16.msra.mxu0 %v2365
      %3465 = vmatpush.bf16.msra.mxu0 %v2364
      %3466 = vmatmul.bf16.gmra.mxu0 %v1554
      %v3467 = vpop.f32.mrf.mxu0
      %v3468 = vadd.f32 %v3299, %v3467
      %v3469 = vpop.f32.mrf.mxu0
      %v3470 = vadd.f32 %v3301, %v3469
      %3471 = vmatmul.bf16.gmra.mxu0 %v1562
      %v3472 = vpop.f32.mrf.mxu0
      %v3473 = vadd.f32 %v3304, %v3472
      %v3474 = vpop.f32.mrf.mxu0
      %v3475 = vadd.f32 %v3306, %v3474
      %3476 = vmatmul.bf16.gmra.mxu0 %v1570
      %v3477 = vpop.f32.mrf.mxu0
      %v3478 = vadd.f32 %v3309, %v3477
      %v3479 = vpop.f32.mrf.mxu0
      %v3480 = vadd.f32 %v3311, %v3479
      %3481 = vmatmul.bf16.gmra.mxu0 %v1578
      %v3482 = vpop.f32.mrf.mxu0
      %v3483 = vadd.f32 %v3314, %v3482
      %v3484 = vpop.f32.mrf.mxu0
      %v3485 = vadd.f32 %v3316, %v3484
      %3486 = vmatmul.bf16.gmra.mxu0 %v1586
      %v3487 = vpop.f32.mrf.mxu0
      %v3488 = vadd.f32 %v3319, %v3487
      %v3489 = vpop.f32.mrf.mxu0
      %v3490 = vadd.f32 %v3321, %v3489
      %3491 = vmatmul.bf16.gmra.mxu0 %v1594
      %v3492 = vpop.f32.mrf.mxu0
      %v3493 = vadd.f32 %v3324, %v3492
      %v3494 = vpop.f32.mrf.mxu0
      %v3495 = vadd.f32 %v3326, %v3494
      %3496 = vmatmul.bf16.gmra.mxu0 %v1602
      %v3497 = vpop.f32.mrf.mxu0
      %v3498 = vadd.f32 %v3329, %v3497
      %v3499 = vpop.f32.mrf.mxu0
      %v3500 = vadd.f32 %v3331, %v3499
      %3501 = vmatmul.bf16.gmra.mxu0 %v1610
      %v3502 = vpop.f32.mrf.mxu0
      %v3503 = vadd.f32 %v3334, %v3502
      %v3504 = vpop.f32.mrf.mxu0
      %v3505 = vadd.f32 %v3336, %v3504
      %3506 = vmatmul.bf16.gmra.mxu0 %v1618
      %v3507 = vpop.f32.mrf.mxu0
      %v3508 = vadd.f32 %v3339, %v3507
      %v3509 = vpop.f32.mrf.mxu0
      %v3510 = vadd.f32 %v3341, %v3509
      %3511 = vmatmul.bf16.gmra.mxu0 %v1626
      %v3512 = vpop.f32.mrf.mxu0
      %v3513 = vadd.f32 %v3344, %v3512
      %v3514 = vpop.f32.mrf.mxu0
      %v3515 = vadd.f32 %v3346, %v3514
      %3516 = vmatmul.bf16.gmra.mxu0 %v1634
      %v3517 = vpop.f32.mrf.mxu0
      %v3518 = vadd.f32 %v3349, %v3517
      %v3519 = vpop.f32.mrf.mxu0
      %v3520 = vadd.f32 %v3351, %v3519
      %3521 = vmatmul.bf16.gmra.mxu0 %v1642
      %v3522 = vpop.f32.mrf.mxu0
      %v3523 = vadd.f32 %v3354, %v3522
      %v3524 = vpop.f32.mrf.mxu0
      %v3525 = vadd.f32 %v3356, %v3524
      %3526 = vmatmul.bf16.gmra.mxu0 %v1650
      %v3527 = vpop.f32.mrf.mxu0
      %v3528 = vadd.f32 %v3359, %v3527
      %v3529 = vpop.f32.mrf.mxu0
      %v3530 = vadd.f32 %v3361, %v3529
      %3531 = vmatmul.bf16.gmra.mxu0 %v1658
      %v3532 = vpop.f32.mrf.mxu0
      %v3533 = vadd.f32 %v3364, %v3532
      %v3534 = vpop.f32.mrf.mxu0
      %v3535 = vadd.f32 %v3366, %v3534
      %3536 = vmatmul.bf16.gmra.mxu0 %v1666
      %v3537 = vpop.f32.mrf.mxu0
      %v3538 = vadd.f32 %v3369, %v3537
      %v3539 = vpop.f32.mrf.mxu0
      %v3540 = vadd.f32 %v3371, %v3539
      %3541 = vmatmul.bf16.gmra.mxu0 %v1674
      %v3542 = vpop.f32.mrf.mxu0
      %v3543 = vadd.f32 %v3374, %v3542
      %v3544 = vpop.f32.mrf.mxu0
      %v3545 = vadd.f32 %v3376, %v3544
      %3546 = vmatmul.bf16.gmra.mxu0 %v1682
      %v3547 = vpop.f32.mrf.mxu0
      %v3548 = vadd.f32 %v3379, %v3547
      %v3549 = vpop.f32.mrf.mxu0
      %v3550 = vadd.f32 %v3381, %v3549
      %3551 = vmatmul.bf16.gmra.mxu0 %v1690
      %v3552 = vpop.f32.mrf.mxu0
      %v3553 = vadd.f32 %v3384, %v3552
      %v3554 = vpop.f32.mrf.mxu0
      %v3555 = vadd.f32 %v3386, %v3554
      %3556 = vmatmul.bf16.gmra.mxu0 %v1698
      %v3557 = vpop.f32.mrf.mxu0
      %v3558 = vadd.f32 %v3389, %v3557
      %v3559 = vpop.f32.mrf.mxu0
      %v3560 = vadd.f32 %v3391, %v3559
      %3561 = vmatmul.bf16.gmra.mxu0 %v1706
      %v3562 = vpop.f32.mrf.mxu0
      %v3563 = vadd.f32 %v3394, %v3562
      %v3564 = vpop.f32.mrf.mxu0
      %v3565 = vadd.f32 %v3396, %v3564
      %3566 = vmatmul.bf16.gmra.mxu0 %v1714
      %v3567 = vpop.f32.mrf.mxu0
      %v3568 = vadd.f32 %v3399, %v3567
      %v3569 = vpop.f32.mrf.mxu0
      %v3570 = vadd.f32 %v3401, %v3569
      %3571 = vmatmul.bf16.gmra.mxu0 %v1722
      %v3572 = vpop.f32.mrf.mxu0
      %v3573 = vadd.f32 %v3404, %v3572
      %v3574 = vpop.f32.mrf.mxu0
      %v3575 = vadd.f32 %v3406, %v3574
      %3576 = vmatmul.bf16.gmra.mxu0 %v1730
      %v3577 = vpop.f32.mrf.mxu0
      %v3578 = vadd.f32 %v3409, %v3577
      %v3579 = vpop.f32.mrf.mxu0
      %v3580 = vadd.f32 %v3411, %v3579
      %3581 = vmatmul.bf16.gmra.mxu0 %v1738
      %v3582 = vpop.f32.mrf.mxu0
      %v3583 = vadd.f32 %v3414, %v3582
      %v3584 = vpop.f32.mrf.mxu0
      %v3585 = vadd.f32 %v3416, %v3584
      %3586 = vmatmul.bf16.gmra.mxu0 %v1746
      %v3587 = vpop.f32.mrf.mxu0
      %v3588 = vadd.f32 %v3419, %v3587
      %v3589 = vpop.f32.mrf.mxu0
      %v3590 = vadd.f32 %v3421, %v3589
      %3591 = vmatmul.bf16.gmra.mxu0 %v1754
      %v3592 = vpop.f32.mrf.mxu0
      %v3593 = vadd.f32 %v3424, %v3592
      %v3594 = vpop.f32.mrf.mxu0
      %v3595 = vadd.f32 %v3426, %v3594
      %3596 = vmatmul.bf16.gmra.mxu0 %v1762
      %v3597 = vpop.f32.mrf.mxu0
      %v3598 = vadd.f32 %v3429, %v3597
      %v3599 = vpop.f32.mrf.mxu0
      %v3600 = vadd.f32 %v3431, %v3599
      %3601 = vmatmul.bf16.gmra.mxu0 %v1770
      %v3602 = vpop.f32.mrf.mxu0
      %v3603 = vadd.f32 %v3434, %v3602
      %v3604 = vpop.f32.mrf.mxu0
      %v3605 = vadd.f32 %v3436, %v3604
      %3606 = vmatmul.bf16.gmra.mxu0 %v1778
      %v3607 = vpop.f32.mrf.mxu0
      %v3608 = vadd.f32 %v3439, %v3607
      %v3609 = vpop.f32.mrf.mxu0
      %v3610 = vadd.f32 %v3441, %v3609
      %3611 = vmatmul.bf16.gmra.mxu0 %v1786
      %v3612 = vpop.f32.mrf.mxu0
      %v3613 = vadd.f32 %v3444, %v3612
      %v3614 = vpop.f32.mrf.mxu0
      %v3615 = vadd.f32 %v3446, %v3614
      %3616 = vmatmul.bf16.gmra.mxu0 %v1794
      %v3617 = vpop.f32.mrf.mxu0
      %v3618 = vadd.f32 %v3449, %v3617
      %v3619 = vpop.f32.mrf.mxu0
      %v3620 = vadd.f32 %v3451, %v3619
      %3621 = vmatmul.bf16.gmra.mxu0 %v1802
      %v3622 = vpop.f32.mrf.mxu0
      %v3623 = vadd.f32 %v3454, %v3622
      %v3624 = vpop.f32.mrf.mxu0
      %v3625 = vadd.f32 %v3456, %v3624
      %3626 = vdwg.mxu0
      %3627 = vmatpush.bf16.msra.mxu0 %v2379
      %3628 = vmatpush.bf16.msra.mxu0 %v2378
      %3629 = vmatpush.bf16.msra.mxu0 %v2377
      %3630 = vmatpush.bf16.msra.mxu0 %v2376
      %3631 = vmatpush.bf16.msra.mxu0 %v2375
      %3632 = vmatpush.bf16.msra.mxu0 %v2374
      %3633 = vmatpush.bf16.msra.mxu0 %v2373
      %3634 = vmatpush.bf16.msra.mxu0 %v2372
      %3635 = vmatmul.bf16.gmra.mxu0 %v1555
      %v3636 = vpop.f32.mrf.mxu0
      %v3637 = vadd.f32 %v3468, %v3636
      %v3638 = vpop.f32.mrf.mxu0
      %v3639 = vadd.f32 %v3470, %v3638
      %3640 = vmatmul.bf16.gmra.mxu0 %v1563
      %v3641 = vpop.f32.mrf.mxu0
      %v3642 = vadd.f32 %v3473, %v3641
      %v3643 = vpop.f32.mrf.mxu0
      %v3644 = vadd.f32 %v3475, %v3643
      %3645 = vmatmul.bf16.gmra.mxu0 %v1571
      %v3646 = vpop.f32.mrf.mxu0
      %v3647 = vadd.f32 %v3478, %v3646
      %v3648 = vpop.f32.mrf.mxu0
      %v3649 = vadd.f32 %v3480, %v3648
      %3650 = vmatmul.bf16.gmra.mxu0 %v1579
      %v3651 = vpop.f32.mrf.mxu0
      %v3652 = vadd.f32 %v3483, %v3651
      %v3653 = vpop.f32.mrf.mxu0
      %v3654 = vadd.f32 %v3485, %v3653
      %3655 = vmatmul.bf16.gmra.mxu0 %v1587
      %v3656 = vpop.f32.mrf.mxu0
      %v3657 = vadd.f32 %v3488, %v3656
      %v3658 = vpop.f32.mrf.mxu0
      %v3659 = vadd.f32 %v3490, %v3658
      %3660 = vmatmul.bf16.gmra.mxu0 %v1595
      %v3661 = vpop.f32.mrf.mxu0
      %v3662 = vadd.f32 %v3493, %v3661
      %v3663 = vpop.f32.mrf.mxu0
      %v3664 = vadd.f32 %v3495, %v3663
      %3665 = vmatmul.bf16.gmra.mxu0 %v1603
      %v3666 = vpop.f32.mrf.mxu0
      %v3667 = vadd.f32 %v3498, %v3666
      %v3668 = vpop.f32.mrf.mxu0
      %v3669 = vadd.f32 %v3500, %v3668
      %3670 = vmatmul.bf16.gmra.mxu0 %v1611
      %v3671 = vpop.f32.mrf.mxu0
      %v3672 = vadd.f32 %v3503, %v3671
      %v3673 = vpop.f32.mrf.mxu0
      %v3674 = vadd.f32 %v3505, %v3673
      %3675 = vmatmul.bf16.gmra.mxu0 %v1619
      %v3676 = vpop.f32.mrf.mxu0
      %v3677 = vadd.f32 %v3508, %v3676
      %v3678 = vpop.f32.mrf.mxu0
      %v3679 = vadd.f32 %v3510, %v3678
      %3680 = vmatmul.bf16.gmra.mxu0 %v1627
      %v3681 = vpop.f32.mrf.mxu0
      %v3682 = vadd.f32 %v3513, %v3681
      %v3683 = vpop.f32.mrf.mxu0
      %v3684 = vadd.f32 %v3515, %v3683
      %3685 = vmatmul.bf16.gmra.mxu0 %v1635
      %v3686 = vpop.f32.mrf.mxu0
      %v3687 = vadd.f32 %v3518, %v3686
      %v3688 = vpop.f32.mrf.mxu0
      %v3689 = vadd.f32 %v3520, %v3688
      %3690 = vmatmul.bf16.gmra.mxu0 %v1643
      %v3691 = vpop.f32.mrf.mxu0
      %v3692 = vadd.f32 %v3523, %v3691
      %v3693 = vpop.f32.mrf.mxu0
      %v3694 = vadd.f32 %v3525, %v3693
      %3695 = vmatmul.bf16.gmra.mxu0 %v1651
      %v3696 = vpop.f32.mrf.mxu0
      %v3697 = vadd.f32 %v3528, %v3696
      %v3698 = vpop.f32.mrf.mxu0
      %v3699 = vadd.f32 %v3530, %v3698
      %3700 = vmatmul.bf16.gmra.mxu0 %v1659
      %v3701 = vpop.f32.mrf.mxu0
      %v3702 = vadd.f32 %v3533, %v3701
      %v3703 = vpop.f32.mrf.mxu0
      %v3704 = vadd.f32 %v3535, %v3703
      %3705 = vmatmul.bf16.gmra.mxu0 %v1667
      %v3706 = vpop.f32.mrf.mxu0
      %v3707 = vadd.f32 %v3538, %v3706
      %v3708 = vpop.f32.mrf.mxu0
      %v3709 = vadd.f32 %v3540, %v3708
      %3710 = vmatmul.bf16.gmra.mxu0 %v1675
      %v3711 = vpop.f32.mrf.mxu0
      %v3712 = vadd.f32 %v3543, %v3711
      %v3713 = vpop.f32.mrf.mxu0
      %v3714 = vadd.f32 %v3545, %v3713
      %3715 = vmatmul.bf16.gmra.mxu0 %v1683
      %v3716 = vpop.f32.mrf.mxu0
      %v3717 = vadd.f32 %v3548, %v3716
      %v3718 = vpop.f32.mrf.mxu0
      %v3719 = vadd.f32 %v3550, %v3718
      %3720 = vmatmul.bf16.gmra.mxu0 %v1691
      %v3721 = vpop.f32.mrf.mxu0
      %v3722 = vadd.f32 %v3553, %v3721
      %v3723 = vpop.f32.mrf.mxu0
      %v3724 = vadd.f32 %v3555, %v3723
      %3725 = vmatmul.bf16.gmra.mxu0 %v1699
      %v3726 = vpop.f32.mrf.mxu0
      %v3727 = vadd.f32 %v3558, %v3726
      %v3728 = vpop.f32.mrf.mxu0
      %v3729 = vadd.f32 %v3560, %v3728
      %3730 = vmatmul.bf16.gmra.mxu0 %v1707
      %v3731 = vpop.f32.mrf.mxu0
      %v3732 = vadd.f32 %v3563, %v3731
      %v3733 = vpop.f32.mrf.mxu0
      %v3734 = vadd.f32 %v3565, %v3733
      %3735 = vmatmul.bf16.gmra.mxu0 %v1715
      %v3736 = vpop.f32.mrf.mxu0
      %v3737 = vadd.f32 %v3568, %v3736
      %v3738 = vpop.f32.mrf.mxu0
      %v3739 = vadd.f32 %v3570, %v3738
      %3740 = vmatmul.bf16.gmra.mxu0 %v1723
      %v3741 = vpop.f32.mrf.mxu0
      %v3742 = vadd.f32 %v3573, %v3741
      %v3743 = vpop.f32.mrf.mxu0
      %v3744 = vadd.f32 %v3575, %v3743
      %3745 = vmatmul.bf16.gmra.mxu0 %v1731
      %v3746 = vpop.f32.mrf.mxu0
      %v3747 = vadd.f32 %v3578, %v3746
      %v3748 = vpop.f32.mrf.mxu0
      %v3749 = vadd.f32 %v3580, %v3748
      %3750 = vmatmul.bf16.gmra.mxu0 %v1739
      %v3751 = vpop.f32.mrf.mxu0
      %v3752 = vadd.f32 %v3583, %v3751
      %v3753 = vpop.f32.mrf.mxu0
      %v3754 = vadd.f32 %v3585, %v3753
      %3755 = vmatmul.bf16.gmra.mxu0 %v1747
      %v3756 = vpop.f32.mrf.mxu0
      %v3757 = vadd.f32 %v3588, %v3756
      %v3758 = vpop.f32.mrf.mxu0
      %v3759 = vadd.f32 %v3590, %v3758
      %3760 = vmatmul.bf16.gmra.mxu0 %v1755
      %v3761 = vpop.f32.mrf.mxu0
      %v3762 = vadd.f32 %v3593, %v3761
      %v3763 = vpop.f32.mrf.mxu0
      %v3764 = vadd.f32 %v3595, %v3763
      %3765 = vmatmul.bf16.gmra.mxu0 %v1763
      %v3766 = vpop.f32.mrf.mxu0
      %v3767 = vadd.f32 %v3598, %v3766
      %v3768 = vpop.f32.mrf.mxu0
      %v3769 = vadd.f32 %v3600, %v3768
      %3770 = vmatmul.bf16.gmra.mxu0 %v1771
      %v3771 = vpop.f32.mrf.mxu0
      %v3772 = vadd.f32 %v3603, %v3771
      %v3773 = vpop.f32.mrf.mxu0
      %v3774 = vadd.f32 %v3605, %v3773
      %3775 = vmatmul.bf16.gmra.mxu0 %v1779
      %v3776 = vpop.f32.mrf.mxu0
      %v3777 = vadd.f32 %v3608, %v3776
      %v3778 = vpop.f32.mrf.mxu0
      %v3779 = vadd.f32 %v3610, %v3778
      %3780 = vmatmul.bf16.gmra.mxu0 %v1787
      %v3781 = vpop.f32.mrf.mxu0
      %v3782 = vadd.f32 %v3613, %v3781
      %v3783 = vpop.f32.mrf.mxu0
      %v3784 = vadd.f32 %v3615, %v3783
      %3785 = vmatmul.bf16.gmra.mxu0 %v1795
      %v3786 = vpop.f32.mrf.mxu0
      %v3787 = vadd.f32 %v3618, %v3786
      %v3788 = vpop.f32.mrf.mxu0
      %v3789 = vadd.f32 %v3620, %v3788
      %3790 = vmatmul.bf16.gmra.mxu0 %v1803
      %v3791 = vpop.f32.mrf.mxu0
      %v3792 = vadd.f32 %v3623, %v3791
      %v3793 = vpop.f32.mrf.mxu0
      %v3794 = vadd.f32 %v3625, %v3793
      %3795 = vdwg.mxu0
      %v3796 = vadd.f32 %v328, %v3637
      %v3797 = vadd.f32 %v329, %v3639
      %v3798 = vadd.f32 %v330, %v3642
      %v3799 = vadd.f32 %v331, %v3644
      %v3800 = vadd.f32 %v332, %v3647
      %v3801 = vadd.f32 %v333, %v3649
      %v3802 = vadd.f32 %v334, %v3652
      %v3803 = vadd.f32 %v335, %v3654
      %v3804 = vadd.f32 %v336, %v3657
      %v3805 = vadd.f32 %v337, %v3659
      %v3806 = vadd.f32 %v338, %v3662
      %v3807 = vadd.f32 %v339, %v3664
      %v3808 = vadd.f32 %v340, %v3667
      %v3809 = vadd.f32 %v341, %v3669
      %v3810 = vadd.f32 %v342, %v3672
      %v3811 = vadd.f32 %v343, %v3674
      %v3812 = vadd.f32 %v344, %v3677
      %v3813 = vadd.f32 %v345, %v3679
      %v3814 = vadd.f32 %v346, %v3682
      %v3815 = vadd.f32 %v347, %v3684
      %v3816 = vadd.f32 %v348, %v3687
      %v3817 = vadd.f32 %v349, %v3689
      %v3818 = vadd.f32 %v350, %v3692
      %v3819 = vadd.f32 %v351, %v3694
      %v3820 = vadd.f32 %v352, %v3697
      %v3821 = vadd.f32 %v353, %v3699
      %v3822 = vadd.f32 %v354, %v3702
      %v3823 = vadd.f32 %v355, %v3704
      %v3824 = vadd.f32 %v356, %v3707
      %v3825 = vadd.f32 %v357, %v3709
      %v3826 = vadd.f32 %v358, %v3712
      %v3827 = vadd.f32 %v359, %v3714
      %v3828 = vadd.f32 %v360, %v3717
      %v3829 = vadd.f32 %v361, %v3719
      %v3830 = vadd.f32 %v362, %v3722
      %v3831 = vadd.f32 %v363, %v3724
      %v3832 = vadd.f32 %v364, %v3727
      %v3833 = vadd.f32 %v365, %v3729
      %v3834 = vadd.f32 %v366, %v3732
      %v3835 = vadd.f32 %v367, %v3734
      %v3836 = vadd.f32 %v368, %v3737
      %v3837 = vadd.f32 %v369, %v3739
      %v3838 = vadd.f32 %v370, %v3742
      %v3839 = vadd.f32 %v371, %v3744
      %v3840 = vadd.f32 %v372, %v3747
      %v3841 = vadd.f32 %v373, %v3749
      %v3842 = vadd.f32 %v374, %v3752
      %v3843 = vadd.f32 %v375, %v3754
      %v3844 = vadd.f32 %v376, %v3757
      %v3845 = vadd.f32 %v377, %v3759
      %v3846 = vadd.f32 %v378, %v3762
      %v3847 = vadd.f32 %v379, %v3764
      %v3848 = vadd.f32 %v380, %v3767
      %v3849 = vadd.f32 %v381, %v3769
      %v3850 = vadd.f32 %v382, %v3772
      %v3851 = vadd.f32 %v383, %v3774
      %v3852 = vadd.f32 %v384, %v3777
      %v3853 = vadd.f32 %v385, %v3779
      %v3854 = vadd.f32 %v386, %v3782
      %v3855 = vadd.f32 %v387, %v3784
      %v3856 = vadd.f32 %v388, %v3787
      %v3857 = vadd.f32 %v389, %v3789
      %v3858 = vadd.f32 %v390, %v3792
      %v3859 = vadd.f32 %v391, %v3794
      %3860 = vst [vmem:[#allocation2] sm:$0xff] %v3796
      %3861 = vst [vmem:[#allocation2 + $0x8] sm:$0xff] %v3797
      %3862 = vst [vmem:[#allocation2 + $0x10] sm:$0xff] %v3798
      %3863 = vst [vmem:[#allocation2 + $0x18] sm:$0xff] %v3799
      %3864 = vst [vmem:[#allocation2 + $0x20] sm:$0xff] %v3800
      %3865 = vst [vmem:[#allocation2 + $0x28] sm:$0xff] %v3801
      %3866 = vst [vmem:[#allocation2 + $0x30] sm:$0xff] %v3802
      %3867 = vst [vmem:[#allocation2 + $0x38] sm:$0xff] %v3803
      %3868 = vst [vmem:[#allocation2 + $0x40] sm:$0xff] %v3804
      %3869 = vst [vmem:[#allocation2 + $0x48] sm:$0xff] %v3805
      %3870 = vst [vmem:[#allocation2 + $0x50] sm:$0xff] %v3806
      %3871 = vst [vmem:[#allocation2 + $0x58] sm:$0xff] %v3807
      %3872 = vst [vmem:[#allocation2 + $0x60] sm:$0xff] %v3808
      %3873 = vst [vmem:[#allocation2 + $0x68] sm:$0xff] %v3809
      %3874 = vst [vmem:[#allocation2 + $0x70] sm:$0xff] %v3810
      %3875 = vst [vmem:[#allocation2 + $0x78] sm:$0xff] %v3811
      %3876 = vst [vmem:[#allocation2 + $0x80] sm:$0xff] %v3812
      %3877 = vst [vmem:[#allocation2 + $0x88] sm:$0xff] %v3813
      %3878 = vst [vmem:[#allocation2 + $0x90] sm:$0xff] %v3814
      %3879 = vst [vmem:[#allocation2 + $0x98] sm:$0xff] %v3815
      %3880 = vst [vmem:[#allocation2 + $0xa0] sm:$0xff] %v3816
      %3881 = vst [vmem:[#allocation2 + $0xa8] sm:$0xff] %v3817
      %3882 = vst [vmem:[#allocation2 + $0xb0] sm:$0xff] %v3818
      %3883 = vst [vmem:[#allocation2 + $0xb8] sm:$0xff] %v3819
      %3884 = vst [vmem:[#allocation2 + $0xc0] sm:$0xff] %v3820
      %3885 = vst [vmem:[#allocation2 + $0xc8] sm:$0xff] %v3821
      %3886 = vst [vmem:[#allocation2 + $0xd0] sm:$0xff] %v3822
      %3887 = vst [vmem:[#allocation2 + $0xd8] sm:$0xff] %v3823
      %3888 = vst [vmem:[#allocation2 + $0xe0] sm:$0xff] %v3824
      %3889 = vst [vmem:[#allocation2 + $0xe8] sm:$0xff] %v3825
      %3890 = vst [vmem:[#allocation2 + $0xf0] sm:$0xff] %v3826
      %3891 = vst [vmem:[#allocation2 + $0xf8] sm:$0xff] %v3827
      %3892 = vst [vmem:[#allocation2 + $0x100] sm:$0xff] %v3828
      %3893 = vst [vmem:[#allocation2 + $0x108] sm:$0xff] %v3829
      %3894 = vst [vmem:[#allocation2 + $0x110] sm:$0xff] %v3830
      %3895 = vst [vmem:[#allocation2 + $0x118] sm:$0xff] %v3831
      %3896 = vst [vmem:[#allocation2 + $0x120] sm:$0xff] %v3832
      %3897 = vst [vmem:[#allocation2 + $0x128] sm:$0xff] %v3833
      %3898 = vst [vmem:[#allocation2 + $0x130] sm:$0xff] %v3834
      %3899 = vst [vmem:[#allocation2 + $0x138] sm:$0xff] %v3835
      %3900 = vst [vmem:[#allocation2 + $0x140] sm:$0xff] %v3836
      %3901 = vst [vmem:[#allocation2 + $0x148] sm:$0xff] %v3837
      %3902 = vst [vmem:[#allocation2 + $0x150] sm:$0xff] %v3838
      %3903 = vst [vmem:[#allocation2 + $0x158] sm:$0xff] %v3839
      %3904 = vst [vmem:[#allocation2 + $0x160] sm:$0xff] %v3840
      %3905 = vst [vmem:[#allocation2 + $0x168] sm:$0xff] %v3841
      %3906 = vst [vmem:[#allocation2 + $0x170] sm:$0xff] %v3842
      %3907 = vst [vmem:[#allocation2 + $0x178] sm:$0xff] %v3843
      %3908 = vst [vmem:[#allocation2 + $0x180] sm:$0xff] %v3844
      %3909 = vst [vmem:[#allocation2 + $0x188] sm:$0xff] %v3845
      %3910 = vst [vmem:[#allocation2 + $0x190] sm:$0xff] %v3846
      %3911 = vst [vmem:[#allocation2 + $0x198] sm:$0xff] %v3847
      %3912 = vst [vmem:[#allocation2 + $0x1a0] sm:$0xff] %v3848
      %3913 = vst [vmem:[#allocation2 + $0x1a8] sm:$0xff] %v3849
      %3914 = vst [vmem:[#allocation2 + $0x1b0] sm:$0xff] %v3850
      %3915 = vst [vmem:[#allocation2 + $0x1b8] sm:$0xff] %v3851
      %3916 = vst [vmem:[#allocation2 + $0x1c0] sm:$0xff] %v3852
      %3917 = vst [vmem:[#allocation2 + $0x1c8] sm:$0xff] %v3853
      %3918 = vst [vmem:[#allocation2 + $0x1d0] sm:$0xff] %v3854
      %3919 = vst [vmem:[#allocation2 + $0x1d8] sm:$0xff] %v3855
      %3920 = vst [vmem:[#allocation2 + $0x1e0] sm:$0xff] %v3856
      %3921 = vst [vmem:[#allocation2 + $0x1e8] sm:$0xff] %v3857
      %3922 = vst [vmem:[#allocation2 + $0x1f0] sm:$0xff] %v3858
      %3923 = vst [vmem:[#allocation2 + $0x1f8] sm:$0xff] %v3859
      // Predicated region
      $region45: #{sageprop_forward.5} parent=39 // pred_check
        %p3924 = pneg %p259
      $region46: #{sageprop_forward.5} parent=39 // pred_check_branch
        %3926 = sbr.rel (%p3924) target = $region48
      $region47: #{sageprop_forward.5} parent=39 // pred_region
        %s3927 = smul.u32 %s20, 512
        %s3928 = sshra.s32 %s3927, 3
        %s3929 = sand.u32 %s3927, 7
        %s3930 = smul.addr %s3928, 4
        %s3931 = scalar_lea.vmem %s1, %s3930
        %v3932 = vld [vmem:[%s3931] sm:$0xf]
        %v3933 = vld [vmem:[%s3931 + $0x4] sm:$0xf]
        %v3934 = vld [vmem:[%s3931 + $0x8] sm:$0xf]
        %v3935 = vld [vmem:[%s3931 + $0xc] sm:$0xf]
        %v3936 = vld [vmem:[%s3931 + $0x10] sm:$0xf]
        %v3937 = vld [vmem:[%s3931 + $0x14] sm:$0xf]
        %v3938 = vld [vmem:[%s3931 + $0x18] sm:$0xf]
        %v3939 = vld [vmem:[%s3931 + $0x1c] sm:$0xf]
        %v3940 = vld [vmem:[%s3931 + $0x20] sm:$0xf]
        %v3941 = vld [vmem:[%s3931 + $0x24] sm:$0xf]
        %v3942 = vld [vmem:[%s3931 + $0x28] sm:$0xf]
        %v3943 = vld [vmem:[%s3931 + $0x2c] sm:$0xf]
        %v3944 = vld [vmem:[%s3931 + $0x30] sm:$0xf]
        %v3945 = vld [vmem:[%s3931 + $0x34] sm:$0xf]
        %v3946 = vld [vmem:[%s3931 + $0x38] sm:$0xf]
        %v3947 = vld [vmem:[%s3931 + $0x3c] sm:$0xf]
        %v3948 = vld [vmem:[%s3931 + $0x40] sm:$0xf]
        %v3949 = vld [vmem:[%s3931 + $0x44] sm:$0xf]
        %v3950 = vld [vmem:[%s3931 + $0x48] sm:$0xf]
        %v3951 = vld [vmem:[%s3931 + $0x4c] sm:$0xf]
        %v3952 = vld [vmem:[%s3931 + $0x50] sm:$0xf]
        %v3953 = vld [vmem:[%s3931 + $0x54] sm:$0xf]
        %v3954 = vld [vmem:[%s3931 + $0x58] sm:$0xf]
        %v3955 = vld [vmem:[%s3931 + $0x5c] sm:$0xf]
        %v3956 = vld [vmem:[%s3931 + $0x60] sm:$0xf]
        %v3957 = vld [vmem:[%s3931 + $0x64] sm:$0xf]
        %v3958 = vld [vmem:[%s3931 + $0x68] sm:$0xf]
        %v3959 = vld [vmem:[%s3931 + $0x6c] sm:$0xf]
        %v3960 = vld [vmem:[%s3931 + $0x70] sm:$0xf]
        %v3961 = vld [vmem:[%s3931 + $0x74] sm:$0xf]
        %v3962 = vld [vmem:[%s3931 + $0x78] sm:$0xf]
        %v3963 = vld [vmem:[%s3931 + $0x7c] sm:$0xf]
        %v3964 = vld [vmem:[%s3931 + $0x80] sm:$0xf]
        %v3965 = vld [vmem:[%s3931 + $0x84] sm:$0xf]
        %v3966 = vld [vmem:[%s3931 + $0x88] sm:$0xf]
        %v3967 = vld [vmem:[%s3931 + $0x8c] sm:$0xf]
        %v3968 = vld [vmem:[%s3931 + $0x90] sm:$0xf]
        %v3969 = vld [vmem:[%s3931 + $0x94] sm:$0xf]
        %v3970 = vld [vmem:[%s3931 + $0x98] sm:$0xf]
        %v3971 = vld [vmem:[%s3931 + $0x9c] sm:$0xf]
        %v3972 = vld [vmem:[%s3931 + $0xa0] sm:$0xf]
        %v3973 = vld [vmem:[%s3931 + $0xa4] sm:$0xf]
        %v3974 = vld [vmem:[%s3931 + $0xa8] sm:$0xf]
        %v3975 = vld [vmem:[%s3931 + $0xac] sm:$0xf]
        %v3976 = vld [vmem:[%s3931 + $0xb0] sm:$0xf]
        %v3977 = vld [vmem:[%s3931 + $0xb4] sm:$0xf]
        %v3978 = vld [vmem:[%s3931 + $0xb8] sm:$0xf]
        %v3979 = vld [vmem:[%s3931 + $0xbc] sm:$0xf]
        %v3980 = vld [vmem:[%s3931 + $0xc0] sm:$0xf]
        %v3981 = vld [vmem:[%s3931 + $0xc4] sm:$0xf]
        %v3982 = vld [vmem:[%s3931 + $0xc8] sm:$0xf]
        %v3983 = vld [vmem:[%s3931 + $0xcc] sm:$0xf]
        %v3984 = vld [vmem:[%s3931 + $0xd0] sm:$0xf]
        %v3985 = vld [vmem:[%s3931 + $0xd4] sm:$0xf]
        %v3986 = vld [vmem:[%s3931 + $0xd8] sm:$0xf]
        %v3987 = vld [vmem:[%s3931 + $0xdc] sm:$0xf]
        %v3988 = vld [vmem:[%s3931 + $0xe0] sm:$0xf]
        %v3989 = vld [vmem:[%s3931 + $0xe4] sm:$0xf]
        %v3990 = vld [vmem:[%s3931 + $0xe8] sm:$0xf]
        %v3991 = vld [vmem:[%s3931 + $0xec] sm:$0xf]
        %v3992 = vld [vmem:[%s3931 + $0xf0] sm:$0xf]
        %v3993 = vld [vmem:[%s3931 + $0xf4] sm:$0xf]
        %v3994 = vld [vmem:[%s3931 + $0xf8] sm:$0xf]
        %v3995 = vld [vmem:[%s3931 + $0xfc] sm:$0xf]
        %v3996 = vld [vmem:[%s2] sm:$0xf]
        %v3997 = vld [vmem:[%s2 + $0x4] sm:$0xf]
        %v3998 = vld [vmem:[%s2 + $0x8] sm:$0xf]
        %v3999 = vld [vmem:[%s2 + $0xc] sm:$0xf]
        %v4000 = vld [vmem:[%s2 + $0x10] sm:$0xf]
        %v4001 = vld [vmem:[%s2 + $0x14] sm:$0xf]
        %v4002 = vld [vmem:[%s2 + $0x18] sm:$0xf]
        %v4003 = vld [vmem:[%s2 + $0x1c] sm:$0xf]
        %v4004 = vld [vmem:[%s2 + $0x20] sm:$0xf]
        %v4005 = vld [vmem:[%s2 + $0x24] sm:$0xf]
        %v4006 = vld [vmem:[%s2 + $0x28] sm:$0xf]
        %v4007 = vld [vmem:[%s2 + $0x2c] sm:$0xf]
        %v4008 = vld [vmem:[%s2 + $0x30] sm:$0xf]
        %v4009 = vld [vmem:[%s2 + $0x34] sm:$0xf]
        %v4010 = vld [vmem:[%s2 + $0x38] sm:$0xf]
        %v4011 = vld [vmem:[%s2 + $0x3c] sm:$0xf]
        %v4012 = vld [vmem:[#allocation2] sm:$0xff]
        %v4013 = vld [vmem:[#allocation2 + $0x8] sm:$0xff]
        %v4014 = vld [vmem:[#allocation2 + $0x10] sm:$0xff]
        %v4015 = vld [vmem:[#allocation2 + $0x18] sm:$0xff]
        %v4016 = vld [vmem:[#allocation2 + $0x20] sm:$0xff]
        %v4017 = vld [vmem:[#allocation2 + $0x28] sm:$0xff]
        %v4018 = vld [vmem:[#allocation2 + $0x30] sm:$0xff]
        %v4019 = vld [vmem:[#allocation2 + $0x38] sm:$0xff]
        %v4020 = vld [vmem:[#allocation2 + $0x40] sm:$0xff]
        %v4021 = vld [vmem:[#allocation2 + $0x48] sm:$0xff]
        %v4022 = vld [vmem:[#allocation2 + $0x50] sm:$0xff]
        %v4023 = vld [vmem:[#allocation2 + $0x58] sm:$0xff]
        %v4024 = vld [vmem:[#allocation2 + $0x60] sm:$0xff]
        %v4025 = vld [vmem:[#allocation2 + $0x68] sm:$0xff]
        %v4026 = vld [vmem:[#allocation2 + $0x70] sm:$0xff]
        %v4027 = vld [vmem:[#allocation2 + $0x78] sm:$0xff]
        %v4028 = vld [vmem:[#allocation2 + $0x80] sm:$0xff]
        %v4029 = vld [vmem:[#allocation2 + $0x88] sm:$0xff]
        %v4030 = vld [vmem:[#allocation2 + $0x90] sm:$0xff]
        %v4031 = vld [vmem:[#allocation2 + $0x98] sm:$0xff]
        %v4032 = vld [vmem:[#allocation2 + $0xa0] sm:$0xff]
        %v4033 = vld [vmem:[#allocation2 + $0xa8] sm:$0xff]
        %v4034 = vld [vmem:[#allocation2 + $0xb0] sm:$0xff]
        %v4035 = vld [vmem:[#allocation2 + $0xb8] sm:$0xff]
        %v4036 = vld [vmem:[#allocation2 + $0xc0] sm:$0xff]
        %v4037 = vld [vmem:[#allocation2 + $0xc8] sm:$0xff]
        %v4038 = vld [vmem:[#allocation2 + $0xd0] sm:$0xff]
        %v4039 = vld [vmem:[#allocation2 + $0xd8] sm:$0xff]
        %v4040 = vld [vmem:[#allocation2 + $0xe0] sm:$0xff]
        %v4041 = vld [vmem:[#allocation2 + $0xe8] sm:$0xff]
        %v4042 = vld [vmem:[#allocation2 + $0xf0] sm:$0xff]
        %v4043 = vld [vmem:[#allocation2 + $0xf8] sm:$0xff]
        %v4044 = vld [vmem:[#allocation2 + $0x100] sm:$0xff]
        %v4045 = vld [vmem:[#allocation2 + $0x108] sm:$0xff]
        %v4046 = vld [vmem:[#allocation2 + $0x110] sm:$0xff]
        %v4047 = vld [vmem:[#allocation2 + $0x118] sm:$0xff]
        %v4048 = vld [vmem:[#allocation2 + $0x120] sm:$0xff]
        %v4049 = vld [vmem:[#allocation2 + $0x128] sm:$0xff]
        %v4050 = vld [vmem:[#allocation2 + $0x130] sm:$0xff]
        %v4051 = vld [vmem:[#allocation2 + $0x138] sm:$0xff]
        %v4052 = vld [vmem:[#allocation2 + $0x140] sm:$0xff]
        %v4053 = vld [vmem:[#allocation2 + $0x148] sm:$0xff]
        %v4054 = vld [vmem:[#allocation2 + $0x150] sm:$0xff]
        %v4055 = vld [vmem:[#allocation2 + $0x158] sm:$0xff]
        %v4056 = vld [vmem:[#allocation2 + $0x160] sm:$0xff]
        %v4057 = vld [vmem:[#allocation2 + $0x168] sm:$0xff]
        %v4058 = vld [vmem:[#allocation2 + $0x170] sm:$0xff]
        %v4059 = vld [vmem:[#allocation2 + $0x178] sm:$0xff]
        %v4060 = vld [vmem:[#allocation2 + $0x180] sm:$0xff]
        %v4061 = vld [vmem:[#allocation2 + $0x188] sm:$0xff]
        %v4062 = vld [vmem:[#allocation2 + $0x190] sm:$0xff]
        %v4063 = vld [vmem:[#allocation2 + $0x198] sm:$0xff]
        %v4064 = vld [vmem:[#allocation2 + $0x1a0] sm:$0xff]
        %v4065 = vld [vmem:[#allocation2 + $0x1a8] sm:$0xff]
        %v4066 = vld [vmem:[#allocation2 + $0x1b0] sm:$0xff]
        %v4067 = vld [vmem:[#allocation2 + $0x1b8] sm:$0xff]
        %v4068 = vld [vmem:[#allocation2 + $0x1c0] sm:$0xff]
        %v4069 = vld [vmem:[#allocation2 + $0x1c8] sm:$0xff]
        %v4070 = vld [vmem:[#allocation2 + $0x1d0] sm:$0xff]
        %v4071 = vld [vmem:[#allocation2 + $0x1d8] sm:$0xff]
        %v4072 = vld [vmem:[#allocation2 + $0x1e0] sm:$0xff]
        %v4073 = vld [vmem:[#allocation2 + $0x1e8] sm:$0xff]
        %v4074 = vld [vmem:[#allocation2 + $0x1f0] sm:$0xff]
        %v4075 = vld [vmem:[#allocation2 + $0x1f8] sm:$0xff]
        %v4076 = vpack.c.bf16 %v4013, %v4012
        %v4077 = vpack.c.bf16 %v4015, %v4014
        %v4078 = vpack.c.bf16 %v4017, %v4016
        %v4079 = vpack.c.bf16 %v4019, %v4018
        %v4080 = vpack.c.bf16 %v4021, %v4020
        %v4081 = vpack.c.bf16 %v4023, %v4022
        %v4082 = vpack.c.bf16 %v4025, %v4024
        %v4083 = vpack.c.bf16 %v4027, %v4026
        %v4084 = vpack.c.bf16 %v4029, %v4028
        %v4085 = vpack.c.bf16 %v4031, %v4030
        %v4086 = vpack.c.bf16 %v4033, %v4032
        %v4087 = vpack.c.bf16 %v4035, %v4034
        %v4088 = vpack.c.bf16 %v4037, %v4036
        %v4089 = vpack.c.bf16 %v4039, %v4038
        %v4090 = vpack.c.bf16 %v4041, %v4040
        %v4091 = vpack.c.bf16 %v4043, %v4042
        %v4092 = vpack.c.bf16 %v4045, %v4044
        %v4093 = vpack.c.bf16 %v4047, %v4046
        %v4094 = vpack.c.bf16 %v4049, %v4048
        %v4095 = vpack.c.bf16 %v4051, %v4050
        %v4096 = vpack.c.bf16 %v4053, %v4052
        %v4097 = vpack.c.bf16 %v4055, %v4054
        %v4098 = vpack.c.bf16 %v4057, %v4056
        %v4099 = vpack.c.bf16 %v4059, %v4058
        %v4100 = vpack.c.bf16 %v4061, %v4060
        %v4101 = vpack.c.bf16 %v4063, %v4062
        %v4102 = vpack.c.bf16 %v4065, %v4064
        %v4103 = vpack.c.bf16 %v4067, %v4066
        %v4104 = vpack.c.bf16 %v4069, %v4068
        %v4105 = vpack.c.bf16 %v4071, %v4070
        %v4106 = vpack.c.bf16 %v4073, %v4072
        %v4107 = vpack.c.bf16 %v4075, %v4074
        %v4108 = vld [vmem:[%s3] sm:$0xf]
        %v4109 = vld [vmem:[%s3 + $0x4] sm:$0xf]
        %v4110 = vld [vmem:[%s3 + $0x8] sm:$0xf]
        %v4111 = vld [vmem:[%s3 + $0xc] sm:$0xf]
        %v4112 = vld [vmem:[%s3 + $0x10] sm:$0xf]
        %v4113 = vld [vmem:[%s3 + $0x14] sm:$0xf]
        %v4114 = vld [vmem:[%s3 + $0x18] sm:$0xf]
        %v4115 = vld [vmem:[%s3 + $0x1c] sm:$0xf]
        %v4116 = vld [vmem:[%s3 + $0x20] sm:$0xf]
        %v4117 = vld [vmem:[%s3 + $0x24] sm:$0xf]
        %v4118 = vld [vmem:[%s3 + $0x28] sm:$0xf]
        %v4119 = vld [vmem:[%s3 + $0x2c] sm:$0xf]
        %v4120 = vld [vmem:[%s3 + $0x30] sm:$0xf]
        %v4121 = vld [vmem:[%s3 + $0x34] sm:$0xf]
        %v4122 = vld [vmem:[%s3 + $0x38] sm:$0xf]
        %v4123 = vld [vmem:[%s3 + $0x3c] sm:$0xf]
        %v4140 = vunpack.c.l.b16 %v4108
        %v4141 = vunpack.c.l.b16 %v4109
        %v4142 = vunpack.c.l.b16 %v4110
        %v4143 = vunpack.c.l.b16 %v4111
        %v4144 = vunpack.c.l.b16 %v4112
        %v4145 = vunpack.c.l.b16 %v4113
        %v4146 = vunpack.c.l.b16 %v4114
        %v4147 = vunpack.c.l.b16 %v4115
        %v4148 = vunpack.c.l.b16 %v4116
        %v4149 = vunpack.c.l.b16 %v4117
        %v4150 = vunpack.c.l.b16 %v4118
        %v4151 = vunpack.c.l.b16 %v4119
        %v4152 = vunpack.c.l.b16 %v4120
        %v4153 = vunpack.c.l.b16 %v4121
        %v4154 = vunpack.c.l.b16 %v4122
        %v4155 = vunpack.c.l.b16 %v4123
        %v4156 = vpack.c.b16 %v4141, %v4140
        %v4157 = vpack.c.b16 %v4143, %v4142
        %v4158 = vpack.c.b16 %v4145, %v4144
        %v4159 = vpack.c.b16 %v4147, %v4146
        %v4160 = vpack.c.b16 %v4149, %v4148
        %v4161 = vpack.c.b16 %v4151, %v4150
        %v4162 = vpack.c.b16 %v4153, %v4152
        %v4163 = vpack.c.b16 %v4155, %v4154
        %4172 = vmatpush.bf16.msra.mxu0 %v4163
        %4173 = vmatpush.bf16.msra.mxu0 %v4162
        %4174 = vmatpush.bf16.msra.mxu0 %v4161
        %4175 = vmatpush.bf16.msra.mxu0 %v4160
        %4176 = vmatpush.bf16.msra.mxu0 %v4159
        %4177 = vmatpush.bf16.msra.mxu0 %v4158
        %4178 = vmatpush.bf16.msra.mxu0 %v4157
        %4179 = vmatpush.bf16.msra.mxu0 %v4156
        %4180 = vmatmul.bf16.gmra.mxu0 %v4076
        %v4181 = vpop.f32.mrf.mxu0
        %v4182 = vadd.f32 0.0, %v4181
        %v4183 = vpop.f32.mrf.mxu0
        %v4184 = vadd.f32 0.0, %v4183
        %4185 = vmatmul.bf16.gmra.mxu0 %v4077
        %v4186 = vpop.f32.mrf.mxu0
        %v4187 = vadd.f32 0.0, %v4186
        %v4188 = vpop.f32.mrf.mxu0
        %v4189 = vadd.f32 0.0, %v4188
        %4190 = vmatmul.bf16.gmra.mxu0 %v4078
        %v4191 = vpop.f32.mrf.mxu0
        %v4192 = vadd.f32 0.0, %v4191
        %v4193 = vpop.f32.mrf.mxu0
        %v4194 = vadd.f32 0.0, %v4193
        %4195 = vmatmul.bf16.gmra.mxu0 %v4079
        %v4196 = vpop.f32.mrf.mxu0
        %v4197 = vadd.f32 0.0, %v4196
        %v4198 = vpop.f32.mrf.mxu0
        %v4199 = vadd.f32 0.0, %v4198
        %4200 = vmatmul.bf16.gmra.mxu0 %v4080
        %v4201 = vpop.f32.mrf.mxu0
        %v4202 = vadd.f32 0.0, %v4201
        %v4203 = vpop.f32.mrf.mxu0
        %v4204 = vadd.f32 0.0, %v4203
        %4205 = vmatmul.bf16.gmra.mxu0 %v4081
        %v4206 = vpop.f32.mrf.mxu0
        %v4207 = vadd.f32 0.0, %v4206
        %v4208 = vpop.f32.mrf.mxu0
        %v4209 = vadd.f32 0.0, %v4208
        %4210 = vmatmul.bf16.gmra.mxu0 %v4082
        %v4211 = vpop.f32.mrf.mxu0
        %v4212 = vadd.f32 0.0, %v4211
        %v4213 = vpop.f32.mrf.mxu0
        %v4214 = vadd.f32 0.0, %v4213
        %4215 = vmatmul.bf16.gmra.mxu0 %v4083
        %v4216 = vpop.f32.mrf.mxu0
        %v4217 = vadd.f32 0.0, %v4216
        %v4218 = vpop.f32.mrf.mxu0
        %v4219 = vadd.f32 0.0, %v4218
        %4220 = vmatmul.bf16.gmra.mxu0 %v4084
        %v4221 = vpop.f32.mrf.mxu0
        %v4222 = vadd.f32 0.0, %v4221
        %v4223 = vpop.f32.mrf.mxu0
        %v4224 = vadd.f32 0.0, %v4223
        %4225 = vmatmul.bf16.gmra.mxu0 %v4085
        %v4226 = vpop.f32.mrf.mxu0
        %v4227 = vadd.f32 0.0, %v4226
        %v4228 = vpop.f32.mrf.mxu0
        %v4229 = vadd.f32 0.0, %v4228
        %4230 = vmatmul.bf16.gmra.mxu0 %v4086
        %v4231 = vpop.f32.mrf.mxu0
        %v4232 = vadd.f32 0.0, %v4231
        %v4233 = vpop.f32.mrf.mxu0
        %v4234 = vadd.f32 0.0, %v4233
        %4235 = vmatmul.bf16.gmra.mxu0 %v4087
        %v4236 = vpop.f32.mrf.mxu0
        %v4237 = vadd.f32 0.0, %v4236
        %v4238 = vpop.f32.mrf.mxu0
        %v4239 = vadd.f32 0.0, %v4238
        %4240 = vmatmul.bf16.gmra.mxu0 %v4088
        %v4241 = vpop.f32.mrf.mxu0
        %v4242 = vadd.f32 0.0, %v4241
        %v4243 = vpop.f32.mrf.mxu0
        %v4244 = vadd.f32 0.0, %v4243
        %4245 = vmatmul.bf16.gmra.mxu0 %v4089
        %v4246 = vpop.f32.mrf.mxu0
        %v4247 = vadd.f32 0.0, %v4246
        %v4248 = vpop.f32.mrf.mxu0
        %v4249 = vadd.f32 0.0, %v4248
        %4250 = vmatmul.bf16.gmra.mxu0 %v4090
        %v4251 = vpop.f32.mrf.mxu0
        %v4252 = vadd.f32 0.0, %v4251
        %v4253 = vpop.f32.mrf.mxu0
        %v4254 = vadd.f32 0.0, %v4253
        %4255 = vmatmul.bf16.gmra.mxu0 %v4091
        %v4256 = vpop.f32.mrf.mxu0
        %v4257 = vadd.f32 0.0, %v4256
        %v4258 = vpop.f32.mrf.mxu0
        %v4259 = vadd.f32 0.0, %v4258
        %4260 = vmatmul.bf16.gmra.mxu0 %v4092
        %v4261 = vpop.f32.mrf.mxu0
        %v4262 = vadd.f32 0.0, %v4261
        %v4263 = vpop.f32.mrf.mxu0
        %v4264 = vadd.f32 0.0, %v4263
        %4265 = vmatmul.bf16.gmra.mxu0 %v4093
        %v4266 = vpop.f32.mrf.mxu0
        %v4267 = vadd.f32 0.0, %v4266
        %v4268 = vpop.f32.mrf.mxu0
        %v4269 = vadd.f32 0.0, %v4268
        %4270 = vmatmul.bf16.gmra.mxu0 %v4094
        %v4271 = vpop.f32.mrf.mxu0
        %v4272 = vadd.f32 0.0, %v4271
        %v4273 = vpop.f32.mrf.mxu0
        %v4274 = vadd.f32 0.0, %v4273
        %4275 = vmatmul.bf16.gmra.mxu0 %v4095
        %v4276 = vpop.f32.mrf.mxu0
        %v4277 = vadd.f32 0.0, %v4276
        %v4278 = vpop.f32.mrf.mxu0
        %v4279 = vadd.f32 0.0, %v4278
        %4280 = vmatmul.bf16.gmra.mxu0 %v4096
        %v4281 = vpop.f32.mrf.mxu0
        %v4282 = vadd.f32 0.0, %v4281
        %v4283 = vpop.f32.mrf.mxu0
        %v4284 = vadd.f32 0.0, %v4283
        %4285 = vmatmul.bf16.gmra.mxu0 %v4097
        %v4286 = vpop.f32.mrf.mxu0
        %v4287 = vadd.f32 0.0, %v4286
        %v4288 = vpop.f32.mrf.mxu0
        %v4289 = vadd.f32 0.0, %v4288
        %4290 = vmatmul.bf16.gmra.mxu0 %v4098
        %v4291 = vpop.f32.mrf.mxu0
        %v4292 = vadd.f32 0.0, %v4291
        %v4293 = vpop.f32.mrf.mxu0
        %v4294 = vadd.f32 0.0, %v4293
        %4295 = vmatmul.bf16.gmra.mxu0 %v4099
        %v4296 = vpop.f32.mrf.mxu0
        %v4297 = vadd.f32 0.0, %v4296
        %v4298 = vpop.f32.mrf.mxu0
        %v4299 = vadd.f32 0.0, %v4298
        %4300 = vmatmul.bf16.gmra.mxu0 %v4100
        %v4301 = vpop.f32.mrf.mxu0
        %v4302 = vadd.f32 0.0, %v4301
        %v4303 = vpop.f32.mrf.mxu0
        %v4304 = vadd.f32 0.0, %v4303
        %4305 = vmatmul.bf16.gmra.mxu0 %v4101
        %v4306 = vpop.f32.mrf.mxu0
        %v4307 = vadd.f32 0.0, %v4306
        %v4308 = vpop.f32.mrf.mxu0
        %v4309 = vadd.f32 0.0, %v4308
        %4310 = vmatmul.bf16.gmra.mxu0 %v4102
        %v4311 = vpop.f32.mrf.mxu0
        %v4312 = vadd.f32 0.0, %v4311
        %v4313 = vpop.f32.mrf.mxu0
        %v4314 = vadd.f32 0.0, %v4313
        %4315 = vmatmul.bf16.gmra.mxu0 %v4103
        %v4316 = vpop.f32.mrf.mxu0
        %v4317 = vadd.f32 0.0, %v4316
        %v4318 = vpop.f32.mrf.mxu0
        %v4319 = vadd.f32 0.0, %v4318
        %4320 = vmatmul.bf16.gmra.mxu0 %v4104
        %v4321 = vpop.f32.mrf.mxu0
        %v4322 = vadd.f32 0.0, %v4321
        %v4323 = vpop.f32.mrf.mxu0
        %v4324 = vadd.f32 0.0, %v4323
        %4325 = vmatmul.bf16.gmra.mxu0 %v4105
        %v4326 = vpop.f32.mrf.mxu0
        %v4327 = vadd.f32 0.0, %v4326
        %v4328 = vpop.f32.mrf.mxu0
        %v4329 = vadd.f32 0.0, %v4328
        %4330 = vmatmul.bf16.gmra.mxu0 %v4106
        %v4331 = vpop.f32.mrf.mxu0
        %v4332 = vadd.f32 0.0, %v4331
        %v4333 = vpop.f32.mrf.mxu0
        %v4334 = vadd.f32 0.0, %v4333
        %4335 = vmatmul.bf16.gmra.mxu0 %v4107
        %v4336 = vpop.f32.mrf.mxu0
        %v4337 = vadd.f32 0.0, %v4336
        %v4338 = vpop.f32.mrf.mxu0
        %v4339 = vadd.f32 0.0, %v4338
        %4340 = vdwg.mxu0
        %v4405 = vunpack.c.l.b16 %v3932
        %v4406 = vunpack.c.l.b16 %v3933
        %v4407 = vunpack.c.l.b16 %v3934
        %v4408 = vunpack.c.l.b16 %v3935
        %v4409 = vunpack.c.l.b16 %v3936
        %v4410 = vunpack.c.l.b16 %v3937
        %v4411 = vunpack.c.l.b16 %v3938
        %v4412 = vunpack.c.l.b16 %v3939
        %v4413 = vunpack.c.l.b16 %v3940
        %v4414 = vunpack.c.l.b16 %v3941
        %v4415 = vunpack.c.l.b16 %v3942
        %v4416 = vunpack.c.l.b16 %v3943
        %v4417 = vunpack.c.l.b16 %v3944
        %v4418 = vunpack.c.l.b16 %v3945
        %v4419 = vunpack.c.l.b16 %v3946
        %v4420 = vunpack.c.l.b16 %v3947
        %v4421 = vunpack.c.l.b16 %v3948
        %v4422 = vunpack.c.l.b16 %v3949
        %v4423 = vunpack.c.l.b16 %v3950
        %v4424 = vunpack.c.l.b16 %v3951
        %v4425 = vunpack.c.l.b16 %v3952
        %v4426 = vunpack.c.l.b16 %v3953
        %v4427 = vunpack.c.l.b16 %v3954
        %v4428 = vunpack.c.l.b16 %v3955
        %v4429 = vunpack.c.l.b16 %v3956
        %v4430 = vunpack.c.l.b16 %v3957
        %v4431 = vunpack.c.l.b16 %v3958
        %v4432 = vunpack.c.l.b16 %v3959
        %v4433 = vunpack.c.l.b16 %v3960
        %v4434 = vunpack.c.l.b16 %v3961
        %v4435 = vunpack.c.l.b16 %v3962
        %v4436 = vunpack.c.l.b16 %v3963
        %v4437 = vunpack.c.l.b16 %v3964
        %v4438 = vunpack.c.l.b16 %v3965
        %v4439 = vunpack.c.l.b16 %v3966
        %v4440 = vunpack.c.l.b16 %v3967
        %v4441 = vunpack.c.l.b16 %v3968
        %v4442 = vunpack.c.l.b16 %v3969
        %v4443 = vunpack.c.l.b16 %v3970
        %v4444 = vunpack.c.l.b16 %v3971
        %v4445 = vunpack.c.l.b16 %v3972
        %v4446 = vunpack.c.l.b16 %v3973
        %v4447 = vunpack.c.l.b16 %v3974
        %v4448 = vunpack.c.l.b16 %v3975
        %v4449 = vunpack.c.l.b16 %v3976
        %v4450 = vunpack.c.l.b16 %v3977
        %v4451 = vunpack.c.l.b16 %v3978
        %v4452 = vunpack.c.l.b16 %v3979
        %v4453 = vunpack.c.l.b16 %v3980
        %v4454 = vunpack.c.l.b16 %v3981
        %v4455 = vunpack.c.l.b16 %v3982
        %v4456 = vunpack.c.l.b16 %v3983
        %v4457 = vunpack.c.l.b16 %v3984
        %v4458 = vunpack.c.l.b16 %v3985
        %v4459 = vunpack.c.l.b16 %v3986
        %v4460 = vunpack.c.l.b16 %v3987
        %v4461 = vunpack.c.l.b16 %v3988
        %v4462 = vunpack.c.l.b16 %v3989
        %v4463 = vunpack.c.l.b16 %v3990
        %v4464 = vunpack.c.l.b16 %v3991
        %v4465 = vunpack.c.l.b16 %v3992
        %v4466 = vunpack.c.l.b16 %v3993
        %v4467 = vunpack.c.l.b16 %v3994
        %v4468 = vunpack.c.l.b16 %v3995
        %v4469 = vpack.c.b16 %v4406, %v4405
        %v4470 = vpack.c.b16 %v4408, %v4407
        %v4471 = vpack.c.b16 %v4410, %v4409
        %v4472 = vpack.c.b16 %v4412, %v4411
        %v4473 = vpack.c.b16 %v4414, %v4413
        %v4474 = vpack.c.b16 %v4416, %v4415
        %v4475 = vpack.c.b16 %v4418, %v4417
        %v4476 = vpack.c.b16 %v4420, %v4419
        %v4477 = vpack.c.b16 %v4422, %v4421
        %v4478 = vpack.c.b16 %v4424, %v4423
        %v4479 = vpack.c.b16 %v4426, %v4425
        %v4480 = vpack.c.b16 %v4428, %v4427
        %v4481 = vpack.c.b16 %v4430, %v4429
        %v4482 = vpack.c.b16 %v4432, %v4431
        %v4483 = vpack.c.b16 %v4434, %v4433
        %v4484 = vpack.c.b16 %v4436, %v4435
        %v4485 = vpack.c.b16 %v4438, %v4437
        %v4486 = vpack.c.b16 %v4440, %v4439
        %v4487 = vpack.c.b16 %v4442, %v4441
        %v4488 = vpack.c.b16 %v4444, %v4443
        %v4489 = vpack.c.b16 %v4446, %v4445
        %v4490 = vpack.c.b16 %v4448, %v4447
        %v4491 = vpack.c.b16 %v4450, %v4449
        %v4492 = vpack.c.b16 %v4452, %v4451
        %v4493 = vpack.c.b16 %v4454, %v4453
        %v4494 = vpack.c.b16 %v4456, %v4455
        %v4495 = vpack.c.b16 %v4458, %v4457
        %v4496 = vpack.c.b16 %v4460, %v4459
        %v4497 = vpack.c.b16 %v4462, %v4461
        %v4498 = vpack.c.b16 %v4464, %v4463
        %v4499 = vpack.c.b16 %v4466, %v4465
        %v4500 = vpack.c.b16 %v4468, %v4467
        %v4549 = vunpack.c.l.b16 %v3996
        %v4550 = vunpack.c.l.b16 %v3997
        %v4551 = vunpack.c.l.b16 %v3998
        %v4552 = vunpack.c.l.b16 %v3999
        %v4553 = vunpack.c.l.b16 %v4000
        %v4554 = vunpack.c.l.b16 %v4001
        %v4555 = vunpack.c.l.b16 %v4002
        %v4556 = vunpack.c.l.b16 %v4003
        %v4557 = vunpack.c.l.b16 %v4004
        %v4558 = vunpack.c.l.b16 %v4005
        %v4559 = vunpack.c.l.b16 %v4006
        %v4560 = vunpack.c.l.b16 %v4007
        %v4561 = vunpack.c.l.b16 %v4008
        %v4562 = vunpack.c.l.b16 %v4009
        %v4563 = vunpack.c.l.b16 %v4010
        %v4564 = vunpack.c.l.b16 %v4011
        %v4565 = vpack.c.b16 %v4550, %v4549
        %v4566 = vpack.c.b16 %v4552, %v4551
        %v4567 = vpack.c.b16 %v4554, %v4553
        %v4568 = vpack.c.b16 %v4556, %v4555
        %v4569 = vpack.c.b16 %v4558, %v4557
        %v4570 = vpack.c.b16 %v4560, %v4559
        %v4571 = vpack.c.b16 %v4562, %v4561
        %v4572 = vpack.c.b16 %v4564, %v4563
        %4581 = vmatpush.bf16.msra.mxu0 %v4572
        %4582 = vmatpush.bf16.msra.mxu0 %v4571
        %4583 = vmatpush.bf16.msra.mxu0 %v4570
        %4584 = vmatpush.bf16.msra.mxu0 %v4569
        %4585 = vmatpush.bf16.msra.mxu0 %v4568
        %4586 = vmatpush.bf16.msra.mxu0 %v4567
        %4587 = vmatpush.bf16.msra.mxu0 %v4566
        %4588 = vmatpush.bf16.msra.mxu0 %v4565
        %4589 = vmatmul.bf16.gmra.mxu0 %v4469
        %v4590 = vpop.f32.mrf.mxu0
        %v4591 = vadd.f32 %v4182, %v4590
        %v4592 = vpop.f32.mrf.mxu0
        %v4593 = vadd.f32 %v4184, %v4592
        %4594 = vmatmul.bf16.gmra.mxu0 %v4470
        %v4595 = vpop.f32.mrf.mxu0
        %v4596 = vadd.f32 %v4187, %v4595
        %v4597 = vpop.f32.mrf.mxu0
        %v4598 = vadd.f32 %v4189, %v4597
        %4599 = vmatmul.bf16.gmra.mxu0 %v4471
        %v4600 = vpop.f32.mrf.mxu0
        %v4601 = vadd.f32 %v4192, %v4600
        %v4602 = vpop.f32.mrf.mxu0
        %v4603 = vadd.f32 %v4194, %v4602
        %4604 = vmatmul.bf16.gmra.mxu0 %v4472
        %v4605 = vpop.f32.mrf.mxu0
        %v4606 = vadd.f32 %v4197, %v4605
        %v4607 = vpop.f32.mrf.mxu0
        %v4608 = vadd.f32 %v4199, %v4607
        %4609 = vmatmul.bf16.gmra.mxu0 %v4473
        %v4610 = vpop.f32.mrf.mxu0
        %v4611 = vadd.f32 %v4202, %v4610
        %v4612 = vpop.f32.mrf.mxu0
        %v4613 = vadd.f32 %v4204, %v4612
        %4614 = vmatmul.bf16.gmra.mxu0 %v4474
        %v4615 = vpop.f32.mrf.mxu0
        %v4616 = vadd.f32 %v4207, %v4615
        %v4617 = vpop.f32.mrf.mxu0
        %v4618 = vadd.f32 %v4209, %v4617
        %4619 = vmatmul.bf16.gmra.mxu0 %v4475
        %v4620 = vpop.f32.mrf.mxu0
        %v4621 = vadd.f32 %v4212, %v4620
        %v4622 = vpop.f32.mrf.mxu0
        %v4623 = vadd.f32 %v4214, %v4622
        %4624 = vmatmul.bf16.gmra.mxu0 %v4476
        %v4625 = vpop.f32.mrf.mxu0
        %v4626 = vadd.f32 %v4217, %v4625
        %v4627 = vpop.f32.mrf.mxu0
        %v4628 = vadd.f32 %v4219, %v4627
        %4629 = vmatmul.bf16.gmra.mxu0 %v4477
        %v4630 = vpop.f32.mrf.mxu0
        %v4631 = vadd.f32 %v4222, %v4630
        %v4632 = vpop.f32.mrf.mxu0
        %v4633 = vadd.f32 %v4224, %v4632
        %4634 = vmatmul.bf16.gmra.mxu0 %v4478
        %v4635 = vpop.f32.mrf.mxu0
        %v4636 = vadd.f32 %v4227, %v4635
        %v4637 = vpop.f32.mrf.mxu0
        %v4638 = vadd.f32 %v4229, %v4637
        %4639 = vmatmul.bf16.gmra.mxu0 %v4479
        %v4640 = vpop.f32.mrf.mxu0
        %v4641 = vadd.f32 %v4232, %v4640
        %v4642 = vpop.f32.mrf.mxu0
        %v4643 = vadd.f32 %v4234, %v4642
        %4644 = vmatmul.bf16.gmra.mxu0 %v4480
        %v4645 = vpop.f32.mrf.mxu0
        %v4646 = vadd.f32 %v4237, %v4645
        %v4647 = vpop.f32.mrf.mxu0
        %v4648 = vadd.f32 %v4239, %v4647
        %4649 = vmatmul.bf16.gmra.mxu0 %v4481
        %v4650 = vpop.f32.mrf.mxu0
        %v4651 = vadd.f32 %v4242, %v4650
        %v4652 = vpop.f32.mrf.mxu0
        %v4653 = vadd.f32 %v4244, %v4652
        %4654 = vmatmul.bf16.gmra.mxu0 %v4482
        %v4655 = vpop.f32.mrf.mxu0
        %v4656 = vadd.f32 %v4247, %v4655
        %v4657 = vpop.f32.mrf.mxu0
        %v4658 = vadd.f32 %v4249, %v4657
        %4659 = vmatmul.bf16.gmra.mxu0 %v4483
        %v4660 = vpop.f32.mrf.mxu0
        %v4661 = vadd.f32 %v4252, %v4660
        %v4662 = vpop.f32.mrf.mxu0
        %v4663 = vadd.f32 %v4254, %v4662
        %4664 = vmatmul.bf16.gmra.mxu0 %v4484
        %v4665 = vpop.f32.mrf.mxu0
        %v4666 = vadd.f32 %v4257, %v4665
        %v4667 = vpop.f32.mrf.mxu0
        %v4668 = vadd.f32 %v4259, %v4667
        %4669 = vmatmul.bf16.gmra.mxu0 %v4485
        %v4670 = vpop.f32.mrf.mxu0
        %v4671 = vadd.f32 %v4262, %v4670
        %v4672 = vpop.f32.mrf.mxu0
        %v4673 = vadd.f32 %v4264, %v4672
        %4674 = vmatmul.bf16.gmra.mxu0 %v4486
        %v4675 = vpop.f32.mrf.mxu0
        %v4676 = vadd.f32 %v4267, %v4675
        %v4677 = vpop.f32.mrf.mxu0
        %v4678 = vadd.f32 %v4269, %v4677
        %4679 = vmatmul.bf16.gmra.mxu0 %v4487
        %v4680 = vpop.f32.mrf.mxu0
        %v4681 = vadd.f32 %v4272, %v4680
        %v4682 = vpop.f32.mrf.mxu0
        %v4683 = vadd.f32 %v4274, %v4682
        %4684 = vmatmul.bf16.gmra.mxu0 %v4488
        %v4685 = vpop.f32.mrf.mxu0
        %v4686 = vadd.f32 %v4277, %v4685
        %v4687 = vpop.f32.mrf.mxu0
        %v4688 = vadd.f32 %v4279, %v4687
        %4689 = vmatmul.bf16.gmra.mxu0 %v4489
        %v4690 = vpop.f32.mrf.mxu0
        %v4691 = vadd.f32 %v4282, %v4690
        %v4692 = vpop.f32.mrf.mxu0
        %v4693 = vadd.f32 %v4284, %v4692
        %4694 = vmatmul.bf16.gmra.mxu0 %v4490
        %v4695 = vpop.f32.mrf.mxu0
        %v4696 = vadd.f32 %v4287, %v4695
        %v4697 = vpop.f32.mrf.mxu0
        %v4698 = vadd.f32 %v4289, %v4697
        %4699 = vmatmul.bf16.gmra.mxu0 %v4491
        %v4700 = vpop.f32.mrf.mxu0
        %v4701 = vadd.f32 %v4292, %v4700
        %v4702 = vpop.f32.mrf.mxu0
        %v4703 = vadd.f32 %v4294, %v4702
        %4704 = vmatmul.bf16.gmra.mxu0 %v4492
        %v4705 = vpop.f32.mrf.mxu0
        %v4706 = vadd.f32 %v4297, %v4705
        %v4707 = vpop.f32.mrf.mxu0
        %v4708 = vadd.f32 %v4299, %v4707
        %4709 = vmatmul.bf16.gmra.mxu0 %v4493
        %v4710 = vpop.f32.mrf.mxu0
        %v4711 = vadd.f32 %v4302, %v4710
        %v4712 = vpop.f32.mrf.mxu0
        %v4713 = vadd.f32 %v4304, %v4712
        %4714 = vmatmul.bf16.gmra.mxu0 %v4494
        %v4715 = vpop.f32.mrf.mxu0
        %v4716 = vadd.f32 %v4307, %v4715
        %v4717 = vpop.f32.mrf.mxu0
        %v4718 = vadd.f32 %v4309, %v4717
        %4719 = vmatmul.bf16.gmra.mxu0 %v4495
        %v4720 = vpop.f32.mrf.mxu0
        %v4721 = vadd.f32 %v4312, %v4720
        %v4722 = vpop.f32.mrf.mxu0
        %v4723 = vadd.f32 %v4314, %v4722
        %4724 = vmatmul.bf16.gmra.mxu0 %v4496
        %v4725 = vpop.f32.mrf.mxu0
        %v4726 = vadd.f32 %v4317, %v4725
        %v4727 = vpop.f32.mrf.mxu0
        %v4728 = vadd.f32 %v4319, %v4727
        %4729 = vmatmul.bf16.gmra.mxu0 %v4497
        %v4730 = vpop.f32.mrf.mxu0
        %v4731 = vadd.f32 %v4322, %v4730
        %v4732 = vpop.f32.mrf.mxu0
        %v4733 = vadd.f32 %v4324, %v4732
        %4734 = vmatmul.bf16.gmra.mxu0 %v4498
        %v4735 = vpop.f32.mrf.mxu0
        %v4736 = vadd.f32 %v4327, %v4735
        %v4737 = vpop.f32.mrf.mxu0
        %v4738 = vadd.f32 %v4329, %v4737
        %4739 = vmatmul.bf16.gmra.mxu0 %v4499
        %v4740 = vpop.f32.mrf.mxu0
        %v4741 = vadd.f32 %v4332, %v4740
        %v4742 = vpop.f32.mrf.mxu0
        %v4743 = vadd.f32 %v4334, %v4742
        %4744 = vmatmul.bf16.gmra.mxu0 %v4500
        %v4745 = vpop.f32.mrf.mxu0
        %v4746 = vadd.f32 %v4337, %v4745
        %v4747 = vpop.f32.mrf.mxu0
        %v4748 = vadd.f32 %v4339, %v4747
        %4749 = vdwg.mxu0
        %v4750 = vld [vmem:[%s4] sm:$0x1]
        %v4752 = vperm.slane %v4750, 0
        %v4754 = vadd.f32 %v4591, %v4752
        %v4755 = vadd.f32 %v4593, %v4752
        %v4756 = vadd.f32 %v4596, %v4752
        %v4757 = vadd.f32 %v4598, %v4752
        %v4758 = vadd.f32 %v4601, %v4752
        %v4759 = vadd.f32 %v4603, %v4752
        %v4760 = vadd.f32 %v4606, %v4752
        %v4761 = vadd.f32 %v4608, %v4752
        %v4762 = vadd.f32 %v4611, %v4752
        %v4763 = vadd.f32 %v4613, %v4752
        %v4764 = vadd.f32 %v4616, %v4752
        %v4765 = vadd.f32 %v4618, %v4752
        %v4766 = vadd.f32 %v4621, %v4752
        %v4767 = vadd.f32 %v4623, %v4752
        %v4768 = vadd.f32 %v4626, %v4752
        %v4769 = vadd.f32 %v4628, %v4752
        %v4770 = vadd.f32 %v4631, %v4752
        %v4771 = vadd.f32 %v4633, %v4752
        %v4772 = vadd.f32 %v4636, %v4752
        %v4773 = vadd.f32 %v4638, %v4752
        %v4774 = vadd.f32 %v4641, %v4752
        %v4775 = vadd.f32 %v4643, %v4752
        %v4776 = vadd.f32 %v4646, %v4752
        %v4777 = vadd.f32 %v4648, %v4752
        %v4778 = vadd.f32 %v4651, %v4752
        %v4779 = vadd.f32 %v4653, %v4752
        %v4780 = vadd.f32 %v4656, %v4752
        %v4781 = vadd.f32 %v4658, %v4752
        %v4782 = vadd.f32 %v4661, %v4752
        %v4783 = vadd.f32 %v4663, %v4752
        %v4784 = vadd.f32 %v4666, %v4752
        %v4785 = vadd.f32 %v4668, %v4752
        %v4786 = vadd.f32 %v4671, %v4752
        %v4787 = vadd.f32 %v4673, %v4752
        %v4788 = vadd.f32 %v4676, %v4752
        %v4789 = vadd.f32 %v4678, %v4752
        %v4790 = vadd.f32 %v4681, %v4752
        %v4791 = vadd.f32 %v4683, %v4752
        %v4792 = vadd.f32 %v4686, %v4752
        %v4793 = vadd.f32 %v4688, %v4752
        %v4794 = vadd.f32 %v4691, %v4752
        %v4795 = vadd.f32 %v4693, %v4752
        %v4796 = vadd.f32 %v4696, %v4752
        %v4797 = vadd.f32 %v4698, %v4752
        %v4798 = vadd.f32 %v4701, %v4752
        %v4799 = vadd.f32 %v4703, %v4752
        %v4800 = vadd.f32 %v4706, %v4752
        %v4801 = vadd.f32 %v4708, %v4752
        %v4802 = vadd.f32 %v4711, %v4752
        %v4803 = vadd.f32 %v4713, %v4752
        %v4804 = vadd.f32 %v4716, %v4752
        %v4805 = vadd.f32 %v4718, %v4752
        %v4806 = vadd.f32 %v4721, %v4752
        %v4807 = vadd.f32 %v4723, %v4752
        %v4808 = vadd.f32 %v4726, %v4752
        %v4809 = vadd.f32 %v4728, %v4752
        %v4810 = vadd.f32 %v4731, %v4752
        %v4811 = vadd.f32 %v4733, %v4752
        %v4812 = vadd.f32 %v4736, %v4752
        %v4813 = vadd.f32 %v4738, %v4752
        %v4814 = vadd.f32 %v4741, %v4752
        %v4815 = vadd.f32 %v4743, %v4752
        %v4816 = vadd.f32 %v4746, %v4752
        %v4817 = vadd.f32 %v4748, %v4752
        %4818 = vst [vmem:[%s257] sm:$0xff] %v4754
        %4819 = vst [vmem:[%s257 + $0x8] sm:$0xff] %v4755
        %4820 = vst [vmem:[%s257 + $0x10] sm:$0xff] %v4756
        %4821 = vst [vmem:[%s257 + $0x18] sm:$0xff] %v4757
        %4822 = vst [vmem:[%s257 + $0x20] sm:$0xff] %v4758
        %4823 = vst [vmem:[%s257 + $0x28] sm:$0xff] %v4759
        %4824 = vst [vmem:[%s257 + $0x30] sm:$0xff] %v4760
        %4825 = vst [vmem:[%s257 + $0x38] sm:$0xff] %v4761
        %4826 = vst [vmem:[%s257 + $0x40] sm:$0xff] %v4762
        %4827 = vst [vmem:[%s257 + $0x48] sm:$0xff] %v4763
        %4828 = vst [vmem:[%s257 + $0x50] sm:$0xff] %v4764
        %4829 = vst [vmem:[%s257 + $0x58] sm:$0xff] %v4765
        %4830 = vst [vmem:[%s257 + $0x60] sm:$0xff] %v4766
        %4831 = vst [vmem:[%s257 + $0x68] sm:$0xff] %v4767
        %4832 = vst [vmem:[%s257 + $0x70] sm:$0xff] %v4768
        %4833 = vst [vmem:[%s257 + $0x78] sm:$0xff] %v4769
        %4834 = vst [vmem:[%s257 + $0x80] sm:$0xff] %v4770
        %4835 = vst [vmem:[%s257 + $0x88] sm:$0xff] %v4771
        %4836 = vst [vmem:[%s257 + $0x90] sm:$0xff] %v4772
        %4837 = vst [vmem:[%s257 + $0x98] sm:$0xff] %v4773
        %4838 = vst [vmem:[%s257 + $0xa0] sm:$0xff] %v4774
        %4839 = vst [vmem:[%s257 + $0xa8] sm:$0xff] %v4775
        %4840 = vst [vmem:[%s257 + $0xb0] sm:$0xff] %v4776
        %4841 = vst [vmem:[%s257 + $0xb8] sm:$0xff] %v4777
        %4842 = vst [vmem:[%s257 + $0xc0] sm:$0xff] %v4778
        %4843 = vst [vmem:[%s257 + $0xc8] sm:$0xff] %v4779
        %4844 = vst [vmem:[%s257 + $0xd0] sm:$0xff] %v4780
        %4845 = vst [vmem:[%s257 + $0xd8] sm:$0xff] %v4781
        %4846 = vst [vmem:[%s257 + $0xe0] sm:$0xff] %v4782
        %4847 = vst [vmem:[%s257 + $0xe8] sm:$0xff] %v4783
        %4848 = vst [vmem:[%s257 + $0xf0] sm:$0xff] %v4784
        %4849 = vst [vmem:[%s257 + $0xf8] sm:$0xff] %v4785
        %4850 = vst [vmem:[%s257 + $0x100] sm:$0xff] %v4786
        %4851 = vst [vmem:[%s257 + $0x108] sm:$0xff] %v4787
        %4852 = vst [vmem:[%s257 + $0x110] sm:$0xff] %v4788
        %4853 = vst [vmem:[%s257 + $0x118] sm:$0xff] %v4789
        %4854 = vst [vmem:[%s257 + $0x120] sm:$0xff] %v4790
        %4855 = vst [vmem:[%s257 + $0x128] sm:$0xff] %v4791
        %4856 = vst [vmem:[%s257 + $0x130] sm:$0xff] %v4792
        %4857 = vst [vmem:[%s257 + $0x138] sm:$0xff] %v4793
        %4858 = vst [vmem:[%s257 + $0x140] sm:$0xff] %v4794
        %4859 = vst [vmem:[%s257 + $0x148] sm:$0xff] %v4795
        %4860 = vst [vmem:[%s257 + $0x150] sm:$0xff] %v4796
        %4861 = vst [vmem:[%s257 + $0x158] sm:$0xff] %v4797
        %4862 = vst [vmem:[%s257 + $0x160] sm:$0xff] %v4798
        %4863 = vst [vmem:[%s257 + $0x168] sm:$0xff] %v4799
        %4864 = vst [vmem:[%s257 + $0x170] sm:$0xff] %v4800
        %4865 = vst [vmem:[%s257 + $0x178] sm:$0xff] %v4801
        %4866 = vst [vmem:[%s257 + $0x180] sm:$0xff] %v4802
        %4867 = vst [vmem:[%s257 + $0x188] sm:$0xff] %v4803
        %4868 = vst [vmem:[%s257 + $0x190] sm:$0xff] %v4804
        %4869 = vst [vmem:[%s257 + $0x198] sm:$0xff] %v4805
        %4870 = vst [vmem:[%s257 + $0x1a0] sm:$0xff] %v4806
        %4871 = vst [vmem:[%s257 + $0x1a8] sm:$0xff] %v4807
        %4872 = vst [vmem:[%s257 + $0x1b0] sm:$0xff] %v4808
        %4873 = vst [vmem:[%s257 + $0x1b8] sm:$0xff] %v4809
        %4874 = vst [vmem:[%s257 + $0x1c0] sm:$0xff] %v4810
        %4875 = vst [vmem:[%s257 + $0x1c8] sm:$0xff] %v4811
        %4876 = vst [vmem:[%s257 + $0x1d0] sm:$0xff] %v4812
        %4877 = vst [vmem:[%s257 + $0x1d8] sm:$0xff] %v4813
        %4878 = vst [vmem:[%s257 + $0x1e0] sm:$0xff] %v4814
        %4879 = vst [vmem:[%s257 + $0x1e8] sm:$0xff] %v4815
        %4880 = vst [vmem:[%s257 + $0x1f0] sm:$0xff] %v4816
        %4881 = vst [vmem:[%s257 + $0x1f8] sm:$0xff] %v4817
      $region48: #{sageprop_forward.5} parent=39 // pred_fallthru
        _
      %s4882 = smul.u32 64, %s20
      %p4883 = scmp.lt.s32.totalorder %s4882, 127
      %s4884 = scalar_select %p4883, %s4882, 127
      %s4885 = smul.addr %s4884, 8
      %s4886 = scalar_lea.vmem %s5, %s4885
      // Predicated region
      $region49: #{sageprop_forward.5} parent=39 // pred_check
        %p4887 = pneg %p158
      $region50: #{sageprop_forward.5} parent=39 // pred_check_branch
        %4889 = sbr.rel (%p4887) target = $region52
      $region51: #{sageprop_forward.5} parent=39 // pred_region
        %s4890 = smul.u32 64, %s20
      $region52: #{sageprop_forward.5} parent=39 // pred_fallthru
        _
    $region40: #{sageprop_forward.5} parent=5 // pred_fallthru
      _
    %p4891 = scmp.le.s32.totalorder 2, %s11
    // Predicated region
    $region53: #{sageprop_forward.5} parent=5 // pred_check
      %p4892 = pneg %p4891
    $region54: #{sageprop_forward.5} parent=5 // pred_check_branch
      %4894 = sbr.rel (%p4892) target = $region56
    $region55: #{sageprop_forward.5} parent=5 // pred_region
      %s4895 = ssub.s32 %s11, 2
      // Predicated region
      $region57: #{sageprop_forward.5} parent=55 // pred_check
        %p4896 = pneg %p164
      $region58: #{sageprop_forward.5} parent=55 // pred_check_branch
        %4898 = sbr.rel (%p4896) target = $region60
      $region59: #{sageprop_forward.5} parent=55 // pred_region
        %s4899 = smul.u32 64, %s22
        %p4900 = scmp.lt.s32.totalorder %s4899, 127
        %s4901 = scalar_select %p4900, %s4899, 127
        %s4902 = smul.addr %s4901, 8
        %s4903 = scalar_lea.vmem %s5, %s4902
      $region60: #{sageprop_forward.5} parent=55 // pred_fallthru
        _
    $region56: #{sageprop_forward.5} parent=5 // pred_fallthru
      _
  $region6: #{sageprop_forward.5} parent=0 // loop_footer
    %s15 = sadd.s32 1, %s11
  $region7: #{sageprop_forward.5} parent=0 // loop_footer_branch
    %10 = sbr.rel target = $region3
  $region8: #{sageprop_forward.5} parent=0 // loop_exit
    _

// kernel: sageprop_forward.3
$region0: #{sageprop_forward.3}
  #allocation0 [shape = 'u32[]', space=smem, size = 0x4, offset = 0x4, fixed_abs, tag = 'smem constant byte address 0x4 - core index']
  #allocation1 [shape = 'u32[72,128]{1,0:T(1,128)}', space=vmem, size = 0x9000, scoped, tag = 'internal scratch']
  #allocation2 [shape = 'f32[512,128]{1,0:T(8,128)}', space=vmem, size = 0x40000, scoped, tag = 'scratch operand']
  %s0 = inlined_call_operand.vmem [shape: bf16[1024,1024], index: 0, kind: input, shape index: {}]
  %s1 = inlined_call_operand.vmem [shape: bf16[1024,128], index: 1, kind: input, shape index: {}]
  %s2 = inlined_call_operand.vmem [shape: bf16[128,128], index: 2, kind: input, shape index: {}]
  %s3 = inlined_call_operand.vmem [shape: bf16[128,128], index: 3, kind: input, shape index: {}]
  %s4 = inlined_call_operand.vmem [shape: f32[1,128], index: 4, kind: input, shape index: {}]
  %s5 = inlined_call_operand.vmem [shape: bf16[1024,128], index: 5, kind: output, shape index: {}]
  %s6 = sld [smem:[#allocation0]]
  $region61: #{sageprop_forward.3} parent=0
    _
  %s8 = ssub.s32 1, %s6
  %s9 = scalar_select 0, %s8, %s6
  loop: start=0, step=1, limit=4
  $region2: #{sageprop_forward.3} parent=0 // loop_pre_header
    _
  $region3: #{sageprop_forward.3} parent=0 // loop_header
    %s11 = sphi 0, %s15
    %p12 = scmp.ge.s32.totalorder %s11, 4
    %s18 = sphi 0, %s30
    %s19 = sphi 0, %s26
    %s20 = sphi 0, %s18
    %s21 = sphi 0, %s19
    %s22 = sphi 0, %s20
    %s23 = sphi 0, %s21
    %s35 = sphi 0, %s37
    %s38 = sphi 0, %s35
    %s39 = sphi 0, %s38
    %s55 = sphi 0, %s39
    %s59 = sphi 0, %s59
    %s61 = sphi 0, %s59
    %s62 = sphi 0, %s61
    %s76 = sphi 0, %s62
    %s80 = sphi 0, %s80
    %s82 = sphi 0, %s80
    %s83 = sphi 0, %s82
    %s97 = sphi 0, %s83
    %s101 = sphi 0, %s101
    %s103 = sphi 0, %s101
    %s104 = sphi 0, %s103
    %s118 = sphi 0, %s104
    %s122 = sphi 0, %s122
    %s124 = sphi 0, %s122
    %s125 = sphi 0, %s124
    %s139 = sphi 0, %s125
    %s145 = sphi 0, %s147
    %s148 = sphi 0, %s145
    %s149 = sphi 0, %s148
    %s165 = sphi 0, %s149
  $region4: #{sageprop_forward.3} parent=0 // loop_header_branch
    %14 = sbr.rel (%p12) target = $region8
  $region5: #{sageprop_forward.3} parent=0 // loop_body
    %s16 = ssub.s32 %s11, 1
    %s17 = ssub.s32 %s11, 2
    %s24 = sadd.s32 1, %s19
    %p25 = scmp.ge.s32.totalorder %s24, 1
    %s26 = scalar_select %p25, 0, %s24
    %s27 = sadd.s32 1, %s18
    %s28 = scalar_select %p25, %s27, %s18
    %p29 = scmp.ge.s32.totalorder %s28, 2
    %s30 = scalar_select %p29, 0, %s28
    %s31 = ssub.s32 %s18, %s30
    %s32 = ssub.s32 %s19, %s26
    %s33 = sor.u32 %s31, %s32
    %p34 = scmp.eq.s32.totalorder %s33, 0
    %s36 = sadd.s32 %s35, 1
    %s37 = scalar_select %p34, %s35, %s36
    %p40 = pneg %p34
    %p41 = scmp.eq.s32.totalorder %s11, 1
    %p42 = por %p40, %p41
    %p43 = scmp.ne.s32.totalorder %s35, %s38
    %p44 = scmp.eq.s32.totalorder %s11, 0
    %p45 = por %p43, %p44
    %p46 = scmp.ne.s32.totalorder %s35, %s38
    %p47 = scmp.eq.s32.totalorder %s16, 1
    %p48 = por %p46, %p47
    %p49 = scmp.ne.s32.totalorder %s38, %s39
    %p50 = scmp.eq.s32.totalorder %s16, 0
    %p51 = por %p49, %p50
    %p52 = scmp.ne.s32.totalorder %s38, %s39
    %p53 = scmp.eq.s32.totalorder %s17, 1
    %p54 = por %p52, %p53
    %p56 = scmp.ne.s32.totalorder %s39, %s55
    %p57 = scmp.eq.s32.totalorder %s17, 0
    %p58 = por %p56, %p57
    %s60 = sadd.s32 %s59, 1
    %p63 = scmp.eq.s32.totalorder %s11, 1
    %p64 = scmp.ne.s32.totalorder %s59, %s61
    %p65 = scmp.eq.s32.totalorder %s11, 0
    %p66 = por %p64, %p65
    %p67 = scmp.ne.s32.totalorder %s59, %s61
    %p68 = scmp.eq.s32.totalorder %s16, 1
    %p69 = por %p67, %p68
    %p70 = scmp.ne.s32.totalorder %s61, %s62
    %p71 = scmp.eq.s32.totalorder %s16, 0
    %p72 = por %p70, %p71
    %p73 = scmp.ne.s32.totalorder %s61, %s62
    %p74 = scmp.eq.s32.totalorder %s17, 1
    %p75 = por %p73, %p74
    %p77 = scmp.ne.s32.totalorder %s62, %s76
    %p78 = scmp.eq.s32.totalorder %s17, 0
    %p79 = por %p77, %p78
    %s81 = sadd.s32 %s80, 1
    %p84 = scmp.eq.s32.totalorder %s11, 1
    %p85 = scmp.ne.s32.totalorder %s80, %s82
    %p86 = scmp.eq.s32.totalorder %s11, 0
    %p87 = por %p85, %p86
    %p88 = scmp.ne.s32.totalorder %s80, %s82
    %p89 = scmp.eq.s32.totalorder %s16, 1
    %p90 = por %p88, %p89
    %p91 = scmp.ne.s32.totalorder %s82, %s83
    %p92 = scmp.eq.s32.totalorder %s16, 0
    %p93 = por %p91, %p92
    %p94 = scmp.ne.s32.totalorder %s82, %s83
    %p95 = scmp.eq.s32.totalorder %s17, 1
    %p96 = por %p94, %p95
    %p98 = scmp.ne.s32.totalorder %s83, %s97
    %p99 = scmp.eq.s32.totalorder %s17, 0
    %p100 = por %p98, %p99
    %s102 = sadd.s32 %s101, 1
    %p105 = scmp.eq.s32.totalorder %s11, 1
    %p106 = scmp.ne.s32.totalorder %s101, %s103
    %p107 = scmp.eq.s32.totalorder %s11, 0
    %p108 = por %p106, %p107
    %p109 = scmp.ne.s32.totalorder %s101, %s103
    %p110 = scmp.eq.s32.totalorder %s16, 1
    %p111 = por %p109, %p110
    %p112 = scmp.ne.s32.totalorder %s103, %s104
    %p113 = scmp.eq.s32.totalorder %s16, 0
    %p114 = por %p112, %p113
    %p115 = scmp.ne.s32.totalorder %s103, %s104
    %p116 = scmp.eq.s32.totalorder %s17, 1
    %p117 = por %p115, %p116
    %p119 = scmp.ne.s32.totalorder %s104, %s118
    %p120 = scmp.eq.s32.totalorder %s17, 0
    %p121 = por %p119, %p120
    %s123 = sadd.s32 %s122, 1
    %p126 = scmp.eq.s32.totalorder %s11, 1
    %p127 = scmp.ne.s32.totalorder %s122, %s124
    %p128 = scmp.eq.s32.totalorder %s11, 0
    %p129 = por %p127, %p128
    %p130 = scmp.ne.s32.totalorder %s122, %s124
    %p131 = scmp.eq.s32.totalorder %s16, 1
    %p132 = por %p130, %p131
    %p133 = scmp.ne.s32.totalorder %s124, %s125
    %p134 = scmp.eq.s32.totalorder %s16, 0
    %p135 = por %p133, %p134
    %p136 = scmp.ne.s32.totalorder %s124, %s125
    %p137 = scmp.eq.s32.totalorder %s17, 1
    %p138 = por %p136, %p137
    %p140 = scmp.ne.s32.totalorder %s125, %s139
    %p141 = scmp.eq.s32.totalorder %s17, 0
    %p142 = por %p140, %p141
    %s143 = ssub.s32 %s18, %s30
    %p144 = scmp.eq.s32.totalorder %s143, 0
    %s146 = sadd.s32 %s145, 1
    %s147 = scalar_select %p144, %s145, %s146
    %p150 = pneg %p144
    %p151 = scmp.eq.s32.totalorder %s11, 1
    %p152 = por %p150, %p151
    %p153 = scmp.ne.s32.totalorder %s145, %s148
    %p154 = scmp.eq.s32.totalorder %s11, 0
    %p155 = por %p153, %p154
    %p156 = scmp.ne.s32.totalorder %s145, %s148
    %p157 = scmp.eq.s32.totalorder %s16, 1
    %p158 = por %p156, %p157
    %p159 = scmp.ne.s32.totalorder %s148, %s149
    %p160 = scmp.eq.s32.totalorder %s16, 0
    %p161 = por %p159, %p160
    %p162 = scmp.ne.s32.totalorder %s148, %s149
    %p163 = scmp.eq.s32.totalorder %s17, 1
    %p164 = por %p162, %p163
    %p166 = scmp.ne.s32.totalorder %s149, %s165
    %p167 = scmp.eq.s32.totalorder %s17, 0
    %p168 = por %p166, %p167
    %p169 = scmp.le.s32.totalorder 1, %s11
    %p170 = scmp.lt.s32.totalorder %s11, 3
    %p171 = pnand %p169, %p170
    %p172 = pneg %p171
    // Predicated region
    $region9: #{sageprop_forward.3} parent=5 // pred_check
      _
    $region10: #{sageprop_forward.3} parent=5 // pred_check_branch
      %174 = sbr.rel (%p171) target = $region12
    $region11: #{sageprop_forward.3} parent=5 // pred_region
      %s175 = ssub.s32 %s11, 1
      // Predicated region
      $region13: #{sageprop_forward.3} parent=11 // pred_check
        %p176 = pneg %p72
      $region14: #{sageprop_forward.3} parent=11 // pred_check_branch
        %178 = sbr.rel (%p176) target = $region16
      $region15: #{sageprop_forward.3} parent=11 // pred_region
        _
      $region16: #{sageprop_forward.3} parent=11 // pred_fallthru
        _
      // Predicated region
      $region17: #{sageprop_forward.3} parent=11 // pred_check
        %p179 = pneg %p93
      $region18: #{sageprop_forward.3} parent=11 // pred_check_branch
        %181 = sbr.rel (%p179) target = $region20
      $region19: #{sageprop_forward.3} parent=11 // pred_region
        _
      $region20: #{sageprop_forward.3} parent=11 // pred_fallthru
        _
      // Predicated region
      $region21: #{sageprop_forward.3} parent=11 // pred_check
        %p182 = pneg %p114
      $region22: #{sageprop_forward.3} parent=11 // pred_check_branch
        %184 = sbr.rel (%p182) target = $region24
      $region23: #{sageprop_forward.3} parent=11 // pred_region
        _
      $region24: #{sageprop_forward.3} parent=11 // pred_fallthru
        _
      // Predicated region
      $region25: #{sageprop_forward.3} parent=11 // pred_check
        %p185 = pneg %p135
      $region26: #{sageprop_forward.3} parent=11 // pred_check_branch
        %187 = sbr.rel (%p185) target = $region28
      $region27: #{sageprop_forward.3} parent=11 // pred_region
        _
      $region28: #{sageprop_forward.3} parent=11 // pred_fallthru
        _
    $region12: #{sageprop_forward.3} parent=5 // pred_fallthru
      _
    %p188 = scmp.lt.s32.totalorder %s11, 2
    // Predicated region
    $region29: #{sageprop_forward.3} parent=5 // pred_check
      %p189 = pneg %p188
    $region30: #{sageprop_forward.3} parent=5 // pred_check_branch
      %191 = sbr.rel (%p189) target = $region32
    $region31: #{sageprop_forward.3} parent=5 // pred_region
      // Predicated region
      $region33: #{sageprop_forward.3} parent=31 // pred_check
        %p192 = pneg %p45
      $region34: #{sageprop_forward.3} parent=31 // pred_check_branch
        %194 = sbr.rel (%p192) target = $region36
      $region35: #{sageprop_forward.3} parent=31 // pred_region
        %s195 = smul.u32 64, %s18
        %s196 = smul.u32 8, %s19
        %p197 = scmp.lt.s32.totalorder %s195, 127
        %s198 = scalar_select %p197, %s195, 127
        %p199 = scmp.lt.s32.totalorder %s196, 7
        %s200 = scalar_select %p199, %s196, 7
        %s201 = smul.addr %s198, 8
        %s202 = sadd.s32 %s200, %s201
        %s203 = smul.addr %s202, 4
        %s204 = scalar_lea.vmem %s0, %s203
        %s205 = smul.u32 64, %s18
        %s206 = smul.u32 8, %s19
      $region36: #{sageprop_forward.3} parent=31 // pred_fallthru
        _
    $region32: #{sageprop_forward.3} parent=5 // pred_fallthru
      _
    %p207 = scmp.le.s32.totalorder 1, %s11
    %p208 = scmp.lt.s32.totalorder %s11, 3
    %p209 = pnand %p207, %p208
    %p210 = pneg %p209
    // Predicated region
    $region37: #{sageprop_forward.3} parent=5 // pred_check
      _
    $region38: #{sageprop_forward.3} parent=5 // pred_check_branch
      %212 = sbr.rel (%p209) target = $region40
    $region39: #{sageprop_forward.3} parent=5 // pred_region
      %s213 = ssub.s32 %s11, 1
      %s214 = smul.u32 64, %s20
      %s215 = smul.u32 8, %s21
      %p216 = scmp.lt.s32.totalorder %s214, 127
      %s217 = scalar_select %p216, %s214, 127
      %p218 = scmp.lt.s32.totalorder %s215, 7
      %s219 = scalar_select %p218, %s215, 7
      %s220 = smul.addr %s217, 8
      %s221 = sadd.s32 %s219, %s220
      %s222 = smul.addr %s221, 4
      %s223 = scalar_lea.vmem %s0, %s222
      %p224 = pneg %p51
      %p225 = pneg %p48
      %p226 = pneg %p72
      %p227 = pneg %p69
      %p228 = pneg %p93
      %p229 = pneg %p90
      %p230 = pneg %p114
      %p231 = pneg %p111
      %p232 = pneg %p135
      %p233 = pneg %p132
      %p234 = pneg %p161
      %p235 = pneg %p158
      %s236 = smul.u32 64, %s20
      %p237 = scmp.lt.s32.totalorder %s236, 127
      %s238 = scalar_select %p237, %s236, 127
      %s239 = smul.addr %s238, 4
      %s240 = scalar_lea.vmem %s5, %s239
      %s241 = smul.u32 64, %s20
      %s242 = smul.u32 8, %s21
      %p243 = scmp.lt.s32.totalorder %s241, 127
      %s244 = scalar_select %p243, %s241, 127
      %p245 = scmp.lt.s32.totalorder %s242, 7
      %s246 = scalar_select %p245, %s242, 7
      %s247 = smul.addr %s244, 8
      %s248 = sadd.s32 %s246, %s247
      %s249 = smul.addr %s248, 4
      %s250 = scalar_lea.vmem %s0, %s249
      %s251 = smul.u32 64, %s20
      %s252 = smul.u32 8, %s21
      %s253 = smul.u32 64, %s20
      %p254 = scmp.lt.s32.totalorder %s253, 127
      %s255 = scalar_select %p254, %s253, 127
      %s256 = smul.addr %s255, 4
      %s257 = scalar_lea.vmem %s5, %s256
      %s258 = smul.u32 64, %s20
      %p259 = scmp.eq.s32.totalorder %s21, 0
      // Predicated region
      $region41: #{sageprop_forward.3} parent=39 // pred_check
        %p260 = pneg %p259
      $region42: #{sageprop_forward.3} parent=39 // pred_check_branch
        %262 = sbr.rel (%p260) target = $region44
      $region43: #{sageprop_forward.3} parent=39 // pred_region
        %263 = vst [vmem:[#allocation2] sm:$0xff] 0.0
        %264 = vst [vmem:[#allocation2 + $0x8] sm:$0xff] 0.0
        %265 = vst [vmem:[#allocation2 + $0x10] sm:$0xff] 0.0
        %266 = vst [vmem:[#allocation2 + $0x18] sm:$0xff] 0.0
        %267 = vst [vmem:[#allocation2 + $0x20] sm:$0xff] 0.0
        %268 = vst [vmem:[#allocation2 + $0x28] sm:$0xff] 0.0
        %269 = vst [vmem:[#allocation2 + $0x30] sm:$0xff] 0.0
        %270 = vst [vmem:[#allocation2 + $0x38] sm:$0xff] 0.0
        %271 = vst [vmem:[#allocation2 + $0x40] sm:$0xff] 0.0
        %272 = vst [vmem:[#allocation2 + $0x48] sm:$0xff] 0.0
        %273 = vst [vmem:[#allocation2 + $0x50] sm:$0xff] 0.0
        %274 = vst [vmem:[#allocation2 + $0x58] sm:$0xff] 0.0
        %275 = vst [vmem:[#allocation2 + $0x60] sm:$0xff] 0.0
        %276 = vst [vmem:[#allocation2 + $0x68] sm:$0xff] 0.0
        %277 = vst [vmem:[#allocation2 + $0x70] sm:$0xff] 0.0
        %278 = vst [vmem:[#allocation2 + $0x78] sm:$0xff] 0.0
        %279 = vst [vmem:[#allocation2 + $0x80] sm:$0xff] 0.0
        %280 = vst [vmem:[#allocation2 + $0x88] sm:$0xff] 0.0
        %281 = vst [vmem:[#allocation2 + $0x90] sm:$0xff] 0.0
        %282 = vst [vmem:[#allocation2 + $0x98] sm:$0xff] 0.0
        %283 = vst [vmem:[#allocation2 + $0xa0] sm:$0xff] 0.0
        %284 = vst [vmem:[#allocation2 + $0xa8] sm:$0xff] 0.0
        %285 = vst [vmem:[#allocation2 + $0xb0] sm:$0xff] 0.0
        %286 = vst [vmem:[#allocation2 + $0xb8] sm:$0xff] 0.0
        %287 = vst [vmem:[#allocation2 + $0xc0] sm:$0xff] 0.0
        %288 = vst [vmem:[#allocation2 + $0xc8] sm:$0xff] 0.0
        %289 = vst [vmem:[#allocation2 + $0xd0] sm:$0xff] 0.0
        %290 = vst [vmem:[#allocation2 + $0xd8] sm:$0xff] 0.0
        %291 = vst [vmem:[#allocation2 + $0xe0] sm:$0xff] 0.0
        %292 = vst [vmem:[#allocation2 + $0xe8] sm:$0xff] 0.0
        %293 = vst [vmem:[#allocation2 + $0xf0] sm:$0xff] 0.0
        %294 = vst [vmem:[#allocation2 + $0xf8] sm:$0xff] 0.0
        %295 = vst [vmem:[#allocation2 + $0x100] sm:$0xff] 0.0
        %296 = vst [vmem:[#allocation2 + $0x108] sm:$0xff] 0.0
        %297 = vst [vmem:[#allocation2 + $0x110] sm:$0xff] 0.0
        %298 = vst [vmem:[#allocation2 + $0x118] sm:$0xff] 0.0
        %299 = vst [vmem:[#allocation2 + $0x120] sm:$0xff] 0.0
        %300 = vst [vmem:[#allocation2 + $0x128] sm:$0xff] 0.0
        %301 = vst [vmem:[#allocation2 + $0x130] sm:$0xff] 0.0
        %302 = vst [vmem:[#allocation2 + $0x138] sm:$0xff] 0.0
        %303 = vst [vmem:[#allocation2 + $0x140] sm:$0xff] 0.0
        %304 = vst [vmem:[#allocation2 + $0x148] sm:$0xff] 0.0
        %305 = vst [vmem:[#allocation2 + $0x150] sm:$0xff] 0.0
        %306 = vst [vmem:[#allocation2 + $0x158] sm:$0xff] 0.0
        %307 = vst [vmem:[#allocation2 + $0x160] sm:$0xff] 0.0
        %308 = vst [vmem:[#allocation2 + $0x168] sm:$0xff] 0.0
        %309 = vst [vmem:[#allocation2 + $0x170] sm:$0xff] 0.0
        %310 = vst [vmem:[#allocation2 + $0x178] sm:$0xff] 0.0
        %311 = vst [vmem:[#allocation2 + $0x180] sm:$0xff] 0.0
        %312 = vst [vmem:[#allocation2 + $0x188] sm:$0xff] 0.0
        %313 = vst [vmem:[#allocation2 + $0x190] sm:$0xff] 0.0
        %314 = vst [vmem:[#allocation2 + $0x198] sm:$0xff] 0.0
        %315 = vst [vmem:[#allocation2 + $0x1a0] sm:$0xff] 0.0
        %316 = vst [vmem:[#allocation2 + $0x1a8] sm:$0xff] 0.0
        %317 = vst [vmem:[#allocation2 + $0x1b0] sm:$0xff] 0.0
        %318 = vst [vmem:[#allocation2 + $0x1b8] sm:$0xff] 0.0
        %319 = vst [vmem:[#allocation2 + $0x1c0] sm:$0xff] 0.0
        %320 = vst [vmem:[#allocation2 + $0x1c8] sm:$0xff] 0.0
        %321 = vst [vmem:[#allocation2 + $0x1d0] sm:$0xff] 0.0
        %322 = vst [vmem:[#allocation2 + $0x1d8] sm:$0xff] 0.0
        %323 = vst [vmem:[#allocation2 + $0x1e0] sm:$0xff] 0.0
        %324 = vst [vmem:[#allocation2 + $0x1e8] sm:$0xff] 0.0
        %325 = vst [vmem:[#allocation2 + $0x1f0] sm:$0xff] 0.0
        %326 = vst [vmem:[#allocation2 + $0x1f8] sm:$0xff] 0.0
      $region44: #{sageprop_forward.3} parent=39 // pred_fallthru
        _
      %s327 = smul.u32 %s21, 1024
      %v328 = vld [vmem:[#allocation2] sm:$0xff]
      %v329 = vld [vmem:[#allocation2 + $0x8] sm:$0xff]
      %v330 = vld [vmem:[#allocation2 + $0x10] sm:$0xff]
      %v331 = vld [vmem:[#allocation2 + $0x18] sm:$0xff]
      %v332 = vld [vmem:[#allocation2 + $0x20] sm:$0xff]
      %v333 = vld [vmem:[#allocation2 + $0x28] sm:$0xff]
      %v334 = vld [vmem:[#allocation2 + $0x30] sm:$0xff]
      %v335 = vld [vmem:[#allocation2 + $0x38] sm:$0xff]
      %v336 = vld [vmem:[#allocation2 + $0x40] sm:$0xff]
      %v337 = vld [vmem:[#allocation2 + $0x48] sm:$0xff]
      %v338 = vld [vmem:[#allocation2 + $0x50] sm:$0xff]
      %v339 = vld [vmem:[#allocation2 + $0x58] sm:$0xff]
      %v340 = vld [vmem:[#allocation2 + $0x60] sm:$0xff]
      %v341 = vld [vmem:[#allocation2 + $0x68] sm:$0xff]
      %v342 = vld [vmem:[#allocation2 + $0x70] sm:$0xff]
      %v343 = vld [vmem:[#allocation2 + $0x78] sm:$0xff]
      %v344 = vld [vmem:[#allocation2 + $0x80] sm:$0xff]
      %v345 = vld [vmem:[#allocation2 + $0x88] sm:$0xff]
      %v346 = vld [vmem:[#allocation2 + $0x90] sm:$0xff]
      %v347 = vld [vmem:[#allocation2 + $0x98] sm:$0xff]
      %v348 = vld [vmem:[#allocation2 + $0xa0] sm:$0xff]
      %v349 = vld [vmem:[#allocation2 + $0xa8] sm:$0xff]
      %v350 = vld [vmem:[#allocation2 + $0xb0] sm:$0xff]
      %v351 = vld [vmem:[#allocation2 + $0xb8] sm:$0xff]
      %v352 = vld [vmem:[#allocation2 + $0xc0] sm:$0xff]
      %v353 = vld [vmem:[#allocation2 + $0xc8] sm:$0xff]
      %v354 = vld [vmem:[#allocation2 + $0xd0] sm:$0xff]
      %v355 = vld [vmem:[#allocation2 + $0xd8] sm:$0xff]
      %v356 = vld [vmem:[#allocation2 + $0xe0] sm:$0xff]
      %v357 = vld [vmem:[#allocation2 + $0xe8] sm:$0xff]
      %v358 = vld [vmem:[#allocation2 + $0xf0] sm:$0xff]
      %v359 = vld [vmem:[#allocation2 + $0xf8] sm:$0xff]
      %v360 = vld [vmem:[#allocation2 + $0x100] sm:$0xff]
      %v361 = vld [vmem:[#allocation2 + $0x108] sm:$0xff]
      %v362 = vld [vmem:[#allocation2 + $0x110] sm:$0xff]
      %v363 = vld [vmem:[#allocation2 + $0x118] sm:$0xff]
      %v364 = vld [vmem:[#allocation2 + $0x120] sm:$0xff]
      %v365 = vld [vmem:[#allocation2 + $0x128] sm:$0xff]
      %v366 = vld [vmem:[#allocation2 + $0x130] sm:$0xff]
      %v367 = vld [vmem:[#allocation2 + $0x138] sm:$0xff]
      %v368 = vld [vmem:[#allocation2 + $0x140] sm:$0xff]
      %v369 = vld [vmem:[#allocation2 + $0x148] sm:$0xff]
      %v370 = vld [vmem:[#allocation2 + $0x150] sm:$0xff]
      %v371 = vld [vmem:[#allocation2 + $0x158] sm:$0xff]
      %v372 = vld [vmem:[#allocation2 + $0x160] sm:$0xff]
      %v373 = vld [vmem:[#allocation2 + $0x168] sm:$0xff]
      %v374 = vld [vmem:[#allocation2 + $0x170] sm:$0xff]
      %v375 = vld [vmem:[#allocation2 + $0x178] sm:$0xff]
      %v376 = vld [vmem:[#allocation2 + $0x180] sm:$0xff]
      %v377 = vld [vmem:[#allocation2 + $0x188] sm:$0xff]
      %v378 = vld [vmem:[#allocation2 + $0x190] sm:$0xff]
      %v379 = vld [vmem:[#allocation2 + $0x198] sm:$0xff]
      %v380 = vld [vmem:[#allocation2 + $0x1a0] sm:$0xff]
      %v381 = vld [vmem:[#allocation2 + $0x1a8] sm:$0xff]
      %v382 = vld [vmem:[#allocation2 + $0x1b0] sm:$0xff]
      %v383 = vld [vmem:[#allocation2 + $0x1b8] sm:$0xff]
      %v384 = vld [vmem:[#allocation2 + $0x1c0] sm:$0xff]
      %v385 = vld [vmem:[#allocation2 + $0x1c8] sm:$0xff]
      %v386 = vld [vmem:[#allocation2 + $0x1d0] sm:$0xff]
      %v387 = vld [vmem:[#allocation2 + $0x1d8] sm:$0xff]
      %v388 = vld [vmem:[#allocation2 + $0x1e0] sm:$0xff]
      %v389 = vld [vmem:[#allocation2 + $0x1e8] sm:$0xff]
      %v390 = vld [vmem:[#allocation2 + $0x1f0] sm:$0xff]
      %v391 = vld [vmem:[#allocation2 + $0x1f8] sm:$0xff]
      %v392 = vld [vmem:[%s250] sm:$0xff]
      %v393 = vld [vmem:[%s250 + $0x8] sm:$0xff]
      %v394 = vld [vmem:[%s250 + $0x10] sm:$0xff]
      %v395 = vld [vmem:[%s250 + $0x18] sm:$0xff]
      %v396 = vld [vmem:[%s250 + $0x20] sm:$0xff]
      %v397 = vld [vmem:[%s250 + $0x28] sm:$0xff]
      %v398 = vld [vmem:[%s250 + $0x30] sm:$0xff]
      %v399 = vld [vmem:[%s250 + $0x38] sm:$0xff]
      %v400 = vld [vmem:[%s250 + $0x40] sm:$0xff]
      %v401 = vld [vmem:[%s250 + $0x48] sm:$0xff]
      %v402 = vld [vmem:[%s250 + $0x50] sm:$0xff]
      %v403 = vld [vmem:[%s250 + $0x58] sm:$0xff]
      %v404 = vld [vmem:[%s250 + $0x60] sm:$0xff]
      %v405 = vld [vmem:[%s250 + $0x68] sm:$0xff]
      %v406 = vld [vmem:[%s250 + $0x70] sm:$0xff]
      %v407 = vld [vmem:[%s250 + $0x78] sm:$0xff]
      %v408 = vld [vmem:[%s250 + $0x80] sm:$0xff]
      %v409 = vld [vmem:[%s250 + $0x88] sm:$0xff]
      %v410 = vld [vmem:[%s250 + $0x90] sm:$0xff]
      %v411 = vld [vmem:[%s250 + $0x98] sm:$0xff]
      %v412 = vld [vmem:[%s250 + $0xa0] sm:$0xff]
      %v413 = vld [vmem:[%s250 + $0xa8] sm:$0xff]
      %v414 = vld [vmem:[%s250 + $0xb0] sm:$0xff]
      %v415 = vld [vmem:[%s250 + $0xb8] sm:$0xff]
      %v416 = vld [vmem:[%s250 + $0xc0] sm:$0xff]
      %v417 = vld [vmem:[%s250 + $0xc8] sm:$0xff]
      %v418 = vld [vmem:[%s250 + $0xd0] sm:$0xff]
      %v419 = vld [vmem:[%s250 + $0xd8] sm:$0xff]
      %v420 = vld [vmem:[%s250 + $0xe0] sm:$0xff]
      %v421 = vld [vmem:[%s250 + $0xe8] sm:$0xff]
      %v422 = vld [vmem:[%s250 + $0xf0] sm:$0xff]
      %v423 = vld [vmem:[%s250 + $0xf8] sm:$0xff]
      %v424 = vld [vmem:[%s250 + $0x100] sm:$0xff]
      %v425 = vld [vmem:[%s250 + $0x108] sm:$0xff]
      %v426 = vld [vmem:[%s250 + $0x110] sm:$0xff]
      %v427 = vld [vmem:[%s250 + $0x118] sm:$0xff]
      %v428 = vld [vmem:[%s250 + $0x120] sm:$0xff]
      %v429 = vld [vmem:[%s250 + $0x128] sm:$0xff]
      %v430 = vld [vmem:[%s250 + $0x130] sm:$0xff]
      %v431 = vld [vmem:[%s250 + $0x138] sm:$0xff]
      %v432 = vld [vmem:[%s250 + $0x140] sm:$0xff]
      %v433 = vld [vmem:[%s250 + $0x148] sm:$0xff]
      %v434 = vld [vmem:[%s250 + $0x150] sm:$0xff]
      %v435 = vld [vmem:[%s250 + $0x158] sm:$0xff]
      %v436 = vld [vmem:[%s250 + $0x160] sm:$0xff]
      %v437 = vld [vmem:[%s250 + $0x168] sm:$0xff]
      %v438 = vld [vmem:[%s250 + $0x170] sm:$0xff]
      %v439 = vld [vmem:[%s250 + $0x178] sm:$0xff]
      %v440 = vld [vmem:[%s250 + $0x180] sm:$0xff]
      %v441 = vld [vmem:[%s250 + $0x188] sm:$0xff]
      %v442 = vld [vmem:[%s250 + $0x190] sm:$0xff]
      %v443 = vld [vmem:[%s250 + $0x198] sm:$0xff]
      %v444 = vld [vmem:[%s250 + $0x1a0] sm:$0xff]
      %v445 = vld [vmem:[%s250 + $0x1a8] sm:$0xff]
      %v446 = vld [vmem:[%s250 + $0x1b0] sm:$0xff]
      %v447 = vld [vmem:[%s250 + $0x1b8] sm:$0xff]
      %v448 = vld [vmem:[%s250 + $0x1c0] sm:$0xff]
      %v449 = vld [vmem:[%s250 + $0x1c8] sm:$0xff]
      %v450 = vld [vmem:[%s250 + $0x1d0] sm:$0xff]
      %v451 = vld [vmem:[%s250 + $0x1d8] sm:$0xff]
      %v452 = vld [vmem:[%s250 + $0x1e0] sm:$0xff]
      %v453 = vld [vmem:[%s250 + $0x1e8] sm:$0xff]
      %v454 = vld [vmem:[%s250 + $0x1f0] sm:$0xff]
      %v455 = vld [vmem:[%s250 + $0x1f8] sm:$0xff]
      %v456 = vld [vmem:[%s250 + $0x200] sm:$0xff]
      %v457 = vld [vmem:[%s250 + $0x208] sm:$0xff]
      %v458 = vld [vmem:[%s250 + $0x210] sm:$0xff]
      %v459 = vld [vmem:[%s250 + $0x218] sm:$0xff]
      %v460 = vld [vmem:[%s250 + $0x220] sm:$0xff]
      %v461 = vld [vmem:[%s250 + $0x228] sm:$0xff]
      %v462 = vld [vmem:[%s250 + $0x230] sm:$0xff]
      %v463 = vld [vmem:[%s250 + $0x238] sm:$0xff]
      %v464 = vld [vmem:[%s250 + $0x240] sm:$0xff]
      %v465 = vld [vmem:[%s250 + $0x248] sm:$0xff]
      %v466 = vld [vmem:[%s250 + $0x250] sm:$0xff]
      %v467 = vld [vmem:[%s250 + $0x258] sm:$0xff]
      %v468 = vld [vmem:[%s250 + $0x260] sm:$0xff]
      %v469 = vld [vmem:[%s250 + $0x268] sm:$0xff]
      %v470 = vld [vmem:[%s250 + $0x270] sm:$0xff]
      %v471 = vld [vmem:[%s250 + $0x278] sm:$0xff]
      %v472 = vld [vmem:[%s250 + $0x280] sm:$0xff]
      %v473 = vld [vmem:[%s250 + $0x288] sm:$0xff]
      %v474 = vld [vmem:[%s250 + $0x290] sm:$0xff]
      %v475 = vld [vmem:[%s250 + $0x298] sm:$0xff]
      %v476 = vld [vmem:[%s250 + $0x2a0] sm:$0xff]
      %v477 = vld [vmem:[%s250 + $0x2a8] sm:$0xff]
      %v478 = vld [vmem:[%s250 + $0x2b0] sm:$0xff]
      %v479 = vld [vmem:[%s250 + $0x2b8] sm:$0xff]
      %v480 = vld [vmem:[%s250 + $0x2c0] sm:$0xff]
      %v481 = vld [vmem:[%s250 + $0x2c8] sm:$0xff]
      %v482 = vld [vmem:[%s250 + $0x2d0] sm:$0xff]
      %v483 = vld [vmem:[%s250 + $0x2d8] sm:$0xff]
      %v484 = vld [vmem:[%s250 + $0x2e0] sm:$0xff]
      %v485 = vld [vmem:[%s250 + $0x2e8] sm:$0xff]
      %v486 = vld [vmem:[%s250 + $0x2f0] sm:$0xff]
      %v487 = vld [vmem:[%s250 + $0x2f8] sm:$0xff]
      %v488 = vld [vmem:[%s250 + $0x300] sm:$0xff]
      %v489 = vld [vmem:[%s250 + $0x308] sm:$0xff]
      %v490 = vld [vmem:[%s250 + $0x310] sm:$0xff]
      %v491 = vld [vmem:[%s250 + $0x318] sm:$0xff]
      %v492 = vld [vmem:[%s250 + $0x320] sm:$0xff]
      %v493 = vld [vmem:[%s250 + $0x328] sm:$0xff]
      %v494 = vld [vmem:[%s250 + $0x330] sm:$0xff]
      %v495 = vld [vmem:[%s250 + $0x338] sm:$0xff]
      %v496 = vld [vmem:[%s250 + $0x340] sm:$0xff]
      %v497 = vld [vmem:[%s250 + $0x348] sm:$0xff]
      %v498 = vld [vmem:[%s250 + $0x350] sm:$0xff]
      %v499 = vld [vmem:[%s250 + $0x358] sm:$0xff]
      %v500 = vld [vmem:[%s250 + $0x360] sm:$0xff]
      %v501 = vld [vmem:[%s250 + $0x368] sm:$0xff]
      %v502 = vld [vmem:[%s250 + $0x370] sm:$0xff]
      %v503 = vld [vmem:[%s250 + $0x378] sm:$0xff]
      %v504 = vld [vmem:[%s250 + $0x380] sm:$0xff]
      %v505 = vld [vmem:[%s250 + $0x388] sm:$0xff]
      %v506 = vld [vmem:[%s250 + $0x390] sm:$0xff]
      %v507 = vld [vmem:[%s250 + $0x398] sm:$0xff]
      %v508 = vld [vmem:[%s250 + $0x3a0] sm:$0xff]
      %v509 = vld [vmem:[%s250 + $0x3a8] sm:$0xff]
      %v510 = vld [vmem:[%s250 + $0x3b0] sm:$0xff]
      %v511 = vld [vmem:[%s250 + $0x3b8] sm:$0xff]
      %v512 = vld [vmem:[%s250 + $0x3c0] sm:$0xff]
      %v513 = vld [vmem:[%s250 + $0x3c8] sm:$0xff]
      %v514 = vld [vmem:[%s250 + $0x3d0] sm:$0xff]
      %v515 = vld [vmem:[%s250 + $0x3d8] sm:$0xff]
      %v516 = vld [vmem:[%s250 + $0x3e0] sm:$0xff]
      %v517 = vld [vmem:[%s250 + $0x3e8] sm:$0xff]
      %v518 = vld [vmem:[%s250 + $0x3f0] sm:$0xff]
      %v519 = vld [vmem:[%s250 + $0x3f8] sm:$0xff]
      %v520 = vld [vmem:[%s250 + $0x400] sm:$0xff]
      %v521 = vld [vmem:[%s250 + $0x408] sm:$0xff]
      %v522 = vld [vmem:[%s250 + $0x410] sm:$0xff]
      %v523 = vld [vmem:[%s250 + $0x418] sm:$0xff]
      %v524 = vld [vmem:[%s250 + $0x420] sm:$0xff]
      %v525 = vld [vmem:[%s250 + $0x428] sm:$0xff]
      %v526 = vld [vmem:[%s250 + $0x430] sm:$0xff]
      %v527 = vld [vmem:[%s250 + $0x438] sm:$0xff]
      %v528 = vld [vmem:[%s250 + $0x440] sm:$0xff]
      %v529 = vld [vmem:[%s250 + $0x448] sm:$0xff]
      %v530 = vld [vmem:[%s250 + $0x450] sm:$0xff]
      %v531 = vld [vmem:[%s250 + $0x458] sm:$0xff]
      %v532 = vld [vmem:[%s250 + $0x460] sm:$0xff]
      %v533 = vld [vmem:[%s250 + $0x468] sm:$0xff]
      %v534 = vld [vmem:[%s250 + $0x470] sm:$0xff]
      %v535 = vld [vmem:[%s250 + $0x478] sm:$0xff]
      %v536 = vld [vmem:[%s250 + $0x480] sm:$0xff]
      %v537 = vld [vmem:[%s250 + $0x488] sm:$0xff]
      %v538 = vld [vmem:[%s250 + $0x490] sm:$0xff]
      %v539 = vld [vmem:[%s250 + $0x498] sm:$0xff]
      %v540 = vld [vmem:[%s250 + $0x4a0] sm:$0xff]
      %v541 = vld [vmem:[%s250 + $0x4a8] sm:$0xff]
      %v542 = vld [vmem:[%s250 + $0x4b0] sm:$0xff]
      %v543 = vld [vmem:[%s250 + $0x4b8] sm:$0xff]
      %v544 = vld [vmem:[%s250 + $0x4c0] sm:$0xff]
      %v545 = vld [vmem:[%s250 + $0x4c8] sm:$0xff]
      %v546 = vld [vmem:[%s250 + $0x4d0] sm:$0xff]
      %v547 = vld [vmem:[%s250 + $0x4d8] sm:$0xff]
      %v548 = vld [vmem:[%s250 + $0x4e0] sm:$0xff]
      %v549 = vld [vmem:[%s250 + $0x4e8] sm:$0xff]
      %v550 = vld [vmem:[%s250 + $0x4f0] sm:$0xff]
      %v551 = vld [vmem:[%s250 + $0x4f8] sm:$0xff]
      %v552 = vld [vmem:[%s250 + $0x500] sm:$0xff]
      %v553 = vld [vmem:[%s250 + $0x508] sm:$0xff]
      %v554 = vld [vmem:[%s250 + $0x510] sm:$0xff]
      %v555 = vld [vmem:[%s250 + $0x518] sm:$0xff]
      %v556 = vld [vmem:[%s250 + $0x520] sm:$0xff]
      %v557 = vld [vmem:[%s250 + $0x528] sm:$0xff]
      %v558 = vld [vmem:[%s250 + $0x530] sm:$0xff]
      %v559 = vld [vmem:[%s250 + $0x538] sm:$0xff]
      %v560 = vld [vmem:[%s250 + $0x540] sm:$0xff]
      %v561 = vld [vmem:[%s250 + $0x548] sm:$0xff]
      %v562 = vld [vmem:[%s250 + $0x550] sm:$0xff]
      %v563 = vld [vmem:[%s250 + $0x558] sm:$0xff]
      %v564 = vld [vmem:[%s250 + $0x560] sm:$0xff]
      %v565 = vld [vmem:[%s250 + $0x568] sm:$0xff]
      %v566 = vld [vmem:[%s250 + $0x570] sm:$0xff]
      %v567 = vld [vmem:[%s250 + $0x578] sm:$0xff]
      %v568 = vld [vmem:[%s250 + $0x580] sm:$0xff]
      %v569 = vld [vmem:[%s250 + $0x588] sm:$0xff]
      %v570 = vld [vmem:[%s250 + $0x590] sm:$0xff]
      %v571 = vld [vmem:[%s250 + $0x598] sm:$0xff]
      %v572 = vld [vmem:[%s250 + $0x5a0] sm:$0xff]
      %v573 = vld [vmem:[%s250 + $0x5a8] sm:$0xff]
      %v574 = vld [vmem:[%s250 + $0x5b0] sm:$0xff]
      %v575 = vld [vmem:[%s250 + $0x5b8] sm:$0xff]
      %v576 = vld [vmem:[%s250 + $0x5c0] sm:$0xff]
      %v577 = vld [vmem:[%s250 + $0x5c8] sm:$0xff]
      %v578 = vld [vmem:[%s250 + $0x5d0] sm:$0xff]
      %v579 = vld [vmem:[%s250 + $0x5d8] sm:$0xff]
      %v580 = vld [vmem:[%s250 + $0x5e0] sm:$0xff]
      %v581 = vld [vmem:[%s250 + $0x5e8] sm:$0xff]
      %v582 = vld [vmem:[%s250 + $0x5f0] sm:$0xff]
      %v583 = vld [vmem:[%s250 + $0x5f8] sm:$0xff]
      %v584 = vld [vmem:[%s250 + $0x600] sm:$0xff]
      %v585 = vld [vmem:[%s250 + $0x608] sm:$0xff]
      %v586 = vld [vmem:[%s250 + $0x610] sm:$0xff]
      %v587 = vld [vmem:[%s250 + $0x618] sm:$0xff]
      %v588 = vld [vmem:[%s250 + $0x620] sm:$0xff]
      %v589 = vld [vmem:[%s250 + $0x628] sm:$0xff]
      %v590 = vld [vmem:[%s250 + $0x630] sm:$0xff]
      %v591 = vld [vmem:[%s250 + $0x638] sm:$0xff]
      %v592 = vld [vmem:[%s250 + $0x640] sm:$0xff]
      %v593 = vld [vmem:[%s250 + $0x648] sm:$0xff]
      %v594 = vld [vmem:[%s250 + $0x650] sm:$0xff]
      %v595 = vld [vmem:[%s250 + $0x658] sm:$0xff]
      %v596 = vld [vmem:[%s250 + $0x660] sm:$0xff]
      %v597 = vld [vmem:[%s250 + $0x668] sm:$0xff]
      %v598 = vld [vmem:[%s250 + $0x670] sm:$0xff]
      %v599 = vld [vmem:[%s250 + $0x678] sm:$0xff]
      %v600 = vld [vmem:[%s250 + $0x680] sm:$0xff]
      %v601 = vld [vmem:[%s250 + $0x688] sm:$0xff]
      %v602 = vld [vmem:[%s250 + $0x690] sm:$0xff]
      %v603 = vld [vmem:[%s250 + $0x698] sm:$0xff]
      %v604 = vld [vmem:[%s250 + $0x6a0] sm:$0xff]
      %v605 = vld [vmem:[%s250 + $0x6a8] sm:$0xff]
      %v606 = vld [vmem:[%s250 + $0x6b0] sm:$0xff]
      %v607 = vld [vmem:[%s250 + $0x6b8] sm:$0xff]
      %v608 = vld [vmem:[%s250 + $0x6c0] sm:$0xff]
      %v609 = vld [vmem:[%s250 + $0x6c8] sm:$0xff]
      %v610 = vld [vmem:[%s250 + $0x6d0] sm:$0xff]
      %v611 = vld [vmem:[%s250 + $0x6d8] sm:$0xff]
      %v612 = vld [vmem:[%s250 + $0x6e0] sm:$0xff]
      %v613 = vld [vmem:[%s250 + $0x6e8] sm:$0xff]
      %v614 = vld [vmem:[%s250 + $0x6f0] sm:$0xff]
      %v615 = vld [vmem:[%s250 + $0x6f8] sm:$0xff]
      %v616 = vld [vmem:[%s250 + $0x700] sm:$0xff]
      %v617 = vld [vmem:[%s250 + $0x708] sm:$0xff]
      %v618 = vld [vmem:[%s250 + $0x710] sm:$0xff]
      %v619 = vld [vmem:[%s250 + $0x718] sm:$0xff]
      %v620 = vld [vmem:[%s250 + $0x720] sm:$0xff]
      %v621 = vld [vmem:[%s250 + $0x728] sm:$0xff]
      %v622 = vld [vmem:[%s250 + $0x730] sm:$0xff]
      %v623 = vld [vmem:[%s250 + $0x738] sm:$0xff]
      %v624 = vld [vmem:[%s250 + $0x740] sm:$0xff]
      %v625 = vld [vmem:[%s250 + $0x748] sm:$0xff]
      %v626 = vld [vmem:[%s250 + $0x750] sm:$0xff]
      %v627 = vld [vmem:[%s250 + $0x758] sm:$0xff]
      %v628 = vld [vmem:[%s250 + $0x760] sm:$0xff]
      %v629 = vld [vmem:[%s250 + $0x768] sm:$0xff]
      %v630 = vld [vmem:[%s250 + $0x770] sm:$0xff]
      %v631 = vld [vmem:[%s250 + $0x778] sm:$0xff]
      %v632 = vld [vmem:[%s250 + $0x780] sm:$0xff]
      %v633 = vld [vmem:[%s250 + $0x788] sm:$0xff]
      %v634 = vld [vmem:[%s250 + $0x790] sm:$0xff]
      %v635 = vld [vmem:[%s250 + $0x798] sm:$0xff]
      %v636 = vld [vmem:[%s250 + $0x7a0] sm:$0xff]
      %v637 = vld [vmem:[%s250 + $0x7a8] sm:$0xff]
      %v638 = vld [vmem:[%s250 + $0x7b0] sm:$0xff]
      %v639 = vld [vmem:[%s250 + $0x7b8] sm:$0xff]
      %v640 = vld [vmem:[%s250 + $0x7c0] sm:$0xff]
      %v641 = vld [vmem:[%s250 + $0x7c8] sm:$0xff]
      %v642 = vld [vmem:[%s250 + $0x7d0] sm:$0xff]
      %v643 = vld [vmem:[%s250 + $0x7d8] sm:$0xff]
      %v644 = vld [vmem:[%s250 + $0x7e0] sm:$0xff]
      %v645 = vld [vmem:[%s250 + $0x7e8] sm:$0xff]
      %v646 = vld [vmem:[%s250 + $0x7f0] sm:$0xff]
      %v647 = vld [vmem:[%s250 + $0x7f8] sm:$0xff]
      %s648 = sshra.s32 %s327, 3
      %s649 = sand.u32 %s327, 7
      %s650 = smul.addr %s648, 4
      %s651 = scalar_lea.vmem %s1, %s650
      %v652 = vld [vmem:[%s651] sm:$0xf]
      %v653 = vld [vmem:[%s651 + $0x4] sm:$0xf]
      %v654 = vld [vmem:[%s651 + $0x8] sm:$0xf]
      %v655 = vld [vmem:[%s651 + $0xc] sm:$0xf]
      %v656 = vld [vmem:[%s651 + $0x10] sm:$0xf]
      %v657 = vld [vmem:[%s651 + $0x14] sm:$0xf]
      %v658 = vld [vmem:[%s651 + $0x18] sm:$0xf]
      %v659 = vld [vmem:[%s651 + $0x1c] sm:$0xf]
      %v660 = vld [vmem:[%s651 + $0x20] sm:$0xf]
      %v661 = vld [vmem:[%s651 + $0x24] sm:$0xf]
      %v662 = vld [vmem:[%s651 + $0x28] sm:$0xf]
      %v663 = vld [vmem:[%s651 + $0x2c] sm:$0xf]
      %v664 = vld [vmem:[%s651 + $0x30] sm:$0xf]
      %v665 = vld [vmem:[%s651 + $0x34] sm:$0xf]
      %v666 = vld [vmem:[%s651 + $0x38] sm:$0xf]
      %v667 = vld [vmem:[%s651 + $0x3c] sm:$0xf]
      %v668 = vld [vmem:[%s651 + $0x40] sm:$0xf]
      %v669 = vld [vmem:[%s651 + $0x44] sm:$0xf]
      %v670 = vld [vmem:[%s651 + $0x48] sm:$0xf]
      %v671 = vld [vmem:[%s651 + $0x4c] sm:$0xf]
      %v672 = vld [vmem:[%s651 + $0x50] sm:$0xf]
      %v673 = vld [vmem:[%s651 + $0x54] sm:$0xf]
      %v674 = vld [vmem:[%s651 + $0x58] sm:$0xf]
      %v675 = vld [vmem:[%s651 + $0x5c] sm:$0xf]
      %v676 = vld [vmem:[%s651 + $0x60] sm:$0xf]
      %v677 = vld [vmem:[%s651 + $0x64] sm:$0xf]
      %v678 = vld [vmem:[%s651 + $0x68] sm:$0xf]
      %v679 = vld [vmem:[%s651 + $0x6c] sm:$0xf]
      %v680 = vld [vmem:[%s651 + $0x70] sm:$0xf]
      %v681 = vld [vmem:[%s651 + $0x74] sm:$0xf]
      %v682 = vld [vmem:[%s651 + $0x78] sm:$0xf]
      %v683 = vld [vmem:[%s651 + $0x7c] sm:$0xf]
      %v684 = vld [vmem:[%s651 + $0x80] sm:$0xf]
      %v685 = vld [vmem:[%s651 + $0x84] sm:$0xf]
      %v686 = vld [vmem:[%s651 + $0x88] sm:$0xf]
      %v687 = vld [vmem:[%s651 + $0x8c] sm:$0xf]
      %v688 = vld [vmem:[%s651 + $0x90] sm:$0xf]
      %v689 = vld [vmem:[%s651 + $0x94] sm:$0xf]
      %v690 = vld [vmem:[%s651 + $0x98] sm:$0xf]
      %v691 = vld [vmem:[%s651 + $0x9c] sm:$0xf]
      %v692 = vld [vmem:[%s651 + $0xa0] sm:$0xf]
      %v693 = vld [vmem:[%s651 + $0xa4] sm:$0xf]
      %v694 = vld [vmem:[%s651 + $0xa8] sm:$0xf]
      %v695 = vld [vmem:[%s651 + $0xac] sm:$0xf]
      %v696 = vld [vmem:[%s651 + $0xb0] sm:$0xf]
      %v697 = vld [vmem:[%s651 + $0xb4] sm:$0xf]
      %v698 = vld [vmem:[%s651 + $0xb8] sm:$0xf]
      %v699 = vld [vmem:[%s651 + $0xbc] sm:$0xf]
      %v700 = vld [vmem:[%s651 + $0xc0] sm:$0xf]
      %v701 = vld [vmem:[%s651 + $0xc4] sm:$0xf]
      %v702 = vld [vmem:[%s651 + $0xc8] sm:$0xf]
      %v703 = vld [vmem:[%s651 + $0xcc] sm:$0xf]
      %v704 = vld [vmem:[%s651 + $0xd0] sm:$0xf]
      %v705 = vld [vmem:[%s651 + $0xd4] sm:$0xf]
      %v706 = vld [vmem:[%s651 + $0xd8] sm:$0xf]
      %v707 = vld [vmem:[%s651 + $0xdc] sm:$0xf]
      %v708 = vld [vmem:[%s651 + $0xe0] sm:$0xf]
      %v709 = vld [vmem:[%s651 + $0xe4] sm:$0xf]
      %v710 = vld [vmem:[%s651 + $0xe8] sm:$0xf]
      %v711 = vld [vmem:[%s651 + $0xec] sm:$0xf]
      %v712 = vld [vmem:[%s651 + $0xf0] sm:$0xf]
      %v713 = vld [vmem:[%s651 + $0xf4] sm:$0xf]
      %v714 = vld [vmem:[%s651 + $0xf8] sm:$0xf]
      %v715 = vld [vmem:[%s651 + $0xfc] sm:$0xf]
      %v716 = vld [vmem:[%s651 + $0x100] sm:$0xf]
      %v717 = vld [vmem:[%s651 + $0x104] sm:$0xf]
      %v718 = vld [vmem:[%s651 + $0x108] sm:$0xf]
      %v719 = vld [vmem:[%s651 + $0x10c] sm:$0xf]
      %v720 = vld [vmem:[%s651 + $0x110] sm:$0xf]
      %v721 = vld [vmem:[%s651 + $0x114] sm:$0xf]
      %v722 = vld [vmem:[%s651 + $0x118] sm:$0xf]
      %v723 = vld [vmem:[%s651 + $0x11c] sm:$0xf]
      %v724 = vld [vmem:[%s651 + $0x120] sm:$0xf]
      %v725 = vld [vmem:[%s651 + $0x124] sm:$0xf]
      %v726 = vld [vmem:[%s651 + $0x128] sm:$0xf]
      %v727 = vld [vmem:[%s651 + $0x12c] sm:$0xf]
      %v728 = vld [vmem:[%s651 + $0x130] sm:$0xf]
      %v729 = vld [vmem:[%s651 + $0x134] sm:$0xf]
      %v730 = vld [vmem:[%s651 + $0x138] sm:$0xf]
      %v731 = vld [vmem:[%s651 + $0x13c] sm:$0xf]
      %v732 = vld [vmem:[%s651 + $0x140] sm:$0xf]
      %v733 = vld [vmem:[%s651 + $0x144] sm:$0xf]
      %v734 = vld [vmem:[%s651 + $0x148] sm:$0xf]
      %v735 = vld [vmem:[%s651 + $0x14c] sm:$0xf]
      %v736 = vld [vmem:[%s651 + $0x150] sm:$0xf]
      %v737 = vld [vmem:[%s651 + $0x154] sm:$0xf]
      %v738 = vld [vmem:[%s651 + $0x158] sm:$0xf]
      %v739 = vld [vmem:[%s651 + $0x15c] sm:$0xf]
      %v740 = vld [vmem:[%s651 + $0x160] sm:$0xf]
      %v741 = vld [vmem:[%s651 + $0x164] sm:$0xf]
      %v742 = vld [vmem:[%s651 + $0x168] sm:$0xf]
      %v743 = vld [vmem:[%s651 + $0x16c] sm:$0xf]
      %v744 = vld [vmem:[%s651 + $0x170] sm:$0xf]
      %v745 = vld [vmem:[%s651 + $0x174] sm:$0xf]
      %v746 = vld [vmem:[%s651 + $0x178] sm:$0xf]
      %v747 = vld [vmem:[%s651 + $0x17c] sm:$0xf]
      %v748 = vld [vmem:[%s651 + $0x180] sm:$0xf]
      %v749 = vld [vmem:[%s651 + $0x184] sm:$0xf]
      %v750 = vld [vmem:[%s651 + $0x188] sm:$0xf]
      %v751 = vld [vmem:[%s651 + $0x18c] sm:$0xf]
      %v752 = vld [vmem:[%s651 + $0x190] sm:$0xf]
      %v753 = vld [vmem:[%s651 + $0x194] sm:$0xf]
      %v754 = vld [vmem:[%s651 + $0x198] sm:$0xf]
      %v755 = vld [vmem:[%s651 + $0x19c] sm:$0xf]
      %v756 = vld [vmem:[%s651 + $0x1a0] sm:$0xf]
      %v757 = vld [vmem:[%s651 + $0x1a4] sm:$0xf]
      %v758 = vld [vmem:[%s651 + $0x1a8] sm:$0xf]
      %v759 = vld [vmem:[%s651 + $0x1ac] sm:$0xf]
      %v760 = vld [vmem:[%s651 + $0x1b0] sm:$0xf]
      %v761 = vld [vmem:[%s651 + $0x1b4] sm:$0xf]
      %v762 = vld [vmem:[%s651 + $0x1b8] sm:$0xf]
      %v763 = vld [vmem:[%s651 + $0x1bc] sm:$0xf]
      %v764 = vld [vmem:[%s651 + $0x1c0] sm:$0xf]
      %v765 = vld [vmem:[%s651 + $0x1c4] sm:$0xf]
      %v766 = vld [vmem:[%s651 + $0x1c8] sm:$0xf]
      %v767 = vld [vmem:[%s651 + $0x1cc] sm:$0xf]
      %v768 = vld [vmem:[%s651 + $0x1d0] sm:$0xf]
      %v769 = vld [vmem:[%s651 + $0x1d4] sm:$0xf]
      %v770 = vld [vmem:[%s651 + $0x1d8] sm:$0xf]
      %v771 = vld [vmem:[%s651 + $0x1dc] sm:$0xf]
      %v772 = vld [vmem:[%s651 + $0x1e0] sm:$0xf]
      %v773 = vld [vmem:[%s651 + $0x1e4] sm:$0xf]
      %v774 = vld [vmem:[%s651 + $0x1e8] sm:$0xf]
      %v775 = vld [vmem:[%s651 + $0x1ec] sm:$0xf]
      %v776 = vld [vmem:[%s651 + $0x1f0] sm:$0xf]
      %v777 = vld [vmem:[%s651 + $0x1f4] sm:$0xf]
      %v778 = vld [vmem:[%s651 + $0x1f8] sm:$0xf]
      %v779 = vld [vmem:[%s651 + $0x1fc] sm:$0xf]
      %v1036 = vunpack.c.l.b16 %v392
      %v1037 = vunpack.c.h.b16 %v392
      %v1038 = vunpack.c.l.b16 %v393
      %v1039 = vunpack.c.h.b16 %v393
      %v1040 = vunpack.c.l.b16 %v394
      %v1041 = vunpack.c.h.b16 %v394
      %v1042 = vunpack.c.l.b16 %v395
      %v1043 = vunpack.c.h.b16 %v395
      %v1044 = vunpack.c.l.b16 %v396
      %v1045 = vunpack.c.h.b16 %v396
      %v1046 = vunpack.c.l.b16 %v397
      %v1047 = vunpack.c.h.b16 %v397
      %v1048 = vunpack.c.l.b16 %v398
      %v1049 = vunpack.c.h.b16 %v398
      %v1050 = vunpack.c.l.b16 %v399
      %v1051 = vunpack.c.h.b16 %v399
      %v1052 = vunpack.c.l.b16 %v400
      %v1053 = vunpack.c.h.b16 %v400
      %v1054 = vunpack.c.l.b16 %v401
      %v1055 = vunpack.c.h.b16 %v401
      %v1056 = vunpack.c.l.b16 %v402
      %v1057 = vunpack.c.h.b16 %v402
      %v1058 = vunpack.c.l.b16 %v403
      %v1059 = vunpack.c.h.b16 %v403
      %v1060 = vunpack.c.l.b16 %v404
      %v1061 = vunpack.c.h.b16 %v404
      %v1062 = vunpack.c.l.b16 %v405
      %v1063 = vunpack.c.h.b16 %v405
      %v1064 = vunpack.c.l.b16 %v406
      %v1065 = vunpack.c.h.b16 %v406
      %v1066 = vunpack.c.l.b16 %v407
      %v1067 = vunpack.c.h.b16 %v407
      %v1068 = vunpack.c.l.b16 %v408
      %v1069 = vunpack.c.h.b16 %v408
      %v1070 = vunpack.c.l.b16 %v409
      %v1071 = vunpack.c.h.b16 %v409
      %v1072 = vunpack.c.l.b16 %v410
      %v1073 = vunpack.c.h.b16 %v410
      %v1074 = vunpack.c.l.b16 %v411
      %v1075 = vunpack.c.h.b16 %v411
      %v1076 = vunpack.c.l.b16 %v412
      %v1077 = vunpack.c.h.b16 %v412
      %v1078 = vunpack.c.l.b16 %v413
      %v1079 = vunpack.c.h.b16 %v413
      %v1080 = vunpack.c.l.b16 %v414
      %v1081 = vunpack.c.h.b16 %v414
      %v1082 = vunpack.c.l.b16 %v415
      %v1083 = vunpack.c.h.b16 %v415
      %v1084 = vunpack.c.l.b16 %v416
      %v1085 = vunpack.c.h.b16 %v416
      %v1086 = vunpack.c.l.b16 %v417
      %v1087 = vunpack.c.h.b16 %v417
      %v1088 = vunpack.c.l.b16 %v418
      %v1089 = vunpack.c.h.b16 %v418
      %v1090 = vunpack.c.l.b16 %v419
      %v1091 = vunpack.c.h.b16 %v419
      %v1092 = vunpack.c.l.b16 %v420
      %v1093 = vunpack.c.h.b16 %v420
      %v1094 = vunpack.c.l.b16 %v421
      %v1095 = vunpack.c.h.b16 %v421
      %v1096 = vunpack.c.l.b16 %v422
      %v1097 = vunpack.c.h.b16 %v422
      %v1098 = vunpack.c.l.b16 %v423
      %v1099 = vunpack.c.h.b16 %v423
      %v1100 = vunpack.c.l.b16 %v424
      %v1101 = vunpack.c.h.b16 %v424
      %v1102 = vunpack.c.l.b16 %v425
      %v1103 = vunpack.c.h.b16 %v425
      %v1104 = vunpack.c.l.b16 %v426
      %v1105 = vunpack.c.h.b16 %v426
      %v1106 = vunpack.c.l.b16 %v427
      %v1107 = vunpack.c.h.b16 %v427
      %v1108 = vunpack.c.l.b16 %v428
      %v1109 = vunpack.c.h.b16 %v428
      %v1110 = vunpack.c.l.b16 %v429
      %v1111 = vunpack.c.h.b16 %v429
      %v1112 = vunpack.c.l.b16 %v430
      %v1113 = vunpack.c.h.b16 %v430
      %v1114 = vunpack.c.l.b16 %v431
      %v1115 = vunpack.c.h.b16 %v431
      %v1116 = vunpack.c.l.b16 %v432
      %v1117 = vunpack.c.h.b16 %v432
      %v1118 = vunpack.c.l.b16 %v433
      %v1119 = vunpack.c.h.b16 %v433
      %v1120 = vunpack.c.l.b16 %v434
      %v1121 = vunpack.c.h.b16 %v434
      %v1122 = vunpack.c.l.b16 %v435
      %v1123 = vunpack.c.h.b16 %v435
      %v1124 = vunpack.c.l.b16 %v436
      %v1125 = vunpack.c.h.b16 %v436
      %v1126 = vunpack.c.l.b16 %v437
      %v1127 = vunpack.c.h.b16 %v437
      %v1128 = vunpack.c.l.b16 %v438
      %v1129 = vunpack.c.h.b16 %v438
      %v1130 = vunpack.c.l.b16 %v439
      %v1131 = vunpack.c.h.b16 %v439
      %v1132 = vunpack.c.l.b16 %v440
      %v1133 = vunpack.c.h.b16 %v440
      %v1134 = vunpack.c.l.b16 %v441
      %v1135 = vunpack.c.h.b16 %v441
      %v1136 = vunpack.c.l.b16 %v442
      %v1137 = vunpack.c.h.b16 %v442
      %v1138 = vunpack.c.l.b16 %v443
      %v1139 = vunpack.c.h.b16 %v443
      %v1140 = vunpack.c.l.b16 %v444
      %v1141 = vunpack.c.h.b16 %v444
      %v1142 = vunpack.c.l.b16 %v445
      %v1143 = vunpack.c.h.b16 %v445
      %v1144 = vunpack.c.l.b16 %v446
      %v1145 = vunpack.c.h.b16 %v446
      %v1146 = vunpack.c.l.b16 %v447
      %v1147 = vunpack.c.h.b16 %v447
      %v1148 = vunpack.c.l.b16 %v448
      %v1149 = vunpack.c.h.b16 %v448
      %v1150 = vunpack.c.l.b16 %v449
      %v1151 = vunpack.c.h.b16 %v449
      %v1152 = vunpack.c.l.b16 %v450
      %v1153 = vunpack.c.h.b16 %v450
      %v1154 = vunpack.c.l.b16 %v451
      %v1155 = vunpack.c.h.b16 %v451
      %v1156 = vunpack.c.l.b16 %v452
      %v1157 = vunpack.c.h.b16 %v452
      %v1158 = vunpack.c.l.b16 %v453
      %v1159 = vunpack.c.h.b16 %v453
      %v1160 = vunpack.c.l.b16 %v454
      %v1161 = vunpack.c.h.b16 %v454
      %v1162 = vunpack.c.l.b16 %v455
      %v1163 = vunpack.c.h.b16 %v455
      %v1164 = vunpack.c.l.b16 %v456
      %v1165 = vunpack.c.h.b16 %v456
      %v1166 = vunpack.c.l.b16 %v457
      %v1167 = vunpack.c.h.b16 %v457
      %v1168 = vunpack.c.l.b16 %v458
      %v1169 = vunpack.c.h.b16 %v458
      %v1170 = vunpack.c.l.b16 %v459
      %v1171 = vunpack.c.h.b16 %v459
      %v1172 = vunpack.c.l.b16 %v460
      %v1173 = vunpack.c.h.b16 %v460
      %v1174 = vunpack.c.l.b16 %v461
      %v1175 = vunpack.c.h.b16 %v461
      %v1176 = vunpack.c.l.b16 %v462
      %v1177 = vunpack.c.h.b16 %v462
      %v1178 = vunpack.c.l.b16 %v463
      %v1179 = vunpack.c.h.b16 %v463
      %v1180 = vunpack.c.l.b16 %v464
      %v1181 = vunpack.c.h.b16 %v464
      %v1182 = vunpack.c.l.b16 %v465
      %v1183 = vunpack.c.h.b16 %v465
      %v1184 = vunpack.c.l.b16 %v466
      %v1185 = vunpack.c.h.b16 %v466
      %v1186 = vunpack.c.l.b16 %v467
      %v1187 = vunpack.c.h.b16 %v467
      %v1188 = vunpack.c.l.b16 %v468
      %v1189 = vunpack.c.h.b16 %v468
      %v1190 = vunpack.c.l.b16 %v469
      %v1191 = vunpack.c.h.b16 %v469
      %v1192 = vunpack.c.l.b16 %v470
      %v1193 = vunpack.c.h.b16 %v470
      %v1194 = vunpack.c.l.b16 %v471
      %v1195 = vunpack.c.h.b16 %v471
      %v1196 = vunpack.c.l.b16 %v472
      %v1197 = vunpack.c.h.b16 %v472
      %v1198 = vunpack.c.l.b16 %v473
      %v1199 = vunpack.c.h.b16 %v473
      %v1200 = vunpack.c.l.b16 %v474
      %v1201 = vunpack.c.h.b16 %v474
      %v1202 = vunpack.c.l.b16 %v475
      %v1203 = vunpack.c.h.b16 %v475
      %v1204 = vunpack.c.l.b16 %v476
      %v1205 = vunpack.c.h.b16 %v476
      %v1206 = vunpack.c.l.b16 %v477
      %v1207 = vunpack.c.h.b16 %v477
      %v1208 = vunpack.c.l.b16 %v478
      %v1209 = vunpack.c.h.b16 %v478
      %v1210 = vunpack.c.l.b16 %v479
      %v1211 = vunpack.c.h.b16 %v479
      %v1212 = vunpack.c.l.b16 %v480
      %v1213 = vunpack.c.h.b16 %v480
      %v1214 = vunpack.c.l.b16 %v481
      %v1215 = vunpack.c.h.b16 %v481
      %v1216 = vunpack.c.l.b16 %v482
      %v1217 = vunpack.c.h.b16 %v482
      %v1218 = vunpack.c.l.b16 %v483
      %v1219 = vunpack.c.h.b16 %v483
      %v1220 = vunpack.c.l.b16 %v484
      %v1221 = vunpack.c.h.b16 %v484
      %v1222 = vunpack.c.l.b16 %v485
      %v1223 = vunpack.c.h.b16 %v485
      %v1224 = vunpack.c.l.b16 %v486
      %v1225 = vunpack.c.h.b16 %v486
      %v1226 = vunpack.c.l.b16 %v487
      %v1227 = vunpack.c.h.b16 %v487
      %v1228 = vunpack.c.l.b16 %v488
      %v1229 = vunpack.c.h.b16 %v488
      %v1230 = vunpack.c.l.b16 %v489
      %v1231 = vunpack.c.h.b16 %v489
      %v1232 = vunpack.c.l.b16 %v490
      %v1233 = vunpack.c.h.b16 %v490
      %v1234 = vunpack.c.l.b16 %v491
      %v1235 = vunpack.c.h.b16 %v491
      %v1236 = vunpack.c.l.b16 %v492
      %v1237 = vunpack.c.h.b16 %v492
      %v1238 = vunpack.c.l.b16 %v493
      %v1239 = vunpack.c.h.b16 %v493
      %v1240 = vunpack.c.l.b16 %v494
      %v1241 = vunpack.c.h.b16 %v494
      %v1242 = vunpack.c.l.b16 %v495
      %v1243 = vunpack.c.h.b16 %v495
      %v1244 = vunpack.c.l.b16 %v496
      %v1245 = vunpack.c.h.b16 %v496
      %v1246 = vunpack.c.l.b16 %v497
      %v1247 = vunpack.c.h.b16 %v497
      %v1248 = vunpack.c.l.b16 %v498
      %v1249 = vunpack.c.h.b16 %v498
      %v1250 = vunpack.c.l.b16 %v499
      %v1251 = vunpack.c.h.b16 %v499
      %v1252 = vunpack.c.l.b16 %v500
      %v1253 = vunpack.c.h.b16 %v500
      %v1254 = vunpack.c.l.b16 %v501
      %v1255 = vunpack.c.h.b16 %v501
      %v1256 = vunpack.c.l.b16 %v502
      %v1257 = vunpack.c.h.b16 %v502
      %v1258 = vunpack.c.l.b16 %v503
      %v1259 = vunpack.c.h.b16 %v503
      %v1260 = vunpack.c.l.b16 %v504
      %v1261 = vunpack.c.h.b16 %v504
      %v1262 = vunpack.c.l.b16 %v505
      %v1263 = vunpack.c.h.b16 %v505
      %v1264 = vunpack.c.l.b16 %v506
      %v1265 = vunpack.c.h.b16 %v506
      %v1266 = vunpack.c.l.b16 %v507
      %v1267 = vunpack.c.h.b16 %v507
      %v1268 = vunpack.c.l.b16 %v508
      %v1269 = vunpack.c.h.b16 %v508
      %v1270 = vunpack.c.l.b16 %v509
      %v1271 = vunpack.c.h.b16 %v509
      %v1272 = vunpack.c.l.b16 %v510
      %v1273 = vunpack.c.h.b16 %v510
      %v1274 = vunpack.c.l.b16 %v511
      %v1275 = vunpack.c.h.b16 %v511
      %v1276 = vunpack.c.l.b16 %v512
      %v1277 = vunpack.c.h.b16 %v512
      %v1278 = vunpack.c.l.b16 %v513
      %v1279 = vunpack.c.h.b16 %v513
      %v1280 = vunpack.c.l.b16 %v514
      %v1281 = vunpack.c.h.b16 %v514
      %v1282 = vunpack.c.l.b16 %v515
      %v1283 = vunpack.c.h.b16 %v515
      %v1284 = vunpack.c.l.b16 %v516
      %v1285 = vunpack.c.h.b16 %v516
      %v1286 = vunpack.c.l.b16 %v517
      %v1287 = vunpack.c.h.b16 %v517
      %v1288 = vunpack.c.l.b16 %v518
      %v1289 = vunpack.c.h.b16 %v518
      %v1290 = vunpack.c.l.b16 %v519
      %v1291 = vunpack.c.h.b16 %v519
      %v1292 = vunpack.c.l.b16 %v520
      %v1293 = vunpack.c.h.b16 %v520
      %v1294 = vunpack.c.l.b16 %v521
      %v1295 = vunpack.c.h.b16 %v521
      %v1296 = vunpack.c.l.b16 %v522
      %v1297 = vunpack.c.h.b16 %v522
      %v1298 = vunpack.c.l.b16 %v523
      %v1299 = vunpack.c.h.b16 %v523
      %v1300 = vunpack.c.l.b16 %v524
      %v1301 = vunpack.c.h.b16 %v524
      %v1302 = vunpack.c.l.b16 %v525
      %v1303 = vunpack.c.h.b16 %v525
      %v1304 = vunpack.c.l.b16 %v526
      %v1305 = vunpack.c.h.b16 %v526
      %v1306 = vunpack.c.l.b16 %v527
      %v1307 = vunpack.c.h.b16 %v527
      %v1308 = vunpack.c.l.b16 %v528
      %v1309 = vunpack.c.h.b16 %v528
      %v1310 = vunpack.c.l.b16 %v529
      %v1311 = vunpack.c.h.b16 %v529
      %v1312 = vunpack.c.l.b16 %v530
      %v1313 = vunpack.c.h.b16 %v530
      %v1314 = vunpack.c.l.b16 %v531
      %v1315 = vunpack.c.h.b16 %v531
      %v1316 = vunpack.c.l.b16 %v532
      %v1317 = vunpack.c.h.b16 %v532
      %v1318 = vunpack.c.l.b16 %v533
      %v1319 = vunpack.c.h.b16 %v533
      %v1320 = vunpack.c.l.b16 %v534
      %v1321 = vunpack.c.h.b16 %v534
      %v1322 = vunpack.c.l.b16 %v535
      %v1323 = vunpack.c.h.b16 %v535
      %v1324 = vunpack.c.l.b16 %v536
      %v1325 = vunpack.c.h.b16 %v536
      %v1326 = vunpack.c.l.b16 %v537
      %v1327 = vunpack.c.h.b16 %v537
      %v1328 = vunpack.c.l.b16 %v538
      %v1329 = vunpack.c.h.b16 %v538
      %v1330 = vunpack.c.l.b16 %v539
      %v1331 = vunpack.c.h.b16 %v539
      %v1332 = vunpack.c.l.b16 %v540
      %v1333 = vunpack.c.h.b16 %v540
      %v1334 = vunpack.c.l.b16 %v541
      %v1335 = vunpack.c.h.b16 %v541
      %v1336 = vunpack.c.l.b16 %v542
      %v1337 = vunpack.c.h.b16 %v542
      %v1338 = vunpack.c.l.b16 %v543
      %v1339 = vunpack.c.h.b16 %v543
      %v1340 = vunpack.c.l.b16 %v544
      %v1341 = vunpack.c.h.b16 %v544
      %v1342 = vunpack.c.l.b16 %v545
      %v1343 = vunpack.c.h.b16 %v545
      %v1344 = vunpack.c.l.b16 %v546
      %v1345 = vunpack.c.h.b16 %v546
      %v1346 = vunpack.c.l.b16 %v547
      %v1347 = vunpack.c.h.b16 %v547
      %v1348 = vunpack.c.l.b16 %v548
      %v1349 = vunpack.c.h.b16 %v548
      %v1350 = vunpack.c.l.b16 %v549
      %v1351 = vunpack.c.h.b16 %v549
      %v1352 = vunpack.c.l.b16 %v550
      %v1353 = vunpack.c.h.b16 %v550
      %v1354 = vunpack.c.l.b16 %v551
      %v1355 = vunpack.c.h.b16 %v551
      %v1356 = vunpack.c.l.b16 %v552
      %v1357 = vunpack.c.h.b16 %v552
      %v1358 = vunpack.c.l.b16 %v553
      %v1359 = vunpack.c.h.b16 %v553
      %v1360 = vunpack.c.l.b16 %v554
      %v1361 = vunpack.c.h.b16 %v554
      %v1362 = vunpack.c.l.b16 %v555
      %v1363 = vunpack.c.h.b16 %v555
      %v1364 = vunpack.c.l.b16 %v556
      %v1365 = vunpack.c.h.b16 %v556
      %v1366 = vunpack.c.l.b16 %v557
      %v1367 = vunpack.c.h.b16 %v557
      %v1368 = vunpack.c.l.b16 %v558
      %v1369 = vunpack.c.h.b16 %v558
      %v1370 = vunpack.c.l.b16 %v559
      %v1371 = vunpack.c.h.b16 %v559
      %v1372 = vunpack.c.l.b16 %v560
      %v1373 = vunpack.c.h.b16 %v560
      %v1374 = vunpack.c.l.b16 %v561
      %v1375 = vunpack.c.h.b16 %v561
      %v1376 = vunpack.c.l.b16 %v562
      %v1377 = vunpack.c.h.b16 %v562
      %v1378 = vunpack.c.l.b16 %v563
      %v1379 = vunpack.c.h.b16 %v563
      %v1380 = vunpack.c.l.b16 %v564
      %v1381 = vunpack.c.h.b16 %v564
      %v1382 = vunpack.c.l.b16 %v565
      %v1383 = vunpack.c.h.b16 %v565
      %v1384 = vunpack.c.l.b16 %v566
      %v1385 = vunpack.c.h.b16 %v566
      %v1386 = vunpack.c.l.b16 %v567
      %v1387 = vunpack.c.h.b16 %v567
      %v1388 = vunpack.c.l.b16 %v568
      %v1389 = vunpack.c.h.b16 %v568
      %v1390 = vunpack.c.l.b16 %v569
      %v1391 = vunpack.c.h.b16 %v569
      %v1392 = vunpack.c.l.b16 %v570
      %v1393 = vunpack.c.h.b16 %v570
      %v1394 = vunpack.c.l.b16 %v571
      %v1395 = vunpack.c.h.b16 %v571
      %v1396 = vunpack.c.l.b16 %v572
      %v1397 = vunpack.c.h.b16 %v572
      %v1398 = vunpack.c.l.b16 %v573
      %v1399 = vunpack.c.h.b16 %v573
      %v1400 = vunpack.c.l.b16 %v574
      %v1401 = vunpack.c.h.b16 %v574
      %v1402 = vunpack.c.l.b16 %v575
      %v1403 = vunpack.c.h.b16 %v575
      %v1404 = vunpack.c.l.b16 %v576
      %v1405 = vunpack.c.h.b16 %v576
      %v1406 = vunpack.c.l.b16 %v577
      %v1407 = vunpack.c.h.b16 %v577
      %v1408 = vunpack.c.l.b16 %v578
      %v1409 = vunpack.c.h.b16 %v578
      %v1410 = vunpack.c.l.b16 %v579
      %v1411 = vunpack.c.h.b16 %v579
      %v1412 = vunpack.c.l.b16 %v580
      %v1413 = vunpack.c.h.b16 %v580
      %v1414 = vunpack.c.l.b16 %v581
      %v1415 = vunpack.c.h.b16 %v581
      %v1416 = vunpack.c.l.b16 %v582
      %v1417 = vunpack.c.h.b16 %v582
      %v1418 = vunpack.c.l.b16 %v583
      %v1419 = vunpack.c.h.b16 %v583
      %v1420 = vunpack.c.l.b16 %v584
      %v1421 = vunpack.c.h.b16 %v584
      %v1422 = vunpack.c.l.b16 %v585
      %v1423 = vunpack.c.h.b16 %v585
      %v1424 = vunpack.c.l.b16 %v586
      %v1425 = vunpack.c.h.b16 %v586
      %v1426 = vunpack.c.l.b16 %v587
      %v1427 = vunpack.c.h.b16 %v587
      %v1428 = vunpack.c.l.b16 %v588
      %v1429 = vunpack.c.h.b16 %v588
      %v1430 = vunpack.c.l.b16 %v589
      %v1431 = vunpack.c.h.b16 %v589
      %v1432 = vunpack.c.l.b16 %v590
      %v1433 = vunpack.c.h.b16 %v590
      %v1434 = vunpack.c.l.b16 %v591
      %v1435 = vunpack.c.h.b16 %v591
      %v1436 = vunpack.c.l.b16 %v592
      %v1437 = vunpack.c.h.b16 %v592
      %v1438 = vunpack.c.l.b16 %v593
      %v1439 = vunpack.c.h.b16 %v593
      %v1440 = vunpack.c.l.b16 %v594
      %v1441 = vunpack.c.h.b16 %v594
      %v1442 = vunpack.c.l.b16 %v595
      %v1443 = vunpack.c.h.b16 %v595
      %v1444 = vunpack.c.l.b16 %v596
      %v1445 = vunpack.c.h.b16 %v596
      %v1446 = vunpack.c.l.b16 %v597
      %v1447 = vunpack.c.h.b16 %v597
      %v1448 = vunpack.c.l.b16 %v598
      %v1449 = vunpack.c.h.b16 %v598
      %v1450 = vunpack.c.l.b16 %v599
      %v1451 = vunpack.c.h.b16 %v599
      %v1452 = vunpack.c.l.b16 %v600
      %v1453 = vunpack.c.h.b16 %v600
      %v1454 = vunpack.c.l.b16 %v601
      %v1455 = vunpack.c.h.b16 %v601
      %v1456 = vunpack.c.l.b16 %v602
      %v1457 = vunpack.c.h.b16 %v602
      %v1458 = vunpack.c.l.b16 %v603
      %v1459 = vunpack.c.h.b16 %v603
      %v1460 = vunpack.c.l.b16 %v604
      %v1461 = vunpack.c.h.b16 %v604
      %v1462 = vunpack.c.l.b16 %v605
      %v1463 = vunpack.c.h.b16 %v605
      %v1464 = vunpack.c.l.b16 %v606
      %v1465 = vunpack.c.h.b16 %v606
      %v1466 = vunpack.c.l.b16 %v607
      %v1467 = vunpack.c.h.b16 %v607
      %v1468 = vunpack.c.l.b16 %v608
      %v1469 = vunpack.c.h.b16 %v608
      %v1470 = vunpack.c.l.b16 %v609
      %v1471 = vunpack.c.h.b16 %v609
      %v1472 = vunpack.c.l.b16 %v610
      %v1473 = vunpack.c.h.b16 %v610
      %v1474 = vunpack.c.l.b16 %v611
      %v1475 = vunpack.c.h.b16 %v611
      %v1476 = vunpack.c.l.b16 %v612
      %v1477 = vunpack.c.h.b16 %v612
      %v1478 = vunpack.c.l.b16 %v613
      %v1479 = vunpack.c.h.b16 %v613
      %v1480 = vunpack.c.l.b16 %v614
      %v1481 = vunpack.c.h.b16 %v614
      %v1482 = vunpack.c.l.b16 %v615
      %v1483 = vunpack.c.h.b16 %v615
      %v1484 = vunpack.c.l.b16 %v616
      %v1485 = vunpack.c.h.b16 %v616
      %v1486 = vunpack.c.l.b16 %v617
      %v1487 = vunpack.c.h.b16 %v617
      %v1488 = vunpack.c.l.b16 %v618
      %v1489 = vunpack.c.h.b16 %v618
      %v1490 = vunpack.c.l.b16 %v619
      %v1491 = vunpack.c.h.b16 %v619
      %v1492 = vunpack.c.l.b16 %v620
      %v1493 = vunpack.c.h.b16 %v620
      %v1494 = vunpack.c.l.b16 %v621
      %v1495 = vunpack.c.h.b16 %v621
      %v1496 = vunpack.c.l.b16 %v622
      %v1497 = vunpack.c.h.b16 %v622
      %v1498 = vunpack.c.l.b16 %v623
      %v1499 = vunpack.c.h.b16 %v623
      %v1500 = vunpack.c.l.b16 %v624
      %v1501 = vunpack.c.h.b16 %v624
      %v1502 = vunpack.c.l.b16 %v625
      %v1503 = vunpack.c.h.b16 %v625
      %v1504 = vunpack.c.l.b16 %v626
      %v1505 = vunpack.c.h.b16 %v626
      %v1506 = vunpack.c.l.b16 %v627
      %v1507 = vunpack.c.h.b16 %v627
      %v1508 = vunpack.c.l.b16 %v628
      %v1509 = vunpack.c.h.b16 %v628
      %v1510 = vunpack.c.l.b16 %v629
      %v1511 = vunpack.c.h.b16 %v629
      %v1512 = vunpack.c.l.b16 %v630
      %v1513 = vunpack.c.h.b16 %v630
      %v1514 = vunpack.c.l.b16 %v631
      %v1515 = vunpack.c.h.b16 %v631
      %v1516 = vunpack.c.l.b16 %v632
      %v1517 = vunpack.c.h.b16 %v632
      %v1518 = vunpack.c.l.b16 %v633
      %v1519 = vunpack.c.h.b16 %v633
      %v1520 = vunpack.c.l.b16 %v634
      %v1521 = vunpack.c.h.b16 %v634
      %v1522 = vunpack.c.l.b16 %v635
      %v1523 = vunpack.c.h.b16 %v635
      %v1524 = vunpack.c.l.b16 %v636
      %v1525 = vunpack.c.h.b16 %v636
      %v1526 = vunpack.c.l.b16 %v637
      %v1527 = vunpack.c.h.b16 %v637
      %v1528 = vunpack.c.l.b16 %v638
      %v1529 = vunpack.c.h.b16 %v638
      %v1530 = vunpack.c.l.b16 %v639
      %v1531 = vunpack.c.h.b16 %v639
      %v1532 = vunpack.c.l.b16 %v640
      %v1533 = vunpack.c.h.b16 %v640
      %v1534 = vunpack.c.l.b16 %v641
      %v1535 = vunpack.c.h.b16 %v641
      %v1536 = vunpack.c.l.b16 %v642
      %v1537 = vunpack.c.h.b16 %v642
      %v1538 = vunpack.c.l.b16 %v643
      %v1539 = vunpack.c.h.b16 %v643
      %v1540 = vunpack.c.l.b16 %v644
      %v1541 = vunpack.c.h.b16 %v644
      %v1542 = vunpack.c.l.b16 %v645
      %v1543 = vunpack.c.h.b16 %v645
      %v1544 = vunpack.c.l.b16 %v646
      %v1545 = vunpack.c.h.b16 %v646
      %v1546 = vunpack.c.l.b16 %v647
      %v1547 = vunpack.c.h.b16 %v647
      %v1548 = vpack.c.b16 %v1044, %v1036
      %v1549 = vpack.c.b16 %v1045, %v1037
      %v1550 = vpack.c.b16 %v1046, %v1038
      %v1551 = vpack.c.b16 %v1047, %v1039
      %v1552 = vpack.c.b16 %v1048, %v1040
      %v1553 = vpack.c.b16 %v1049, %v1041
      %v1554 = vpack.c.b16 %v1050, %v1042
      %v1555 = vpack.c.b16 %v1051, %v1043
      %v1556 = vpack.c.b16 %v1060, %v1052
      %v1557 = vpack.c.b16 %v1061, %v1053
      %v1558 = vpack.c.b16 %v1062, %v1054
      %v1559 = vpack.c.b16 %v1063, %v1055
      %v1560 = vpack.c.b16 %v1064, %v1056
      %v1561 = vpack.c.b16 %v1065, %v1057
      %v1562 = vpack.c.b16 %v1066, %v1058
      %v1563 = vpack.c.b16 %v1067, %v1059
      %v1564 = vpack.c.b16 %v1076, %v1068
      %v1565 = vpack.c.b16 %v1077, %v1069
      %v1566 = vpack.c.b16 %v1078, %v1070
      %v1567 = vpack.c.b16 %v1079, %v1071
      %v1568 = vpack.c.b16 %v1080, %v1072
      %v1569 = vpack.c.b16 %v1081, %v1073
      %v1570 = vpack.c.b16 %v1082, %v1074
      %v1571 = vpack.c.b16 %v1083, %v1075
      %v1572 = vpack.c.b16 %v1092, %v1084
      %v1573 = vpack.c.b16 %v1093, %v1085
      %v1574 = vpack.c.b16 %v1094, %v1086
      %v1575 = vpack.c.b16 %v1095, %v1087
      %v1576 = vpack.c.b16 %v1096, %v1088
      %v1577 = vpack.c.b16 %v1097, %v1089
      %v1578 = vpack.c.b16 %v1098, %v1090
      %v1579 = vpack.c.b16 %v1099, %v1091
      %v1580 = vpack.c.b16 %v1108, %v1100
      %v1581 = vpack.c.b16 %v1109, %v1101
      %v1582 = vpack.c.b16 %v1110, %v1102
      %v1583 = vpack.c.b16 %v1111, %v1103
      %v1584 = vpack.c.b16 %v1112, %v1104
      %v1585 = vpack.c.b16 %v1113, %v1105
      %v1586 = vpack.c.b16 %v1114, %v1106
      %v1587 = vpack.c.b16 %v1115, %v1107
      %v1588 = vpack.c.b16 %v1124, %v1116
      %v1589 = vpack.c.b16 %v1125, %v1117
      %v1590 = vpack.c.b16 %v1126, %v1118
      %v1591 = vpack.c.b16 %v1127, %v1119
      %v1592 = vpack.c.b16 %v1128, %v1120
      %v1593 = vpack.c.b16 %v1129, %v1121
      %v1594 = vpack.c.b16 %v1130, %v1122
      %v1595 = vpack.c.b16 %v1131, %v1123
      %v1596 = vpack.c.b16 %v1140, %v1132
      %v1597 = vpack.c.b16 %v1141, %v1133
      %v1598 = vpack.c.b16 %v1142, %v1134
      %v1599 = vpack.c.b16 %v1143, %v1135
      %v1600 = vpack.c.b16 %v1144, %v1136
      %v1601 = vpack.c.b16 %v1145, %v1137
      %v1602 = vpack.c.b16 %v1146, %v1138
      %v1603 = vpack.c.b16 %v1147, %v1139
      %v1604 = vpack.c.b16 %v1156, %v1148
      %v1605 = vpack.c.b16 %v1157, %v1149
      %v1606 = vpack.c.b16 %v1158, %v1150
      %v1607 = vpack.c.b16 %v1159, %v1151
      %v1608 = vpack.c.b16 %v1160, %v1152
      %v1609 = vpack.c.b16 %v1161, %v1153
      %v1610 = vpack.c.b16 %v1162, %v1154
      %v1611 = vpack.c.b16 %v1163, %v1155
      %v1612 = vpack.c.b16 %v1172, %v1164
      %v1613 = vpack.c.b16 %v1173, %v1165
      %v1614 = vpack.c.b16 %v1174, %v1166
      %v1615 = vpack.c.b16 %v1175, %v1167
      %v1616 = vpack.c.b16 %v1176, %v1168
      %v1617 = vpack.c.b16 %v1177, %v1169
      %v1618 = vpack.c.b16 %v1178, %v1170
      %v1619 = vpack.c.b16 %v1179, %v1171
      %v1620 = vpack.c.b16 %v1188, %v1180
      %v1621 = vpack.c.b16 %v1189, %v1181
      %v1622 = vpack.c.b16 %v1190, %v1182
      %v1623 = vpack.c.b16 %v1191, %v1183
      %v1624 = vpack.c.b16 %v1192, %v1184
      %v1625 = vpack.c.b16 %v1193, %v1185
      %v1626 = vpack.c.b16 %v1194, %v1186
      %v1627 = vpack.c.b16 %v1195, %v1187
      %v1628 = vpack.c.b16 %v1204, %v1196
      %v1629 = vpack.c.b16 %v1205, %v1197
      %v1630 = vpack.c.b16 %v1206, %v1198
      %v1631 = vpack.c.b16 %v1207, %v1199
      %v1632 = vpack.c.b16 %v1208, %v1200
      %v1633 = vpack.c.b16 %v1209, %v1201
      %v1634 = vpack.c.b16 %v1210, %v1202
      %v1635 = vpack.c.b16 %v1211, %v1203
      %v1636 = vpack.c.b16 %v1220, %v1212
      %v1637 = vpack.c.b16 %v1221, %v1213
      %v1638 = vpack.c.b16 %v1222, %v1214
      %v1639 = vpack.c.b16 %v1223, %v1215
      %v1640 = vpack.c.b16 %v1224, %v1216
      %v1641 = vpack.c.b16 %v1225, %v1217
      %v1642 = vpack.c.b16 %v1226, %v1218
      %v1643 = vpack.c.b16 %v1227, %v1219
      %v1644 = vpack.c.b16 %v1236, %v1228
      %v1645 = vpack.c.b16 %v1237, %v1229
      %v1646 = vpack.c.b16 %v1238, %v1230
      %v1647 = vpack.c.b16 %v1239, %v1231
      %v1648 = vpack.c.b16 %v1240, %v1232
      %v1649 = vpack.c.b16 %v1241, %v1233
      %v1650 = vpack.c.b16 %v1242, %v1234
      %v1651 = vpack.c.b16 %v1243, %v1235
      %v1652 = vpack.c.b16 %v1252, %v1244
      %v1653 = vpack.c.b16 %v1253, %v1245
      %v1654 = vpack.c.b16 %v1254, %v1246
      %v1655 = vpack.c.b16 %v1255, %v1247
      %v1656 = vpack.c.b16 %v1256, %v1248
      %v1657 = vpack.c.b16 %v1257, %v1249
      %v1658 = vpack.c.b16 %v1258, %v1250
      %v1659 = vpack.c.b16 %v1259, %v1251
      %v1660 = vpack.c.b16 %v1268, %v1260
      %v1661 = vpack.c.b16 %v1269, %v1261
      %v1662 = vpack.c.b16 %v1270, %v1262
      %v1663 = vpack.c.b16 %v1271, %v1263
      %v1664 = vpack.c.b16 %v1272, %v1264
      %v1665 = vpack.c.b16 %v1273, %v1265
      %v1666 = vpack.c.b16 %v1274, %v1266
      %v1667 = vpack.c.b16 %v1275, %v1267
      %v1668 = vpack.c.b16 %v1284, %v1276
      %v1669 = vpack.c.b16 %v1285, %v1277
      %v1670 = vpack.c.b16 %v1286, %v1278
      %v1671 = vpack.c.b16 %v1287, %v1279
      %v1672 = vpack.c.b16 %v1288, %v1280
      %v1673 = vpack.c.b16 %v1289, %v1281
      %v1674 = vpack.c.b16 %v1290, %v1282
      %v1675 = vpack.c.b16 %v1291, %v1283
      %v1676 = vpack.c.b16 %v1300, %v1292
      %v1677 = vpack.c.b16 %v1301, %v1293
      %v1678 = vpack.c.b16 %v1302, %v1294
      %v1679 = vpack.c.b16 %v1303, %v1295
      %v1680 = vpack.c.b16 %v1304, %v1296
      %v1681 = vpack.c.b16 %v1305, %v1297
      %v1682 = vpack.c.b16 %v1306, %v1298
      %v1683 = vpack.c.b16 %v1307, %v1299
      %v1684 = vpack.c.b16 %v1316, %v1308
      %v1685 = vpack.c.b16 %v1317, %v1309
      %v1686 = vpack.c.b16 %v1318, %v1310
      %v1687 = vpack.c.b16 %v1319, %v1311
      %v1688 = vpack.c.b16 %v1320, %v1312
      %v1689 = vpack.c.b16 %v1321, %v1313
      %v1690 = vpack.c.b16 %v1322, %v1314
      %v1691 = vpack.c.b16 %v1323, %v1315
      %v1692 = vpack.c.b16 %v1332, %v1324
      %v1693 = vpack.c.b16 %v1333, %v1325
      %v1694 = vpack.c.b16 %v1334, %v1326
      %v1695 = vpack.c.b16 %v1335, %v1327
      %v1696 = vpack.c.b16 %v1336, %v1328
      %v1697 = vpack.c.b16 %v1337, %v1329
      %v1698 = vpack.c.b16 %v1338, %v1330
      %v1699 = vpack.c.b16 %v1339, %v1331
      %v1700 = vpack.c.b16 %v1348, %v1340
      %v1701 = vpack.c.b16 %v1349, %v1341
      %v1702 = vpack.c.b16 %v1350, %v1342
      %v1703 = vpack.c.b16 %v1351, %v1343
      %v1704 = vpack.c.b16 %v1352, %v1344
      %v1705 = vpack.c.b16 %v1353, %v1345
      %v1706 = vpack.c.b16 %v1354, %v1346
      %v1707 = vpack.c.b16 %v1355, %v1347
      %v1708 = vpack.c.b16 %v1364, %v1356
      %v1709 = vpack.c.b16 %v1365, %v1357
      %v1710 = vpack.c.b16 %v1366, %v1358
      %v1711 = vpack.c.b16 %v1367, %v1359
      %v1712 = vpack.c.b16 %v1368, %v1360
      %v1713 = vpack.c.b16 %v1369, %v1361
      %v1714 = vpack.c.b16 %v1370, %v1362
      %v1715 = vpack.c.b16 %v1371, %v1363
      %v1716 = vpack.c.b16 %v1380, %v1372
      %v1717 = vpack.c.b16 %v1381, %v1373
      %v1718 = vpack.c.b16 %v1382, %v1374
      %v1719 = vpack.c.b16 %v1383, %v1375
      %v1720 = vpack.c.b16 %v1384, %v1376
      %v1721 = vpack.c.b16 %v1385, %v1377
      %v1722 = vpack.c.b16 %v1386, %v1378
      %v1723 = vpack.c.b16 %v1387, %v1379
      %v1724 = vpack.c.b16 %v1396, %v1388
      %v1725 = vpack.c.b16 %v1397, %v1389
      %v1726 = vpack.c.b16 %v1398, %v1390
      %v1727 = vpack.c.b16 %v1399, %v1391
      %v1728 = vpack.c.b16 %v1400, %v1392
      %v1729 = vpack.c.b16 %v1401, %v1393
      %v1730 = vpack.c.b16 %v1402, %v1394
      %v1731 = vpack.c.b16 %v1403, %v1395
      %v1732 = vpack.c.b16 %v1412, %v1404
      %v1733 = vpack.c.b16 %v1413, %v1405
      %v1734 = vpack.c.b16 %v1414, %v1406
      %v1735 = vpack.c.b16 %v1415, %v1407
      %v1736 = vpack.c.b16 %v1416, %v1408
      %v1737 = vpack.c.b16 %v1417, %v1409
      %v1738 = vpack.c.b16 %v1418, %v1410
      %v1739 = vpack.c.b16 %v1419, %v1411
      %v1740 = vpack.c.b16 %v1428, %v1420
      %v1741 = vpack.c.b16 %v1429, %v1421
      %v1742 = vpack.c.b16 %v1430, %v1422
      %v1743 = vpack.c.b16 %v1431, %v1423
      %v1744 = vpack.c.b16 %v1432, %v1424
      %v1745 = vpack.c.b16 %v1433, %v1425
      %v1746 = vpack.c.b16 %v1434, %v1426
      %v1747 = vpack.c.b16 %v1435, %v1427
      %v1748 = vpack.c.b16 %v1444, %v1436
      %v1749 = vpack.c.b16 %v1445, %v1437
      %v1750 = vpack.c.b16 %v1446, %v1438
      %v1751 = vpack.c.b16 %v1447, %v1439
      %v1752 = vpack.c.b16 %v1448, %v1440
      %v1753 = vpack.c.b16 %v1449, %v1441
      %v1754 = vpack.c.b16 %v1450, %v1442
      %v1755 = vpack.c.b16 %v1451, %v1443
      %v1756 = vpack.c.b16 %v1460, %v1452
      %v1757 = vpack.c.b16 %v1461, %v1453
      %v1758 = vpack.c.b16 %v1462, %v1454
      %v1759 = vpack.c.b16 %v1463, %v1455
      %v1760 = vpack.c.b16 %v1464, %v1456
      %v1761 = vpack.c.b16 %v1465, %v1457
      %v1762 = vpack.c.b16 %v1466, %v1458
      %v1763 = vpack.c.b16 %v1467, %v1459
      %v1764 = vpack.c.b16 %v1476, %v1468
      %v1765 = vpack.c.b16 %v1477, %v1469
      %v1766 = vpack.c.b16 %v1478, %v1470
      %v1767 = vpack.c.b16 %v1479, %v1471
      %v1768 = vpack.c.b16 %v1480, %v1472
      %v1769 = vpack.c.b16 %v1481, %v1473
      %v1770 = vpack.c.b16 %v1482, %v1474
      %v1771 = vpack.c.b16 %v1483, %v1475
      %v1772 = vpack.c.b16 %v1492, %v1484
      %v1773 = vpack.c.b16 %v1493, %v1485
      %v1774 = vpack.c.b16 %v1494, %v1486
      %v1775 = vpack.c.b16 %v1495, %v1487
      %v1776 = vpack.c.b16 %v1496, %v1488
      %v1777 = vpack.c.b16 %v1497, %v1489
      %v1778 = vpack.c.b16 %v1498, %v1490
      %v1779 = vpack.c.b16 %v1499, %v1491
      %v1780 = vpack.c.b16 %v1508, %v1500
      %v1781 = vpack.c.b16 %v1509, %v1501
      %v1782 = vpack.c.b16 %v1510, %v1502
      %v1783 = vpack.c.b16 %v1511, %v1503
      %v1784 = vpack.c.b16 %v1512, %v1504
      %v1785 = vpack.c.b16 %v1513, %v1505
      %v1786 = vpack.c.b16 %v1514, %v1506
      %v1787 = vpack.c.b16 %v1515, %v1507
      %v1788 = vpack.c.b16 %v1524, %v1516
      %v1789 = vpack.c.b16 %v1525, %v1517
      %v1790 = vpack.c.b16 %v1526, %v1518
      %v1791 = vpack.c.b16 %v1527, %v1519
      %v1792 = vpack.c.b16 %v1528, %v1520
      %v1793 = vpack.c.b16 %v1529, %v1521
      %v1794 = vpack.c.b16 %v1530, %v1522
      %v1795 = vpack.c.b16 %v1531, %v1523
      %v1796 = vpack.c.b16 %v1540, %v1532
      %v1797 = vpack.c.b16 %v1541, %v1533
      %v1798 = vpack.c.b16 %v1542, %v1534
      %v1799 = vpack.c.b16 %v1543, %v1535
      %v1800 = vpack.c.b16 %v1544, %v1536
      %v1801 = vpack.c.b16 %v1545, %v1537
      %v1802 = vpack.c.b16 %v1546, %v1538
      %v1803 = vpack.c.b16 %v1547, %v1539
      %v2188 = vunpack.c.l.b16 %v652
      %v2189 = vunpack.c.l.b16 %v653
      %v2190 = vunpack.c.l.b16 %v654
      %v2191 = vunpack.c.l.b16 %v655
      %v2192 = vunpack.c.l.b16 %v656
      %v2193 = vunpack.c.l.b16 %v657
      %v2194 = vunpack.c.l.b16 %v658
      %v2195 = vunpack.c.l.b16 %v659
      %v2196 = vunpack.c.l.b16 %v660
      %v2197 = vunpack.c.l.b16 %v661
      %v2198 = vunpack.c.l.b16 %v662
      %v2199 = vunpack.c.l.b16 %v663
      %v2200 = vunpack.c.l.b16 %v664
      %v2201 = vunpack.c.l.b16 %v665
      %v2202 = vunpack.c.l.b16 %v666
      %v2203 = vunpack.c.l.b16 %v667
      %v2204 = vunpack.c.l.b16 %v668
      %v2205 = vunpack.c.l.b16 %v669
      %v2206 = vunpack.c.l.b16 %v670
      %v2207 = vunpack.c.l.b16 %v671
      %v2208 = vunpack.c.l.b16 %v672
      %v2209 = vunpack.c.l.b16 %v673
      %v2210 = vunpack.c.l.b16 %v674
      %v2211 = vunpack.c.l.b16 %v675
      %v2212 = vunpack.c.l.b16 %v676
      %v2213 = vunpack.c.l.b16 %v677
      %v2214 = vunpack.c.l.b16 %v678
      %v2215 = vunpack.c.l.b16 %v679
      %v2216 = vunpack.c.l.b16 %v680
      %v2217 = vunpack.c.l.b16 %v681
      %v2218 = vunpack.c.l.b16 %v682
      %v2219 = vunpack.c.l.b16 %v683
      %v2220 = vunpack.c.l.b16 %v684
      %v2221 = vunpack.c.l.b16 %v685
      %v2222 = vunpack.c.l.b16 %v686
      %v2223 = vunpack.c.l.b16 %v687
      %v2224 = vunpack.c.l.b16 %v688
      %v2225 = vunpack.c.l.b16 %v689
      %v2226 = vunpack.c.l.b16 %v690
      %v2227 = vunpack.c.l.b16 %v691
      %v2228 = vunpack.c.l.b16 %v692
      %v2229 = vunpack.c.l.b16 %v693
      %v2230 = vunpack.c.l.b16 %v694
      %v2231 = vunpack.c.l.b16 %v695
      %v2232 = vunpack.c.l.b16 %v696
      %v2233 = vunpack.c.l.b16 %v697
      %v2234 = vunpack.c.l.b16 %v698
      %v2235 = vunpack.c.l.b16 %v699
      %v2236 = vunpack.c.l.b16 %v700
      %v2237 = vunpack.c.l.b16 %v701
      %v2238 = vunpack.c.l.b16 %v702
      %v2239 = vunpack.c.l.b16 %v703
      %v2240 = vunpack.c.l.b16 %v704
      %v2241 = vunpack.c.l.b16 %v705
      %v2242 = vunpack.c.l.b16 %v706
      %v2243 = vunpack.c.l.b16 %v707
      %v2244 = vunpack.c.l.b16 %v708
      %v2245 = vunpack.c.l.b16 %v709
      %v2246 = vunpack.c.l.b16 %v710
      %v2247 = vunpack.c.l.b16 %v711
      %v2248 = vunpack.c.l.b16 %v712
      %v2249 = vunpack.c.l.b16 %v713
      %v2250 = vunpack.c.l.b16 %v714
      %v2251 = vunpack.c.l.b16 %v715
      %v2252 = vunpack.c.l.b16 %v716
      %v2253 = vunpack.c.l.b16 %v717
      %v2254 = vunpack.c.l.b16 %v718
      %v2255 = vunpack.c.l.b16 %v719
      %v2256 = vunpack.c.l.b16 %v720
      %v2257 = vunpack.c.l.b16 %v721
      %v2258 = vunpack.c.l.b16 %v722
      %v2259 = vunpack.c.l.b16 %v723
      %v2260 = vunpack.c.l.b16 %v724
      %v2261 = vunpack.c.l.b16 %v725
      %v2262 = vunpack.c.l.b16 %v726
      %v2263 = vunpack.c.l.b16 %v727
      %v2264 = vunpack.c.l.b16 %v728
      %v2265 = vunpack.c.l.b16 %v729
      %v2266 = vunpack.c.l.b16 %v730
      %v2267 = vunpack.c.l.b16 %v731
      %v2268 = vunpack.c.l.b16 %v732
      %v2269 = vunpack.c.l.b16 %v733
      %v2270 = vunpack.c.l.b16 %v734
      %v2271 = vunpack.c.l.b16 %v735
      %v2272 = vunpack.c.l.b16 %v736
      %v2273 = vunpack.c.l.b16 %v737
      %v2274 = vunpack.c.l.b16 %v738
      %v2275 = vunpack.c.l.b16 %v739
      %v2276 = vunpack.c.l.b16 %v740
      %v2277 = vunpack.c.l.b16 %v741
      %v2278 = vunpack.c.l.b16 %v742
      %v2279 = vunpack.c.l.b16 %v743
      %v2280 = vunpack.c.l.b16 %v744
      %v2281 = vunpack.c.l.b16 %v745
      %v2282 = vunpack.c.l.b16 %v746
      %v2283 = vunpack.c.l.b16 %v747
      %v2284 = vunpack.c.l.b16 %v748
      %v2285 = vunpack.c.l.b16 %v749
      %v2286 = vunpack.c.l.b16 %v750
      %v2287 = vunpack.c.l.b16 %v751
      %v2288 = vunpack.c.l.b16 %v752
      %v2289 = vunpack.c.l.b16 %v753
      %v2290 = vunpack.c.l.b16 %v754
      %v2291 = vunpack.c.l.b16 %v755
      %v2292 = vunpack.c.l.b16 %v756
      %v2293 = vunpack.c.l.b16 %v757
      %v2294 = vunpack.c.l.b16 %v758
      %v2295 = vunpack.c.l.b16 %v759
      %v2296 = vunpack.c.l.b16 %v760
      %v2297 = vunpack.c.l.b16 %v761
      %v2298 = vunpack.c.l.b16 %v762
      %v2299 = vunpack.c.l.b16 %v763
      %v2300 = vunpack.c.l.b16 %v764
      %v2301 = vunpack.c.l.b16 %v765
      %v2302 = vunpack.c.l.b16 %v766
      %v2303 = vunpack.c.l.b16 %v767
      %v2304 = vunpack.c.l.b16 %v768
      %v2305 = vunpack.c.l.b16 %v769
      %v2306 = vunpack.c.l.b16 %v770
      %v2307 = vunpack.c.l.b16 %v771
      %v2308 = vunpack.c.l.b16 %v772
      %v2309 = vunpack.c.l.b16 %v773
      %v2310 = vunpack.c.l.b16 %v774
      %v2311 = vunpack.c.l.b16 %v775
      %v2312 = vunpack.c.l.b16 %v776
      %v2313 = vunpack.c.l.b16 %v777
      %v2314 = vunpack.c.l.b16 %v778
      %v2315 = vunpack.c.l.b16 %v779
      %v2316 = vpack.c.b16 %v2189, %v2188
      %v2317 = vpack.c.b16 %v2191, %v2190
      %v2318 = vpack.c.b16 %v2193, %v2192
      %v2319 = vpack.c.b16 %v2195, %v2194
      %v2320 = vpack.c.b16 %v2197, %v2196
      %v2321 = vpack.c.b16 %v2199, %v2198
      %v2322 = vpack.c.b16 %v2201, %v2200
      %v2323 = vpack.c.b16 %v2203, %v2202
      %v2324 = vpack.c.b16 %v2205, %v2204
      %v2325 = vpack.c.b16 %v2207, %v2206
      %v2326 = vpack.c.b16 %v2209, %v2208
      %v2327 = vpack.c.b16 %v2211, %v2210
      %v2328 = vpack.c.b16 %v2213, %v2212
      %v2329 = vpack.c.b16 %v2215, %v2214
      %v2330 = vpack.c.b16 %v2217, %v2216
      %v2331 = vpack.c.b16 %v2219, %v2218
      %v2332 = vpack.c.b16 %v2221, %v2220
      %v2333 = vpack.c.b16 %v2223, %v2222
      %v2334 = vpack.c.b16 %v2225, %v2224
      %v2335 = vpack.c.b16 %v2227, %v2226
      %v2336 = vpack.c.b16 %v2229, %v2228
      %v2337 = vpack.c.b16 %v2231, %v2230
      %v2338 = vpack.c.b16 %v2233, %v2232
      %v2339 = vpack.c.b16 %v2235, %v2234
      %v2340 = vpack.c.b16 %v2237, %v2236
      %v2341 = vpack.c.b16 %v2239, %v2238
      %v2342 = vpack.c.b16 %v2241, %v2240
      %v2343 = vpack.c.b16 %v2243, %v2242
      %v2344 = vpack.c.b16 %v2245, %v2244
      %v2345 = vpack.c.b16 %v2247, %v2246
      %v2346 = vpack.c.b16 %v2249, %v2248
      %v2347 = vpack.c.b16 %v2251, %v2250
      %v2348 = vpack.c.b16 %v2253, %v2252
      %v2349 = vpack.c.b16 %v2255, %v2254
      %v2350 = vpack.c.b16 %v2257, %v2256
      %v2351 = vpack.c.b16 %v2259, %v2258
      %v2352 = vpack.c.b16 %v2261, %v2260
      %v2353 = vpack.c.b16 %v2263, %v2262
      %v2354 = vpack.c.b16 %v2265, %v2264
      %v2355 = vpack.c.b16 %v2267, %v2266
      %v2356 = vpack.c.b16 %v2269, %v2268
      %v2357 = vpack.c.b16 %v2271, %v2270
      %v2358 = vpack.c.b16 %v2273, %v2272
      %v2359 = vpack.c.b16 %v2275, %v2274
      %v2360 = vpack.c.b16 %v2277, %v2276
      %v2361 = vpack.c.b16 %v2279, %v2278
      %v2362 = vpack.c.b16 %v2281, %v2280
      %v2363 = vpack.c.b16 %v2283, %v2282
      %v2364 = vpack.c.b16 %v2285, %v2284
      %v2365 = vpack.c.b16 %v2287, %v2286
      %v2366 = vpack.c.b16 %v2289, %v2288
      %v2367 = vpack.c.b16 %v2291, %v2290
      %v2368 = vpack.c.b16 %v2293, %v2292
      %v2369 = vpack.c.b16 %v2295, %v2294
      %v2370 = vpack.c.b16 %v2297, %v2296
      %v2371 = vpack.c.b16 %v2299, %v2298
      %v2372 = vpack.c.b16 %v2301, %v2300
      %v2373 = vpack.c.b16 %v2303, %v2302
      %v2374 = vpack.c.b16 %v2305, %v2304
      %v2375 = vpack.c.b16 %v2307, %v2306
      %v2376 = vpack.c.b16 %v2309, %v2308
      %v2377 = vpack.c.b16 %v2311, %v2310
      %v2378 = vpack.c.b16 %v2313, %v2312
      %v2379 = vpack.c.b16 %v2315, %v2314
      %2444 = vmatpush.bf16.msra.mxu0 %v2323
      %2445 = vmatpush.bf16.msra.mxu0 %v2322
      %2446 = vmatpush.bf16.msra.mxu0 %v2321
      %2447 = vmatpush.bf16.msra.mxu0 %v2320
      %2448 = vmatpush.bf16.msra.mxu0 %v2319
      %2449 = vmatpush.bf16.msra.mxu0 %v2318
      %2450 = vmatpush.bf16.msra.mxu0 %v2317
      %2451 = vmatpush.bf16.msra.mxu0 %v2316
      %2452 = vmatmul.bf16.gmra.mxu0 %v1548
      %v2453 = vpop.f32.mrf.mxu0
      %v2454 = vadd.f32 0.0, %v2453
      %v2455 = vpop.f32.mrf.mxu0
      %v2456 = vadd.f32 0.0, %v2455
      %2457 = vmatmul.bf16.gmra.mxu0 %v1556
      %v2458 = vpop.f32.mrf.mxu0
      %v2459 = vadd.f32 0.0, %v2458
      %v2460 = vpop.f32.mrf.mxu0
      %v2461 = vadd.f32 0.0, %v2460
      %2462 = vmatmul.bf16.gmra.mxu0 %v1564
      %v2463 = vpop.f32.mrf.mxu0
      %v2464 = vadd.f32 0.0, %v2463
      %v2465 = vpop.f32.mrf.mxu0
      %v2466 = vadd.f32 0.0, %v2465
      %2467 = vmatmul.bf16.gmra.mxu0 %v1572
      %v2468 = vpop.f32.mrf.mxu0
      %v2469 = vadd.f32 0.0, %v2468
      %v2470 = vpop.f32.mrf.mxu0
      %v2471 = vadd.f32 0.0, %v2470
      %2472 = vmatmul.bf16.gmra.mxu0 %v1580
      %v2473 = vpop.f32.mrf.mxu0
      %v2474 = vadd.f32 0.0, %v2473
      %v2475 = vpop.f32.mrf.mxu0
      %v2476 = vadd.f32 0.0, %v2475
      %2477 = vmatmul.bf16.gmra.mxu0 %v1588
      %v2478 = vpop.f32.mrf.mxu0
      %v2479 = vadd.f32 0.0, %v2478
      %v2480 = vpop.f32.mrf.mxu0
      %v2481 = vadd.f32 0.0, %v2480
      %2482 = vmatmul.bf16.gmra.mxu0 %v1596
      %v2483 = vpop.f32.mrf.mxu0
      %v2484 = vadd.f32 0.0, %v2483
      %v2485 = vpop.f32.mrf.mxu0
      %v2486 = vadd.f32 0.0, %v2485
      %2487 = vmatmul.bf16.gmra.mxu0 %v1604
      %v2488 = vpop.f32.mrf.mxu0
      %v2489 = vadd.f32 0.0, %v2488
      %v2490 = vpop.f32.mrf.mxu0
      %v2491 = vadd.f32 0.0, %v2490
      %2492 = vmatmul.bf16.gmra.mxu0 %v1612
      %v2493 = vpop.f32.mrf.mxu0
      %v2494 = vadd.f32 0.0, %v2493
      %v2495 = vpop.f32.mrf.mxu0
      %v2496 = vadd.f32 0.0, %v2495
      %2497 = vmatmul.bf16.gmra.mxu0 %v1620
      %v2498 = vpop.f32.mrf.mxu0
      %v2499 = vadd.f32 0.0, %v2498
      %v2500 = vpop.f32.mrf.mxu0
      %v2501 = vadd.f32 0.0, %v2500
      %2502 = vmatmul.bf16.gmra.mxu0 %v1628
      %v2503 = vpop.f32.mrf.mxu0
      %v2504 = vadd.f32 0.0, %v2503
      %v2505 = vpop.f32.mrf.mxu0
      %v2506 = vadd.f32 0.0, %v2505
      %2507 = vmatmul.bf16.gmra.mxu0 %v1636
      %v2508 = vpop.f32.mrf.mxu0
      %v2509 = vadd.f32 0.0, %v2508
      %v2510 = vpop.f32.mrf.mxu0
      %v2511 = vadd.f32 0.0, %v2510
      %2512 = vmatmul.bf16.gmra.mxu0 %v1644
      %v2513 = vpop.f32.mrf.mxu0
      %v2514 = vadd.f32 0.0, %v2513
      %v2515 = vpop.f32.mrf.mxu0
      %v2516 = vadd.f32 0.0, %v2515
      %2517 = vmatmul.bf16.gmra.mxu0 %v1652
      %v2518 = vpop.f32.mrf.mxu0
      %v2519 = vadd.f32 0.0, %v2518
      %v2520 = vpop.f32.mrf.mxu0
      %v2521 = vadd.f32 0.0, %v2520
      %2522 = vmatmul.bf16.gmra.mxu0 %v1660
      %v2523 = vpop.f32.mrf.mxu0
      %v2524 = vadd.f32 0.0, %v2523
      %v2525 = vpop.f32.mrf.mxu0
      %v2526 = vadd.f32 0.0, %v2525
      %2527 = vmatmul.bf16.gmra.mxu0 %v1668
      %v2528 = vpop.f32.mrf.mxu0
      %v2529 = vadd.f32 0.0, %v2528
      %v2530 = vpop.f32.mrf.mxu0
      %v2531 = vadd.f32 0.0, %v2530
      %2532 = vmatmul.bf16.gmra.mxu0 %v1676
      %v2533 = vpop.f32.mrf.mxu0
      %v2534 = vadd.f32 0.0, %v2533
      %v2535 = vpop.f32.mrf.mxu0
      %v2536 = vadd.f32 0.0, %v2535
      %2537 = vmatmul.bf16.gmra.mxu0 %v1684
      %v2538 = vpop.f32.mrf.mxu0
      %v2539 = vadd.f32 0.0, %v2538
      %v2540 = vpop.f32.mrf.mxu0
      %v2541 = vadd.f32 0.0, %v2540
      %2542 = vmatmul.bf16.gmra.mxu0 %v1692
      %v2543 = vpop.f32.mrf.mxu0
      %v2544 = vadd.f32 0.0, %v2543
      %v2545 = vpop.f32.mrf.mxu0
      %v2546 = vadd.f32 0.0, %v2545
      %2547 = vmatmul.bf16.gmra.mxu0 %v1700
      %v2548 = vpop.f32.mrf.mxu0
      %v2549 = vadd.f32 0.0, %v2548
      %v2550 = vpop.f32.mrf.mxu0
      %v2551 = vadd.f32 0.0, %v2550
      %2552 = vmatmul.bf16.gmra.mxu0 %v1708
      %v2553 = vpop.f32.mrf.mxu0
      %v2554 = vadd.f32 0.0, %v2553
      %v2555 = vpop.f32.mrf.mxu0
      %v2556 = vadd.f32 0.0, %v2555
      %2557 = vmatmul.bf16.gmra.mxu0 %v1716
      %v2558 = vpop.f32.mrf.mxu0
      %v2559 = vadd.f32 0.0, %v2558
      %v2560 = vpop.f32.mrf.mxu0
      %v2561 = vadd.f32 0.0, %v2560
      %2562 = vmatmul.bf16.gmra.mxu0 %v1724
      %v2563 = vpop.f32.mrf.mxu0
      %v2564 = vadd.f32 0.0, %v2563
      %v2565 = vpop.f32.mrf.mxu0
      %v2566 = vadd.f32 0.0, %v2565
      %2567 = vmatmul.bf16.gmra.mxu0 %v1732
      %v2568 = vpop.f32.mrf.mxu0
      %v2569 = vadd.f32 0.0, %v2568
      %v2570 = vpop.f32.mrf.mxu0
      %v2571 = vadd.f32 0.0, %v2570
      %2572 = vmatmul.bf16.gmra.mxu0 %v1740
      %v2573 = vpop.f32.mrf.mxu0
      %v2574 = vadd.f32 0.0, %v2573
      %v2575 = vpop.f32.mrf.mxu0
      %v2576 = vadd.f32 0.0, %v2575
      %2577 = vmatmul.bf16.gmra.mxu0 %v1748
      %v2578 = vpop.f32.mrf.mxu0
      %v2579 = vadd.f32 0.0, %v2578
      %v2580 = vpop.f32.mrf.mxu0
      %v2581 = vadd.f32 0.0, %v2580
      %2582 = vmatmul.bf16.gmra.mxu0 %v1756
      %v2583 = vpop.f32.mrf.mxu0
      %v2584 = vadd.f32 0.0, %v2583
      %v2585 = vpop.f32.mrf.mxu0
      %v2586 = vadd.f32 0.0, %v2585
      %2587 = vmatmul.bf16.gmra.mxu0 %v1764
      %v2588 = vpop.f32.mrf.mxu0
      %v2589 = vadd.f32 0.0, %v2588
      %v2590 = vpop.f32.mrf.mxu0
      %v2591 = vadd.f32 0.0, %v2590
      %2592 = vmatmul.bf16.gmra.mxu0 %v1772
      %v2593 = vpop.f32.mrf.mxu0
      %v2594 = vadd.f32 0.0, %v2593
      %v2595 = vpop.f32.mrf.mxu0
      %v2596 = vadd.f32 0.0, %v2595
      %2597 = vmatmul.bf16.gmra.mxu0 %v1780
      %v2598 = vpop.f32.mrf.mxu0
      %v2599 = vadd.f32 0.0, %v2598
      %v2600 = vpop.f32.mrf.mxu0
      %v2601 = vadd.f32 0.0, %v2600
      %2602 = vmatmul.bf16.gmra.mxu0 %v1788
      %v2603 = vpop.f32.mrf.mxu0
      %v2604 = vadd.f32 0.0, %v2603
      %v2605 = vpop.f32.mrf.mxu0
      %v2606 = vadd.f32 0.0, %v2605
      %2607 = vmatmul.bf16.gmra.mxu0 %v1796
      %v2608 = vpop.f32.mrf.mxu0
      %v2609 = vadd.f32 0.0, %v2608
      %v2610 = vpop.f32.mrf.mxu0
      %v2611 = vadd.f32 0.0, %v2610
      %2612 = vdwg.mxu0
      %2613 = vmatpush.bf16.msra.mxu0 %v2331
      %2614 = vmatpush.bf16.msra.mxu0 %v2330
      %2615 = vmatpush.bf16.msra.mxu0 %v2329
      %2616 = vmatpush.bf16.msra.mxu0 %v2328
      %2617 = vmatpush.bf16.msra.mxu0 %v2327
      %2618 = vmatpush.bf16.msra.mxu0 %v2326
      %2619 = vmatpush.bf16.msra.mxu0 %v2325
      %2620 = vmatpush.bf16.msra.mxu0 %v2324
      %2621 = vmatmul.bf16.gmra.mxu0 %v1549
      %v2622 = vpop.f32.mrf.mxu0
      %v2623 = vadd.f32 %v2454, %v2622
      %v2624 = vpop.f32.mrf.mxu0
      %v2625 = vadd.f32 %v2456, %v2624
      %2626 = vmatmul.bf16.gmra.mxu0 %v1557
      %v2627 = vpop.f32.mrf.mxu0
      %v2628 = vadd.f32 %v2459, %v2627
      %v2629 = vpop.f32.mrf.mxu0
      %v2630 = vadd.f32 %v2461, %v2629
      %2631 = vmatmul.bf16.gmra.mxu0 %v1565
      %v2632 = vpop.f32.mrf.mxu0
      %v2633 = vadd.f32 %v2464, %v2632
      %v2634 = vpop.f32.mrf.mxu0
      %v2635 = vadd.f32 %v2466, %v2634
      %2636 = vmatmul.bf16.gmra.mxu0 %v1573
      %v2637 = vpop.f32.mrf.mxu0
      %v2638 = vadd.f32 %v2469, %v2637
      %v2639 = vpop.f32.mrf.mxu0
      %v2640 = vadd.f32 %v2471, %v2639
      %2641 = vmatmul.bf16.gmra.mxu0 %v1581
      %v2642 = vpop.f32.mrf.mxu0
      %v2643 = vadd.f32 %v2474, %v2642
      %v2644 = vpop.f32.mrf.mxu0
      %v2645 = vadd.f32 %v2476, %v2644
      %2646 = vmatmul.bf16.gmra.mxu0 %v1589
      %v2647 = vpop.f32.mrf.mxu0
      %v2648 = vadd.f32 %v2479, %v2647
      %v2649 = vpop.f32.mrf.mxu0
      %v2650 = vadd.f32 %v2481, %v2649
      %2651 = vmatmul.bf16.gmra.mxu0 %v1597
      %v2652 = vpop.f32.mrf.mxu0
      %v2653 = vadd.f32 %v2484, %v2652
      %v2654 = vpop.f32.mrf.mxu0
      %v2655 = vadd.f32 %v2486, %v2654
      %2656 = vmatmul.bf16.gmra.mxu0 %v1605
      %v2657 = vpop.f32.mrf.mxu0
      %v2658 = vadd.f32 %v2489, %v2657
      %v2659 = vpop.f32.mrf.mxu0
      %v2660 = vadd.f32 %v2491, %v2659
      %2661 = vmatmul.bf16.gmra.mxu0 %v1613
      %v2662 = vpop.f32.mrf.mxu0
      %v2663 = vadd.f32 %v2494, %v2662
      %v2664 = vpop.f32.mrf.mxu0
      %v2665 = vadd.f32 %v2496, %v2664
      %2666 = vmatmul.bf16.gmra.mxu0 %v1621
      %v2667 = vpop.f32.mrf.mxu0
      %v2668 = vadd.f32 %v2499, %v2667
      %v2669 = vpop.f32.mrf.mxu0
      %v2670 = vadd.f32 %v2501, %v2669
      %2671 = vmatmul.bf16.gmra.mxu0 %v1629
      %v2672 = vpop.f32.mrf.mxu0
      %v2673 = vadd.f32 %v2504, %v2672
      %v2674 = vpop.f32.mrf.mxu0
      %v2675 = vadd.f32 %v2506, %v2674
      %2676 = vmatmul.bf16.gmra.mxu0 %v1637
      %v2677 = vpop.f32.mrf.mxu0
      %v2678 = vadd.f32 %v2509, %v2677
      %v2679 = vpop.f32.mrf.mxu0
      %v2680 = vadd.f32 %v2511, %v2679
      %2681 = vmatmul.bf16.gmra.mxu0 %v1645
      %v2682 = vpop.f32.mrf.mxu0
      %v2683 = vadd.f32 %v2514, %v2682
      %v2684 = vpop.f32.mrf.mxu0
      %v2685 = vadd.f32 %v2516, %v2684
      %2686 = vmatmul.bf16.gmra.mxu0 %v1653
      %v2687 = vpop.f32.mrf.mxu0
      %v2688 = vadd.f32 %v2519, %v2687
      %v2689 = vpop.f32.mrf.mxu0
      %v2690 = vadd.f32 %v2521, %v2689
      %2691 = vmatmul.bf16.gmra.mxu0 %v1661
      %v2692 = vpop.f32.mrf.mxu0
      %v2693 = vadd.f32 %v2524, %v2692
      %v2694 = vpop.f32.mrf.mxu0
      %v2695 = vadd.f32 %v2526, %v2694
      %2696 = vmatmul.bf16.gmra.mxu0 %v1669
      %v2697 = vpop.f32.mrf.mxu0
      %v2698 = vadd.f32 %v2529, %v2697
      %v2699 = vpop.f32.mrf.mxu0
      %v2700 = vadd.f32 %v2531, %v2699
      %2701 = vmatmul.bf16.gmra.mxu0 %v1677
      %v2702 = vpop.f32.mrf.mxu0
      %v2703 = vadd.f32 %v2534, %v2702
      %v2704 = vpop.f32.mrf.mxu0
      %v2705 = vadd.f32 %v2536, %v2704
      %2706 = vmatmul.bf16.gmra.mxu0 %v1685
      %v2707 = vpop.f32.mrf.mxu0
      %v2708 = vadd.f32 %v2539, %v2707
      %v2709 = vpop.f32.mrf.mxu0
      %v2710 = vadd.f32 %v2541, %v2709
      %2711 = vmatmul.bf16.gmra.mxu0 %v1693
      %v2712 = vpop.f32.mrf.mxu0
      %v2713 = vadd.f32 %v2544, %v2712
      %v2714 = vpop.f32.mrf.mxu0
      %v2715 = vadd.f32 %v2546, %v2714
      %2716 = vmatmul.bf16.gmra.mxu0 %v1701
      %v2717 = vpop.f32.mrf.mxu0
      %v2718 = vadd.f32 %v2549, %v2717
      %v2719 = vpop.f32.mrf.mxu0
      %v2720 = vadd.f32 %v2551, %v2719
      %2721 = vmatmul.bf16.gmra.mxu0 %v1709
      %v2722 = vpop.f32.mrf.mxu0
      %v2723 = vadd.f32 %v2554, %v2722
      %v2724 = vpop.f32.mrf.mxu0
      %v2725 = vadd.f32 %v2556, %v2724
      %2726 = vmatmul.bf16.gmra.mxu0 %v1717
      %v2727 = vpop.f32.mrf.mxu0
      %v2728 = vadd.f32 %v2559, %v2727
      %v2729 = vpop.f32.mrf.mxu0
      %v2730 = vadd.f32 %v2561, %v2729
      %2731 = vmatmul.bf16.gmra.mxu0 %v1725
      %v2732 = vpop.f32.mrf.mxu0
      %v2733 = vadd.f32 %v2564, %v2732
      %v2734 = vpop.f32.mrf.mxu0
      %v2735 = vadd.f32 %v2566, %v2734
      %2736 = vmatmul.bf16.gmra.mxu0 %v1733
      %v2737 = vpop.f32.mrf.mxu0
      %v2738 = vadd.f32 %v2569, %v2737
      %v2739 = vpop.f32.mrf.mxu0
      %v2740 = vadd.f32 %v2571, %v2739
      %2741 = vmatmul.bf16.gmra.mxu0 %v1741
      %v2742 = vpop.f32.mrf.mxu0
      %v2743 = vadd.f32 %v2574, %v2742
      %v2744 = vpop.f32.mrf.mxu0
      %v2745 = vadd.f32 %v2576, %v2744
      %2746 = vmatmul.bf16.gmra.mxu0 %v1749
      %v2747 = vpop.f32.mrf.mxu0
      %v2748 = vadd.f32 %v2579, %v2747
      %v2749 = vpop.f32.mrf.mxu0
      %v2750 = vadd.f32 %v2581, %v2749
      %2751 = vmatmul.bf16.gmra.mxu0 %v1757
      %v2752 = vpop.f32.mrf.mxu0
      %v2753 = vadd.f32 %v2584, %v2752
      %v2754 = vpop.f32.mrf.mxu0
      %v2755 = vadd.f32 %v2586, %v2754
      %2756 = vmatmul.bf16.gmra.mxu0 %v1765
      %v2757 = vpop.f32.mrf.mxu0
      %v2758 = vadd.f32 %v2589, %v2757
      %v2759 = vpop.f32.mrf.mxu0
      %v2760 = vadd.f32 %v2591, %v2759
      %2761 = vmatmul.bf16.gmra.mxu0 %v1773
      %v2762 = vpop.f32.mrf.mxu0
      %v2763 = vadd.f32 %v2594, %v2762
      %v2764 = vpop.f32.mrf.mxu0
      %v2765 = vadd.f32 %v2596, %v2764
      %2766 = vmatmul.bf16.gmra.mxu0 %v1781
      %v2767 = vpop.f32.mrf.mxu0
      %v2768 = vadd.f32 %v2599, %v2767
      %v2769 = vpop.f32.mrf.mxu0
      %v2770 = vadd.f32 %v2601, %v2769
      %2771 = vmatmul.bf16.gmra.mxu0 %v1789
      %v2772 = vpop.f32.mrf.mxu0
      %v2773 = vadd.f32 %v2604, %v2772
      %v2774 = vpop.f32.mrf.mxu0
      %v2775 = vadd.f32 %v2606, %v2774
      %2776 = vmatmul.bf16.gmra.mxu0 %v1797
      %v2777 = vpop.f32.mrf.mxu0
      %v2778 = vadd.f32 %v2609, %v2777
      %v2779 = vpop.f32.mrf.mxu0
      %v2780 = vadd.f32 %v2611, %v2779
      %2781 = vdwg.mxu0
      %2782 = vmatpush.bf16.msra.mxu0 %v2339
      %2783 = vmatpush.bf16.msra.mxu0 %v2338
      %2784 = vmatpush.bf16.msra.mxu0 %v2337
      %2785 = vmatpush.bf16.msra.mxu0 %v2336
      %2786 = vmatpush.bf16.msra.mxu0 %v2335
      %2787 = vmatpush.bf16.msra.mxu0 %v2334
      %2788 = vmatpush.bf16.msra.mxu0 %v2333
      %2789 = vmatpush.bf16.msra.mxu0 %v2332
      %2790 = vmatmul.bf16.gmra.mxu0 %v1550
      %v2791 = vpop.f32.mrf.mxu0
      %v2792 = vadd.f32 %v2623, %v2791
      %v2793 = vpop.f32.mrf.mxu0
      %v2794 = vadd.f32 %v2625, %v2793
      %2795 = vmatmul.bf16.gmra.mxu0 %v1558
      %v2796 = vpop.f32.mrf.mxu0
      %v2797 = vadd.f32 %v2628, %v2796
      %v2798 = vpop.f32.mrf.mxu0
      %v2799 = vadd.f32 %v2630, %v2798
      %2800 = vmatmul.bf16.gmra.mxu0 %v1566
      %v2801 = vpop.f32.mrf.mxu0
      %v2802 = vadd.f32 %v2633, %v2801
      %v2803 = vpop.f32.mrf.mxu0
      %v2804 = vadd.f32 %v2635, %v2803
      %2805 = vmatmul.bf16.gmra.mxu0 %v1574
      %v2806 = vpop.f32.mrf.mxu0
      %v2807 = vadd.f32 %v2638, %v2806
      %v2808 = vpop.f32.mrf.mxu0
      %v2809 = vadd.f32 %v2640, %v2808
      %2810 = vmatmul.bf16.gmra.mxu0 %v1582
      %v2811 = vpop.f32.mrf.mxu0
      %v2812 = vadd.f32 %v2643, %v2811
      %v2813 = vpop.f32.mrf.mxu0
      %v2814 = vadd.f32 %v2645, %v2813
      %2815 = vmatmul.bf16.gmra.mxu0 %v1590
      %v2816 = vpop.f32.mrf.mxu0
      %v2817 = vadd.f32 %v2648, %v2816
      %v2818 = vpop.f32.mrf.mxu0
      %v2819 = vadd.f32 %v2650, %v2818
      %2820 = vmatmul.bf16.gmra.mxu0 %v1598
      %v2821 = vpop.f32.mrf.mxu0
      %v2822 = vadd.f32 %v2653, %v2821
      %v2823 = vpop.f32.mrf.mxu0
      %v2824 = vadd.f32 %v2655, %v2823
      %2825 = vmatmul.bf16.gmra.mxu0 %v1606
      %v2826 = vpop.f32.mrf.mxu0
      %v2827 = vadd.f32 %v2658, %v2826
      %v2828 = vpop.f32.mrf.mxu0
      %v2829 = vadd.f32 %v2660, %v2828
      %2830 = vmatmul.bf16.gmra.mxu0 %v1614
      %v2831 = vpop.f32.mrf.mxu0
      %v2832 = vadd.f32 %v2663, %v2831
      %v2833 = vpop.f32.mrf.mxu0
      %v2834 = vadd.f32 %v2665, %v2833
      %2835 = vmatmul.bf16.gmra.mxu0 %v1622
      %v2836 = vpop.f32.mrf.mxu0
      %v2837 = vadd.f32 %v2668, %v2836
      %v2838 = vpop.f32.mrf.mxu0
      %v2839 = vadd.f32 %v2670, %v2838
      %2840 = vmatmul.bf16.gmra.mxu0 %v1630
      %v2841 = vpop.f32.mrf.mxu0
      %v2842 = vadd.f32 %v2673, %v2841
      %v2843 = vpop.f32.mrf.mxu0
      %v2844 = vadd.f32 %v2675, %v2843
      %2845 = vmatmul.bf16.gmra.mxu0 %v1638
      %v2846 = vpop.f32.mrf.mxu0
      %v2847 = vadd.f32 %v2678, %v2846
      %v2848 = vpop.f32.mrf.mxu0
      %v2849 = vadd.f32 %v2680, %v2848
      %2850 = vmatmul.bf16.gmra.mxu0 %v1646
      %v2851 = vpop.f32.mrf.mxu0
      %v2852 = vadd.f32 %v2683, %v2851
      %v2853 = vpop.f32.mrf.mxu0
      %v2854 = vadd.f32 %v2685, %v2853
      %2855 = vmatmul.bf16.gmra.mxu0 %v1654
      %v2856 = vpop.f32.mrf.mxu0
      %v2857 = vadd.f32 %v2688, %v2856
      %v2858 = vpop.f32.mrf.mxu0
      %v2859 = vadd.f32 %v2690, %v2858
      %2860 = vmatmul.bf16.gmra.mxu0 %v1662
      %v2861 = vpop.f32.mrf.mxu0
      %v2862 = vadd.f32 %v2693, %v2861
      %v2863 = vpop.f32.mrf.mxu0
      %v2864 = vadd.f32 %v2695, %v2863
      %2865 = vmatmul.bf16.gmra.mxu0 %v1670
      %v2866 = vpop.f32.mrf.mxu0
      %v2867 = vadd.f32 %v2698, %v2866
      %v2868 = vpop.f32.mrf.mxu0
      %v2869 = vadd.f32 %v2700, %v2868
      %2870 = vmatmul.bf16.gmra.mxu0 %v1678
      %v2871 = vpop.f32.mrf.mxu0
      %v2872 = vadd.f32 %v2703, %v2871
      %v2873 = vpop.f32.mrf.mxu0
      %v2874 = vadd.f32 %v2705, %v2873
      %2875 = vmatmul.bf16.gmra.mxu0 %v1686
      %v2876 = vpop.f32.mrf.mxu0
      %v2877 = vadd.f32 %v2708, %v2876
      %v2878 = vpop.f32.mrf.mxu0
      %v2879 = vadd.f32 %v2710, %v2878
      %2880 = vmatmul.bf16.gmra.mxu0 %v1694
      %v2881 = vpop.f32.mrf.mxu0
      %v2882 = vadd.f32 %v2713, %v2881
      %v2883 = vpop.f32.mrf.mxu0
      %v2884 = vadd.f32 %v2715, %v2883
      %2885 = vmatmul.bf16.gmra.mxu0 %v1702
      %v2886 = vpop.f32.mrf.mxu0
      %v2887 = vadd.f32 %v2718, %v2886
      %v2888 = vpop.f32.mrf.mxu0
      %v2889 = vadd.f32 %v2720, %v2888
      %2890 = vmatmul.bf16.gmra.mxu0 %v1710
      %v2891 = vpop.f32.mrf.mxu0
      %v2892 = vadd.f32 %v2723, %v2891
      %v2893 = vpop.f32.mrf.mxu0
      %v2894 = vadd.f32 %v2725, %v2893
      %2895 = vmatmul.bf16.gmra.mxu0 %v1718
      %v2896 = vpop.f32.mrf.mxu0
      %v2897 = vadd.f32 %v2728, %v2896
      %v2898 = vpop.f32.mrf.mxu0
      %v2899 = vadd.f32 %v2730, %v2898
      %2900 = vmatmul.bf16.gmra.mxu0 %v1726
      %v2901 = vpop.f32.mrf.mxu0
      %v2902 = vadd.f32 %v2733, %v2901
      %v2903 = vpop.f32.mrf.mxu0
      %v2904 = vadd.f32 %v2735, %v2903
      %2905 = vmatmul.bf16.gmra.mxu0 %v1734
      %v2906 = vpop.f32.mrf.mxu0
      %v2907 = vadd.f32 %v2738, %v2906
      %v2908 = vpop.f32.mrf.mxu0
      %v2909 = vadd.f32 %v2740, %v2908
      %2910 = vmatmul.bf16.gmra.mxu0 %v1742
      %v2911 = vpop.f32.mrf.mxu0
      %v2912 = vadd.f32 %v2743, %v2911
      %v2913 = vpop.f32.mrf.mxu0
      %v2914 = vadd.f32 %v2745, %v2913
      %2915 = vmatmul.bf16.gmra.mxu0 %v1750
      %v2916 = vpop.f32.mrf.mxu0
      %v2917 = vadd.f32 %v2748, %v2916
      %v2918 = vpop.f32.mrf.mxu0
      %v2919 = vadd.f32 %v2750, %v2918
      %2920 = vmatmul.bf16.gmra.mxu0 %v1758
      %v2921 = vpop.f32.mrf.mxu0
      %v2922 = vadd.f32 %v2753, %v2921
      %v2923 = vpop.f32.mrf.mxu0
      %v2924 = vadd.f32 %v2755, %v2923
      %2925 = vmatmul.bf16.gmra.mxu0 %v1766
      %v2926 = vpop.f32.mrf.mxu0
      %v2927 = vadd.f32 %v2758, %v2926
      %v2928 = vpop.f32.mrf.mxu0
      %v2929 = vadd.f32 %v2760, %v2928
      %2930 = vmatmul.bf16.gmra.mxu0 %v1774
      %v2931 = vpop.f32.mrf.mxu0
      %v2932 = vadd.f32 %v2763, %v2931
      %v2933 = vpop.f32.mrf.mxu0
      %v2934 = vadd.f32 %v2765, %v2933
      %2935 = vmatmul.bf16.gmra.mxu0 %v1782
      %v2936 = vpop.f32.mrf.mxu0
      %v2937 = vadd.f32 %v2768, %v2936
      %v2938 = vpop.f32.mrf.mxu0
      %v2939 = vadd.f32 %v2770, %v2938
      %2940 = vmatmul.bf16.gmra.mxu0 %v1790
      %v2941 = vpop.f32.mrf.mxu0
      %v2942 = vadd.f32 %v2773, %v2941
      %v2943 = vpop.f32.mrf.mxu0
      %v2944 = vadd.f32 %v2775, %v2943
      %2945 = vmatmul.bf16.gmra.mxu0 %v1798
      %v2946 = vpop.f32.mrf.mxu0
      %v2947 = vadd.f32 %v2778, %v2946
      %v2948 = vpop.f32.mrf.mxu0
      %v2949 = vadd.f32 %v2780, %v2948
      %2950 = vdwg.mxu0
      %2951 = vmatpush.bf16.msra.mxu0 %v2347
      %2952 = vmatpush.bf16.msra.mxu0 %v2346
      %2953 = vmatpush.bf16.msra.mxu0 %v2345
      %2954 = vmatpush.bf16.msra.mxu0 %v2344
      %2955 = vmatpush.bf16.msra.mxu0 %v2343
      %2956 = vmatpush.bf16.msra.mxu0 %v2342
      %2957 = vmatpush.bf16.msra.mxu0 %v2341
      %2958 = vmatpush.bf16.msra.mxu0 %v2340
      %2959 = vmatmul.bf16.gmra.mxu0 %v1551
      %v2960 = vpop.f32.mrf.mxu0
      %v2961 = vadd.f32 %v2792, %v2960
      %v2962 = vpop.f32.mrf.mxu0
      %v2963 = vadd.f32 %v2794, %v2962
      %2964 = vmatmul.bf16.gmra.mxu0 %v1559
      %v2965 = vpop.f32.mrf.mxu0
      %v2966 = vadd.f32 %v2797, %v2965
      %v2967 = vpop.f32.mrf.mxu0
      %v2968 = vadd.f32 %v2799, %v2967
      %2969 = vmatmul.bf16.gmra.mxu0 %v1567
      %v2970 = vpop.f32.mrf.mxu0
      %v2971 = vadd.f32 %v2802, %v2970
      %v2972 = vpop.f32.mrf.mxu0
      %v2973 = vadd.f32 %v2804, %v2972
      %2974 = vmatmul.bf16.gmra.mxu0 %v1575
      %v2975 = vpop.f32.mrf.mxu0
      %v2976 = vadd.f32 %v2807, %v2975
      %v2977 = vpop.f32.mrf.mxu0
      %v2978 = vadd.f32 %v2809, %v2977
      %2979 = vmatmul.bf16.gmra.mxu0 %v1583
      %v2980 = vpop.f32.mrf.mxu0
      %v2981 = vadd.f32 %v2812, %v2980
      %v2982 = vpop.f32.mrf.mxu0
      %v2983 = vadd.f32 %v2814, %v2982
      %2984 = vmatmul.bf16.gmra.mxu0 %v1591
      %v2985 = vpop.f32.mrf.mxu0
      %v2986 = vadd.f32 %v2817, %v2985
      %v2987 = vpop.f32.mrf.mxu0
      %v2988 = vadd.f32 %v2819, %v2987
      %2989 = vmatmul.bf16.gmra.mxu0 %v1599
      %v2990 = vpop.f32.mrf.mxu0
      %v2991 = vadd.f32 %v2822, %v2990
      %v2992 = vpop.f32.mrf.mxu0
      %v2993 = vadd.f32 %v2824, %v2992
      %2994 = vmatmul.bf16.gmra.mxu0 %v1607
      %v2995 = vpop.f32.mrf.mxu0
      %v2996 = vadd.f32 %v2827, %v2995
      %v2997 = vpop.f32.mrf.mxu0
      %v2998 = vadd.f32 %v2829, %v2997
      %2999 = vmatmul.bf16.gmra.mxu0 %v1615
      %v3000 = vpop.f32.mrf.mxu0
      %v3001 = vadd.f32 %v2832, %v3000
      %v3002 = vpop.f32.mrf.mxu0
      %v3003 = vadd.f32 %v2834, %v3002
      %3004 = vmatmul.bf16.gmra.mxu0 %v1623
      %v3005 = vpop.f32.mrf.mxu0
      %v3006 = vadd.f32 %v2837, %v3005
      %v3007 = vpop.f32.mrf.mxu0
      %v3008 = vadd.f32 %v2839, %v3007
      %3009 = vmatmul.bf16.gmra.mxu0 %v1631
      %v3010 = vpop.f32.mrf.mxu0
      %v3011 = vadd.f32 %v2842, %v3010
      %v3012 = vpop.f32.mrf.mxu0
      %v3013 = vadd.f32 %v2844, %v3012
      %3014 = vmatmul.bf16.gmra.mxu0 %v1639
      %v3015 = vpop.f32.mrf.mxu0
      %v3016 = vadd.f32 %v2847, %v3015
      %v3017 = vpop.f32.mrf.mxu0
      %v3018 = vadd.f32 %v2849, %v3017
      %3019 = vmatmul.bf16.gmra.mxu0 %v1647
      %v3020 = vpop.f32.mrf.mxu0
      %v3021 = vadd.f32 %v2852, %v3020
      %v3022 = vpop.f32.mrf.mxu0
      %v3023 = vadd.f32 %v2854, %v3022
      %3024 = vmatmul.bf16.gmra.mxu0 %v1655
      %v3025 = vpop.f32.mrf.mxu0
      %v3026 = vadd.f32 %v2857, %v3025
      %v3027 = vpop.f32.mrf.mxu0
      %v3028 = vadd.f32 %v2859, %v3027
      %3029 = vmatmul.bf16.gmra.mxu0 %v1663
      %v3030 = vpop.f32.mrf.mxu0
      %v3031 = vadd.f32 %v2862, %v3030
      %v3032 = vpop.f32.mrf.mxu0
      %v3033 = vadd.f32 %v2864, %v3032
      %3034 = vmatmul.bf16.gmra.mxu0 %v1671
      %v3035 = vpop.f32.mrf.mxu0
      %v3036 = vadd.f32 %v2867, %v3035
      %v3037 = vpop.f32.mrf.mxu0
      %v3038 = vadd.f32 %v2869, %v3037
      %3039 = vmatmul.bf16.gmra.mxu0 %v1679
      %v3040 = vpop.f32.mrf.mxu0
      %v3041 = vadd.f32 %v2872, %v3040
      %v3042 = vpop.f32.mrf.mxu0
      %v3043 = vadd.f32 %v2874, %v3042
      %3044 = vmatmul.bf16.gmra.mxu0 %v1687
      %v3045 = vpop.f32.mrf.mxu0
      %v3046 = vadd.f32 %v2877, %v3045
      %v3047 = vpop.f32.mrf.mxu0
      %v3048 = vadd.f32 %v2879, %v3047
      %3049 = vmatmul.bf16.gmra.mxu0 %v1695
      %v3050 = vpop.f32.mrf.mxu0
      %v3051 = vadd.f32 %v2882, %v3050
      %v3052 = vpop.f32.mrf.mxu0
      %v3053 = vadd.f32 %v2884, %v3052
      %3054 = vmatmul.bf16.gmra.mxu0 %v1703
      %v3055 = vpop.f32.mrf.mxu0
      %v3056 = vadd.f32 %v2887, %v3055
      %v3057 = vpop.f32.mrf.mxu0
      %v3058 = vadd.f32 %v2889, %v3057
      %3059 = vmatmul.bf16.gmra.mxu0 %v1711
      %v3060 = vpop.f32.mrf.mxu0
      %v3061 = vadd.f32 %v2892, %v3060
      %v3062 = vpop.f32.mrf.mxu0
      %v3063 = vadd.f32 %v2894, %v3062
      %3064 = vmatmul.bf16.gmra.mxu0 %v1719
      %v3065 = vpop.f32.mrf.mxu0
      %v3066 = vadd.f32 %v2897, %v3065
      %v3067 = vpop.f32.mrf.mxu0
      %v3068 = vadd.f32 %v2899, %v3067
      %3069 = vmatmul.bf16.gmra.mxu0 %v1727
      %v3070 = vpop.f32.mrf.mxu0
      %v3071 = vadd.f32 %v2902, %v3070
      %v3072 = vpop.f32.mrf.mxu0
      %v3073 = vadd.f32 %v2904, %v3072
      %3074 = vmatmul.bf16.gmra.mxu0 %v1735
      %v3075 = vpop.f32.mrf.mxu0
      %v3076 = vadd.f32 %v2907, %v3075
      %v3077 = vpop.f32.mrf.mxu0
      %v3078 = vadd.f32 %v2909, %v3077
      %3079 = vmatmul.bf16.gmra.mxu0 %v1743
      %v3080 = vpop.f32.mrf.mxu0
      %v3081 = vadd.f32 %v2912, %v3080
      %v3082 = vpop.f32.mrf.mxu0
      %v3083 = vadd.f32 %v2914, %v3082
      %3084 = vmatmul.bf16.gmra.mxu0 %v1751
      %v3085 = vpop.f32.mrf.mxu0
      %v3086 = vadd.f32 %v2917, %v3085
      %v3087 = vpop.f32.mrf.mxu0
      %v3088 = vadd.f32 %v2919, %v3087
      %3089 = vmatmul.bf16.gmra.mxu0 %v1759
      %v3090 = vpop.f32.mrf.mxu0
      %v3091 = vadd.f32 %v2922, %v3090
      %v3092 = vpop.f32.mrf.mxu0
      %v3093 = vadd.f32 %v2924, %v3092
      %3094 = vmatmul.bf16.gmra.mxu0 %v1767
      %v3095 = vpop.f32.mrf.mxu0
      %v3096 = vadd.f32 %v2927, %v3095
      %v3097 = vpop.f32.mrf.mxu0
      %v3098 = vadd.f32 %v2929, %v3097
      %3099 = vmatmul.bf16.gmra.mxu0 %v1775
      %v3100 = vpop.f32.mrf.mxu0
      %v3101 = vadd.f32 %v2932, %v3100
      %v3102 = vpop.f32.mrf.mxu0
      %v3103 = vadd.f32 %v2934, %v3102
      %3104 = vmatmul.bf16.gmra.mxu0 %v1783
      %v3105 = vpop.f32.mrf.mxu0
      %v3106 = vadd.f32 %v2937, %v3105
      %v3107 = vpop.f32.mrf.mxu0
      %v3108 = vadd.f32 %v2939, %v3107
      %3109 = vmatmul.bf16.gmra.mxu0 %v1791
      %v3110 = vpop.f32.mrf.mxu0
      %v3111 = vadd.f32 %v2942, %v3110
      %v3112 = vpop.f32.mrf.mxu0
      %v3113 = vadd.f32 %v2944, %v3112
      %3114 = vmatmul.bf16.gmra.mxu0 %v1799
      %v3115 = vpop.f32.mrf.mxu0
      %v3116 = vadd.f32 %v2947, %v3115
      %v3117 = vpop.f32.mrf.mxu0
      %v3118 = vadd.f32 %v2949, %v3117
      %3119 = vdwg.mxu0
      %3120 = vmatpush.bf16.msra.mxu0 %v2355
      %3121 = vmatpush.bf16.msra.mxu0 %v2354
      %3122 = vmatpush.bf16.msra.mxu0 %v2353
      %3123 = vmatpush.bf16.msra.mxu0 %v2352
      %3124 = vmatpush.bf16.msra.mxu0 %v2351
      %3125 = vmatpush.bf16.msra.mxu0 %v2350
      %3126 = vmatpush.bf16.msra.mxu0 %v2349
      %3127 = vmatpush.bf16.msra.mxu0 %v2348
      %3128 = vmatmul.bf16.gmra.mxu0 %v1552
      %v3129 = vpop.f32.mrf.mxu0
      %v3130 = vadd.f32 %v2961, %v3129
      %v3131 = vpop.f32.mrf.mxu0
      %v3132 = vadd.f32 %v2963, %v3131
      %3133 = vmatmul.bf16.gmra.mxu0 %v1560
      %v3134 = vpop.f32.mrf.mxu0
      %v3135 = vadd.f32 %v2966, %v3134
      %v3136 = vpop.f32.mrf.mxu0
      %v3137 = vadd.f32 %v2968, %v3136
      %3138 = vmatmul.bf16.gmra.mxu0 %v1568
      %v3139 = vpop.f32.mrf.mxu0
      %v3140 = vadd.f32 %v2971, %v3139
      %v3141 = vpop.f32.mrf.mxu0
      %v3142 = vadd.f32 %v2973, %v3141
      %3143 = vmatmul.bf16.gmra.mxu0 %v1576
      %v3144 = vpop.f32.mrf.mxu0
      %v3145 = vadd.f32 %v2976, %v3144
      %v3146 = vpop.f32.mrf.mxu0
      %v3147 = vadd.f32 %v2978, %v3146
      %3148 = vmatmul.bf16.gmra.mxu0 %v1584
      %v3149 = vpop.f32.mrf.mxu0
      %v3150 = vadd.f32 %v2981, %v3149
      %v3151 = vpop.f32.mrf.mxu0
      %v3152 = vadd.f32 %v2983, %v3151
      %3153 = vmatmul.bf16.gmra.mxu0 %v1592
      %v3154 = vpop.f32.mrf.mxu0
      %v3155 = vadd.f32 %v2986, %v3154
      %v3156 = vpop.f32.mrf.mxu0
      %v3157 = vadd.f32 %v2988, %v3156
      %3158 = vmatmul.bf16.gmra.mxu0 %v1600
      %v3159 = vpop.f32.mrf.mxu0
      %v3160 = vadd.f32 %v2991, %v3159
      %v3161 = vpop.f32.mrf.mxu0
      %v3162 = vadd.f32 %v2993, %v3161
      %3163 = vmatmul.bf16.gmra.mxu0 %v1608
      %v3164 = vpop.f32.mrf.mxu0
      %v3165 = vadd.f32 %v2996, %v3164
      %v3166 = vpop.f32.mrf.mxu0
      %v3167 = vadd.f32 %v2998, %v3166
      %3168 = vmatmul.bf16.gmra.mxu0 %v1616
      %v3169 = vpop.f32.mrf.mxu0
      %v3170 = vadd.f32 %v3001, %v3169
      %v3171 = vpop.f32.mrf.mxu0
      %v3172 = vadd.f32 %v3003, %v3171
      %3173 = vmatmul.bf16.gmra.mxu0 %v1624
      %v3174 = vpop.f32.mrf.mxu0
      %v3175 = vadd.f32 %v3006, %v3174
      %v3176 = vpop.f32.mrf.mxu0
      %v3177 = vadd.f32 %v3008, %v3176
      %3178 = vmatmul.bf16.gmra.mxu0 %v1632
      %v3179 = vpop.f32.mrf.mxu0
      %v3180 = vadd.f32 %v3011, %v3179
      %v3181 = vpop.f32.mrf.mxu0
      %v3182 = vadd.f32 %v3013, %v3181
      %3183 = vmatmul.bf16.gmra.mxu0 %v1640
      %v3184 = vpop.f32.mrf.mxu0
      %v3185 = vadd.f32 %v3016, %v3184
      %v3186 = vpop.f32.mrf.mxu0
      %v3187 = vadd.f32 %v3018, %v3186
      %3188 = vmatmul.bf16.gmra.mxu0 %v1648
      %v3189 = vpop.f32.mrf.mxu0
      %v3190 = vadd.f32 %v3021, %v3189
      %v3191 = vpop.f32.mrf.mxu0
      %v3192 = vadd.f32 %v3023, %v3191
      %3193 = vmatmul.bf16.gmra.mxu0 %v1656
      %v3194 = vpop.f32.mrf.mxu0
      %v3195 = vadd.f32 %v3026, %v3194
      %v3196 = vpop.f32.mrf.mxu0
      %v3197 = vadd.f32 %v3028, %v3196
      %3198 = vmatmul.bf16.gmra.mxu0 %v1664
      %v3199 = vpop.f32.mrf.mxu0
      %v3200 = vadd.f32 %v3031, %v3199
      %v3201 = vpop.f32.mrf.mxu0
      %v3202 = vadd.f32 %v3033, %v3201
      %3203 = vmatmul.bf16.gmra.mxu0 %v1672
      %v3204 = vpop.f32.mrf.mxu0
      %v3205 = vadd.f32 %v3036, %v3204
      %v3206 = vpop.f32.mrf.mxu0
      %v3207 = vadd.f32 %v3038, %v3206
      %3208 = vmatmul.bf16.gmra.mxu0 %v1680
      %v3209 = vpop.f32.mrf.mxu0
      %v3210 = vadd.f32 %v3041, %v3209
      %v3211 = vpop.f32.mrf.mxu0
      %v3212 = vadd.f32 %v3043, %v3211
      %3213 = vmatmul.bf16.gmra.mxu0 %v1688
      %v3214 = vpop.f32.mrf.mxu0
      %v3215 = vadd.f32 %v3046, %v3214
      %v3216 = vpop.f32.mrf.mxu0
      %v3217 = vadd.f32 %v3048, %v3216
      %3218 = vmatmul.bf16.gmra.mxu0 %v1696
      %v3219 = vpop.f32.mrf.mxu0
      %v3220 = vadd.f32 %v3051, %v3219
      %v3221 = vpop.f32.mrf.mxu0
      %v3222 = vadd.f32 %v3053, %v3221
      %3223 = vmatmul.bf16.gmra.mxu0 %v1704
      %v3224 = vpop.f32.mrf.mxu0
      %v3225 = vadd.f32 %v3056, %v3224
      %v3226 = vpop.f32.mrf.mxu0
      %v3227 = vadd.f32 %v3058, %v3226
      %3228 = vmatmul.bf16.gmra.mxu0 %v1712
      %v3229 = vpop.f32.mrf.mxu0
      %v3230 = vadd.f32 %v3061, %v3229
      %v3231 = vpop.f32.mrf.mxu0
      %v3232 = vadd.f32 %v3063, %v3231
      %3233 = vmatmul.bf16.gmra.mxu0 %v1720
      %v3234 = vpop.f32.mrf.mxu0
      %v3235 = vadd.f32 %v3066, %v3234
      %v3236 = vpop.f32.mrf.mxu0
      %v3237 = vadd.f32 %v3068, %v3236
      %3238 = vmatmul.bf16.gmra.mxu0 %v1728
      %v3239 = vpop.f32.mrf.mxu0
      %v3240 = vadd.f32 %v3071, %v3239
      %v3241 = vpop.f32.mrf.mxu0
      %v3242 = vadd.f32 %v3073, %v3241
      %3243 = vmatmul.bf16.gmra.mxu0 %v1736
      %v3244 = vpop.f32.mrf.mxu0
      %v3245 = vadd.f32 %v3076, %v3244
      %v3246 = vpop.f32.mrf.mxu0
      %v3247 = vadd.f32 %v3078, %v3246
      %3248 = vmatmul.bf16.gmra.mxu0 %v1744
      %v3249 = vpop.f32.mrf.mxu0
      %v3250 = vadd.f32 %v3081, %v3249
      %v3251 = vpop.f32.mrf.mxu0
      %v3252 = vadd.f32 %v3083, %v3251
      %3253 = vmatmul.bf16.gmra.mxu0 %v1752
      %v3254 = vpop.f32.mrf.mxu0
      %v3255 = vadd.f32 %v3086, %v3254
      %v3256 = vpop.f32.mrf.mxu0
      %v3257 = vadd.f32 %v3088, %v3256
      %3258 = vmatmul.bf16.gmra.mxu0 %v1760
      %v3259 = vpop.f32.mrf.mxu0
      %v3260 = vadd.f32 %v3091, %v3259
      %v3261 = vpop.f32.mrf.mxu0
      %v3262 = vadd.f32 %v3093, %v3261
      %3263 = vmatmul.bf16.gmra.mxu0 %v1768
      %v3264 = vpop.f32.mrf.mxu0
      %v3265 = vadd.f32 %v3096, %v3264
      %v3266 = vpop.f32.mrf.mxu0
      %v3267 = vadd.f32 %v3098, %v3266
      %3268 = vmatmul.bf16.gmra.mxu0 %v1776
      %v3269 = vpop.f32.mrf.mxu0
      %v3270 = vadd.f32 %v3101, %v3269
      %v3271 = vpop.f32.mrf.mxu0
      %v3272 = vadd.f32 %v3103, %v3271
      %3273 = vmatmul.bf16.gmra.mxu0 %v1784
      %v3274 = vpop.f32.mrf.mxu0
      %v3275 = vadd.f32 %v3106, %v3274
      %v3276 = vpop.f32.mrf.mxu0
      %v3277 = vadd.f32 %v3108, %v3276
      %3278 = vmatmul.bf16.gmra.mxu0 %v1792
      %v3279 = vpop.f32.mrf.mxu0
      %v3280 = vadd.f32 %v3111, %v3279
      %v3281 = vpop.f32.mrf.mxu0
      %v3282 = vadd.f32 %v3113, %v3281
      %3283 = vmatmul.bf16.gmra.mxu0 %v1800
      %v3284 = vpop.f32.mrf.mxu0
      %v3285 = vadd.f32 %v3116, %v3284
      %v3286 = vpop.f32.mrf.mxu0
      %v3287 = vadd.f32 %v3118, %v3286
      %3288 = vdwg.mxu0
      %3289 = vmatpush.bf16.msra.mxu0 %v2363
      %3290 = vmatpush.bf16.msra.mxu0 %v2362
      %3291 = vmatpush.bf16.msra.mxu0 %v2361
      %3292 = vmatpush.bf16.msra.mxu0 %v2360
      %3293 = vmatpush.bf16.msra.mxu0 %v2359
      %3294 = vmatpush.bf16.msra.mxu0 %v2358
      %3295 = vmatpush.bf16.msra.mxu0 %v2357
      %3296 = vmatpush.bf16.msra.mxu0 %v2356
      %3297 = vmatmul.bf16.gmra.mxu0 %v1553
      %v3298 = vpop.f32.mrf.mxu0
      %v3299 = vadd.f32 %v3130, %v3298
      %v3300 = vpop.f32.mrf.mxu0
      %v3301 = vadd.f32 %v3132, %v3300
      %3302 = vmatmul.bf16.gmra.mxu0 %v1561
      %v3303 = vpop.f32.mrf.mxu0
      %v3304 = vadd.f32 %v3135, %v3303
      %v3305 = vpop.f32.mrf.mxu0
      %v3306 = vadd.f32 %v3137, %v3305
      %3307 = vmatmul.bf16.gmra.mxu0 %v1569
      %v3308 = vpop.f32.mrf.mxu0
      %v3309 = vadd.f32 %v3140, %v3308
      %v3310 = vpop.f32.mrf.mxu0
      %v3311 = vadd.f32 %v3142, %v3310
      %3312 = vmatmul.bf16.gmra.mxu0 %v1577
      %v3313 = vpop.f32.mrf.mxu0
      %v3314 = vadd.f32 %v3145, %v3313
      %v3315 = vpop.f32.mrf.mxu0
      %v3316 = vadd.f32 %v3147, %v3315
      %3317 = vmatmul.bf16.gmra.mxu0 %v1585
      %v3318 = vpop.f32.mrf.mxu0
      %v3319 = vadd.f32 %v3150, %v3318
      %v3320 = vpop.f32.mrf.mxu0
      %v3321 = vadd.f32 %v3152, %v3320
      %3322 = vmatmul.bf16.gmra.mxu0 %v1593
      %v3323 = vpop.f32.mrf.mxu0
      %v3324 = vadd.f32 %v3155, %v3323
      %v3325 = vpop.f32.mrf.mxu0
      %v3326 = vadd.f32 %v3157, %v3325
      %3327 = vmatmul.bf16.gmra.mxu0 %v1601
      %v3328 = vpop.f32.mrf.mxu0
      %v3329 = vadd.f32 %v3160, %v3328
      %v3330 = vpop.f32.mrf.mxu0
      %v3331 = vadd.f32 %v3162, %v3330
      %3332 = vmatmul.bf16.gmra.mxu0 %v1609
      %v3333 = vpop.f32.mrf.mxu0
      %v3334 = vadd.f32 %v3165, %v3333
      %v3335 = vpop.f32.mrf.mxu0
      %v3336 = vadd.f32 %v3167, %v3335
      %3337 = vmatmul.bf16.gmra.mxu0 %v1617
      %v3338 = vpop.f32.mrf.mxu0
      %v3339 = vadd.f32 %v3170, %v3338
      %v3340 = vpop.f32.mrf.mxu0
      %v3341 = vadd.f32 %v3172, %v3340
      %3342 = vmatmul.bf16.gmra.mxu0 %v1625
      %v3343 = vpop.f32.mrf.mxu0
      %v3344 = vadd.f32 %v3175, %v3343
      %v3345 = vpop.f32.mrf.mxu0
      %v3346 = vadd.f32 %v3177, %v3345
      %3347 = vmatmul.bf16.gmra.mxu0 %v1633
      %v3348 = vpop.f32.mrf.mxu0
      %v3349 = vadd.f32 %v3180, %v3348
      %v3350 = vpop.f32.mrf.mxu0
      %v3351 = vadd.f32 %v3182, %v3350
      %3352 = vmatmul.bf16.gmra.mxu0 %v1641
      %v3353 = vpop.f32.mrf.mxu0
      %v3354 = vadd.f32 %v3185, %v3353
      %v3355 = vpop.f32.mrf.mxu0
      %v3356 = vadd.f32 %v3187, %v3355
      %3357 = vmatmul.bf16.gmra.mxu0 %v1649
      %v3358 = vpop.f32.mrf.mxu0
      %v3359 = vadd.f32 %v3190, %v3358
      %v3360 = vpop.f32.mrf.mxu0
      %v3361 = vadd.f32 %v3192, %v3360
      %3362 = vmatmul.bf16.gmra.mxu0 %v1657
      %v3363 = vpop.f32.mrf.mxu0
      %v3364 = vadd.f32 %v3195, %v3363
      %v3365 = vpop.f32.mrf.mxu0
      %v3366 = vadd.f32 %v3197, %v3365
      %3367 = vmatmul.bf16.gmra.mxu0 %v1665
      %v3368 = vpop.f32.mrf.mxu0
      %v3369 = vadd.f32 %v3200, %v3368
      %v3370 = vpop.f32.mrf.mxu0
      %v3371 = vadd.f32 %v3202, %v3370
      %3372 = vmatmul.bf16.gmra.mxu0 %v1673
      %v3373 = vpop.f32.mrf.mxu0
      %v3374 = vadd.f32 %v3205, %v3373
      %v3375 = vpop.f32.mrf.mxu0
      %v3376 = vadd.f32 %v3207, %v3375
      %3377 = vmatmul.bf16.gmra.mxu0 %v1681
      %v3378 = vpop.f32.mrf.mxu0
      %v3379 = vadd.f32 %v3210, %v3378
      %v3380 = vpop.f32.mrf.mxu0
      %v3381 = vadd.f32 %v3212, %v3380
      %3382 = vmatmul.bf16.gmra.mxu0 %v1689
      %v3383 = vpop.f32.mrf.mxu0
      %v3384 = vadd.f32 %v3215, %v3383
      %v3385 = vpop.f32.mrf.mxu0
      %v3386 = vadd.f32 %v3217, %v3385
      %3387 = vmatmul.bf16.gmra.mxu0 %v1697
      %v3388 = vpop.f32.mrf.mxu0
      %v3389 = vadd.f32 %v3220, %v3388
      %v3390 = vpop.f32.mrf.mxu0
      %v3391 = vadd.f32 %v3222, %v3390
      %3392 = vmatmul.bf16.gmra.mxu0 %v1705
      %v3393 = vpop.f32.mrf.mxu0
      %v3394 = vadd.f32 %v3225, %v3393
      %v3395 = vpop.f32.mrf.mxu0
      %v3396 = vadd.f32 %v3227, %v3395
      %3397 = vmatmul.bf16.gmra.mxu0 %v1713
      %v3398 = vpop.f32.mrf.mxu0
      %v3399 = vadd.f32 %v3230, %v3398
      %v3400 = vpop.f32.mrf.mxu0
      %v3401 = vadd.f32 %v3232, %v3400
      %3402 = vmatmul.bf16.gmra.mxu0 %v1721
      %v3403 = vpop.f32.mrf.mxu0
      %v3404 = vadd.f32 %v3235, %v3403
      %v3405 = vpop.f32.mrf.mxu0
      %v3406 = vadd.f32 %v3237, %v3405
      %3407 = vmatmul.bf16.gmra.mxu0 %v1729
      %v3408 = vpop.f32.mrf.mxu0
      %v3409 = vadd.f32 %v3240, %v3408
      %v3410 = vpop.f32.mrf.mxu0
      %v3411 = vadd.f32 %v3242, %v3410
      %3412 = vmatmul.bf16.gmra.mxu0 %v1737
      %v3413 = vpop.f32.mrf.mxu0
      %v3414 = vadd.f32 %v3245, %v3413
      %v3415 = vpop.f32.mrf.mxu0
      %v3416 = vadd.f32 %v3247, %v3415
      %3417 = vmatmul.bf16.gmra.mxu0 %v1745
      %v3418 = vpop.f32.mrf.mxu0
      %v3419 = vadd.f32 %v3250, %v3418
      %v3420 = vpop.f32.mrf.mxu0
      %v3421 = vadd.f32 %v3252, %v3420
      %3422 = vmatmul.bf16.gmra.mxu0 %v1753
      %v3423 = vpop.f32.mrf.mxu0
      %v3424 = vadd.f32 %v3255, %v3423
      %v3425 = vpop.f32.mrf.mxu0
      %v3426 = vadd.f32 %v3257, %v3425
      %3427 = vmatmul.bf16.gmra.mxu0 %v1761
      %v3428 = vpop.f32.mrf.mxu0
      %v3429 = vadd.f32 %v3260, %v3428
      %v3430 = vpop.f32.mrf.mxu0
      %v3431 = vadd.f32 %v3262, %v3430
      %3432 = vmatmul.bf16.gmra.mxu0 %v1769
      %v3433 = vpop.f32.mrf.mxu0
      %v3434 = vadd.f32 %v3265, %v3433
      %v3435 = vpop.f32.mrf.mxu0
      %v3436 = vadd.f32 %v3267, %v3435
      %3437 = vmatmul.bf16.gmra.mxu0 %v1777
      %v3438 = vpop.f32.mrf.mxu0
      %v3439 = vadd.f32 %v3270, %v3438
      %v3440 = vpop.f32.mrf.mxu0
      %v3441 = vadd.f32 %v3272, %v3440
      %3442 = vmatmul.bf16.gmra.mxu0 %v1785
      %v3443 = vpop.f32.mrf.mxu0
      %v3444 = vadd.f32 %v3275, %v3443
      %v3445 = vpop.f32.mrf.mxu0
      %v3446 = vadd.f32 %v3277, %v3445
      %3447 = vmatmul.bf16.gmra.mxu0 %v1793
      %v3448 = vpop.f32.mrf.mxu0
      %v3449 = vadd.f32 %v3280, %v3448
      %v3450 = vpop.f32.mrf.mxu0
      %v3451 = vadd.f32 %v3282, %v3450
      %3452 = vmatmul.bf16.gmra.mxu0 %v1801
      %v3453 = vpop.f32.mrf.mxu0
      %v3454 = vadd.f32 %v3285, %v3453
      %v3455 = vpop.f32.mrf.mxu0
      %v3456 = vadd.f32 %v3287, %v3455
      %3457 = vdwg.mxu0
      %3458 = vmatpush.bf16.msra.mxu0 %v2371
      %3459 = vmatpush.bf16.msra.mxu0 %v2370
      %3460 = vmatpush.bf16.msra.mxu0 %v2369
      %3461 = vmatpush.bf16.msra.mxu0 %v2368
      %3462 = vmatpush.bf16.msra.mxu0 %v2367
      %3463 = vmatpush.bf16.msra.mxu0 %v2366
      %3464 = vmatpush.bf16.msra.mxu0 %v2365
      %3465 = vmatpush.bf16.msra.mxu0 %v2364
      %3466 = vmatmul.bf16.gmra.mxu0 %v1554
      %v3467 = vpop.f32.mrf.mxu0
      %v3468 = vadd.f32 %v3299, %v3467
      %v3469 = vpop.f32.mrf.mxu0
      %v3470 = vadd.f32 %v3301, %v3469
      %3471 = vmatmul.bf16.gmra.mxu0 %v1562
      %v3472 = vpop.f32.mrf.mxu0
      %v3473 = vadd.f32 %v3304, %v3472
      %v3474 = vpop.f32.mrf.mxu0
      %v3475 = vadd.f32 %v3306, %v3474
      %3476 = vmatmul.bf16.gmra.mxu0 %v1570
      %v3477 = vpop.f32.mrf.mxu0
      %v3478 = vadd.f32 %v3309, %v3477
      %v3479 = vpop.f32.mrf.mxu0
      %v3480 = vadd.f32 %v3311, %v3479
      %3481 = vmatmul.bf16.gmra.mxu0 %v1578
      %v3482 = vpop.f32.mrf.mxu0
      %v3483 = vadd.f32 %v3314, %v3482
      %v3484 = vpop.f32.mrf.mxu0
      %v3485 = vadd.f32 %v3316, %v3484
      %3486 = vmatmul.bf16.gmra.mxu0 %v1586
      %v3487 = vpop.f32.mrf.mxu0
      %v3488 = vadd.f32 %v3319, %v3487
      %v3489 = vpop.f32.mrf.mxu0
      %v3490 = vadd.f32 %v3321, %v3489
      %3491 = vmatmul.bf16.gmra.mxu0 %v1594
      %v3492 = vpop.f32.mrf.mxu0
      %v3493 = vadd.f32 %v3324, %v3492
      %v3494 = vpop.f32.mrf.mxu0
      %v3495 = vadd.f32 %v3326, %v3494
      %3496 = vmatmul.bf16.gmra.mxu0 %v1602
      %v3497 = vpop.f32.mrf.mxu0
      %v3498 = vadd.f32 %v3329, %v3497
      %v3499 = vpop.f32.mrf.mxu0
      %v3500 = vadd.f32 %v3331, %v3499
      %3501 = vmatmul.bf16.gmra.mxu0 %v1610
      %v3502 = vpop.f32.mrf.mxu0
      %v3503 = vadd.f32 %v3334, %v3502
      %v3504 = vpop.f32.mrf.mxu0
      %v3505 = vadd.f32 %v3336, %v3504
      %3506 = vmatmul.bf16.gmra.mxu0 %v1618
      %v3507 = vpop.f32.mrf.mxu0
      %v3508 = vadd.f32 %v3339, %v3507
      %v3509 = vpop.f32.mrf.mxu0
      %v3510 = vadd.f32 %v3341, %v3509
      %3511 = vmatmul.bf16.gmra.mxu0 %v1626
      %v3512 = vpop.f32.mrf.mxu0
      %v3513 = vadd.f32 %v3344, %v3512
      %v3514 = vpop.f32.mrf.mxu0
      %v3515 = vadd.f32 %v3346, %v3514
      %3516 = vmatmul.bf16.gmra.mxu0 %v1634
      %v3517 = vpop.f32.mrf.mxu0
      %v3518 = vadd.f32 %v3349, %v3517
      %v3519 = vpop.f32.mrf.mxu0
      %v3520 = vadd.f32 %v3351, %v3519
      %3521 = vmatmul.bf16.gmra.mxu0 %v1642
      %v3522 = vpop.f32.mrf.mxu0
      %v3523 = vadd.f32 %v3354, %v3522
      %v3524 = vpop.f32.mrf.mxu0
      %v3525 = vadd.f32 %v3356, %v3524
      %3526 = vmatmul.bf16.gmra.mxu0 %v1650
      %v3527 = vpop.f32.mrf.mxu0
      %v3528 = vadd.f32 %v3359, %v3527
      %v3529 = vpop.f32.mrf.mxu0
      %v3530 = vadd.f32 %v3361, %v3529
      %3531 = vmatmul.bf16.gmra.mxu0 %v1658
      %v3532 = vpop.f32.mrf.mxu0
      %v3533 = vadd.f32 %v3364, %v3532
      %v3534 = vpop.f32.mrf.mxu0
      %v3535 = vadd.f32 %v3366, %v3534
      %3536 = vmatmul.bf16.gmra.mxu0 %v1666
      %v3537 = vpop.f32.mrf.mxu0
      %v3538 = vadd.f32 %v3369, %v3537
      %v3539 = vpop.f32.mrf.mxu0
      %v3540 = vadd.f32 %v3371, %v3539
      %3541 = vmatmul.bf16.gmra.mxu0 %v1674
      %v3542 = vpop.f32.mrf.mxu0
      %v3543 = vadd.f32 %v3374, %v3542
      %v3544 = vpop.f32.mrf.mxu0
      %v3545 = vadd.f32 %v3376, %v3544
      %3546 = vmatmul.bf16.gmra.mxu0 %v1682
      %v3547 = vpop.f32.mrf.mxu0
      %v3548 = vadd.f32 %v3379, %v3547
      %v3549 = vpop.f32.mrf.mxu0
      %v3550 = vadd.f32 %v3381, %v3549
      %3551 = vmatmul.bf16.gmra.mxu0 %v1690
      %v3552 = vpop.f32.mrf.mxu0
      %v3553 = vadd.f32 %v3384, %v3552
      %v3554 = vpop.f32.mrf.mxu0
      %v3555 = vadd.f32 %v3386, %v3554
      %3556 = vmatmul.bf16.gmra.mxu0 %v1698
      %v3557 = vpop.f32.mrf.mxu0
      %v3558 = vadd.f32 %v3389, %v3557
      %v3559 = vpop.f32.mrf.mxu0
      %v3560 = vadd.f32 %v3391, %v3559
      %3561 = vmatmul.bf16.gmra.mxu0 %v1706
      %v3562 = vpop.f32.mrf.mxu0
      %v3563 = vadd.f32 %v3394, %v3562
      %v3564 = vpop.f32.mrf.mxu0
      %v3565 = vadd.f32 %v3396, %v3564
      %3566 = vmatmul.bf16.gmra.mxu0 %v1714
      %v3567 = vpop.f32.mrf.mxu0
      %v3568 = vadd.f32 %v3399, %v3567
      %v3569 = vpop.f32.mrf.mxu0
      %v3570 = vadd.f32 %v3401, %v3569
      %3571 = vmatmul.bf16.gmra.mxu0 %v1722
      %v3572 = vpop.f32.mrf.mxu0
      %v3573 = vadd.f32 %v3404, %v3572
      %v3574 = vpop.f32.mrf.mxu0
      %v3575 = vadd.f32 %v3406, %v3574
      %3576 = vmatmul.bf16.gmra.mxu0 %v1730
      %v3577 = vpop.f32.mrf.mxu0
      %v3578 = vadd.f32 %v3409, %v3577
      %v3579 = vpop.f32.mrf.mxu0
      %v3580 = vadd.f32 %v3411, %v3579
      %3581 = vmatmul.bf16.gmra.mxu0 %v1738
      %v3582 = vpop.f32.mrf.mxu0
      %v3583 = vadd.f32 %v3414, %v3582
      %v3584 = vpop.f32.mrf.mxu0
      %v3585 = vadd.f32 %v3416, %v3584
      %3586 = vmatmul.bf16.gmra.mxu0 %v1746
      %v3587 = vpop.f32.mrf.mxu0
      %v3588 = vadd.f32 %v3419, %v3587
      %v3589 = vpop.f32.mrf.mxu0
      %v3590 = vadd.f32 %v3421, %v3589
      %3591 = vmatmul.bf16.gmra.mxu0 %v1754
      %v3592 = vpop.f32.mrf.mxu0
      %v3593 = vadd.f32 %v3424, %v3592
      %v3594 = vpop.f32.mrf.mxu0
      %v3595 = vadd.f32 %v3426, %v3594
      %3596 = vmatmul.bf16.gmra.mxu0 %v1762
      %v3597 = vpop.f32.mrf.mxu0
      %v3598 = vadd.f32 %v3429, %v3597
      %v3599 = vpop.f32.mrf.mxu0
      %v3600 = vadd.f32 %v3431, %v3599
      %3601 = vmatmul.bf16.gmra.mxu0 %v1770
      %v3602 = vpop.f32.mrf.mxu0
      %v3603 = vadd.f32 %v3434, %v3602
      %v3604 = vpop.f32.mrf.mxu0
      %v3605 = vadd.f32 %v3436, %v3604
      %3606 = vmatmul.bf16.gmra.mxu0 %v1778
      %v3607 = vpop.f32.mrf.mxu0
      %v3608 = vadd.f32 %v3439, %v3607
      %v3609 = vpop.f32.mrf.mxu0
      %v3610 = vadd.f32 %v3441, %v3609
      %3611 = vmatmul.bf16.gmra.mxu0 %v1786
      %v3612 = vpop.f32.mrf.mxu0
      %v3613 = vadd.f32 %v3444, %v3612
      %v3614 = vpop.f32.mrf.mxu0
      %v3615 = vadd.f32 %v3446, %v3614
      %3616 = vmatmul.bf16.gmra.mxu0 %v1794
      %v3617 = vpop.f32.mrf.mxu0
      %v3618 = vadd.f32 %v3449, %v3617
      %v3619 = vpop.f32.mrf.mxu0
      %v3620 = vadd.f32 %v3451, %v3619
      %3621 = vmatmul.bf16.gmra.mxu0 %v1802
      %v3622 = vpop.f32.mrf.mxu0
      %v3623 = vadd.f32 %v3454, %v3622
      %v3624 = vpop.f32.mrf.mxu0
      %v3625 = vadd.f32 %v3456, %v3624
      %3626 = vdwg.mxu0
      %3627 = vmatpush.bf16.msra.mxu0 %v2379
      %3628 = vmatpush.bf16.msra.mxu0 %v2378
      %3629 = vmatpush.bf16.msra.mxu0 %v2377
      %3630 = vmatpush.bf16.msra.mxu0 %v2376
      %3631 = vmatpush.bf16.msra.mxu0 %v2375
      %3632 = vmatpush.bf16.msra.mxu0 %v2374
      %3633 = vmatpush.bf16.msra.mxu0 %v2373
      %3634 = vmatpush.bf16.msra.mxu0 %v2372
      %3635 = vmatmul.bf16.gmra.mxu0 %v1555
      %v3636 = vpop.f32.mrf.mxu0
      %v3637 = vadd.f32 %v3468, %v3636
      %v3638 = vpop.f32.mrf.mxu0
      %v3639 = vadd.f32 %v3470, %v3638
      %3640 = vmatmul.bf16.gmra.mxu0 %v1563
      %v3641 = vpop.f32.mrf.mxu0
      %v3642 = vadd.f32 %v3473, %v3641
      %v3643 = vpop.f32.mrf.mxu0
      %v3644 = vadd.f32 %v3475, %v3643
      %3645 = vmatmul.bf16.gmra.mxu0 %v1571
      %v3646 = vpop.f32.mrf.mxu0
      %v3647 = vadd.f32 %v3478, %v3646
      %v3648 = vpop.f32.mrf.mxu0
      %v3649 = vadd.f32 %v3480, %v3648
      %3650 = vmatmul.bf16.gmra.mxu0 %v1579
      %v3651 = vpop.f32.mrf.mxu0
      %v3652 = vadd.f32 %v3483, %v3651
      %v3653 = vpop.f32.mrf.mxu0
      %v3654 = vadd.f32 %v3485, %v3653
      %3655 = vmatmul.bf16.gmra.mxu0 %v1587
      %v3656 = vpop.f32.mrf.mxu0
      %v3657 = vadd.f32 %v3488, %v3656
      %v3658 = vpop.f32.mrf.mxu0
      %v3659 = vadd.f32 %v3490, %v3658
      %3660 = vmatmul.bf16.gmra.mxu0 %v1595
      %v3661 = vpop.f32.mrf.mxu0
      %v3662 = vadd.f32 %v3493, %v3661
      %v3663 = vpop.f32.mrf.mxu0
      %v3664 = vadd.f32 %v3495, %v3663
      %3665 = vmatmul.bf16.gmra.mxu0 %v1603
      %v3666 = vpop.f32.mrf.mxu0
      %v3667 = vadd.f32 %v3498, %v3666
      %v3668 = vpop.f32.mrf.mxu0
      %v3669 = vadd.f32 %v3500, %v3668
      %3670 = vmatmul.bf16.gmra.mxu0 %v1611
      %v3671 = vpop.f32.mrf.mxu0
      %v3672 = vadd.f32 %v3503, %v3671
      %v3673 = vpop.f32.mrf.mxu0
      %v3674 = vadd.f32 %v3505, %v3673
      %3675 = vmatmul.bf16.gmra.mxu0 %v1619
      %v3676 = vpop.f32.mrf.mxu0
      %v3677 = vadd.f32 %v3508, %v3676
      %v3678 = vpop.f32.mrf.mxu0
      %v3679 = vadd.f32 %v3510, %v3678
      %3680 = vmatmul.bf16.gmra.mxu0 %v1627
      %v3681 = vpop.f32.mrf.mxu0
      %v3682 = vadd.f32 %v3513, %v3681
      %v3683 = vpop.f32.mrf.mxu0
      %v3684 = vadd.f32 %v3515, %v3683
      %3685 = vmatmul.bf16.gmra.mxu0 %v1635
      %v3686 = vpop.f32.mrf.mxu0
      %v3687 = vadd.f32 %v3518, %v3686
      %v3688 = vpop.f32.mrf.mxu0
      %v3689 = vadd.f32 %v3520, %v3688
      %3690 = vmatmul.bf16.gmra.mxu0 %v1643
      %v3691 = vpop.f32.mrf.mxu0
      %v3692 = vadd.f32 %v3523, %v3691
      %v3693 = vpop.f32.mrf.mxu0
      %v3694 = vadd.f32 %v3525, %v3693
      %3695 = vmatmul.bf16.gmra.mxu0 %v1651
      %v3696 = vpop.f32.mrf.mxu0
      %v3697 = vadd.f32 %v3528, %v3696
      %v3698 = vpop.f32.mrf.mxu0
      %v3699 = vadd.f32 %v3530, %v3698
      %3700 = vmatmul.bf16.gmra.mxu0 %v1659
      %v3701 = vpop.f32.mrf.mxu0
      %v3702 = vadd.f32 %v3533, %v3701
      %v3703 = vpop.f32.mrf.mxu0
      %v3704 = vadd.f32 %v3535, %v3703
      %3705 = vmatmul.bf16.gmra.mxu0 %v1667
      %v3706 = vpop.f32.mrf.mxu0
      %v3707 = vadd.f32 %v3538, %v3706
      %v3708 = vpop.f32.mrf.mxu0
      %v3709 = vadd.f32 %v3540, %v3708
      %3710 = vmatmul.bf16.gmra.mxu0 %v1675
      %v3711 = vpop.f32.mrf.mxu0
      %v3712 = vadd.f32 %v3543, %v3711
      %v3713 = vpop.f32.mrf.mxu0
      %v3714 = vadd.f32 %v3545, %v3713
      %3715 = vmatmul.bf16.gmra.mxu0 %v1683
      %v3716 = vpop.f32.mrf.mxu0
      %v3717 = vadd.f32 %v3548, %v3716
      %v3718 = vpop.f32.mrf.mxu0
      %v3719 = vadd.f32 %v3550, %v3718
      %3720 = vmatmul.bf16.gmra.mxu0 %v1691
      %v3721 = vpop.f32.mrf.mxu0
      %v3722 = vadd.f32 %v3553, %v3721
      %v3723 = vpop.f32.mrf.mxu0
      %v3724 = vadd.f32 %v3555, %v3723
      %3725 = vmatmul.bf16.gmra.mxu0 %v1699
      %v3726 = vpop.f32.mrf.mxu0
      %v3727 = vadd.f32 %v3558, %v3726
      %v3728 = vpop.f32.mrf.mxu0
      %v3729 = vadd.f32 %v3560, %v3728
      %3730 = vmatmul.bf16.gmra.mxu0 %v1707
      %v3731 = vpop.f32.mrf.mxu0
      %v3732 = vadd.f32 %v3563, %v3731
      %v3733 = vpop.f32.mrf.mxu0
      %v3734 = vadd.f32 %v3565, %v3733
      %3735 = vmatmul.bf16.gmra.mxu0 %v1715
      %v3736 = vpop.f32.mrf.mxu0
      %v3737 = vadd.f32 %v3568, %v3736
      %v3738 = vpop.f32.mrf.mxu0
      %v3739 = vadd.f32 %v3570, %v3738
      %3740 = vmatmul.bf16.gmra.mxu0 %v1723
      %v3741 = vpop.f32.mrf.mxu0
      %v3742 = vadd.f32 %v3573, %v3741
      %v3743 = vpop.f32.mrf.mxu0
      %v3744 = vadd.f32 %v3575, %v3743
      %3745 = vmatmul.bf16.gmra.mxu0 %v1731
      %v3746 = vpop.f32.mrf.mxu0
      %v3747 = vadd.f32 %v3578, %v3746
      %v3748 = vpop.f32.mrf.mxu0
      %v3749 = vadd.f32 %v3580, %v3748
      %3750 = vmatmul.bf16.gmra.mxu0 %v1739
      %v3751 = vpop.f32.mrf.mxu0
      %v3752 = vadd.f32 %v3583, %v3751
      %v3753 = vpop.f32.mrf.mxu0
      %v3754 = vadd.f32 %v3585, %v3753
      %3755 = vmatmul.bf16.gmra.mxu0 %v1747
      %v3756 = vpop.f32.mrf.mxu0
      %v3757 = vadd.f32 %v3588, %v3756
      %v3758 = vpop.f32.mrf.mxu0
      %v3759 = vadd.f32 %v3590, %v3758
      %3760 = vmatmul.bf16.gmra.mxu0 %v1755
      %v3761 = vpop.f32.mrf.mxu0
      %v3762 = vadd.f32 %v3593, %v3761
      %v3763 = vpop.f32.mrf.mxu0
      %v3764 = vadd.f32 %v3595, %v3763
      %3765 = vmatmul.bf16.gmra.mxu0 %v1763
      %v3766 = vpop.f32.mrf.mxu0
      %v3767 = vadd.f32 %v3598, %v3766
      %v3768 = vpop.f32.mrf.mxu0
      %v3769 = vadd.f32 %v3600, %v3768
      %3770 = vmatmul.bf16.gmra.mxu0 %v1771
      %v3771 = vpop.f32.mrf.mxu0
      %v3772 = vadd.f32 %v3603, %v3771
      %v3773 = vpop.f32.mrf.mxu0
      %v3774 = vadd.f32 %v3605, %v3773
      %3775 = vmatmul.bf16.gmra.mxu0 %v1779
      %v3776 = vpop.f32.mrf.mxu0
      %v3777 = vadd.f32 %v3608, %v3776
      %v3778 = vpop.f32.mrf.mxu0
      %v3779 = vadd.f32 %v3610, %v3778
      %3780 = vmatmul.bf16.gmra.mxu0 %v1787
      %v3781 = vpop.f32.mrf.mxu0
      %v3782 = vadd.f32 %v3613, %v3781
      %v3783 = vpop.f32.mrf.mxu0
      %v3784 = vadd.f32 %v3615, %v3783
      %3785 = vmatmul.bf16.gmra.mxu0 %v1795
      %v3786 = vpop.f32.mrf.mxu0
      %v3787 = vadd.f32 %v3618, %v3786
      %v3788 = vpop.f32.mrf.mxu0
      %v3789 = vadd.f32 %v3620, %v3788
      %3790 = vmatmul.bf16.gmra.mxu0 %v1803
      %v3791 = vpop.f32.mrf.mxu0
      %v3792 = vadd.f32 %v3623, %v3791
      %v3793 = vpop.f32.mrf.mxu0
      %v3794 = vadd.f32 %v3625, %v3793
      %3795 = vdwg.mxu0
      %v3796 = vadd.f32 %v328, %v3637
      %v3797 = vadd.f32 %v329, %v3639
      %v3798 = vadd.f32 %v330, %v3642
      %v3799 = vadd.f32 %v331, %v3644
      %v3800 = vadd.f32 %v332, %v3647
      %v3801 = vadd.f32 %v333, %v3649
      %v3802 = vadd.f32 %v334, %v3652
      %v3803 = vadd.f32 %v335, %v3654
      %v3804 = vadd.f32 %v336, %v3657
      %v3805 = vadd.f32 %v337, %v3659
      %v3806 = vadd.f32 %v338, %v3662
      %v3807 = vadd.f32 %v339, %v3664
      %v3808 = vadd.f32 %v340, %v3667
      %v3809 = vadd.f32 %v341, %v3669
      %v3810 = vadd.f32 %v342, %v3672
      %v3811 = vadd.f32 %v343, %v3674
      %v3812 = vadd.f32 %v344, %v3677
      %v3813 = vadd.f32 %v345, %v3679
      %v3814 = vadd.f32 %v346, %v3682
      %v3815 = vadd.f32 %v347, %v3684
      %v3816 = vadd.f32 %v348, %v3687
      %v3817 = vadd.f32 %v349, %v3689
      %v3818 = vadd.f32 %v350, %v3692
      %v3819 = vadd.f32 %v351, %v3694
      %v3820 = vadd.f32 %v352, %v3697
      %v3821 = vadd.f32 %v353, %v3699
      %v3822 = vadd.f32 %v354, %v3702
      %v3823 = vadd.f32 %v355, %v3704
      %v3824 = vadd.f32 %v356, %v3707
      %v3825 = vadd.f32 %v357, %v3709
      %v3826 = vadd.f32 %v358, %v3712
      %v3827 = vadd.f32 %v359, %v3714
      %v3828 = vadd.f32 %v360, %v3717
      %v3829 = vadd.f32 %v361, %v3719
      %v3830 = vadd.f32 %v362, %v3722
      %v3831 = vadd.f32 %v363, %v3724
      %v3832 = vadd.f32 %v364, %v3727
      %v3833 = vadd.f32 %v365, %v3729
      %v3834 = vadd.f32 %v366, %v3732
      %v3835 = vadd.f32 %v367, %v3734
      %v3836 = vadd.f32 %v368, %v3737
      %v3837 = vadd.f32 %v369, %v3739
      %v3838 = vadd.f32 %v370, %v3742
      %v3839 = vadd.f32 %v371, %v3744
      %v3840 = vadd.f32 %v372, %v3747
      %v3841 = vadd.f32 %v373, %v3749
      %v3842 = vadd.f32 %v374, %v3752
      %v3843 = vadd.f32 %v375, %v3754
      %v3844 = vadd.f32 %v376, %v3757
      %v3845 = vadd.f32 %v377, %v3759
      %v3846 = vadd.f32 %v378, %v3762
      %v3847 = vadd.f32 %v379, %v3764
      %v3848 = vadd.f32 %v380, %v3767
      %v3849 = vadd.f32 %v381, %v3769
      %v3850 = vadd.f32 %v382, %v3772
      %v3851 = vadd.f32 %v383, %v3774
      %v3852 = vadd.f32 %v384, %v3777
      %v3853 = vadd.f32 %v385, %v3779
      %v3854 = vadd.f32 %v386, %v3782
      %v3855 = vadd.f32 %v387, %v3784
      %v3856 = vadd.f32 %v388, %v3787
      %v3857 = vadd.f32 %v389, %v3789
      %v3858 = vadd.f32 %v390, %v3792
      %v3859 = vadd.f32 %v391, %v3794
      %3860 = vst [vmem:[#allocation2] sm:$0xff] %v3796
      %3861 = vst [vmem:[#allocation2 + $0x8] sm:$0xff] %v3797
      %3862 = vst [vmem:[#allocation2 + $0x10] sm:$0xff] %v3798
      %3863 = vst [vmem:[#allocation2 + $0x18] sm:$0xff] %v3799
      %3864 = vst [vmem:[#allocation2 + $0x20] sm:$0xff] %v3800
      %3865 = vst [vmem:[#allocation2 + $0x28] sm:$0xff] %v3801
      %3866 = vst [vmem:[#allocation2 + $0x30] sm:$0xff] %v3802
      %3867 = vst [vmem:[#allocation2 + $0x38] sm:$0xff] %v3803
      %3868 = vst [vmem:[#allocation2 + $0x40] sm:$0xff] %v3804
      %3869 = vst [vmem:[#allocation2 + $0x48] sm:$0xff] %v3805
      %3870 = vst [vmem:[#allocation2 + $0x50] sm:$0xff] %v3806
      %3871 = vst [vmem:[#allocation2 + $0x58] sm:$0xff] %v3807
      %3872 = vst [vmem:[#allocation2 + $0x60] sm:$0xff] %v3808
      %3873 = vst [vmem:[#allocation2 + $0x68] sm:$0xff] %v3809
      %3874 = vst [vmem:[#allocation2 + $0x70] sm:$0xff] %v3810
      %3875 = vst [vmem:[#allocation2 + $0x78] sm:$0xff] %v3811
      %3876 = vst [vmem:[#allocation2 + $0x80] sm:$0xff] %v3812
      %3877 = vst [vmem:[#allocation2 + $0x88] sm:$0xff] %v3813
      %3878 = vst [vmem:[#allocation2 + $0x90] sm:$0xff] %v3814
      %3879 = vst [vmem:[#allocation2 + $0x98] sm:$0xff] %v3815
      %3880 = vst [vmem:[#allocation2 + $0xa0] sm:$0xff] %v3816
      %3881 = vst [vmem:[#allocation2 + $0xa8] sm:$0xff] %v3817
      %3882 = vst [vmem:[#allocation2 + $0xb0] sm:$0xff] %v3818
      %3883 = vst [vmem:[#allocation2 + $0xb8] sm:$0xff] %v3819
      %3884 = vst [vmem:[#allocation2 + $0xc0] sm:$0xff] %v3820
      %3885 = vst [vmem:[#allocation2 + $0xc8] sm:$0xff] %v3821
      %3886 = vst [vmem:[#allocation2 + $0xd0] sm:$0xff] %v3822
      %3887 = vst [vmem:[#allocation2 + $0xd8] sm:$0xff] %v3823
      %3888 = vst [vmem:[#allocation2 + $0xe0] sm:$0xff] %v3824
      %3889 = vst [vmem:[#allocation2 + $0xe8] sm:$0xff] %v3825
      %3890 = vst [vmem:[#allocation2 + $0xf0] sm:$0xff] %v3826
      %3891 = vst [vmem:[#allocation2 + $0xf8] sm:$0xff] %v3827
      %3892 = vst [vmem:[#allocation2 + $0x100] sm:$0xff] %v3828
      %3893 = vst [vmem:[#allocation2 + $0x108] sm:$0xff] %v3829
      %3894 = vst [vmem:[#allocation2 + $0x110] sm:$0xff] %v3830
      %3895 = vst [vmem:[#allocation2 + $0x118] sm:$0xff] %v3831
      %3896 = vst [vmem:[#allocation2 + $0x120] sm:$0xff] %v3832
      %3897 = vst [vmem:[#allocation2 + $0x128] sm:$0xff] %v3833
      %3898 = vst [vmem:[#allocation2 + $0x130] sm:$0xff] %v3834
      %3899 = vst [vmem:[#allocation2 + $0x138] sm:$0xff] %v3835
      %3900 = vst [vmem:[#allocation2 + $0x140] sm:$0xff] %v3836
      %3901 = vst [vmem:[#allocation2 + $0x148] sm:$0xff] %v3837
      %3902 = vst [vmem:[#allocation2 + $0x150] sm:$0xff] %v3838
      %3903 = vst [vmem:[#allocation2 + $0x158] sm:$0xff] %v3839
      %3904 = vst [vmem:[#allocation2 + $0x160] sm:$0xff] %v3840
      %3905 = vst [vmem:[#allocation2 + $0x168] sm:$0xff] %v3841
      %3906 = vst [vmem:[#allocation2 + $0x170] sm:$0xff] %v3842
      %3907 = vst [vmem:[#allocation2 + $0x178] sm:$0xff] %v3843
      %3908 = vst [vmem:[#allocation2 + $0x180] sm:$0xff] %v3844
      %3909 = vst [vmem:[#allocation2 + $0x188] sm:$0xff] %v3845
      %3910 = vst [vmem:[#allocation2 + $0x190] sm:$0xff] %v3846
      %3911 = vst [vmem:[#allocation2 + $0x198] sm:$0xff] %v3847
      %3912 = vst [vmem:[#allocation2 + $0x1a0] sm:$0xff] %v3848
      %3913 = vst [vmem:[#allocation2 + $0x1a8] sm:$0xff] %v3849
      %3914 = vst [vmem:[#allocation2 + $0x1b0] sm:$0xff] %v3850
      %3915 = vst [vmem:[#allocation2 + $0x1b8] sm:$0xff] %v3851
      %3916 = vst [vmem:[#allocation2 + $0x1c0] sm:$0xff] %v3852
      %3917 = vst [vmem:[#allocation2 + $0x1c8] sm:$0xff] %v3853
      %3918 = vst [vmem:[#allocation2 + $0x1d0] sm:$0xff] %v3854
      %3919 = vst [vmem:[#allocation2 + $0x1d8] sm:$0xff] %v3855
      %3920 = vst [vmem:[#allocation2 + $0x1e0] sm:$0xff] %v3856
      %3921 = vst [vmem:[#allocation2 + $0x1e8] sm:$0xff] %v3857
      %3922 = vst [vmem:[#allocation2 + $0x1f0] sm:$0xff] %v3858
      %3923 = vst [vmem:[#allocation2 + $0x1f8] sm:$0xff] %v3859
      // Predicated region
      $region45: #{sageprop_forward.3} parent=39 // pred_check
        %p3924 = pneg %p259
      $region46: #{sageprop_forward.3} parent=39 // pred_check_branch
        %3926 = sbr.rel (%p3924) target = $region48
      $region47: #{sageprop_forward.3} parent=39 // pred_region
        %s3927 = smul.u32 %s20, 512
        %s3928 = sshra.s32 %s3927, 3
        %s3929 = sand.u32 %s3927, 7
        %s3930 = smul.addr %s3928, 4
        %s3931 = scalar_lea.vmem %s1, %s3930
        %v3932 = vld [vmem:[%s3931] sm:$0xf]
        %v3933 = vld [vmem:[%s3931 + $0x4] sm:$0xf]
        %v3934 = vld [vmem:[%s3931 + $0x8] sm:$0xf]
        %v3935 = vld [vmem:[%s3931 + $0xc] sm:$0xf]
        %v3936 = vld [vmem:[%s3931 + $0x10] sm:$0xf]
        %v3937 = vld [vmem:[%s3931 + $0x14] sm:$0xf]
        %v3938 = vld [vmem:[%s3931 + $0x18] sm:$0xf]
        %v3939 = vld [vmem:[%s3931 + $0x1c] sm:$0xf]
        %v3940 = vld [vmem:[%s3931 + $0x20] sm:$0xf]
        %v3941 = vld [vmem:[%s3931 + $0x24] sm:$0xf]
        %v3942 = vld [vmem:[%s3931 + $0x28] sm:$0xf]
        %v3943 = vld [vmem:[%s3931 + $0x2c] sm:$0xf]
        %v3944 = vld [vmem:[%s3931 + $0x30] sm:$0xf]
        %v3945 = vld [vmem:[%s3931 + $0x34] sm:$0xf]
        %v3946 = vld [vmem:[%s3931 + $0x38] sm:$0xf]
        %v3947 = vld [vmem:[%s3931 + $0x3c] sm:$0xf]
        %v3948 = vld [vmem:[%s3931 + $0x40] sm:$0xf]
        %v3949 = vld [vmem:[%s3931 + $0x44] sm:$0xf]
        %v3950 = vld [vmem:[%s3931 + $0x48] sm:$0xf]
        %v3951 = vld [vmem:[%s3931 + $0x4c] sm:$0xf]
        %v3952 = vld [vmem:[%s3931 + $0x50] sm:$0xf]
        %v3953 = vld [vmem:[%s3931 + $0x54] sm:$0xf]
        %v3954 = vld [vmem:[%s3931 + $0x58] sm:$0xf]
        %v3955 = vld [vmem:[%s3931 + $0x5c] sm:$0xf]
        %v3956 = vld [vmem:[%s3931 + $0x60] sm:$0xf]
        %v3957 = vld [vmem:[%s3931 + $0x64] sm:$0xf]
        %v3958 = vld [vmem:[%s3931 + $0x68] sm:$0xf]
        %v3959 = vld [vmem:[%s3931 + $0x6c] sm:$0xf]
        %v3960 = vld [vmem:[%s3931 + $0x70] sm:$0xf]
        %v3961 = vld [vmem:[%s3931 + $0x74] sm:$0xf]
        %v3962 = vld [vmem:[%s3931 + $0x78] sm:$0xf]
        %v3963 = vld [vmem:[%s3931 + $0x7c] sm:$0xf]
        %v3964 = vld [vmem:[%s3931 + $0x80] sm:$0xf]
        %v3965 = vld [vmem:[%s3931 + $0x84] sm:$0xf]
        %v3966 = vld [vmem:[%s3931 + $0x88] sm:$0xf]
        %v3967 = vld [vmem:[%s3931 + $0x8c] sm:$0xf]
        %v3968 = vld [vmem:[%s3931 + $0x90] sm:$0xf]
        %v3969 = vld [vmem:[%s3931 + $0x94] sm:$0xf]
        %v3970 = vld [vmem:[%s3931 + $0x98] sm:$0xf]
        %v3971 = vld [vmem:[%s3931 + $0x9c] sm:$0xf]
        %v3972 = vld [vmem:[%s3931 + $0xa0] sm:$0xf]
        %v3973 = vld [vmem:[%s3931 + $0xa4] sm:$0xf]
        %v3974 = vld [vmem:[%s3931 + $0xa8] sm:$0xf]
        %v3975 = vld [vmem:[%s3931 + $0xac] sm:$0xf]
        %v3976 = vld [vmem:[%s3931 + $0xb0] sm:$0xf]
        %v3977 = vld [vmem:[%s3931 + $0xb4] sm:$0xf]
        %v3978 = vld [vmem:[%s3931 + $0xb8] sm:$0xf]
        %v3979 = vld [vmem:[%s3931 + $0xbc] sm:$0xf]
        %v3980 = vld [vmem:[%s3931 + $0xc0] sm:$0xf]
        %v3981 = vld [vmem:[%s3931 + $0xc4] sm:$0xf]
        %v3982 = vld [vmem:[%s3931 + $0xc8] sm:$0xf]
        %v3983 = vld [vmem:[%s3931 + $0xcc] sm:$0xf]
        %v3984 = vld [vmem:[%s3931 + $0xd0] sm:$0xf]
        %v3985 = vld [vmem:[%s3931 + $0xd4] sm:$0xf]
        %v3986 = vld [vmem:[%s3931 + $0xd8] sm:$0xf]
        %v3987 = vld [vmem:[%s3931 + $0xdc] sm:$0xf]
        %v3988 = vld [vmem:[%s3931 + $0xe0] sm:$0xf]
        %v3989 = vld [vmem:[%s3931 + $0xe4] sm:$0xf]
        %v3990 = vld [vmem:[%s3931 + $0xe8] sm:$0xf]
        %v3991 = vld [vmem:[%s3931 + $0xec] sm:$0xf]
        %v3992 = vld [vmem:[%s3931 + $0xf0] sm:$0xf]
        %v3993 = vld [vmem:[%s3931 + $0xf4] sm:$0xf]
        %v3994 = vld [vmem:[%s3931 + $0xf8] sm:$0xf]
        %v3995 = vld [vmem:[%s3931 + $0xfc] sm:$0xf]
        %v3996 = vld [vmem:[%s2] sm:$0xf]
        %v3997 = vld [vmem:[%s2 + $0x4] sm:$0xf]
        %v3998 = vld [vmem:[%s2 + $0x8] sm:$0xf]
        %v3999 = vld [vmem:[%s2 + $0xc] sm:$0xf]
        %v4000 = vld [vmem:[%s2 + $0x10] sm:$0xf]
        %v4001 = vld [vmem:[%s2 + $0x14] sm:$0xf]
        %v4002 = vld [vmem:[%s2 + $0x18] sm:$0xf]
        %v4003 = vld [vmem:[%s2 + $0x1c] sm:$0xf]
        %v4004 = vld [vmem:[%s2 + $0x20] sm:$0xf]
        %v4005 = vld [vmem:[%s2 + $0x24] sm:$0xf]
        %v4006 = vld [vmem:[%s2 + $0x28] sm:$0xf]
        %v4007 = vld [vmem:[%s2 + $0x2c] sm:$0xf]
        %v4008 = vld [vmem:[%s2 + $0x30] sm:$0xf]
        %v4009 = vld [vmem:[%s2 + $0x34] sm:$0xf]
        %v4010 = vld [vmem:[%s2 + $0x38] sm:$0xf]
        %v4011 = vld [vmem:[%s2 + $0x3c] sm:$0xf]
        %v4012 = vld [vmem:[#allocation2] sm:$0xff]
        %v4013 = vld [vmem:[#allocation2 + $0x8] sm:$0xff]
        %v4014 = vld [vmem:[#allocation2 + $0x10] sm:$0xff]
        %v4015 = vld [vmem:[#allocation2 + $0x18] sm:$0xff]
        %v4016 = vld [vmem:[#allocation2 + $0x20] sm:$0xff]
        %v4017 = vld [vmem:[#allocation2 + $0x28] sm:$0xff]
        %v4018 = vld [vmem:[#allocation2 + $0x30] sm:$0xff]
        %v4019 = vld [vmem:[#allocation2 + $0x38] sm:$0xff]
        %v4020 = vld [vmem:[#allocation2 + $0x40] sm:$0xff]
        %v4021 = vld [vmem:[#allocation2 + $0x48] sm:$0xff]
        %v4022 = vld [vmem:[#allocation2 + $0x50] sm:$0xff]
        %v4023 = vld [vmem:[#allocation2 + $0x58] sm:$0xff]
        %v4024 = vld [vmem:[#allocation2 + $0x60] sm:$0xff]
        %v4025 = vld [vmem:[#allocation2 + $0x68] sm:$0xff]
        %v4026 = vld [vmem:[#allocation2 + $0x70] sm:$0xff]
        %v4027 = vld [vmem:[#allocation2 + $0x78] sm:$0xff]
        %v4028 = vld [vmem:[#allocation2 + $0x80] sm:$0xff]
        %v4029 = vld [vmem:[#allocation2 + $0x88] sm:$0xff]
        %v4030 = vld [vmem:[#allocation2 + $0x90] sm:$0xff]
        %v4031 = vld [vmem:[#allocation2 + $0x98] sm:$0xff]
        %v4032 = vld [vmem:[#allocation2 + $0xa0] sm:$0xff]
        %v4033 = vld [vmem:[#allocation2 + $0xa8] sm:$0xff]
        %v4034 = vld [vmem:[#allocation2 + $0xb0] sm:$0xff]
        %v4035 = vld [vmem:[#allocation2 + $0xb8] sm:$0xff]
        %v4036 = vld [vmem:[#allocation2 + $0xc0] sm:$0xff]
        %v4037 = vld [vmem:[#allocation2 + $0xc8] sm:$0xff]
        %v4038 = vld [vmem:[#allocation2 + $0xd0] sm:$0xff]
        %v4039 = vld [vmem:[#allocation2 + $0xd8] sm:$0xff]
        %v4040 = vld [vmem:[#allocation2 + $0xe0] sm:$0xff]
        %v4041 = vld [vmem:[#allocation2 + $0xe8] sm:$0xff]
        %v4042 = vld [vmem:[#allocation2 + $0xf0] sm:$0xff]
        %v4043 = vld [vmem:[#allocation2 + $0xf8] sm:$0xff]
        %v4044 = vld [vmem:[#allocation2 + $0x100] sm:$0xff]
        %v4045 = vld [vmem:[#allocation2 + $0x108] sm:$0xff]
        %v4046 = vld [vmem:[#allocation2 + $0x110] sm:$0xff]
        %v4047 = vld [vmem:[#allocation2 + $0x118] sm:$0xff]
        %v4048 = vld [vmem:[#allocation2 + $0x120] sm:$0xff]
        %v4049 = vld [vmem:[#allocation2 + $0x128] sm:$0xff]
        %v4050 = vld [vmem:[#allocation2 + $0x130] sm:$0xff]
        %v4051 = vld [vmem:[#allocation2 + $0x138] sm:$0xff]
        %v4052 = vld [vmem:[#allocation2 + $0x140] sm:$0xff]
        %v4053 = vld [vmem:[#allocation2 + $0x148] sm:$0xff]
        %v4054 = vld [vmem:[#allocation2 + $0x150] sm:$0xff]
        %v4055 = vld [vmem:[#allocation2 + $0x158] sm:$0xff]
        %v4056 = vld [vmem:[#allocation2 + $0x160] sm:$0xff]
        %v4057 = vld [vmem:[#allocation2 + $0x168] sm:$0xff]
        %v4058 = vld [vmem:[#allocation2 + $0x170] sm:$0xff]
        %v4059 = vld [vmem:[#allocation2 + $0x178] sm:$0xff]
        %v4060 = vld [vmem:[#allocation2 + $0x180] sm:$0xff]
        %v4061 = vld [vmem:[#allocation2 + $0x188] sm:$0xff]
        %v4062 = vld [vmem:[#allocation2 + $0x190] sm:$0xff]
        %v4063 = vld [vmem:[#allocation2 + $0x198] sm:$0xff]
        %v4064 = vld [vmem:[#allocation2 + $0x1a0] sm:$0xff]
        %v4065 = vld [vmem:[#allocation2 + $0x1a8] sm:$0xff]
        %v4066 = vld [vmem:[#allocation2 + $0x1b0] sm:$0xff]
        %v4067 = vld [vmem:[#allocation2 + $0x1b8] sm:$0xff]
        %v4068 = vld [vmem:[#allocation2 + $0x1c0] sm:$0xff]
        %v4069 = vld [vmem:[#allocation2 + $0x1c8] sm:$0xff]
        %v4070 = vld [vmem:[#allocation2 + $0x1d0] sm:$0xff]
        %v4071 = vld [vmem:[#allocation2 + $0x1d8] sm:$0xff]
        %v4072 = vld [vmem:[#allocation2 + $0x1e0] sm:$0xff]
        %v4073 = vld [vmem:[#allocation2 + $0x1e8] sm:$0xff]
        %v4074 = vld [vmem:[#allocation2 + $0x1f0] sm:$0xff]
        %v4075 = vld [vmem:[#allocation2 + $0x1f8] sm:$0xff]
        %v4076 = vpack.c.bf16 %v4013, %v4012
        %v4077 = vpack.c.bf16 %v4015, %v4014
        %v4078 = vpack.c.bf16 %v4017, %v4016
        %v4079 = vpack.c.bf16 %v4019, %v4018
        %v4080 = vpack.c.bf16 %v4021, %v4020
        %v4081 = vpack.c.bf16 %v4023, %v4022
        %v4082 = vpack.c.bf16 %v4025, %v4024
        %v4083 = vpack.c.bf16 %v4027, %v4026
        %v4084 = vpack.c.bf16 %v4029, %v4028
        %v4085 = vpack.c.bf16 %v4031, %v4030
        %v4086 = vpack.c.bf16 %v4033, %v4032
        %v4087 = vpack.c.bf16 %v4035, %v4034
        %v4088 = vpack.c.bf16 %v4037, %v4036
        %v4089 = vpack.c.bf16 %v4039, %v4038
        %v4090 = vpack.c.bf16 %v4041, %v4040
        %v4091 = vpack.c.bf16 %v4043, %v4042
        %v4092 = vpack.c.bf16 %v4045, %v4044
        %v4093 = vpack.c.bf16 %v4047, %v4046
        %v4094 = vpack.c.bf16 %v4049, %v4048
        %v4095 = vpack.c.bf16 %v4051, %v4050
        %v4096 = vpack.c.bf16 %v4053, %v4052
        %v4097 = vpack.c.bf16 %v4055, %v4054
        %v4098 = vpack.c.bf16 %v4057, %v4056
        %v4099 = vpack.c.bf16 %v4059, %v4058
        %v4100 = vpack.c.bf16 %v4061, %v4060
        %v4101 = vpack.c.bf16 %v4063, %v4062
        %v4102 = vpack.c.bf16 %v4065, %v4064
        %v4103 = vpack.c.bf16 %v4067, %v4066
        %v4104 = vpack.c.bf16 %v4069, %v4068
        %v4105 = vpack.c.bf16 %v4071, %v4070
        %v4106 = vpack.c.bf16 %v4073, %v4072
        %v4107 = vpack.c.bf16 %v4075, %v4074
        %v4108 = vld [vmem:[%s3] sm:$0xf]
        %v4109 = vld [vmem:[%s3 + $0x4] sm:$0xf]
        %v4110 = vld [vmem:[%s3 + $0x8] sm:$0xf]
        %v4111 = vld [vmem:[%s3 + $0xc] sm:$0xf]
        %v4112 = vld [vmem:[%s3 + $0x10] sm:$0xf]
        %v4113 = vld [vmem:[%s3 + $0x14] sm:$0xf]
        %v4114 = vld [vmem:[%s3 + $0x18] sm:$0xf]
        %v4115 = vld [vmem:[%s3 + $0x1c] sm:$0xf]
        %v4116 = vld [vmem:[%s3 + $0x20] sm:$0xf]
        %v4117 = vld [vmem:[%s3 + $0x24] sm:$0xf]
        %v4118 = vld [vmem:[%s3 + $0x28] sm:$0xf]
        %v4119 = vld [vmem:[%s3 + $0x2c] sm:$0xf]
        %v4120 = vld [vmem:[%s3 + $0x30] sm:$0xf]
        %v4121 = vld [vmem:[%s3 + $0x34] sm:$0xf]
        %v4122 = vld [vmem:[%s3 + $0x38] sm:$0xf]
        %v4123 = vld [vmem:[%s3 + $0x3c] sm:$0xf]
        %v4140 = vunpack.c.l.b16 %v4108
        %v4141 = vunpack.c.l.b16 %v4109
        %v4142 = vunpack.c.l.b16 %v4110
        %v4143 = vunpack.c.l.b16 %v4111
        %v4144 = vunpack.c.l.b16 %v4112
        %v4145 = vunpack.c.l.b16 %v4113
        %v4146 = vunpack.c.l.b16 %v4114
        %v4147 = vunpack.c.l.b16 %v4115
        %v4148 = vunpack.c.l.b16 %v4116
        %v4149 = vunpack.c.l.b16 %v4117
        %v4150 = vunpack.c.l.b16 %v4118
        %v4151 = vunpack.c.l.b16 %v4119
        %v4152 = vunpack.c.l.b16 %v4120
        %v4153 = vunpack.c.l.b16 %v4121
        %v4154 = vunpack.c.l.b16 %v4122
        %v4155 = vunpack.c.l.b16 %v4123
        %v4156 = vpack.c.b16 %v4141, %v4140
        %v4157 = vpack.c.b16 %v4143, %v4142
        %v4158 = vpack.c.b16 %v4145, %v4144
        %v4159 = vpack.c.b16 %v4147, %v4146
        %v4160 = vpack.c.b16 %v4149, %v4148
        %v4161 = vpack.c.b16 %v4151, %v4150
        %v4162 = vpack.c.b16 %v4153, %v4152
        %v4163 = vpack.c.b16 %v4155, %v4154
        %4172 = vmatpush.bf16.msra.mxu0 %v4163
        %4173 = vmatpush.bf16.msra.mxu0 %v4162
        %4174 = vmatpush.bf16.msra.mxu0 %v4161
        %4175 = vmatpush.bf16.msra.mxu0 %v4160
        %4176 = vmatpush.bf16.msra.mxu0 %v4159
        %4177 = vmatpush.bf16.msra.mxu0 %v4158
        %4178 = vmatpush.bf16.msra.mxu0 %v4157
        %4179 = vmatpush.bf16.msra.mxu0 %v4156
        %4180 = vmatmul.bf16.gmra.mxu0 %v4076
        %v4181 = vpop.f32.mrf.mxu0
        %v4182 = vadd.f32 0.0, %v4181
        %v4183 = vpop.f32.mrf.mxu0
        %v4184 = vadd.f32 0.0, %v4183
        %4185 = vmatmul.bf16.gmra.mxu0 %v4077
        %v4186 = vpop.f32.mrf.mxu0
        %v4187 = vadd.f32 0.0, %v4186
        %v4188 = vpop.f32.mrf.mxu0
        %v4189 = vadd.f32 0.0, %v4188
        %4190 = vmatmul.bf16.gmra.mxu0 %v4078
        %v4191 = vpop.f32.mrf.mxu0
        %v4192 = vadd.f32 0.0, %v4191
        %v4193 = vpop.f32.mrf.mxu0
        %v4194 = vadd.f32 0.0, %v4193
        %4195 = vmatmul.bf16.gmra.mxu0 %v4079
        %v4196 = vpop.f32.mrf.mxu0
        %v4197 = vadd.f32 0.0, %v4196
        %v4198 = vpop.f32.mrf.mxu0
        %v4199 = vadd.f32 0.0, %v4198
        %4200 = vmatmul.bf16.gmra.mxu0 %v4080
        %v4201 = vpop.f32.mrf.mxu0
        %v4202 = vadd.f32 0.0, %v4201
        %v4203 = vpop.f32.mrf.mxu0
        %v4204 = vadd.f32 0.0, %v4203
        %4205 = vmatmul.bf16.gmra.mxu0 %v4081
        %v4206 = vpop.f32.mrf.mxu0
        %v4207 = vadd.f32 0.0, %v4206
        %v4208 = vpop.f32.mrf.mxu0
        %v4209 = vadd.f32 0.0, %v4208
        %4210 = vmatmul.bf16.gmra.mxu0 %v4082
        %v4211 = vpop.f32.mrf.mxu0
        %v4212 = vadd.f32 0.0, %v4211
        %v4213 = vpop.f32.mrf.mxu0
        %v4214 = vadd.f32 0.0, %v4213
        %4215 = vmatmul.bf16.gmra.mxu0 %v4083
        %v4216 = vpop.f32.mrf.mxu0
        %v4217 = vadd.f32 0.0, %v4216
        %v4218 = vpop.f32.mrf.mxu0
        %v4219 = vadd.f32 0.0, %v4218
        %4220 = vmatmul.bf16.gmra.mxu0 %v4084
        %v4221 = vpop.f32.mrf.mxu0
        %v4222 = vadd.f32 0.0, %v4221
        %v4223 = vpop.f32.mrf.mxu0
        %v4224 = vadd.f32 0.0, %v4223
        %4225 = vmatmul.bf16.gmra.mxu0 %v4085
        %v4226 = vpop.f32.mrf.mxu0
        %v4227 = vadd.f32 0.0, %v4226
        %v4228 = vpop.f32.mrf.mxu0
        %v4229 = vadd.f32 0.0, %v4228
        %4230 = vmatmul.bf16.gmra.mxu0 %v4086
        %v4231 = vpop.f32.mrf.mxu0
        %v4232 = vadd.f32 0.0, %v4231
        %v4233 = vpop.f32.mrf.mxu0
        %v4234 = vadd.f32 0.0, %v4233
        %4235 = vmatmul.bf16.gmra.mxu0 %v4087
        %v4236 = vpop.f32.mrf.mxu0
        %v4237 = vadd.f32 0.0, %v4236
        %v4238 = vpop.f32.mrf.mxu0
        %v4239 = vadd.f32 0.0, %v4238
        %4240 = vmatmul.bf16.gmra.mxu0 %v4088
        %v4241 = vpop.f32.mrf.mxu0
        %v4242 = vadd.f32 0.0, %v4241
        %v4243 = vpop.f32.mrf.mxu0
        %v4244 = vadd.f32 0.0, %v4243
        %4245 = vmatmul.bf16.gmra.mxu0 %v4089
        %v4246 = vpop.f32.mrf.mxu0
        %v4247 = vadd.f32 0.0, %v4246
        %v4248 = vpop.f32.mrf.mxu0
        %v4249 = vadd.f32 0.0, %v4248
        %4250 = vmatmul.bf16.gmra.mxu0 %v4090
        %v4251 = vpop.f32.mrf.mxu0
        %v4252 = vadd.f32 0.0, %v4251
        %v4253 = vpop.f32.mrf.mxu0
        %v4254 = vadd.f32 0.0, %v4253
        %4255 = vmatmul.bf16.gmra.mxu0 %v4091
        %v4256 = vpop.f32.mrf.mxu0
        %v4257 = vadd.f32 0.0, %v4256
        %v4258 = vpop.f32.mrf.mxu0
        %v4259 = vadd.f32 0.0, %v4258
        %4260 = vmatmul.bf16.gmra.mxu0 %v4092
        %v4261 = vpop.f32.mrf.mxu0
        %v4262 = vadd.f32 0.0, %v4261
        %v4263 = vpop.f32.mrf.mxu0
        %v4264 = vadd.f32 0.0, %v4263
        %4265 = vmatmul.bf16.gmra.mxu0 %v4093
        %v4266 = vpop.f32.mrf.mxu0
        %v4267 = vadd.f32 0.0, %v4266
        %v4268 = vpop.f32.mrf.mxu0
        %v4269 = vadd.f32 0.0, %v4268
        %4270 = vmatmul.bf16.gmra.mxu0 %v4094
        %v4271 = vpop.f32.mrf.mxu0
        %v4272 = vadd.f32 0.0, %v4271
        %v4273 = vpop.f32.mrf.mxu0
        %v4274 = vadd.f32 0.0, %v4273
        %4275 = vmatmul.bf16.gmra.mxu0 %v4095
        %v4276 = vpop.f32.mrf.mxu0
        %v4277 = vadd.f32 0.0, %v4276
        %v4278 = vpop.f32.mrf.mxu0
        %v4279 = vadd.f32 0.0, %v4278
        %4280 = vmatmul.bf16.gmra.mxu0 %v4096
        %v4281 = vpop.f32.mrf.mxu0
        %v4282 = vadd.f32 0.0, %v4281
        %v4283 = vpop.f32.mrf.mxu0
        %v4284 = vadd.f32 0.0, %v4283
        %4285 = vmatmul.bf16.gmra.mxu0 %v4097
        %v4286 = vpop.f32.mrf.mxu0
        %v4287 = vadd.f32 0.0, %v4286
        %v4288 = vpop.f32.mrf.mxu0
        %v4289 = vadd.f32 0.0, %v4288
        %4290 = vmatmul.bf16.gmra.mxu0 %v4098
        %v4291 = vpop.f32.mrf.mxu0
        %v4292 = vadd.f32 0.0, %v4291
        %v4293 = vpop.f32.mrf.mxu0
        %v4294 = vadd.f32 0.0, %v4293
        %4295 = vmatmul.bf16.gmra.mxu0 %v4099
        %v4296 = vpop.f32.mrf.mxu0
        %v4297 = vadd.f32 0.0, %v4296
        %v4298 = vpop.f32.mrf.mxu0
        %v4299 = vadd.f32 0.0, %v4298
        %4300 = vmatmul.bf16.gmra.mxu0 %v4100
        %v4301 = vpop.f32.mrf.mxu0
        %v4302 = vadd.f32 0.0, %v4301
        %v4303 = vpop.f32.mrf.mxu0
        %v4304 = vadd.f32 0.0, %v4303
        %4305 = vmatmul.bf16.gmra.mxu0 %v4101
        %v4306 = vpop.f32.mrf.mxu0
        %v4307 = vadd.f32 0.0, %v4306
        %v4308 = vpop.f32.mrf.mxu0
        %v4309 = vadd.f32 0.0, %v4308
        %4310 = vmatmul.bf16.gmra.mxu0 %v4102
        %v4311 = vpop.f32.mrf.mxu0
        %v4312 = vadd.f32 0.0, %v4311
        %v4313 = vpop.f32.mrf.mxu0
        %v4314 = vadd.f32 0.0, %v4313
        %4315 = vmatmul.bf16.gmra.mxu0 %v4103
        %v4316 = vpop.f32.mrf.mxu0
        %v4317 = vadd.f32 0.0, %v4316
        %v4318 = vpop.f32.mrf.mxu0
        %v4319 = vadd.f32 0.0, %v4318
        %4320 = vmatmul.bf16.gmra.mxu0 %v4104
        %v4321 = vpop.f32.mrf.mxu0
        %v4322 = vadd.f32 0.0, %v4321
        %v4323 = vpop.f32.mrf.mxu0
        %v4324 = vadd.f32 0.0, %v4323
        %4325 = vmatmul.bf16.gmra.mxu0 %v4105
        %v4326 = vpop.f32.mrf.mxu0
        %v4327 = vadd.f32 0.0, %v4326
        %v4328 = vpop.f32.mrf.mxu0
        %v4329 = vadd.f32 0.0, %v4328
        %4330 = vmatmul.bf16.gmra.mxu0 %v4106
        %v4331 = vpop.f32.mrf.mxu0
        %v4332 = vadd.f32 0.0, %v4331
        %v4333 = vpop.f32.mrf.mxu0
        %v4334 = vadd.f32 0.0, %v4333
        %4335 = vmatmul.bf16.gmra.mxu0 %v4107
        %v4336 = vpop.f32.mrf.mxu0
        %v4337 = vadd.f32 0.0, %v4336
        %v4338 = vpop.f32.mrf.mxu0
        %v4339 = vadd.f32 0.0, %v4338
        %4340 = vdwg.mxu0
        %v4405 = vunpack.c.l.b16 %v3932
        %v4406 = vunpack.c.l.b16 %v3933
        %v4407 = vunpack.c.l.b16 %v3934
        %v4408 = vunpack.c.l.b16 %v3935
        %v4409 = vunpack.c.l.b16 %v3936
        %v4410 = vunpack.c.l.b16 %v3937
        %v4411 = vunpack.c.l.b16 %v3938
        %v4412 = vunpack.c.l.b16 %v3939
        %v4413 = vunpack.c.l.b16 %v3940
        %v4414 = vunpack.c.l.b16 %v3941
        %v4415 = vunpack.c.l.b16 %v3942
        %v4416 = vunpack.c.l.b16 %v3943
        %v4417 = vunpack.c.l.b16 %v3944
        %v4418 = vunpack.c.l.b16 %v3945
        %v4419 = vunpack.c.l.b16 %v3946
        %v4420 = vunpack.c.l.b16 %v3947
        %v4421 = vunpack.c.l.b16 %v3948
        %v4422 = vunpack.c.l.b16 %v3949
        %v4423 = vunpack.c.l.b16 %v3950
        %v4424 = vunpack.c.l.b16 %v3951
        %v4425 = vunpack.c.l.b16 %v3952
        %v4426 = vunpack.c.l.b16 %v3953
        %v4427 = vunpack.c.l.b16 %v3954
        %v4428 = vunpack.c.l.b16 %v3955
        %v4429 = vunpack.c.l.b16 %v3956
        %v4430 = vunpack.c.l.b16 %v3957
        %v4431 = vunpack.c.l.b16 %v3958
        %v4432 = vunpack.c.l.b16 %v3959
        %v4433 = vunpack.c.l.b16 %v3960
        %v4434 = vunpack.c.l.b16 %v3961
        %v4435 = vunpack.c.l.b16 %v3962
        %v4436 = vunpack.c.l.b16 %v3963
        %v4437 = vunpack.c.l.b16 %v3964
        %v4438 = vunpack.c.l.b16 %v3965
        %v4439 = vunpack.c.l.b16 %v3966
        %v4440 = vunpack.c.l.b16 %v3967
        %v4441 = vunpack.c.l.b16 %v3968
        %v4442 = vunpack.c.l.b16 %v3969
        %v4443 = vunpack.c.l.b16 %v3970
        %v4444 = vunpack.c.l.b16 %v3971
        %v4445 = vunpack.c.l.b16 %v3972
        %v4446 = vunpack.c.l.b16 %v3973
        %v4447 = vunpack.c.l.b16 %v3974
        %v4448 = vunpack.c.l.b16 %v3975
        %v4449 = vunpack.c.l.b16 %v3976
        %v4450 = vunpack.c.l.b16 %v3977
        %v4451 = vunpack.c.l.b16 %v3978
        %v4452 = vunpack.c.l.b16 %v3979
        %v4453 = vunpack.c.l.b16 %v3980
        %v4454 = vunpack.c.l.b16 %v3981
        %v4455 = vunpack.c.l.b16 %v3982
        %v4456 = vunpack.c.l.b16 %v3983
        %v4457 = vunpack.c.l.b16 %v3984
        %v4458 = vunpack.c.l.b16 %v3985
        %v4459 = vunpack.c.l.b16 %v3986
        %v4460 = vunpack.c.l.b16 %v3987
        %v4461 = vunpack.c.l.b16 %v3988
        %v4462 = vunpack.c.l.b16 %v3989
        %v4463 = vunpack.c.l.b16 %v3990
        %v4464 = vunpack.c.l.b16 %v3991
        %v4465 = vunpack.c.l.b16 %v3992
        %v4466 = vunpack.c.l.b16 %v3993
        %v4467 = vunpack.c.l.b16 %v3994
        %v4468 = vunpack.c.l.b16 %v3995
        %v4469 = vpack.c.b16 %v4406, %v4405
        %v4470 = vpack.c.b16 %v4408, %v4407
        %v4471 = vpack.c.b16 %v4410, %v4409
        %v4472 = vpack.c.b16 %v4412, %v4411
        %v4473 = vpack.c.b16 %v4414, %v4413
        %v4474 = vpack.c.b16 %v4416, %v4415
        %v4475 = vpack.c.b16 %v4418, %v4417
        %v4476 = vpack.c.b16 %v4420, %v4419
        %v4477 = vpack.c.b16 %v4422, %v4421
        %v4478 = vpack.c.b16 %v4424, %v4423
        %v4479 = vpack.c.b16 %v4426, %v4425
        %v4480 = vpack.c.b16 %v4428, %v4427
        %v4481 = vpack.c.b16 %v4430, %v4429
        %v4482 = vpack.c.b16 %v4432, %v4431
        %v4483 = vpack.c.b16 %v4434, %v4433
        %v4484 = vpack.c.b16 %v4436, %v4435
        %v4485 = vpack.c.b16 %v4438, %v4437
        %v4486 = vpack.c.b16 %v4440, %v4439
        %v4487 = vpack.c.b16 %v4442, %v4441
        %v4488 = vpack.c.b16 %v4444, %v4443
        %v4489 = vpack.c.b16 %v4446, %v4445
        %v4490 = vpack.c.b16 %v4448, %v4447
        %v4491 = vpack.c.b16 %v4450, %v4449
        %v4492 = vpack.c.b16 %v4452, %v4451
        %v4493 = vpack.c.b16 %v4454, %v4453
        %v4494 = vpack.c.b16 %v4456, %v4455
        %v4495 = vpack.c.b16 %v4458, %v4457
        %v4496 = vpack.c.b16 %v4460, %v4459
        %v4497 = vpack.c.b16 %v4462, %v4461
        %v4498 = vpack.c.b16 %v4464, %v4463
        %v4499 = vpack.c.b16 %v4466, %v4465
        %v4500 = vpack.c.b16 %v4468, %v4467
        %v4549 = vunpack.c.l.b16 %v3996
        %v4550 = vunpack.c.l.b16 %v3997
        %v4551 = vunpack.c.l.b16 %v3998
        %v4552 = vunpack.c.l.b16 %v3999
        %v4553 = vunpack.c.l.b16 %v4000
        %v4554 = vunpack.c.l.b16 %v4001
        %v4555 = vunpack.c.l.b16 %v4002
        %v4556 = vunpack.c.l.b16 %v4003
        %v4557 = vunpack.c.l.b16 %v4004
        %v4558 = vunpack.c.l.b16 %v4005
        %v4559 = vunpack.c.l.b16 %v4006
        %v4560 = vunpack.c.l.b16 %v4007
        %v4561 = vunpack.c.l.b16 %v4008
        %v4562 = vunpack.c.l.b16 %v4009
        %v4563 = vunpack.c.l.b16 %v4010
        %v4564 = vunpack.c.l.b16 %v4011
        %v4565 = vpack.c.b16 %v4550, %v4549
        %v4566 = vpack.c.b16 %v4552, %v4551
        %v4567 = vpack.c.b16 %v4554, %v4553
        %v4568 = vpack.c.b16 %v4556, %v4555
        %v4569 = vpack.c.b16 %v4558, %v4557
        %v4570 = vpack.c.b16 %v4560, %v4559
        %v4571 = vpack.c.b16 %v4562, %v4561
        %v4572 = vpack.c.b16 %v4564, %v4563
        %4581 = vmatpush.bf16.msra.mxu0 %v4572
        %4582 = vmatpush.bf16.msra.mxu0 %v4571
        %4583 = vmatpush.bf16.msra.mxu0 %v4570
        %4584 = vmatpush.bf16.msra.mxu0 %v4569
        %4585 = vmatpush.bf16.msra.mxu0 %v4568
        %4586 = vmatpush.bf16.msra.mxu0 %v4567
        %4587 = vmatpush.bf16.msra.mxu0 %v4566
        %4588 = vmatpush.bf16.msra.mxu0 %v4565
        %4589 = vmatmul.bf16.gmra.mxu0 %v4469
        %v4590 = vpop.f32.mrf.mxu0
        %v4591 = vadd.f32 %v4182, %v4590
        %v4592 = vpop.f32.mrf.mxu0
        %v4593 = vadd.f32 %v4184, %v4592
        %4594 = vmatmul.bf16.gmra.mxu0 %v4470
        %v4595 = vpop.f32.mrf.mxu0
        %v4596 = vadd.f32 %v4187, %v4595
        %v4597 = vpop.f32.mrf.mxu0
        %v4598 = vadd.f32 %v4189, %v4597
        %4599 = vmatmul.bf16.gmra.mxu0 %v4471
        %v4600 = vpop.f32.mrf.mxu0
        %v4601 = vadd.f32 %v4192, %v4600
        %v4602 = vpop.f32.mrf.mxu0
        %v4603 = vadd.f32 %v4194, %v4602
        %4604 = vmatmul.bf16.gmra.mxu0 %v4472
        %v4605 = vpop.f32.mrf.mxu0
        %v4606 = vadd.f32 %v4197, %v4605
        %v4607 = vpop.f32.mrf.mxu0
        %v4608 = vadd.f32 %v4199, %v4607
        %4609 = vmatmul.bf16.gmra.mxu0 %v4473
        %v4610 = vpop.f32.mrf.mxu0
        %v4611 = vadd.f32 %v4202, %v4610
        %v4612 = vpop.f32.mrf.mxu0
        %v4613 = vadd.f32 %v4204, %v4612
        %4614 = vmatmul.bf16.gmra.mxu0 %v4474
        %v4615 = vpop.f32.mrf.mxu0
        %v4616 = vadd.f32 %v4207, %v4615
        %v4617 = vpop.f32.mrf.mxu0
        %v4618 = vadd.f32 %v4209, %v4617
        %4619 = vmatmul.bf16.gmra.mxu0 %v4475
        %v4620 = vpop.f32.mrf.mxu0
        %v4621 = vadd.f32 %v4212, %v4620
        %v4622 = vpop.f32.mrf.mxu0
        %v4623 = vadd.f32 %v4214, %v4622
        %4624 = vmatmul.bf16.gmra.mxu0 %v4476
        %v4625 = vpop.f32.mrf.mxu0
        %v4626 = vadd.f32 %v4217, %v4625
        %v4627 = vpop.f32.mrf.mxu0
        %v4628 = vadd.f32 %v4219, %v4627
        %4629 = vmatmul.bf16.gmra.mxu0 %v4477
        %v4630 = vpop.f32.mrf.mxu0
        %v4631 = vadd.f32 %v4222, %v4630
        %v4632 = vpop.f32.mrf.mxu0
        %v4633 = vadd.f32 %v4224, %v4632
        %4634 = vmatmul.bf16.gmra.mxu0 %v4478
        %v4635 = vpop.f32.mrf.mxu0
        %v4636 = vadd.f32 %v4227, %v4635
        %v4637 = vpop.f32.mrf.mxu0
        %v4638 = vadd.f32 %v4229, %v4637
        %4639 = vmatmul.bf16.gmra.mxu0 %v4479
        %v4640 = vpop.f32.mrf.mxu0
        %v4641 = vadd.f32 %v4232, %v4640
        %v4642 = vpop.f32.mrf.mxu0
        %v4643 = vadd.f32 %v4234, %v4642
        %4644 = vmatmul.bf16.gmra.mxu0 %v4480
        %v4645 = vpop.f32.mrf.mxu0
        %v4646 = vadd.f32 %v4237, %v4645
        %v4647 = vpop.f32.mrf.mxu0
        %v4648 = vadd.f32 %v4239, %v4647
        %4649 = vmatmul.bf16.gmra.mxu0 %v4481
        %v4650 = vpop.f32.mrf.mxu0
        %v4651 = vadd.f32 %v4242, %v4650
        %v4652 = vpop.f32.mrf.mxu0
        %v4653 = vadd.f32 %v4244, %v4652
        %4654 = vmatmul.bf16.gmra.mxu0 %v4482
        %v4655 = vpop.f32.mrf.mxu0
        %v4656 = vadd.f32 %v4247, %v4655
        %v4657 = vpop.f32.mrf.mxu0
        %v4658 = vadd.f32 %v4249, %v4657
        %4659 = vmatmul.bf16.gmra.mxu0 %v4483
        %v4660 = vpop.f32.mrf.mxu0
        %v4661 = vadd.f32 %v4252, %v4660
        %v4662 = vpop.f32.mrf.mxu0
        %v4663 = vadd.f32 %v4254, %v4662
        %4664 = vmatmul.bf16.gmra.mxu0 %v4484
        %v4665 = vpop.f32.mrf.mxu0
        %v4666 = vadd.f32 %v4257, %v4665
        %v4667 = vpop.f32.mrf.mxu0
        %v4668 = vadd.f32 %v4259, %v4667
        %4669 = vmatmul.bf16.gmra.mxu0 %v4485
        %v4670 = vpop.f32.mrf.mxu0
        %v4671 = vadd.f32 %v4262, %v4670
        %v4672 = vpop.f32.mrf.mxu0
        %v4673 = vadd.f32 %v4264, %v4672
        %4674 = vmatmul.bf16.gmra.mxu0 %v4486
        %v4675 = vpop.f32.mrf.mxu0
        %v4676 = vadd.f32 %v4267, %v4675
        %v4677 = vpop.f32.mrf.mxu0
        %v4678 = vadd.f32 %v4269, %v4677
        %4679 = vmatmul.bf16.gmra.mxu0 %v4487
        %v4680 = vpop.f32.mrf.mxu0
        %v4681 = vadd.f32 %v4272, %v4680
        %v4682 = vpop.f32.mrf.mxu0
        %v4683 = vadd.f32 %v4274, %v4682
        %4684 = vmatmul.bf16.gmra.mxu0 %v4488
        %v4685 = vpop.f32.mrf.mxu0
        %v4686 = vadd.f32 %v4277, %v4685
        %v4687 = vpop.f32.mrf.mxu0
        %v4688 = vadd.f32 %v4279, %v4687
        %4689 = vmatmul.bf16.gmra.mxu0 %v4489
        %v4690 = vpop.f32.mrf.mxu0
        %v4691 = vadd.f32 %v4282, %v4690
        %v4692 = vpop.f32.mrf.mxu0
        %v4693 = vadd.f32 %v4284, %v4692
        %4694 = vmatmul.bf16.gmra.mxu0 %v4490
        %v4695 = vpop.f32.mrf.mxu0
        %v4696 = vadd.f32 %v4287, %v4695
        %v4697 = vpop.f32.mrf.mxu0
        %v4698 = vadd.f32 %v4289, %v4697
        %4699 = vmatmul.bf16.gmra.mxu0 %v4491
        %v4700 = vpop.f32.mrf.mxu0
        %v4701 = vadd.f32 %v4292, %v4700
        %v4702 = vpop.f32.mrf.mxu0
        %v4703 = vadd.f32 %v4294, %v4702
        %4704 = vmatmul.bf16.gmra.mxu0 %v4492
        %v4705 = vpop.f32.mrf.mxu0
        %v4706 = vadd.f32 %v4297, %v4705
        %v4707 = vpop.f32.mrf.mxu0
        %v4708 = vadd.f32 %v4299, %v4707
        %4709 = vmatmul.bf16.gmra.mxu0 %v4493
        %v4710 = vpop.f32.mrf.mxu0
        %v4711 = vadd.f32 %v4302, %v4710
        %v4712 = vpop.f32.mrf.mxu0
        %v4713 = vadd.f32 %v4304, %v4712
        %4714 = vmatmul.bf16.gmra.mxu0 %v4494
        %v4715 = vpop.f32.mrf.mxu0
        %v4716 = vadd.f32 %v4307, %v4715
        %v4717 = vpop.f32.mrf.mxu0
        %v4718 = vadd.f32 %v4309, %v4717
        %4719 = vmatmul.bf16.gmra.mxu0 %v4495
        %v4720 = vpop.f32.mrf.mxu0
        %v4721 = vadd.f32 %v4312, %v4720
        %v4722 = vpop.f32.mrf.mxu0
        %v4723 = vadd.f32 %v4314, %v4722
        %4724 = vmatmul.bf16.gmra.mxu0 %v4496
        %v4725 = vpop.f32.mrf.mxu0
        %v4726 = vadd.f32 %v4317, %v4725
        %v4727 = vpop.f32.mrf.mxu0
        %v4728 = vadd.f32 %v4319, %v4727
        %4729 = vmatmul.bf16.gmra.mxu0 %v4497
        %v4730 = vpop.f32.mrf.mxu0
        %v4731 = vadd.f32 %v4322, %v4730
        %v4732 = vpop.f32.mrf.mxu0
        %v4733 = vadd.f32 %v4324, %v4732
        %4734 = vmatmul.bf16.gmra.mxu0 %v4498
        %v4735 = vpop.f32.mrf.mxu0
        %v4736 = vadd.f32 %v4327, %v4735
        %v4737 = vpop.f32.mrf.mxu0
        %v4738 = vadd.f32 %v4329, %v4737
        %4739 = vmatmul.bf16.gmra.mxu0 %v4499
        %v4740 = vpop.f32.mrf.mxu0
        %v4741 = vadd.f32 %v4332, %v4740
        %v4742 = vpop.f32.mrf.mxu0
        %v4743 = vadd.f32 %v4334, %v4742
        %4744 = vmatmul.bf16.gmra.mxu0 %v4500
        %v4745 = vpop.f32.mrf.mxu0
        %v4746 = vadd.f32 %v4337, %v4745
        %v4747 = vpop.f32.mrf.mxu0
        %v4748 = vadd.f32 %v4339, %v4747
        %4749 = vdwg.mxu0
        %v4750 = vld [vmem:[%s4] sm:$0x1]
        %v4752 = vperm.slane %v4750, 0
        %v4754 = vadd.f32 %v4591, %v4752
        %v4755 = vadd.f32 %v4593, %v4752
        %v4756 = vadd.f32 %v4596, %v4752
        %v4757 = vadd.f32 %v4598, %v4752
        %v4758 = vadd.f32 %v4601, %v4752
        %v4759 = vadd.f32 %v4603, %v4752
        %v4760 = vadd.f32 %v4606, %v4752
        %v4761 = vadd.f32 %v4608, %v4752
        %v4762 = vadd.f32 %v4611, %v4752
        %v4763 = vadd.f32 %v4613, %v4752
        %v4764 = vadd.f32 %v4616, %v4752
        %v4765 = vadd.f32 %v4618, %v4752
        %v4766 = vadd.f32 %v4621, %v4752
        %v4767 = vadd.f32 %v4623, %v4752
        %v4768 = vadd.f32 %v4626, %v4752
        %v4769 = vadd.f32 %v4628, %v4752
        %v4770 = vadd.f32 %v4631, %v4752
        %v4771 = vadd.f32 %v4633, %v4752
        %v4772 = vadd.f32 %v4636, %v4752
        %v4773 = vadd.f32 %v4638, %v4752
        %v4774 = vadd.f32 %v4641, %v4752
        %v4775 = vadd.f32 %v4643, %v4752
        %v4776 = vadd.f32 %v4646, %v4752
        %v4777 = vadd.f32 %v4648, %v4752
        %v4778 = vadd.f32 %v4651, %v4752
        %v4779 = vadd.f32 %v4653, %v4752
        %v4780 = vadd.f32 %v4656, %v4752
        %v4781 = vadd.f32 %v4658, %v4752
        %v4782 = vadd.f32 %v4661, %v4752
        %v4783 = vadd.f32 %v4663, %v4752
        %v4784 = vadd.f32 %v4666, %v4752
        %v4785 = vadd.f32 %v4668, %v4752
        %v4786 = vadd.f32 %v4671, %v4752
        %v4787 = vadd.f32 %v4673, %v4752
        %v4788 = vadd.f32 %v4676, %v4752
        %v4789 = vadd.f32 %v4678, %v4752
        %v4790 = vadd.f32 %v4681, %v4752
        %v4791 = vadd.f32 %v4683, %v4752
        %v4792 = vadd.f32 %v4686, %v4752
        %v4793 = vadd.f32 %v4688, %v4752
        %v4794 = vadd.f32 %v4691, %v4752
        %v4795 = vadd.f32 %v4693, %v4752
        %v4796 = vadd.f32 %v4696, %v4752
        %v4797 = vadd.f32 %v4698, %v4752
        %v4798 = vadd.f32 %v4701, %v4752
        %v4799 = vadd.f32 %v4703, %v4752
        %v4800 = vadd.f32 %v4706, %v4752
        %v4801 = vadd.f32 %v4708, %v4752
        %v4802 = vadd.f32 %v4711, %v4752
        %v4803 = vadd.f32 %v4713, %v4752
        %v4804 = vadd.f32 %v4716, %v4752
        %v4805 = vadd.f32 %v4718, %v4752
        %v4806 = vadd.f32 %v4721, %v4752
        %v4807 = vadd.f32 %v4723, %v4752
        %v4808 = vadd.f32 %v4726, %v4752
        %v4809 = vadd.f32 %v4728, %v4752
        %v4810 = vadd.f32 %v4731, %v4752
        %v4811 = vadd.f32 %v4733, %v4752
        %v4812 = vadd.f32 %v4736, %v4752
        %v4813 = vadd.f32 %v4738, %v4752
        %v4814 = vadd.f32 %v4741, %v4752
        %v4815 = vadd.f32 %v4743, %v4752
        %v4816 = vadd.f32 %v4746, %v4752
        %v4817 = vadd.f32 %v4748, %v4752
        %v4818 = vmax.f32 %v4754, 0.0
        %v4819 = vmax.f32 %v4755, 0.0
        %v4820 = vmax.f32 %v4756, 0.0
        %v4821 = vmax.f32 %v4757, 0.0
        %v4822 = vmax.f32 %v4758, 0.0
        %v4823 = vmax.f32 %v4759, 0.0
        %v4824 = vmax.f32 %v4760, 0.0
        %v4825 = vmax.f32 %v4761, 0.0
        %v4826 = vmax.f32 %v4762, 0.0
        %v4827 = vmax.f32 %v4763, 0.0
        %v4828 = vmax.f32 %v4764, 0.0
        %v4829 = vmax.f32 %v4765, 0.0
        %v4830 = vmax.f32 %v4766, 0.0
        %v4831 = vmax.f32 %v4767, 0.0
        %v4832 = vmax.f32 %v4768, 0.0
        %v4833 = vmax.f32 %v4769, 0.0
        %v4834 = vmax.f32 %v4770, 0.0
        %v4835 = vmax.f32 %v4771, 0.0
        %v4836 = vmax.f32 %v4772, 0.0
        %v4837 = vmax.f32 %v4773, 0.0
        %v4838 = vmax.f32 %v4774, 0.0
        %v4839 = vmax.f32 %v4775, 0.0
        %v4840 = vmax.f32 %v4776, 0.0
        %v4841 = vmax.f32 %v4777, 0.0
        %v4842 = vmax.f32 %v4778, 0.0
        %v4843 = vmax.f32 %v4779, 0.0
        %v4844 = vmax.f32 %v4780, 0.0
        %v4845 = vmax.f32 %v4781, 0.0
        %v4846 = vmax.f32 %v4782, 0.0
        %v4847 = vmax.f32 %v4783, 0.0
        %v4848 = vmax.f32 %v4784, 0.0
        %v4849 = vmax.f32 %v4785, 0.0
        %v4850 = vmax.f32 %v4786, 0.0
        %v4851 = vmax.f32 %v4787, 0.0
        %v4852 = vmax.f32 %v4788, 0.0
        %v4853 = vmax.f32 %v4789, 0.0
        %v4854 = vmax.f32 %v4790, 0.0
        %v4855 = vmax.f32 %v4791, 0.0
        %v4856 = vmax.f32 %v4792, 0.0
        %v4857 = vmax.f32 %v4793, 0.0
        %v4858 = vmax.f32 %v4794, 0.0
        %v4859 = vmax.f32 %v4795, 0.0
        %v4860 = vmax.f32 %v4796, 0.0
        %v4861 = vmax.f32 %v4797, 0.0
        %v4862 = vmax.f32 %v4798, 0.0
        %v4863 = vmax.f32 %v4799, 0.0
        %v4864 = vmax.f32 %v4800, 0.0
        %v4865 = vmax.f32 %v4801, 0.0
        %v4866 = vmax.f32 %v4802, 0.0
        %v4867 = vmax.f32 %v4803, 0.0
        %v4868 = vmax.f32 %v4804, 0.0
        %v4869 = vmax.f32 %v4805, 0.0
        %v4870 = vmax.f32 %v4806, 0.0
        %v4871 = vmax.f32 %v4807, 0.0
        %v4872 = vmax.f32 %v4808, 0.0
        %v4873 = vmax.f32 %v4809, 0.0
        %v4874 = vmax.f32 %v4810, 0.0
        %v4875 = vmax.f32 %v4811, 0.0
        %v4876 = vmax.f32 %v4812, 0.0
        %v4877 = vmax.f32 %v4813, 0.0
        %v4878 = vmax.f32 %v4814, 0.0
        %v4879 = vmax.f32 %v4815, 0.0
        %v4880 = vmax.f32 %v4816, 0.0
        %v4881 = vmax.f32 %v4817, 0.0
        %v4882 = vpack.c.bf16 %v4818, %v4818
        %v4883 = vpack.c.bf16 %v4819, %v4819
        %v4884 = vpack.c.bf16 %v4820, %v4820
        %v4885 = vpack.c.bf16 %v4821, %v4821
        %v4886 = vpack.c.bf16 %v4822, %v4822
        %v4887 = vpack.c.bf16 %v4823, %v4823
        %v4888 = vpack.c.bf16 %v4824, %v4824
        %v4889 = vpack.c.bf16 %v4825, %v4825
        %v4890 = vpack.c.bf16 %v4826, %v4826
        %v4891 = vpack.c.bf16 %v4827, %v4827
        %v4892 = vpack.c.bf16 %v4828, %v4828
        %v4893 = vpack.c.bf16 %v4829, %v4829
        %v4894 = vpack.c.bf16 %v4830, %v4830
        %v4895 = vpack.c.bf16 %v4831, %v4831
        %v4896 = vpack.c.bf16 %v4832, %v4832
        %v4897 = vpack.c.bf16 %v4833, %v4833
        %v4898 = vpack.c.bf16 %v4834, %v4834
        %v4899 = vpack.c.bf16 %v4835, %v4835
        %v4900 = vpack.c.bf16 %v4836, %v4836
        %v4901 = vpack.c.bf16 %v4837, %v4837
        %v4902 = vpack.c.bf16 %v4838, %v4838
        %v4903 = vpack.c.bf16 %v4839, %v4839
        %v4904 = vpack.c.bf16 %v4840, %v4840
        %v4905 = vpack.c.bf16 %v4841, %v4841
        %v4906 = vpack.c.bf16 %v4842, %v4842
        %v4907 = vpack.c.bf16 %v4843, %v4843
        %v4908 = vpack.c.bf16 %v4844, %v4844
        %v4909 = vpack.c.bf16 %v4845, %v4845
        %v4910 = vpack.c.bf16 %v4846, %v4846
        %v4911 = vpack.c.bf16 %v4847, %v4847
        %v4912 = vpack.c.bf16 %v4848, %v4848
        %v4913 = vpack.c.bf16 %v4849, %v4849
        %v4914 = vpack.c.bf16 %v4850, %v4850
        %v4915 = vpack.c.bf16 %v4851, %v4851
        %v4916 = vpack.c.bf16 %v4852, %v4852
        %v4917 = vpack.c.bf16 %v4853, %v4853
        %v4918 = vpack.c.bf16 %v4854, %v4854
        %v4919 = vpack.c.bf16 %v4855, %v4855
        %v4920 = vpack.c.bf16 %v4856, %v4856
        %v4921 = vpack.c.bf16 %v4857, %v4857
        %v4922 = vpack.c.bf16 %v4858, %v4858
        %v4923 = vpack.c.bf16 %v4859, %v4859
        %v4924 = vpack.c.bf16 %v4860, %v4860
        %v4925 = vpack.c.bf16 %v4861, %v4861
        %v4926 = vpack.c.bf16 %v4862, %v4862
        %v4927 = vpack.c.bf16 %v4863, %v4863
        %v4928 = vpack.c.bf16 %v4864, %v4864
        %v4929 = vpack.c.bf16 %v4865, %v4865
        %v4930 = vpack.c.bf16 %v4866, %v4866
        %v4931 = vpack.c.bf16 %v4867, %v4867
        %v4932 = vpack.c.bf16 %v4868, %v4868
        %v4933 = vpack.c.bf16 %v4869, %v4869
        %v4934 = vpack.c.bf16 %v4870, %v4870
        %v4935 = vpack.c.bf16 %v4871, %v4871
        %v4936 = vpack.c.bf16 %v4872, %v4872
        %v4937 = vpack.c.bf16 %v4873, %v4873
        %v4938 = vpack.c.bf16 %v4874, %v4874
        %v4939 = vpack.c.bf16 %v4875, %v4875
        %v4940 = vpack.c.bf16 %v4876, %v4876
        %v4941 = vpack.c.bf16 %v4877, %v4877
        %v4942 = vpack.c.bf16 %v4878, %v4878
        %v4943 = vpack.c.bf16 %v4879, %v4879
        %v4944 = vpack.c.bf16 %v4880, %v4880
        %v4945 = vpack.c.bf16 %v4881, %v4881
        %4946 = vst [vmem:[%s257] sm:$0xf] %v4882
        %4947 = vst [vmem:[%s257 + $0x4] sm:$0xf] %v4883
        %4948 = vst [vmem:[%s257 + $0x8] sm:$0xf] %v4884
        %4949 = vst [vmem:[%s257 + $0xc] sm:$0xf] %v4885
        %4950 = vst [vmem:[%s257 + $0x10] sm:$0xf] %v4886
        %4951 = vst [vmem:[%s257 + $0x14] sm:$0xf] %v4887
        %4952 = vst [vmem:[%s257 + $0x18] sm:$0xf] %v4888
        %4953 = vst [vmem:[%s257 + $0x1c] sm:$0xf] %v4889
        %4954 = vst [vmem:[%s257 + $0x20] sm:$0xf] %v4890
        %4955 = vst [vmem:[%s257 + $0x24] sm:$0xf] %v4891
        %4956 = vst [vmem:[%s257 + $0x28] sm:$0xf] %v4892
        %4957 = vst [vmem:[%s257 + $0x2c] sm:$0xf] %v4893
        %4958 = vst [vmem:[%s257 + $0x30] sm:$0xf] %v4894
        %4959 = vst [vmem:[%s257 + $0x34] sm:$0xf] %v4895
        %4960 = vst [vmem:[%s257 + $0x38] sm:$0xf] %v4896
        %4961 = vst [vmem:[%s257 + $0x3c] sm:$0xf] %v4897
        %4962 = vst [vmem:[%s257 + $0x40] sm:$0xf] %v4898
        %4963 = vst [vmem:[%s257 + $0x44] sm:$0xf] %v4899
        %4964 = vst [vmem:[%s257 + $0x48] sm:$0xf] %v4900
        %4965 = vst [vmem:[%s257 + $0x4c] sm:$0xf] %v4901
        %4966 = vst [vmem:[%s257 + $0x50] sm:$0xf] %v4902
        %4967 = vst [vmem:[%s257 + $0x54] sm:$0xf] %v4903
        %4968 = vst [vmem:[%s257 + $0x58] sm:$0xf] %v4904
        %4969 = vst [vmem:[%s257 + $0x5c] sm:$0xf] %v4905
        %4970 = vst [vmem:[%s257 + $0x60] sm:$0xf] %v4906
        %4971 = vst [vmem:[%s257 + $0x64] sm:$0xf] %v4907
        %4972 = vst [vmem:[%s257 + $0x68] sm:$0xf] %v4908
        %4973 = vst [vmem:[%s257 + $0x6c] sm:$0xf] %v4909
        %4974 = vst [vmem:[%s257 + $0x70] sm:$0xf] %v4910
        %4975 = vst [vmem:[%s257 + $0x74] sm:$0xf] %v4911
        %4976 = vst [vmem:[%s257 + $0x78] sm:$0xf] %v4912
        %4977 = vst [vmem:[%s257 + $0x7c] sm:$0xf] %v4913
        %4978 = vst [vmem:[%s257 + $0x80] sm:$0xf] %v4914
        %4979 = vst [vmem:[%s257 + $0x84] sm:$0xf] %v4915
        %4980 = vst [vmem:[%s257 + $0x88] sm:$0xf] %v4916
        %4981 = vst [vmem:[%s257 + $0x8c] sm:$0xf] %v4917
        %4982 = vst [vmem:[%s257 + $0x90] sm:$0xf] %v4918
        %4983 = vst [vmem:[%s257 + $0x94] sm:$0xf] %v4919
        %4984 = vst [vmem:[%s257 + $0x98] sm:$0xf] %v4920
        %4985 = vst [vmem:[%s257 + $0x9c] sm:$0xf] %v4921
        %4986 = vst [vmem:[%s257 + $0xa0] sm:$0xf] %v4922
        %4987 = vst [vmem:[%s257 + $0xa4] sm:$0xf] %v4923
        %4988 = vst [vmem:[%s257 + $0xa8] sm:$0xf] %v4924
        %4989 = vst [vmem:[%s257 + $0xac] sm:$0xf] %v4925
        %4990 = vst [vmem:[%s257 + $0xb0] sm:$0xf] %v4926
        %4991 = vst [vmem:[%s257 + $0xb4] sm:$0xf] %v4927
        %4992 = vst [vmem:[%s257 + $0xb8] sm:$0xf] %v4928
        %4993 = vst [vmem:[%s257 + $0xbc] sm:$0xf] %v4929
        %4994 = vst [vmem:[%s257 + $0xc0] sm:$0xf] %v4930
        %4995 = vst [vmem:[%s257 + $0xc4] sm:$0xf] %v4931
        %4996 = vst [vmem:[%s257 + $0xc8] sm:$0xf] %v4932
        %4997 = vst [vmem:[%s257 + $0xcc] sm:$0xf] %v4933
        %4998 = vst [vmem:[%s257 + $0xd0] sm:$0xf] %v4934
        %4999 = vst [vmem:[%s257 + $0xd4] sm:$0xf] %v4935
        %5000 = vst [vmem:[%s257 + $0xd8] sm:$0xf] %v4936
        %5001 = vst [vmem:[%s257 + $0xdc] sm:$0xf] %v4937
        %5002 = vst [vmem:[%s257 + $0xe0] sm:$0xf] %v4938
        %5003 = vst [vmem:[%s257 + $0xe4] sm:$0xf] %v4939
        %5004 = vst [vmem:[%s257 + $0xe8] sm:$0xf] %v4940
        %5005 = vst [vmem:[%s257 + $0xec] sm:$0xf] %v4941
        %5006 = vst [vmem:[%s257 + $0xf0] sm:$0xf] %v4942
        %5007 = vst [vmem:[%s257 + $0xf4] sm:$0xf] %v4943
        %5008 = vst [vmem:[%s257 + $0xf8] sm:$0xf] %v4944
        %5009 = vst [vmem:[%s257 + $0xfc] sm:$0xf] %v4945
      $region48: #{sageprop_forward.3} parent=39 // pred_fallthru
        _
      %s5010 = smul.u32 64, %s20
      %p5011 = scmp.lt.s32.totalorder %s5010, 127
      %s5012 = scalar_select %p5011, %s5010, 127
      %s5013 = smul.addr %s5012, 4
      %s5014 = scalar_lea.vmem %s5, %s5013
      // Predicated region
      $region49: #{sageprop_forward.3} parent=39 // pred_check
        %p5015 = pneg %p158
      $region50: #{sageprop_forward.3} parent=39 // pred_check_branch
        %5017 = sbr.rel (%p5015) target = $region52
      $region51: #{sageprop_forward.3} parent=39 // pred_region
        %s5018 = smul.u32 64, %s20
      $region52: #{sageprop_forward.3} parent=39 // pred_fallthru
        _
    $region40: #{sageprop_forward.3} parent=5 // pred_fallthru
      _
    %p5019 = scmp.le.s32.totalorder 2, %s11
    // Predicated region
    $region53: #{sageprop_forward.3} parent=5 // pred_check
      %p5020 = pneg %p5019
    $region54: #{sageprop_forward.3} parent=5 // pred_check_branch
      %5022 = sbr.rel (%p5020) target = $region56
    $region55: #{sageprop_forward.3} parent=5 // pred_region
      %s5023 = ssub.s32 %s11, 2
      // Predicated region
      $region57: #{sageprop_forward.3} parent=55 // pred_check
        %p5024 = pneg %p164
      $region58: #{sageprop_forward.3} parent=55 // pred_check_branch
        %5026 = sbr.rel (%p5024) target = $region60
      $region59: #{sageprop_forward.3} parent=55 // pred_region
        %s5027 = smul.u32 64, %s22
        %p5028 = scmp.lt.s32.totalorder %s5027, 127
        %s5029 = scalar_select %p5028, %s5027, 127
        %s5030 = smul.addr %s5029, 4
        %s5031 = scalar_lea.vmem %s5, %s5030
      $region60: #{sageprop_forward.3} parent=55 // pred_fallthru
        _
    $region56: #{sageprop_forward.3} parent=5 // pred_fallthru
      _
  $region6: #{sageprop_forward.3} parent=0 // loop_footer
    %s15 = sadd.s32 1, %s11
  $region7: #{sageprop_forward.3} parent=0 // loop_footer_branch
    %10 = sbr.rel target = $region3
  $region8: #{sageprop_forward.3} parent=0 // loop_exit
    _

</llo_original>
